<compile_context>
chip_gen: v5e
topology: v5e:2x2
jax: 0.10.0
libtpu: 0.0.40
codegen_flags: <defaults>
</compile_context>

<pallas_src>
import functools

import jax
import jax.numpy as jnp
import numpy as np
from jax.experimental import pallas as pl
from jax.experimental.pallas import tpu as pltpu

EMBEDDING_DIM = 50
RNN_HIDDEN_DIM = 50
RNN_LAYERS = 1   # single layer, matching the module
LANE_PAD = 128   # each gate padded to a full 128-lane group


def _bilstm_kernel(x_ref, wih_ref, whh_ref, b_ref,      # inputs
                   of_ref, ob_ref,                       # outputs
                   gx_ref, h_ref, c_ref,                 # VMEM scratch
                   *, seq_len, batch, hidden, hp):
    T, B, H, HP = seq_len, batch, hidden, hp
    G = 4 * HP  # padded gate width per direction

    # ---- Phase 1: input projection for every timestep & both directions ----
    # One batched MXU call: (T*B, E) @ (E, 2G) + bias.
    gx = (jnp.dot(x_ref[...], wih_ref[...], preferred_element_type=jnp.float32)
          + b_ref[...])
    # Scatter rows into a (T, B, 2G) scratch so the loop indexes the leading
    # (untiled) time axis only. Static unroll, static slices.
    for t in range(T):
        gx_ref[t] = gx[t * B:(t + 1) * B, :]

    # ---- Init recurrent state: [h_fwd | h_bwd], lane-padded to HP each ----
    h_ref[...] = jnp.zeros_like(h_ref)
    c_ref[...] = jnp.zeros_like(c_ref)

    # ---- Phase 2: the serial recurrence (only h @ W_hh on the MXU) ----
    def step(s, carry):
        # Single fused recurrent matmul for BOTH directions:
        # (B, 2*HP) @ (2*HP, 2G) block-diagonal W_hh.
        gates_h = jnp.dot(h_ref[...], whh_ref[...],
                          preferred_element_type=jnp.float32)   # (B, 2G)
        gxf = gx_ref[s]           # forward cell consumes x[s]
        gxb = gx_ref[T - 1 - s]   # backward cell consumes x[T-1-s]
        c = c_ref[...]            # (B, 2*HP)

        def one_dir(gx_t, col0, d):
            # Pre-activations for this direction, all slices 128-lane aligned.
            g = gates_h[:, col0:col0 + G] + gx_t[:, col0:col0 + G]
            i_g = jax.nn.sigmoid(g[:, 0 * HP:1 * HP])
            f_g = jax.nn.sigmoid(g[:, 1 * HP:2 * HP])
            g_g = jnp.tanh(g[:, 2 * HP:3 * HP])
            o_g = jax.nn.sigmoid(g[:, 3 * HP:4 * HP])
            c_new = f_g * c[:, d * HP:(d + 1) * HP] + i_g * g_g
            h_new = o_g * jnp.tanh(c_new)
            # Padded lanes stay exactly 0: weights/bias there are 0, so
            # c_pad -> 0.5*c_pad (starts at 0) and h_pad -> 0.5*tanh(0) = 0.
            return h_new, c_new

        hf, cf = one_dir(gxf, 0, 0)
        hb, cb = one_dir(gxb, G, 1)

        h_ref[:, 0:HP] = hf
        h_ref[:, HP:2 * HP] = hb
        c_ref[:, 0:HP] = cf
        c_ref[:, HP:2 * HP] = cb

        # Forward hidden goes to time s; backward hidden corresponds to
        # original time T-1-s (i.e. bwd_hss.flip(0)) — no post-hoc flip.
        of_ref[s] = hf[:, :H]
        ob_ref[T - 1 - s] = hb[:, :H]
        return carry

    jax.lax.fori_loop(0, T, step, 0, unroll=True)


def pack_lstm_params(params, hidden=RNN_HIDDEN_DIM, hp=LANE_PAD):
    """Pack (wih, whh, b) of both directions into lane-aligned fused operands.

    Column layout (2G = 8*hp lanes): [fwd i,f,g,o | bwd i,f,g,o], each gate in
    its own 128-lane group (real weights in the first H columns, rest zero).
    whh is block-diagonal over the [h_fwd | h_bwd] rows (2*hp rows).
    """
    (wih_f, whh_f, b_f), (wih_b, whh_b, b_b) = params
    E = wih_f.shape[0]
    H = hidden
    G = 4 * hp
    wih_cat = jnp.zeros((E, 2 * G), jnp.float32)
    whh_blk = jnp.zeros((2 * hp, 2 * G), jnp.float32)
    b_cat = jnp.zeros((1, 2 * G), jnp.float32)
    for k in range(4):
        fc = k * hp            # forward gate-k column offset
        bc = G + k * hp        # backward gate-k column offset
        wih_cat = wih_cat.at[:, fc:fc + H].set(wih_f[:, k * H:(k + 1) * H])
        wih_cat = wih_cat.at[:, bc:bc + H].set(wih_b[:, k * H:(k + 1) * H])
        whh_blk = whh_blk.at[:H, fc:fc + H].set(whh_f[:, k * H:(k + 1) * H])
        whh_blk = whh_blk.at[hp:hp + H, bc:bc + H].set(whh_b[:, k * H:(k + 1) * H])
        b_cat = b_cat.at[:, fc:fc + H].set(b_f[:, k * H:(k + 1) * H])
        b_cat = b_cat.at[:, bc:bc + H].set(b_b[:, k * H:(k + 1) * H])
    return wih_cat, whh_blk, b_cat


@jax.jit
def bidirectional_lstm(sentence, packed):
    """sentence: (T, B, E) float32. packed = pack_lstm_params(params).

    Returns (T, B, 2*H) float32: [forward hidden | backward hidden] per token.
    """
    T, B, E = sentence.shape
    H = RNN_HIDDEN_DIM
    HP = LANE_PAD
    G = 4 * HP
    wih_cat, whh_blk, b_cat = packed

    kernel = functools.partial(_bilstm_kernel,
                               seq_len=T, batch=B, hidden=H, hp=HP)

    x2d = sentence.reshape(T * B, E)   # free row-major reshape in the wrapper

    out_f, out_b = pl.pallas_call(
        kernel,
        out_shape=(jax.ShapeDtypeStruct((T, B, H), jnp.float32),
                   jax.ShapeDtypeStruct((T, B, H), jnp.float32)),
        grid=(1,),
        in_specs=[
            pl.BlockSpec((T * B, E), lambda i: (0, 0)),       # x (flattened)
            pl.BlockSpec((E, 2 * G), lambda i: (0, 0)),       # W_ih (both dirs)
            pl.BlockSpec((2 * HP, 2 * G), lambda i: (0, 0)),  # W_hh block-diag
            pl.BlockSpec((1, 2 * G), lambda i: (0, 0)),       # bias (both dirs)
        ],
        out_specs=(
            pl.BlockSpec((T, B, H), lambda i: (0, 0, 0)),     # forward hiddens
            pl.BlockSpec((T, B, H), lambda i: (0, 0, 0)),     # backward (flipped)
        ),
        scratch_shapes=[
            pltpu.VMEM((T, B, 2 * G), jnp.float32),   # precomputed x-projections
            pltpu.VMEM((B, 2 * HP), jnp.float32),     # h = [h_fwd | h_bwd]
            pltpu.VMEM((B, 2 * HP), jnp.float32),     # c = [c_fwd | c_bwd]
        ],
        compiler_params=pltpu.CompilerParams(
            dimension_semantics=("arbitrary",)),
    )(x2d, wih_cat, whh_blk, b_cat)

    # Final feature concat kept in the wrapper (tiny; avoids unaligned
    # 50-lane-offset stores inside the kernel).
    return jnp.concatenate([out_f, out_b], axis=2)


def init_lstm_params(key, input_dim, hidden_dim):
    """PyTorch-style init U(-1/sqrt(H), 1/sqrt(H)); weights pre-transposed:
    wih: (E, 4H), whh: (H, 4H), b: (1, 4H) = b_ih + b_hh (gate order i,f,g,o)."""
    k1, k2, k3, k4 = jax.random.split(key, 4)
    bound = 1.0 / np.sqrt(hidden_dim)
    wih = jax.random.uniform(k1, (input_dim, 4 * hidden_dim),
                             jnp.float32, -bound, bound)
    whh = jax.random.uniform(k2, (hidden_dim, 4 * hidden_dim),
                             jnp.float32, -bound, bound)
    b_ih = jax.random.uniform(k3, (4 * hidden_dim,), jnp.float32, -bound, bound)
    b_hh = jax.random.uniform(k4, (4 * hidden_dim,), jnp.float32, -bound, bound)
    b = (b_ih + b_hh).reshape(1, 4 * hidden_dim)
    return wih, whh, b


def _lstm_ref(x, wih, whh, b):
    """Pure-JAX reference single-direction LSTM (for correctness check)."""
    H = RNN_HIDDEN_DIM

    def step(carry, x_t):
        h, c = carry
        gates = x_t @ wih + h @ whh + b
        i = jax.nn.sigmoid(gates[:, 0 * H:1 * H])
        f = jax.nn.sigmoid(gates[:, 1 * H:2 * H])
        g = jnp.tanh(gates[:, 2 * H:3 * H])
        o = jax.nn.sigmoid(gates[:, 3 * H:4 * H])
        c = f * c + i * g
        h = o * jnp.tanh(c)
        return (h, c), h

    B = x.shape[1]
    init = (jnp.zeros((B, H), jnp.float32), jnp.zeros((B, H), jnp.float32))
    _, hs = jax.lax.scan(step, init, x)
    return hs


def bidirectional_lstm_ref(x, params):
    (wih_f, whh_f, b_f), (wih_b, whh_b, b_b) = params
    fwd = _lstm_ref(x, wih_f, whh_f, b_f)
    bwd = _lstm_ref(x[::-1], wih_b, whh_b, b_b)
    return jnp.concatenate([fwd, bwd[::-1]], axis=2)


if __name__ == "__main__":
    T, B, E = 8, 2, EMBEDDING_DIM   # (seq_len, batch, embedding_dim)

    key = jax.random.PRNGKey(0)
    k_x, k_f, k_b = jax.random.split(key, 3)

    sentence = jax.random.normal(k_x, (T, B, E), jnp.float32)
    params = (init_lstm_params(k_f, EMBEDDING_DIM, RNN_HIDDEN_DIM),
              init_lstm_params(k_b, EMBEDDING_DIM, RNN_HIDDEN_DIM))
    packed = pack_lstm_params(params)

    out = jax.block_until_ready(bidirectional_lstm(sentence, packed))

    ref = jax.block_until_ready(bidirectional_lstm_ref(sentence, params))
    assert out.shape == (T, B, 2 * RNN_HIDDEN_DIM), out.shape
    np.testing.assert_allclose(np.asarray(out), np.asarray(ref),
                               rtol=1e-5, atol=1e-5)

    print("KERNEL_OK")
</pallas_src>

<mosaic_0001>
module attributes {stable_mosaic.version = 11 : i64} {
  func.func @_bilstm_kernel(%arg0: i32, %arg1: memref<16x50xf32, #tpu.memory_space<vmem>>, %arg2: memref<50x1024xf32, #tpu.memory_space<vmem>>, %arg3: memref<256x1024xf32, #tpu.memory_space<vmem>>, %arg4: memref<1x1024xf32, #tpu.memory_space<vmem>>, %arg5: memref<8x2x50xf32, #tpu.memory_space<vmem>>, %arg6: memref<8x2x50xf32, #tpu.memory_space<vmem>>, %arg7: memref<8x2x1024xf32, #tpu.memory_space<vmem>>, %arg8: memref<2x256xf32, #tpu.memory_space<vmem>>, %arg9: memref<2x256xf32, #tpu.memory_space<vmem>>) attributes {dimension_semantics = [#tpu.dimension_semantics<arbitrary>], iteration_bounds = array<i64: 1>, scalar_prefetch = 0 : i64, scratch_operands = 3 : i64, tpu.core_type = #tpu.core_type<tc>, window_params = [{pipeline_mode = #tpu.pipeline_mode<synchronous>, transform_indices = @transform_0, window_bounds = array<i64: 16, 50>}, {pipeline_mode = #tpu.pipeline_mode<synchronous>, transform_indices = @transform_1, window_bounds = array<i64: 50, 1024>}, {pipeline_mode = #tpu.pipeline_mode<synchronous>, transform_indices = @transform_2, window_bounds = array<i64: 256, 1024>}, {pipeline_mode = #tpu.pipeline_mode<synchronous>, transform_indices = @transform_3, window_bounds = array<i64: 1, 1024>}, {pipeline_mode = #tpu.pipeline_mode<synchronous>, transform_indices = @transform_4, window_bounds = array<i64: 8, 2, 50>}, {pipeline_mode = #tpu.pipeline_mode<synchronous>, transform_indices = @transform_5, window_bounds = array<i64: 8, 2, 50>}]} {
    %c0 = arith.constant 0 : index
    %c0_0 = arith.constant 0 : index
    %0 = vector.load %arg1[%c0, %c0_0] : memref<16x50xf32, #tpu.memory_space<vmem>>, vector<16x50xf32>
    %c0_1 = arith.constant 0 : index
    %c0_2 = arith.constant 0 : index
    %1 = vector.load %arg2[%c0_1, %c0_2] : memref<50x1024xf32, #tpu.memory_space<vmem>>, vector<50x1024xf32>
    %cst = arith.constant dense<0.000000e+00> : vector<16x1024xf32>
    %2 = tpu.matmul %0, %1, %cst {dimension_numbers = #tpu.dot_dimension_numbers<[1], [0], [0], [1], [0, 0, 1, 1], [], []>} : vector<16x50xf32>, vector<50x1024xf32>, vector<16x1024xf32> -> vector<16x1024xf32>
    %c0_3 = arith.constant 0 : index
    %c0_4 = arith.constant 0 : index
    %3 = vector.load %arg4[%c0_3, %c0_4] : memref<1x1024xf32, #tpu.memory_space<vmem>>, vector<1x1024xf32>
    %4 = vector.broadcast %3 : vector<1x1024xf32> to vector<16x1024xf32>
    %5 = arith.addf %2, %4 : vector<16x1024xf32>
    %6 = vector.extract_strided_slice %5 {offsets = [0, 0], sizes = [2, 1024], strides = [1, 1]} : vector<16x1024xf32> to vector<2x1024xf32>
    %c0_5 = arith.constant 0 : index
    %c0_6 = arith.constant 0 : index
    %c0_7 = arith.constant 0 : index
    %7 = vector.load %arg7[%c0_5, %c0_6, %c0_7] : memref<8x2x1024xf32, #tpu.memory_space<vmem>>, vector<1x2x1024xf32>
    %8 = vector.shape_cast %7 : vector<1x2x1024xf32> to vector<2x1024xf32>
    %9 = vector.shape_cast %6 : vector<2x1024xf32> to vector<1x2x1024xf32>
    tpu.vector_store %arg7[%c0_5, %c0_6, %c0_7], %9 {strides = array<i32>} : memref<8x2x1024xf32, #tpu.memory_space<vmem>>, vector<1x2x1024xf32>,
    %10 = vector.extract_strided_slice %5 {offsets = [2, 0], sizes = [2, 1024], strides = [1, 1]} : vector<16x1024xf32> to vector<2x1024xf32>
    %c1 = arith.constant 1 : index
    %c0_8 = arith.constant 0 : index
    %c0_9 = arith.constant 0 : index
    %11 = vector.load %arg7[%c1, %c0_8, %c0_9] : memref<8x2x1024xf32, #tpu.memory_space<vmem>>, vector<1x2x1024xf32>
    %12 = vector.shape_cast %11 : vector<1x2x1024xf32> to vector<2x1024xf32>
    %13 = vector.shape_cast %10 : vector<2x1024xf32> to vector<1x2x1024xf32>
    tpu.vector_store %arg7[%c1, %c0_8, %c0_9], %13 {strides = array<i32>} : memref<8x2x1024xf32, #tpu.memory_space<vmem>>, vector<1x2x1024xf32>,
    %14 = vector.extract_strided_slice %5 {offsets = [4, 0], sizes = [2, 1024], strides = [1, 1]} : vector<16x1024xf32> to vector<2x1024xf32>
    %c2 = arith.constant 2 : index
    %c0_10 = arith.constant 0 : index
    %c0_11 = arith.constant 0 : index
    %15 = vector.load %arg7[%c2, %c0_10, %c0_11] : memref<8x2x1024xf32, #tpu.memory_space<vmem>>, vector<1x2x1024xf32>
    %16 = vector.shape_cast %15 : vector<1x2x1024xf32> to vector<2x1024xf32>
    %17 = vector.shape_cast %14 : vector<2x1024xf32> to vector<1x2x1024xf32>
    tpu.vector_store %arg7[%c2, %c0_10, %c0_11], %17 {strides = array<i32>} : memref<8x2x1024xf32, #tpu.memory_space<vmem>>, vector<1x2x1024xf32>,
    %18 = vector.extract_strided_slice %5 {offsets = [6, 0], sizes = [2, 1024], strides = [1, 1]} : vector<16x1024xf32> to vector<2x1024xf32>
    %c3 = arith.constant 3 : index
    %c0_12 = arith.constant 0 : index
    %c0_13 = arith.constant 0 : index
    %19 = vector.load %arg7[%c3, %c0_12, %c0_13] : memref<8x2x1024xf32, #tpu.memory_space<vmem>>, vector<1x2x1024xf32>
    %20 = vector.shape_cast %19 : vector<1x2x1024xf32> to vector<2x1024xf32>
    %21 = vector.shape_cast %18 : vector<2x1024xf32> to vector<1x2x1024xf32>
    tpu.vector_store %arg7[%c3, %c0_12, %c0_13], %21 {strides = array<i32>} : memref<8x2x1024xf32, #tpu.memory_space<vmem>>, vector<1x2x1024xf32>,
    %22 = vector.extract_strided_slice %5 {offsets = [8, 0], sizes = [2, 1024], strides = [1, 1]} : vector<16x1024xf32> to vector<2x1024xf32>
    %c4 = arith.constant 4 : index
    %c0_14 = arith.constant 0 : index
    %c0_15 = arith.constant 0 : index
    %23 = vector.load %arg7[%c4, %c0_14, %c0_15] : memref<8x2x1024xf32, #tpu.memory_space<vmem>>, vector<1x2x1024xf32>
    %24 = vector.shape_cast %23 : vector<1x2x1024xf32> to vector<2x1024xf32>
    %25 = vector.shape_cast %22 : vector<2x1024xf32> to vector<1x2x1024xf32>
    tpu.vector_store %arg7[%c4, %c0_14, %c0_15], %25 {strides = array<i32>} : memref<8x2x1024xf32, #tpu.memory_space<vmem>>, vector<1x2x1024xf32>,
    %26 = vector.extract_strided_slice %5 {offsets = [10, 0], sizes = [2, 1024], strides = [1, 1]} : vector<16x1024xf32> to vector<2x1024xf32>
    %c5 = arith.constant 5 : index
    %c0_16 = arith.constant 0 : index
    %c0_17 = arith.constant 0 : index
    %27 = vector.load %arg7[%c5, %c0_16, %c0_17] : memref<8x2x1024xf32, #tpu.memory_space<vmem>>, vector<1x2x1024xf32>
    %28 = vector.shape_cast %27 : vector<1x2x1024xf32> to vector<2x1024xf32>
    %29 = vector.shape_cast %26 : vector<2x1024xf32> to vector<1x2x1024xf32>
    tpu.vector_store %arg7[%c5, %c0_16, %c0_17], %29 {strides = array<i32>} : memref<8x2x1024xf32, #tpu.memory_space<vmem>>, vector<1x2x1024xf32>,
    %30 = vector.extract_strided_slice %5 {offsets = [12, 0], sizes = [2, 1024], strides = [1, 1]} : vector<16x1024xf32> to vector<2x1024xf32>
    %c6 = arith.constant 6 : index
    %c0_18 = arith.constant 0 : index
    %c0_19 = arith.constant 0 : index
    %31 = vector.load %arg7[%c6, %c0_18, %c0_19] : memref<8x2x1024xf32, #tpu.memory_space<vmem>>, vector<1x2x1024xf32>
    %32 = vector.shape_cast %31 : vector<1x2x1024xf32> to vector<2x1024xf32>
    %33 = vector.shape_cast %30 : vector<2x1024xf32> to vector<1x2x1024xf32>
    tpu.vector_store %arg7[%c6, %c0_18, %c0_19], %33 {strides = array<i32>} : memref<8x2x1024xf32, #tpu.memory_space<vmem>>, vector<1x2x1024xf32>,
    %34 = vector.extract_strided_slice %5 {offsets = [14, 0], sizes = [2, 1024], strides = [1, 1]} : vector<16x1024xf32> to vector<2x1024xf32>
    %c7 = arith.constant 7 : index
    %c0_20 = arith.constant 0 : index
    %c0_21 = arith.constant 0 : index
    %35 = vector.load %arg7[%c7, %c0_20, %c0_21] : memref<8x2x1024xf32, #tpu.memory_space<vmem>>, vector<1x2x1024xf32>
    %36 = vector.shape_cast %35 : vector<1x2x1024xf32> to vector<2x1024xf32>
    %37 = vector.shape_cast %34 : vector<2x1024xf32> to vector<1x2x1024xf32>
    tpu.vector_store %arg7[%c7, %c0_20, %c0_21], %37 {strides = array<i32>} : memref<8x2x1024xf32, #tpu.memory_space<vmem>>, vector<1x2x1024xf32>,
    %cst_22 = arith.constant 0.000000e+00 : f32
    %38 = vector.broadcast %cst_22 : f32 to vector<2x256xf32>
    %c0_23 = arith.constant 0 : index
    %c0_24 = arith.constant 0 : index
    %39 = vector.load %arg8[%c0_23, %c0_24] : memref<2x256xf32, #tpu.memory_space<vmem>>, vector<2x256xf32>
    tpu.vector_store %arg8[%c0_23, %c0_24], %38 {strides = array<i32>} : memref<2x256xf32, #tpu.memory_space<vmem>>, vector<2x256xf32>,
    %cst_25 = arith.constant 0.000000e+00 : f32
    %40 = vector.broadcast %cst_25 : f32 to vector<2x256xf32>
    %c0_26 = arith.constant 0 : index
    %c0_27 = arith.constant 0 : index
    %41 = vector.load %arg9[%c0_26, %c0_27] : memref<2x256xf32, #tpu.memory_space<vmem>>, vector<2x256xf32>
    tpu.vector_store %arg9[%c0_26, %c0_27], %40 {strides = array<i32>} : memref<2x256xf32, #tpu.memory_space<vmem>>, vector<2x256xf32>,
    %c0_i32 = arith.constant 0 : i32
    %c0_28 = arith.constant 0 : index
    %c0_29 = arith.constant 0 : index
    %42 = vector.load %arg8[%c0_28, %c0_29] : memref<2x256xf32, #tpu.memory_space<vmem>>, vector<2x256xf32>
    %c0_30 = arith.constant 0 : index
    %c0_31 = arith.constant 0 : index
    %43 = vector.load %arg3[%c0_30, %c0_31] : memref<256x1024xf32, #tpu.memory_space<vmem>>, vector<256x1024xf32>
    %cst_32 = arith.constant dense<0.000000e+00> : vector<2x1024xf32>
    %44 = tpu.matmul %42, %43, %cst_32 {dimension_numbers = #tpu.dot_dimension_numbers<[1], [0], [0], [1], [0, 0, 1, 1], [], []>} : vector<2x256xf32>, vector<256x1024xf32>, vector<2x1024xf32> -> vector<2x1024xf32>
    %45 = arith.index_cast %c0_i32 : i32 to index
    %c0_33 = arith.constant 0 : index
    %c0_34 = arith.constant 0 : index
    %46 = vector.load %arg7[%45, %c0_33, %c0_34] : memref<8x2x1024xf32, #tpu.memory_space<vmem>>, vector<1x2x1024xf32>
    %47 = vector.shape_cast %46 : vector<1x2x1024xf32> to vector<2x1024xf32>
    %c7_i32 = arith.constant 7 : i32
    %48 = arith.subi %c7_i32, %c0_i32 : i32
    %49 = arith.index_cast %48 : i32 to index
    %c0_35 = arith.constant 0 : index
    %c0_36 = arith.constant 0 : index
    %50 = vector.load %arg7[%49, %c0_35, %c0_36] : memref<8x2x1024xf32, #tpu.memory_space<vmem>>, vector<1x2x1024xf32>
    %51 = vector.shape_cast %50 : vector<1x2x1024xf32> to vector<2x1024xf32>
    %c0_37 = arith.constant 0 : index
    %c0_38 = arith.constant 0 : index
    %52 = vector.load %arg9[%c0_37, %c0_38] : memref<2x256xf32, #tpu.memory_space<vmem>>, vector<2x256xf32>
    %53 = vector.extract_strided_slice %44 {offsets = [0, 0], sizes = [2, 512], strides = [1, 1]} : vector<2x1024xf32> to vector<2x512xf32>
    %54 = vector.extract_strided_slice %47 {offsets = [0, 0], sizes = [2, 512], strides = [1, 1]} : vector<2x1024xf32> to vector<2x512xf32>
    %55 = arith.addf %53, %54 : vector<2x512xf32>
    %56 = vector.extract_strided_slice %55 {offsets = [0, 0], sizes = [2, 128], strides = [1, 1]} : vector<2x512xf32> to vector<2x128xf32>
    %57 = arith.negf %56 : vector<2x128xf32>
    %58 = math.exp %57 : vector<2x128xf32>
    %cst_39 = arith.constant 1.000000e+00 : f32
    %59 = vector.broadcast %cst_39 : f32 to vector<2x128xf32>
    %60 = arith.addf %59, %58 : vector<2x128xf32>
    %61 = arith.divf %59, %60 : vector<2x128xf32>
    %62 = vector.extract_strided_slice %55 {offsets = [0, 128], sizes = [2, 128], strides = [1, 1]} : vector<2x512xf32> to vector<2x128xf32>
    %63 = arith.negf %62 : vector<2x128xf32>
    %64 = math.exp %63 : vector<2x128xf32>
    %cst_40 = arith.constant 1.000000e+00 : f32
    %65 = vector.broadcast %cst_40 : f32 to vector<2x128xf32>
    %66 = arith.addf %65, %64 : vector<2x128xf32>
    %67 = arith.divf %65, %66 : vector<2x128xf32>
    %68 = vector.extract_strided_slice %55 {offsets = [0, 256], sizes = [2, 128], strides = [1, 1]} : vector<2x512xf32> to vector<2x128xf32>
    %69 = math.tanh %68 : vector<2x128xf32>
    %70 = vector.extract_strided_slice %55 {offsets = [0, 384], sizes = [2, 128], strides = [1, 1]} : vector<2x512xf32> to vector<2x128xf32>
    %71 = arith.negf %70 : vector<2x128xf32>
    %72 = math.exp %71 : vector<2x128xf32>
    %cst_41 = arith.constant 1.000000e+00 : f32
    %73 = vector.broadcast %cst_41 : f32 to vector<2x128xf32>
    %74 = arith.addf %73, %72 : vector<2x128xf32>
    %75 = arith.divf %73, %74 : vector<2x128xf32>
    %76 = vector.extract_strided_slice %52 {offsets = [0, 0], sizes = [2, 128], strides = [1, 1]} : vector<2x256xf32> to vector<2x128xf32>
    %77 = arith.mulf %67, %76 : vector<2x128xf32>
    %78 = arith.mulf %61, %69 : vector<2x128xf32>
    %79 = arith.addf %77, %78 : vector<2x128xf32>
    %80 = math.tanh %79 : vector<2x128xf32>
    %81 = arith.mulf %75, %80 : vector<2x128xf32>
    %82 = vector.extract_strided_slice %44 {offsets = [0, 512], sizes = [2, 512], strides = [1, 1]} : vector<2x1024xf32> to vector<2x512xf32>
    %83 = vector.extract_strided_slice %51 {offsets = [0, 512], sizes = [2, 512], strides = [1, 1]} : vector<2x1024xf32> to vector<2x512xf32>
    %84 = arith.addf %82, %83 : vector<2x512xf32>
    %85 = vector.extract_strided_slice %84 {offsets = [0, 0], sizes = [2, 128], strides = [1, 1]} : vector<2x512xf32> to vector<2x128xf32>
    %86 = arith.negf %85 : vector<2x128xf32>
    %87 = math.exp %86 : vector<2x128xf32>
    %cst_42 = arith.constant 1.000000e+00 : f32
    %88 = vector.broadcast %cst_42 : f32 to vector<2x128xf32>
    %89 = arith.addf %88, %87 : vector<2x128xf32>
    %90 = arith.divf %88, %89 : vector<2x128xf32>
    %91 = vector.extract_strided_slice %84 {offsets = [0, 128], sizes = [2, 128], strides = [1, 1]} : vector<2x512xf32> to vector<2x128xf32>
    %92 = arith.negf %91 : vector<2x128xf32>
    %93 = math.exp %92 : vector<2x128xf32>
    %cst_43 = arith.constant 1.000000e+00 : f32
    %94 = vector.broadcast %cst_43 : f32 to vector<2x128xf32>
    %95 = arith.addf %94, %93 : vector<2x128xf32>
    %96 = arith.divf %94, %95 : vector<2x128xf32>
    %97 = vector.extract_strided_slice %84 {offsets = [0, 256], sizes = [2, 128], strides = [1, 1]} : vector<2x512xf32> to vector<2x128xf32>
    %98 = math.tanh %97 : vector<2x128xf32>
    %99 = vector.extract_strided_slice %84 {offsets = [0, 384], sizes = [2, 128], strides = [1, 1]} : vector<2x512xf32> to vector<2x128xf32>
    %100 = arith.negf %99 : vector<2x128xf32>
    %101 = math.exp %100 : vector<2x128xf32>
    %cst_44 = arith.constant 1.000000e+00 : f32
    %102 = vector.broadcast %cst_44 : f32 to vector<2x128xf32>
    %103 = arith.addf %102, %101 : vector<2x128xf32>
    %104 = arith.divf %102, %103 : vector<2x128xf32>
    %105 = vector.extract_strided_slice %52 {offsets = [0, 128], sizes = [2, 128], strides = [1, 1]} : vector<2x256xf32> to vector<2x128xf32>
    %106 = arith.mulf %96, %105 : vector<2x128xf32>
    %107 = arith.mulf %90, %98 : vector<2x128xf32>
    %108 = arith.addf %106, %107 : vector<2x128xf32>
    %109 = math.tanh %108 : vector<2x128xf32>
    %110 = arith.mulf %104, %109 : vector<2x128xf32>
    %c0_45 = arith.constant 0 : index
    %c0_46 = arith.constant 0 : index
    %111 = vector.load %arg8[%c0_45, %c0_46] : memref<2x256xf32, #tpu.memory_space<vmem>>, vector<2x128xf32>
    tpu.vector_store %arg8[%c0_45, %c0_46], %81 {strides = array<i32>} : memref<2x256xf32, #tpu.memory_space<vmem>>, vector<2x128xf32>,
    %c0_47 = arith.constant 0 : index
    %c128 = arith.constant 128 : index
    %112 = vector.load %arg8[%c0_47, %c128] : memref<2x256xf32, #tpu.memory_space<vmem>>, vector<2x128xf32>
    tpu.vector_store %arg8[%c0_47, %c128], %110 {strides = array<i32>} : memref<2x256xf32, #tpu.memory_space<vmem>>, vector<2x128xf32>,
    %c0_48 = arith.constant 0 : index
    %c0_49 = arith.constant 0 : index
    %113 = vector.load %arg9[%c0_48, %c0_49] : memref<2x256xf32, #tpu.memory_space<vmem>>, vector<2x128xf32>
    tpu.vector_store %arg9[%c0_48, %c0_49], %79 {strides = array<i32>} : memref<2x256xf32, #tpu.memory_space<vmem>>, vector<2x128xf32>,
    %c0_50 = arith.constant 0 : index
    %c128_51 = arith.constant 128 : index
    %114 = vector.load %arg9[%c0_50, %c128_51] : memref<2x256xf32, #tpu.memory_space<vmem>>, vector<2x128xf32>
    tpu.vector_store %arg9[%c0_50, %c128_51], %108 {strides = array<i32>} : memref<2x256xf32, #tpu.memory_space<vmem>>, vector<2x128xf32>,
    %115 = vector.extract_strided_slice %81 {offsets = [0, 0], sizes = [2, 50], strides = [1, 1]} : vector<2x128xf32> to vector<2x50xf32>
    %116 = arith.index_cast %c0_i32 : i32 to index
    %c0_52 = arith.constant 0 : index
    %c0_53 = arith.constant 0 : index
    %117 = vector.load %arg5[%116, %c0_52, %c0_53] : memref<8x2x50xf32, #tpu.memory_space<vmem>>, vector<1x2x50xf32>
    %118 = vector.shape_cast %117 : vector<1x2x50xf32> to vector<2x50xf32>
    %119 = vector.shape_cast %115 : vector<2x50xf32> to vector<1x2x50xf32>
    tpu.vector_store %arg5[%116, %c0_52, %c0_53], %119 {strides = array<i32>} : memref<8x2x50xf32, #tpu.memory_space<vmem>>, vector<1x2x50xf32>,
    %120 = vector.extract_strided_slice %110 {offsets = [0, 0], sizes = [2, 50], strides = [1, 1]} : vector<2x128xf32> to vector<2x50xf32>
    %c7_i32_54 = arith.constant 7 : i32
    %121 = arith.subi %c7_i32_54, %c0_i32 : i32
    %122 = arith.index_cast %121 : i32 to index
    %c0_55 = arith.constant 0 : index
    %c0_56 = arith.constant 0 : index
    %123 = vector.load %arg6[%122, %c0_55, %c0_56] : memref<8x2x50xf32, #tpu.memory_space<vmem>>, vector<1x2x50xf32>
    %124 = vector.shape_cast %123 : vector<1x2x50xf32> to vector<2x50xf32>
    %125 = vector.shape_cast %120 : vector<2x50xf32> to vector<1x2x50xf32>
    tpu.vector_store %arg6[%122, %c0_55, %c0_56], %125 {strides = array<i32>} : memref<8x2x50xf32, #tpu.memory_space<vmem>>, vector<1x2x50xf32>,
    %c1_i32 = arith.constant 1 : i32
    %c0_57 = arith.constant 0 : index
    %c0_58 = arith.constant 0 : index
    %126 = vector.load %arg8[%c0_57, %c0_58] : memref<2x256xf32, #tpu.memory_space<vmem>>, vector<2x256xf32>
    %c0_59 = arith.constant 0 : index
    %c0_60 = arith.constant 0 : index
    %127 = vector.load %arg3[%c0_59, %c0_60] : memref<256x1024xf32, #tpu.memory_space<vmem>>, vector<256x1024xf32>
    %cst_61 = arith.constant dense<0.000000e+00> : vector<2x1024xf32>
    %128 = tpu.matmul %126, %127, %cst_61 {dimension_numbers = #tpu.dot_dimension_numbers<[1], [0], [0], [1], [0, 0, 1, 1], [], []>} : vector<2x256xf32>, vector<256x1024xf32>, vector<2x1024xf32> -> vector<2x1024xf32>
    %129 = arith.index_cast %c1_i32 : i32 to index
    %c0_62 = arith.constant 0 : index
    %c0_63 = arith.constant 0 : index
    %130 = vector.load %arg7[%129, %c0_62, %c0_63] : memref<8x2x1024xf32, #tpu.memory_space<vmem>>, vector<1x2x1024xf32>
    %131 = vector.shape_cast %130 : vector<1x2x1024xf32> to vector<2x1024xf32>
    %c7_i32_64 = arith.constant 7 : i32
    %132 = arith.subi %c7_i32_64, %c1_i32 : i32
    %133 = arith.index_cast %132 : i32 to index
    %c0_65 = arith.constant 0 : index
    %c0_66 = arith.constant 0 : index
    %134 = vector.load %arg7[%133, %c0_65, %c0_66] : memref<8x2x1024xf32, #tpu.memory_space<vmem>>, vector<1x2x1024xf32>
    %135 = vector.shape_cast %134 : vector<1x2x1024xf32> to vector<2x1024xf32>
    %c0_67 = arith.constant 0 : index
    %c0_68 = arith.constant 0 : index
    %136 = vector.load %arg9[%c0_67, %c0_68] : memref<2x256xf32, #tpu.memory_space<vmem>>, vector<2x256xf32>
    %137 = vector.extract_strided_slice %128 {offsets = [0, 0], sizes = [2, 512], strides = [1, 1]} : vector<2x1024xf32> to vector<2x512xf32>
    %138 = vector.extract_strided_slice %131 {offsets = [0, 0], sizes = [2, 512], strides = [1, 1]} : vector<2x1024xf32> to vector<2x512xf32>
    %139 = arith.addf %137, %138 : vector<2x512xf32>
    %140 = vector.extract_strided_slice %139 {offsets = [0, 0], sizes = [2, 128], strides = [1, 1]} : vector<2x512xf32> to vector<2x128xf32>
    %141 = arith.negf %140 : vector<2x128xf32>
    %142 = math.exp %141 : vector<2x128xf32>
    %cst_69 = arith.constant 1.000000e+00 : f32
    %143 = vector.broadcast %cst_69 : f32 to vector<2x128xf32>
    %144 = arith.addf %143, %142 : vector<2x128xf32>
    %145 = arith.divf %143, %144 : vector<2x128xf32>
    %146 = vector.extract_strided_slice %139 {offsets = [0, 128], sizes = [2, 128], strides = [1, 1]} : vector<2x512xf32> to vector<2x128xf32>
    %147 = arith.negf %146 : vector<2x128xf32>
    %148 = math.exp %147 : vector<2x128xf32>
    %cst_70 = arith.constant 1.000000e+00 : f32
    %149 = vector.broadcast %cst_70 : f32 to vector<2x128xf32>
    %150 = arith.addf %149, %148 : vector<2x128xf32>
    %151 = arith.divf %149, %150 : vector<2x128xf32>
    %152 = vector.extract_strided_slice %139 {offsets = [0, 256], sizes = [2, 128], strides = [1, 1]} : vector<2x512xf32> to vector<2x128xf32>
    %153 = math.tanh %152 : vector<2x128xf32>
    %154 = vector.extract_strided_slice %139 {offsets = [0, 384], sizes = [2, 128], strides = [1, 1]} : vector<2x512xf32> to vector<2x128xf32>
    %155 = arith.negf %154 : vector<2x128xf32>
    %156 = math.exp %155 : vector<2x128xf32>
    %cst_71 = arith.constant 1.000000e+00 : f32
    %157 = vector.broadcast %cst_71 : f32 to vector<2x128xf32>
    %158 = arith.addf %157, %156 : vector<2x128xf32>
    %159 = arith.divf %157, %158 : vector<2x128xf32>
    %160 = vector.extract_strided_slice %136 {offsets = [0, 0], sizes = [2, 128], strides = [1, 1]} : vector<2x256xf32> to vector<2x128xf32>
    %161 = arith.mulf %151, %160 : vector<2x128xf32>
    %162 = arith.mulf %145, %153 : vector<2x128xf32>
    %163 = arith.addf %161, %162 : vector<2x128xf32>
    %164 = math.tanh %163 : vector<2x128xf32>
    %165 = arith.mulf %159, %164 : vector<2x128xf32>
    %166 = vector.extract_strided_slice %128 {offsets = [0, 512], sizes = [2, 512], strides = [1, 1]} : vector<2x1024xf32> to vector<2x512xf32>
    %167 = vector.extract_strided_slice %135 {offsets = [0, 512], sizes = [2, 512], strides = [1, 1]} : vector<2x1024xf32> to vector<2x512xf32>
    %168 = arith.addf %166, %167 : vector<2x512xf32>
    %169 = vector.extract_strided_slice %168 {offsets = [0, 0], sizes = [2, 128], strides = [1, 1]} : vector<2x512xf32> to vector<2x128xf32>
    %170 = arith.negf %169 : vector<2x128xf32>
    %171 = math.exp %170 : vector<2x128xf32>
    %cst_72 = arith.constant 1.000000e+00 : f32
    %172 = vector.broadcast %cst_72 : f32 to vector<2x128xf32>
    %173 = arith.addf %172, %171 : vector<2x128xf32>
    %174 = arith.divf %172, %173 : vector<2x128xf32>
    %175 = vector.extract_strided_slice %168 {offsets = [0, 128], sizes = [2, 128], strides = [1, 1]} : vector<2x512xf32> to vector<2x128xf32>
    %176 = arith.negf %175 : vector<2x128xf32>
    %177 = math.exp %176 : vector<2x128xf32>
    %cst_73 = arith.constant 1.000000e+00 : f32
    %178 = vector.broadcast %cst_73 : f32 to vector<2x128xf32>
    %179 = arith.addf %178, %177 : vector<2x128xf32>
    %180 = arith.divf %178, %179 : vector<2x128xf32>
    %181 = vector.extract_strided_slice %168 {offsets = [0, 256], sizes = [2, 128], strides = [1, 1]} : vector<2x512xf32> to vector<2x128xf32>
    %182 = math.tanh %181 : vector<2x128xf32>
    %183 = vector.extract_strided_slice %168 {offsets = [0, 384], sizes = [2, 128], strides = [1, 1]} : vector<2x512xf32> to vector<2x128xf32>
    %184 = arith.negf %183 : vector<2x128xf32>
    %185 = math.exp %184 : vector<2x128xf32>
    %cst_74 = arith.constant 1.000000e+00 : f32
    %186 = vector.broadcast %cst_74 : f32 to vector<2x128xf32>
    %187 = arith.addf %186, %185 : vector<2x128xf32>
    %188 = arith.divf %186, %187 : vector<2x128xf32>
    %189 = vector.extract_strided_slice %136 {offsets = [0, 128], sizes = [2, 128], strides = [1, 1]} : vector<2x256xf32> to vector<2x128xf32>
    %190 = arith.mulf %180, %189 : vector<2x128xf32>
    %191 = arith.mulf %174, %182 : vector<2x128xf32>
    %192 = arith.addf %190, %191 : vector<2x128xf32>
    %193 = math.tanh %192 : vector<2x128xf32>
    %194 = arith.mulf %188, %193 : vector<2x128xf32>
    %c0_75 = arith.constant 0 : index
    %c0_76 = arith.constant 0 : index
    %195 = vector.load %arg8[%c0_75, %c0_76] : memref<2x256xf32, #tpu.memory_space<vmem>>, vector<2x128xf32>
    tpu.vector_store %arg8[%c0_75, %c0_76], %165 {strides = array<i32>} : memref<2x256xf32, #tpu.memory_space<vmem>>, vector<2x128xf32>,
    %c0_77 = arith.constant 0 : index
    %c128_78 = arith.constant 128 : index
    %196 = vector.load %arg8[%c0_77, %c128_78] : memref<2x256xf32, #tpu.memory_space<vmem>>, vector<2x128xf32>
    tpu.vector_store %arg8[%c0_77, %c128_78], %194 {strides = array<i32>} : memref<2x256xf32, #tpu.memory_space<vmem>>, vector<2x128xf32>,
    %c0_79 = arith.constant 0 : index
    %c0_80 = arith.constant 0 : index
    %197 = vector.load %arg9[%c0_79, %c0_80] : memref<2x256xf32, #tpu.memory_space<vmem>>, vector<2x128xf32>
    tpu.vector_store %arg9[%c0_79, %c0_80], %163 {strides = array<i32>} : memref<2x256xf32, #tpu.memory_space<vmem>>, vector<2x128xf32>,
    %c0_81 = arith.constant 0 : index
    %c128_82 = arith.constant 128 : index
    %198 = vector.load %arg9[%c0_81, %c128_82] : memref<2x256xf32, #tpu.memory_space<vmem>>, vector<2x128xf32>
    tpu.vector_store %arg9[%c0_81, %c128_82], %192 {strides = array<i32>} : memref<2x256xf32, #tpu.memory_space<vmem>>, vector<2x128xf32>,
    %199 = vector.extract_strided_slice %165 {offsets = [0, 0], sizes = [2, 50], strides = [1, 1]} : vector<2x128xf32> to vector<2x50xf32>
    %200 = arith.index_cast %c1_i32 : i32 to index
    %c0_83 = arith.constant 0 : index
    %c0_84 = arith.constant 0 : index
    %201 = vector.load %arg5[%200, %c0_83, %c0_84] : memref<8x2x50xf32, #tpu.memory_space<vmem>>, vector<1x2x50xf32>
    %202 = vector.shape_cast %201 : vector<1x2x50xf32> to vector<2x50xf32>
    %203 = vector.shape_cast %199 : vector<2x50xf32> to vector<1x2x50xf32>
    tpu.vector_store %arg5[%200, %c0_83, %c0_84], %203 {strides = array<i32>} : memref<8x2x50xf32, #tpu.memory_space<vmem>>, vector<1x2x50xf32>,
    %204 = vector.extract_strided_slice %194 {offsets = [0, 0], sizes = [2, 50], strides = [1, 1]} : vector<2x128xf32> to vector<2x50xf32>
    %c7_i32_85 = arith.constant 7 : i32
    %205 = arith.subi %c7_i32_85, %c1_i32 : i32
    %206 = arith.index_cast %205 : i32 to index
    %c0_86 = arith.constant 0 : index
    %c0_87 = arith.constant 0 : index
    %207 = vector.load %arg6[%206, %c0_86, %c0_87] : memref<8x2x50xf32, #tpu.memory_space<vmem>>, vector<1x2x50xf32>
    %208 = vector.shape_cast %207 : vector<1x2x50xf32> to vector<2x50xf32>
    %209 = vector.shape_cast %204 : vector<2x50xf32> to vector<1x2x50xf32>
    tpu.vector_store %arg6[%206, %c0_86, %c0_87], %209 {strides = array<i32>} : memref<8x2x50xf32, #tpu.memory_space<vmem>>, vector<1x2x50xf32>,
    %c2_i32 = arith.constant 2 : i32
    %c0_88 = arith.constant 0 : index
    %c0_89 = arith.constant 0 : index
    %210 = vector.load %arg8[%c0_88, %c0_89] : memref<2x256xf32, #tpu.memory_space<vmem>>, vector<2x256xf32>
    %c0_90 = arith.constant 0 : index
    %c0_91 = arith.constant 0 : index
    %211 = vector.load %arg3[%c0_90, %c0_91] : memref<256x1024xf32, #tpu.memory_space<vmem>>, vector<256x1024xf32>
    %cst_92 = arith.constant dense<0.000000e+00> : vector<2x1024xf32>
    %212 = tpu.matmul %210, %211, %cst_92 {dimension_numbers = #tpu.dot_dimension_numbers<[1], [0], [0], [1], [0, 0, 1, 1], [], []>} : vector<2x256xf32>, vector<256x1024xf32>, vector<2x1024xf32> -> vector<2x1024xf32>
    %213 = arith.index_cast %c2_i32 : i32 to index
    %c0_93 = arith.constant 0 : index
    %c0_94 = arith.constant 0 : index
    %214 = vector.load %arg7[%213, %c0_93, %c0_94] : memref<8x2x1024xf32, #tpu.memory_space<vmem>>, vector<1x2x1024xf32>
    %215 = vector.shape_cast %214 : vector<1x2x1024xf32> to vector<2x1024xf32>
    %c7_i32_95 = arith.constant 7 : i32
    %216 = arith.subi %c7_i32_95, %c2_i32 : i32
    %217 = arith.index_cast %216 : i32 to index
    %c0_96 = arith.constant 0 : index
    %c0_97 = arith.constant 0 : index
    %218 = vector.load %arg7[%217, %c0_96, %c0_97] : memref<8x2x1024xf32, #tpu.memory_space<vmem>>, vector<1x2x1024xf32>
    %219 = vector.shape_cast %218 : vector<1x2x1024xf32> to vector<2x1024xf32>
    %c0_98 = arith.constant 0 : index
    %c0_99 = arith.constant 0 : index
    %220 = vector.load %arg9[%c0_98, %c0_99] : memref<2x256xf32, #tpu.memory_space<vmem>>, vector<2x256xf32>
    %221 = vector.extract_strided_slice %212 {offsets = [0, 0], sizes = [2, 512], strides = [1, 1]} : vector<2x1024xf32> to vector<2x512xf32>
    %222 = vector.extract_strided_slice %215 {offsets = [0, 0], sizes = [2, 512], strides = [1, 1]} : vector<2x1024xf32> to vector<2x512xf32>
    %223 = arith.addf %221, %222 : vector<2x512xf32>
    %224 = vector.extract_strided_slice %223 {offsets = [0, 0], sizes = [2, 128], strides = [1, 1]} : vector<2x512xf32> to vector<2x128xf32>
    %225 = arith.negf %224 : vector<2x128xf32>
    %226 = math.exp %225 : vector<2x128xf32>
    %cst_100 = arith.constant 1.000000e+00 : f32
    %227 = vector.broadcast %cst_100 : f32 to vector<2x128xf32>
    %228 = arith.addf %227, %226 : vector<2x128xf32>
    %229 = arith.divf %227, %228 : vector<2x128xf32>
    %230 = vector.extract_strided_slice %223 {offsets = [0, 128], sizes = [2, 128], strides = [1, 1]} : vector<2x512xf32> to vector<2x128xf32>
    %231 = arith.negf %230 : vector<2x128xf32>
    %232 = math.exp %231 : vector<2x128xf32>
    %cst_101 = arith.constant 1.000000e+00 : f32
    %233 = vector.broadcast %cst_101 : f32 to vector<2x128xf32>
    %234 = arith.addf %233, %232 : vector<2x128xf32>
    %235 = arith.divf %233, %234 : vector<2x128xf32>
    %236 = vector.extract_strided_slice %223 {offsets = [0, 256], sizes = [2, 128], strides = [1, 1]} : vector<2x512xf32> to vector<2x128xf32>
    %237 = math.tanh %236 : vector<2x128xf32>
    %238 = vector.extract_strided_slice %223 {offsets = [0, 384], sizes = [2, 128], strides = [1, 1]} : vector<2x512xf32> to vector<2x128xf32>
    %239 = arith.negf %238 : vector<2x128xf32>
    %240 = math.exp %239 : vector<2x128xf32>
    %cst_102 = arith.constant 1.000000e+00 : f32
    %241 = vector.broadcast %cst_102 : f32 to vector<2x128xf32>
    %242 = arith.addf %241, %240 : vector<2x128xf32>
    %243 = arith.divf %241, %242 : vector<2x128xf32>
    %244 = vector.extract_strided_slice %220 {offsets = [0, 0], sizes = [2, 128], strides = [1, 1]} : vector<2x256xf32> to vector<2x128xf32>
    %245 = arith.mulf %235, %244 : vector<2x128xf32>
    %246 = arith.mulf %229, %237 : vector<2x128xf32>
    %247 = arith.addf %245, %246 : vector<2x128xf32>
    %248 = math.tanh %247 : vector<2x128xf32>
    %249 = arith.mulf %243, %248 : vector<2x128xf32>
    %250 = vector.extract_strided_slice %212 {offsets = [0, 512], sizes = [2, 512], strides = [1, 1]} : vector<2x1024xf32> to vector<2x512xf32>
    %251 = vector.extract_strided_slice %219 {offsets = [0, 512], sizes = [2, 512], strides = [1, 1]} : vector<2x1024xf32> to vector<2x512xf32>
    %252 = arith.addf %250, %251 : vector<2x512xf32>
    %253 = vector.extract_strided_slice %252 {offsets = [0, 0], sizes = [2, 128], strides = [1, 1]} : vector<2x512xf32> to vector<2x128xf32>
    %254 = arith.negf %253 : vector<2x128xf32>
    %255 = math.exp %254 : vector<2x128xf32>
    %cst_103 = arith.constant 1.000000e+00 : f32
    %256 = vector.broadcast %cst_103 : f32 to vector<2x128xf32>
    %257 = arith.addf %256, %255 : vector<2x128xf32>
    %258 = arith.divf %256, %257 : vector<2x128xf32>
    %259 = vector.extract_strided_slice %252 {offsets = [0, 128], sizes = [2, 128], strides = [1, 1]} : vector<2x512xf32> to vector<2x128xf32>
    %260 = arith.negf %259 : vector<2x128xf32>
    %261 = math.exp %260 : vector<2x128xf32>
    %cst_104 = arith.constant 1.000000e+00 : f32
    %262 = vector.broadcast %cst_104 : f32 to vector<2x128xf32>
    %263 = arith.addf %262, %261 : vector<2x128xf32>
    %264 = arith.divf %262, %263 : vector<2x128xf32>
    %265 = vector.extract_strided_slice %252 {offsets = [0, 256], sizes = [2, 128], strides = [1, 1]} : vector<2x512xf32> to vector<2x128xf32>
    %266 = math.tanh %265 : vector<2x128xf32>
    %267 = vector.extract_strided_slice %252 {offsets = [0, 384], sizes = [2, 128], strides = [1, 1]} : vector<2x512xf32> to vector<2x128xf32>
    %268 = arith.negf %267 : vector<2x128xf32>
    %269 = math.exp %268 : vector<2x128xf32>
    %cst_105 = arith.constant 1.000000e+00 : f32
    %270 = vector.broadcast %cst_105 : f32 to vector<2x128xf32>
    %271 = arith.addf %270, %269 : vector<2x128xf32>
    %272 = arith.divf %270, %271 : vector<2x128xf32>
    %273 = vector.extract_strided_slice %220 {offsets = [0, 128], sizes = [2, 128], strides = [1, 1]} : vector<2x256xf32> to vector<2x128xf32>
    %274 = arith.mulf %264, %273 : vector<2x128xf32>
    %275 = arith.mulf %258, %266 : vector<2x128xf32>
    %276 = arith.addf %274, %275 : vector<2x128xf32>
    %277 = math.tanh %276 : vector<2x128xf32>
    %278 = arith.mulf %272, %277 : vector<2x128xf32>
    %c0_106 = arith.constant 0 : index
    %c0_107 = arith.constant 0 : index
    %279 = vector.load %arg8[%c0_106, %c0_107] : memref<2x256xf32, #tpu.memory_space<vmem>>, vector<2x128xf32>
    tpu.vector_store %arg8[%c0_106, %c0_107], %249 {strides = array<i32>} : memref<2x256xf32, #tpu.memory_space<vmem>>, vector<2x128xf32>,
    %c0_108 = arith.constant 0 : index
    %c128_109 = arith.constant 128 : index
    %280 = vector.load %arg8[%c0_108, %c128_109] : memref<2x256xf32, #tpu.memory_space<vmem>>, vector<2x128xf32>
    tpu.vector_store %arg8[%c0_108, %c128_109], %278 {strides = array<i32>} : memref<2x256xf32, #tpu.memory_space<vmem>>, vector<2x128xf32>,
    %c0_110 = arith.constant 0 : index
    %c0_111 = arith.constant 0 : index
    %281 = vector.load %arg9[%c0_110, %c0_111] : memref<2x256xf32, #tpu.memory_space<vmem>>, vector<2x128xf32>
    tpu.vector_store %arg9[%c0_110, %c0_111], %247 {strides = array<i32>} : memref<2x256xf32, #tpu.memory_space<vmem>>, vector<2x128xf32>,
    %c0_112 = arith.constant 0 : index
    %c128_113 = arith.constant 128 : index
    %282 = vector.load %arg9[%c0_112, %c128_113] : memref<2x256xf32, #tpu.memory_space<vmem>>, vector<2x128xf32>
    tpu.vector_store %arg9[%c0_112, %c128_113], %276 {strides = array<i32>} : memref<2x256xf32, #tpu.memory_space<vmem>>, vector<2x128xf32>,
    %283 = vector.extract_strided_slice %249 {offsets = [0, 0], sizes = [2, 50], strides = [1, 1]} : vector<2x128xf32> to vector<2x50xf32>
    %284 = arith.index_cast %c2_i32 : i32 to index
    %c0_114 = arith.constant 0 : index
    %c0_115 = arith.constant 0 : index
    %285 = vector.load %arg5[%284, %c0_114, %c0_115] : memref<8x2x50xf32, #tpu.memory_space<vmem>>, vector<1x2x50xf32>
    %286 = vector.shape_cast %285 : vector<1x2x50xf32> to vector<2x50xf32>
    %287 = vector.shape_cast %283 : vector<2x50xf32> to vector<1x2x50xf32>
    tpu.vector_store %arg5[%284, %c0_114, %c0_115], %287 {strides = array<i32>} : memref<8x2x50xf32, #tpu.memory_space<vmem>>, vector<1x2x50xf32>,
    %288 = vector.extract_strided_slice %278 {offsets = [0, 0], sizes = [2, 50], strides = [1, 1]} : vector<2x128xf32> to vector<2x50xf32>
    %c7_i32_116 = arith.constant 7 : i32
    %289 = arith.subi %c7_i32_116, %c2_i32 : i32
    %290 = arith.index_cast %289 : i32 to index
    %c0_117 = arith.constant 0 : index
    %c0_118 = arith.constant 0 : index
    %291 = vector.load %arg6[%290, %c0_117, %c0_118] : memref<8x2x50xf32, #tpu.memory_space<vmem>>, vector<1x2x50xf32>
    %292 = vector.shape_cast %291 : vector<1x2x50xf32> to vector<2x50xf32>
    %293 = vector.shape_cast %288 : vector<2x50xf32> to vector<1x2x50xf32>
    tpu.vector_store %arg6[%290, %c0_117, %c0_118], %293 {strides = array<i32>} : memref<8x2x50xf32, #tpu.memory_space<vmem>>, vector<1x2x50xf32>,
    %c3_i32 = arith.constant 3 : i32
    %c0_119 = arith.constant 0 : index
    %c0_120 = arith.constant 0 : index
    %294 = vector.load %arg8[%c0_119, %c0_120] : memref<2x256xf32, #tpu.memory_space<vmem>>, vector<2x256xf32>
    %c0_121 = arith.constant 0 : index
    %c0_122 = arith.constant 0 : index
    %295 = vector.load %arg3[%c0_121, %c0_122] : memref<256x1024xf32, #tpu.memory_space<vmem>>, vector<256x1024xf32>
    %cst_123 = arith.constant dense<0.000000e+00> : vector<2x1024xf32>
    %296 = tpu.matmul %294, %295, %cst_123 {dimension_numbers = #tpu.dot_dimension_numbers<[1], [0], [0], [1], [0, 0, 1, 1], [], []>} : vector<2x256xf32>, vector<256x1024xf32>, vector<2x1024xf32> -> vector<2x1024xf32>
    %297 = arith.index_cast %c3_i32 : i32 to index
    %c0_124 = arith.constant 0 : index
    %c0_125 = arith.constant 0 : index
    %298 = vector.load %arg7[%297, %c0_124, %c0_125] : memref<8x2x1024xf32, #tpu.memory_space<vmem>>, vector<1x2x1024xf32>
    %299 = vector.shape_cast %298 : vector<1x2x1024xf32> to vector<2x1024xf32>
    %c7_i32_126 = arith.constant 7 : i32
    %300 = arith.subi %c7_i32_126, %c3_i32 : i32
    %301 = arith.index_cast %300 : i32 to index
    %c0_127 = arith.constant 0 : index
    %c0_128 = arith.constant 0 : index
    %302 = vector.load %arg7[%301, %c0_127, %c0_128] : memref<8x2x1024xf32, #tpu.memory_space<vmem>>, vector<1x2x1024xf32>
    %303 = vector.shape_cast %302 : vector<1x2x1024xf32> to vector<2x1024xf32>
    %c0_129 = arith.constant 0 : index
    %c0_130 = arith.constant 0 : index
    %304 = vector.load %arg9[%c0_129, %c0_130] : memref<2x256xf32, #tpu.memory_space<vmem>>, vector<2x256xf32>
    %305 = vector.extract_strided_slice %296 {offsets = [0, 0], sizes = [2, 512], strides = [1, 1]} : vector<2x1024xf32> to vector<2x512xf32>
    %306 = vector.extract_strided_slice %299 {offsets = [0, 0], sizes = [2, 512], strides = [1, 1]} : vector<2x1024xf32> to vector<2x512xf32>
    %307 = arith.addf %305, %306 : vector<2x512xf32>
    %308 = vector.extract_strided_slice %307 {offsets = [0, 0], sizes = [2, 128], strides = [1, 1]} : vector<2x512xf32> to vector<2x128xf32>
    %309 = arith.negf %308 : vector<2x128xf32>
    %310 = math.exp %309 : vector<2x128xf32>
    %cst_131 = arith.constant 1.000000e+00 : f32
    %311 = vector.broadcast %cst_131 : f32 to vector<2x128xf32>
    %312 = arith.addf %311, %310 : vector<2x128xf32>
    %313 = arith.divf %311, %312 : vector<2x128xf32>
    %314 = vector.extract_strided_slice %307 {offsets = [0, 128], sizes = [2, 128], strides = [1, 1]} : vector<2x512xf32> to vector<2x128xf32>
    %315 = arith.negf %314 : vector<2x128xf32>
    %316 = math.exp %315 : vector<2x128xf32>
    %cst_132 = arith.constant 1.000000e+00 : f32
    %317 = vector.broadcast %cst_132 : f32 to vector<2x128xf32>
    %318 = arith.addf %317, %316 : vector<2x128xf32>
    %319 = arith.divf %317, %318 : vector<2x128xf32>
    %320 = vector.extract_strided_slice %307 {offsets = [0, 256], sizes = [2, 128], strides = [1, 1]} : vector<2x512xf32> to vector<2x128xf32>
    %321 = math.tanh %320 : vector<2x128xf32>
    %322 = vector.extract_strided_slice %307 {offsets = [0, 384], sizes = [2, 128], strides = [1, 1]} : vector<2x512xf32> to vector<2x128xf32>
    %323 = arith.negf %322 : vector<2x128xf32>
    %324 = math.exp %323 : vector<2x128xf32>
    %cst_133 = arith.constant 1.000000e+00 : f32
    %325 = vector.broadcast %cst_133 : f32 to vector<2x128xf32>
    %326 = arith.addf %325, %324 : vector<2x128xf32>
    %327 = arith.divf %325, %326 : vector<2x128xf32>
    %328 = vector.extract_strided_slice %304 {offsets = [0, 0], sizes = [2, 128], strides = [1, 1]} : vector<2x256xf32> to vector<2x128xf32>
    %329 = arith.mulf %319, %328 : vector<2x128xf32>
    %330 = arith.mulf %313, %321 : vector<2x128xf32>
    %331 = arith.addf %329, %330 : vector<2x128xf32>
    %332 = math.tanh %331 : vector<2x128xf32>
    %333 = arith.mulf %327, %332 : vector<2x128xf32>
    %334 = vector.extract_strided_slice %296 {offsets = [0, 512], sizes = [2, 512], strides = [1, 1]} : vector<2x1024xf32> to vector<2x512xf32>
    %335 = vector.extract_strided_slice %303 {offsets = [0, 512], sizes = [2, 512], strides = [1, 1]} : vector<2x1024xf32> to vector<2x512xf32>
    %336 = arith.addf %334, %335 : vector<2x512xf32>
    %337 = vector.extract_strided_slice %336 {offsets = [0, 0], sizes = [2, 128], strides = [1, 1]} : vector<2x512xf32> to vector<2x128xf32>
    %338 = arith.negf %337 : vector<2x128xf32>
    %339 = math.exp %338 : vector<2x128xf32>
    %cst_134 = arith.constant 1.000000e+00 : f32
    %340 = vector.broadcast %cst_134 : f32 to vector<2x128xf32>
    %341 = arith.addf %340, %339 : vector<2x128xf32>
    %342 = arith.divf %340, %341 : vector<2x128xf32>
    %343 = vector.extract_strided_slice %336 {offsets = [0, 128], sizes = [2, 128], strides = [1, 1]} : vector<2x512xf32> to vector<2x128xf32>
    %344 = arith.negf %343 : vector<2x128xf32>
    %345 = math.exp %344 : vector<2x128xf32>
    %cst_135 = arith.constant 1.000000e+00 : f32
    %346 = vector.broadcast %cst_135 : f32 to vector<2x128xf32>
    %347 = arith.addf %346, %345 : vector<2x128xf32>
    %348 = arith.divf %346, %347 : vector<2x128xf32>
    %349 = vector.extract_strided_slice %336 {offsets = [0, 256], sizes = [2, 128], strides = [1, 1]} : vector<2x512xf32> to vector<2x128xf32>
    %350 = math.tanh %349 : vector<2x128xf32>
    %351 = vector.extract_strided_slice %336 {offsets = [0, 384], sizes = [2, 128], strides = [1, 1]} : vector<2x512xf32> to vector<2x128xf32>
    %352 = arith.negf %351 : vector<2x128xf32>
    %353 = math.exp %352 : vector<2x128xf32>
    %cst_136 = arith.constant 1.000000e+00 : f32
    %354 = vector.broadcast %cst_136 : f32 to vector<2x128xf32>
    %355 = arith.addf %354, %353 : vector<2x128xf32>
    %356 = arith.divf %354, %355 : vector<2x128xf32>
    %357 = vector.extract_strided_slice %304 {offsets = [0, 128], sizes = [2, 128], strides = [1, 1]} : vector<2x256xf32> to vector<2x128xf32>
    %358 = arith.mulf %348, %357 : vector<2x128xf32>
    %359 = arith.mulf %342, %350 : vector<2x128xf32>
    %360 = arith.addf %358, %359 : vector<2x128xf32>
    %361 = math.tanh %360 : vector<2x128xf32>
    %362 = arith.mulf %356, %361 : vector<2x128xf32>
    %c0_137 = arith.constant 0 : index
    %c0_138 = arith.constant 0 : index
    %363 = vector.load %arg8[%c0_137, %c0_138] : memref<2x256xf32, #tpu.memory_space<vmem>>, vector<2x128xf32>
    tpu.vector_store %arg8[%c0_137, %c0_138], %333 {strides = array<i32>} : memref<2x256xf32, #tpu.memory_space<vmem>>, vector<2x128xf32>,
    %c0_139 = arith.constant 0 : index
    %c128_140 = arith.constant 128 : index
    %364 = vector.load %arg8[%c0_139, %c128_140] : memref<2x256xf32, #tpu.memory_space<vmem>>, vector<2x128xf32>
    tpu.vector_store %arg8[%c0_139, %c128_140], %362 {strides = array<i32>} : memref<2x256xf32, #tpu.memory_space<vmem>>, vector<2x128xf32>,
    %c0_141 = arith.constant 0 : index
    %c0_142 = arith.constant 0 : index
    %365 = vector.load %arg9[%c0_141, %c0_142] : memref<2x256xf32, #tpu.memory_space<vmem>>, vector<2x128xf32>
    tpu.vector_store %arg9[%c0_141, %c0_142], %331 {strides = array<i32>} : memref<2x256xf32, #tpu.memory_space<vmem>>, vector<2x128xf32>,
    %c0_143 = arith.constant 0 : index
    %c128_144 = arith.constant 128 : index
    %366 = vector.load %arg9[%c0_143, %c128_144] : memref<2x256xf32, #tpu.memory_space<vmem>>, vector<2x128xf32>
    tpu.vector_store %arg9[%c0_143, %c128_144], %360 {strides = array<i32>} : memref<2x256xf32, #tpu.memory_space<vmem>>, vector<2x128xf32>,
    %367 = vector.extract_strided_slice %333 {offsets = [0, 0], sizes = [2, 50], strides = [1, 1]} : vector<2x128xf32> to vector<2x50xf32>
    %368 = arith.index_cast %c3_i32 : i32 to index
    %c0_145 = arith.constant 0 : index
    %c0_146 = arith.constant 0 : index
    %369 = vector.load %arg5[%368, %c0_145, %c0_146] : memref<8x2x50xf32, #tpu.memory_space<vmem>>, vector<1x2x50xf32>
    %370 = vector.shape_cast %369 : vector<1x2x50xf32> to vector<2x50xf32>
    %371 = vector.shape_cast %367 : vector<2x50xf32> to vector<1x2x50xf32>
    tpu.vector_store %arg5[%368, %c0_145, %c0_146], %371 {strides = array<i32>} : memref<8x2x50xf32, #tpu.memory_space<vmem>>, vector<1x2x50xf32>,
    %372 = vector.extract_strided_slice %362 {offsets = [0, 0], sizes = [2, 50], strides = [1, 1]} : vector<2x128xf32> to vector<2x50xf32>
    %c7_i32_147 = arith.constant 7 : i32
    %373 = arith.subi %c7_i32_147, %c3_i32 : i32
    %374 = arith.index_cast %373 : i32 to index
    %c0_148 = arith.constant 0 : index
    %c0_149 = arith.constant 0 : index
    %375 = vector.load %arg6[%374, %c0_148, %c0_149] : memref<8x2x50xf32, #tpu.memory_space<vmem>>, vector<1x2x50xf32>
    %376 = vector.shape_cast %375 : vector<1x2x50xf32> to vector<2x50xf32>
    %377 = vector.shape_cast %372 : vector<2x50xf32> to vector<1x2x50xf32>
    tpu.vector_store %arg6[%374, %c0_148, %c0_149], %377 {strides = array<i32>} : memref<8x2x50xf32, #tpu.memory_space<vmem>>, vector<1x2x50xf32>,
    %c4_i32 = arith.constant 4 : i32
    %c0_150 = arith.constant 0 : index
    %c0_151 = arith.constant 0 : index
    %378 = vector.load %arg8[%c0_150, %c0_151] : memref<2x256xf32, #tpu.memory_space<vmem>>, vector<2x256xf32>
    %c0_152 = arith.constant 0 : index
    %c0_153 = arith.constant 0 : index
    %379 = vector.load %arg3[%c0_152, %c0_153] : memref<256x1024xf32, #tpu.memory_space<vmem>>, vector<256x1024xf32>
    %cst_154 = arith.constant dense<0.000000e+00> : vector<2x1024xf32>
    %380 = tpu.matmul %378, %379, %cst_154 {dimension_numbers = #tpu.dot_dimension_numbers<[1], [0], [0], [1], [0, 0, 1, 1], [], []>} : vector<2x256xf32>, vector<256x1024xf32>, vector<2x1024xf32> -> vector<2x1024xf32>
    %381 = arith.index_cast %c4_i32 : i32 to index
    %c0_155 = arith.constant 0 : index
    %c0_156 = arith.constant 0 : index
    %382 = vector.load %arg7[%381, %c0_155, %c0_156] : memref<8x2x1024xf32, #tpu.memory_space<vmem>>, vector<1x2x1024xf32>
    %383 = vector.shape_cast %382 : vector<1x2x1024xf32> to vector<2x1024xf32>
    %c7_i32_157 = arith.constant 7 : i32
    %384 = arith.subi %c7_i32_157, %c4_i32 : i32
    %385 = arith.index_cast %384 : i32 to index
    %c0_158 = arith.constant 0 : index
    %c0_159 = arith.constant 0 : index
    %386 = vector.load %arg7[%385, %c0_158, %c0_159] : memref<8x2x1024xf32, #tpu.memory_space<vmem>>, vector<1x2x1024xf32>
    %387 = vector.shape_cast %386 : vector<1x2x1024xf32> to vector<2x1024xf32>
    %c0_160 = arith.constant 0 : index
    %c0_161 = arith.constant 0 : index
    %388 = vector.load %arg9[%c0_160, %c0_161] : memref<2x256xf32, #tpu.memory_space<vmem>>, vector<2x256xf32>
    %389 = vector.extract_strided_slice %380 {offsets = [0, 0], sizes = [2, 512], strides = [1, 1]} : vector<2x1024xf32> to vector<2x512xf32>
    %390 = vector.extract_strided_slice %383 {offsets = [0, 0], sizes = [2, 512], strides = [1, 1]} : vector<2x1024xf32> to vector<2x512xf32>
    %391 = arith.addf %389, %390 : vector<2x512xf32>
    %392 = vector.extract_strided_slice %391 {offsets = [0, 0], sizes = [2, 128], strides = [1, 1]} : vector<2x512xf32> to vector<2x128xf32>
    %393 = arith.negf %392 : vector<2x128xf32>
    %394 = math.exp %393 : vector<2x128xf32>
    %cst_162 = arith.constant 1.000000e+00 : f32
    %395 = vector.broadcast %cst_162 : f32 to vector<2x128xf32>
    %396 = arith.addf %395, %394 : vector<2x128xf32>
    %397 = arith.divf %395, %396 : vector<2x128xf32>
    %398 = vector.extract_strided_slice %391 {offsets = [0, 128], sizes = [2, 128], strides = [1, 1]} : vector<2x512xf32> to vector<2x128xf32>
    %399 = arith.negf %398 : vector<2x128xf32>
    %400 = math.exp %399 : vector<2x128xf32>
    %cst_163 = arith.constant 1.000000e+00 : f32
    %401 = vector.broadcast %cst_163 : f32 to vector<2x128xf32>
    %402 = arith.addf %401, %400 : vector<2x128xf32>
    %403 = arith.divf %401, %402 : vector<2x128xf32>
    %404 = vector.extract_strided_slice %391 {offsets = [0, 256], sizes = [2, 128], strides = [1, 1]} : vector<2x512xf32> to vector<2x128xf32>
    %405 = math.tanh %404 : vector<2x128xf32>
    %406 = vector.extract_strided_slice %391 {offsets = [0, 384], sizes = [2, 128], strides = [1, 1]} : vector<2x512xf32> to vector<2x128xf32>
    %407 = arith.negf %406 : vector<2x128xf32>
    %408 = math.exp %407 : vector<2x128xf32>
    %cst_164 = arith.constant 1.000000e+00 : f32
    %409 = vector.broadcast %cst_164 : f32 to vector<2x128xf32>
    %410 = arith.addf %409, %408 : vector<2x128xf32>
    %411 = arith.divf %409, %410 : vector<2x128xf32>
    %412 = vector.extract_strided_slice %388 {offsets = [0, 0], sizes = [2, 128], strides = [1, 1]} : vector<2x256xf32> to vector<2x128xf32>
    %413 = arith.mulf %403, %412 : vector<2x128xf32>
    %414 = arith.mulf %397, %405 : vector<2x128xf32>
    %415 = arith.addf %413, %414 : vector<2x128xf32>
    %416 = math.tanh %415 : vector<2x128xf32>
    %417 = arith.mulf %411, %416 : vector<2x128xf32>
    %418 = vector.extract_strided_slice %380 {offsets = [0, 512], sizes = [2, 512], strides = [1, 1]} : vector<2x1024xf32> to vector<2x512xf32>
    %419 = vector.extract_strided_slice %387 {offsets = [0, 512], sizes = [2, 512], strides = [1, 1]} : vector<2x1024xf32> to vector<2x512xf32>
    %420 = arith.addf %418, %419 : vector<2x512xf32>
    %421 = vector.extract_strided_slice %420 {offsets = [0, 0], sizes = [2, 128], strides = [1, 1]} : vector<2x512xf32> to vector<2x128xf32>
    %422 = arith.negf %421 : vector<2x128xf32>
    %423 = math.exp %422 : vector<2x128xf32>
    %cst_165 = arith.constant 1.000000e+00 : f32
    %424 = vector.broadcast %cst_165 : f32 to vector<2x128xf32>
    %425 = arith.addf %424, %423 : vector<2x128xf32>
    %426 = arith.divf %424, %425 : vector<2x128xf32>
    %427 = vector.extract_strided_slice %420 {offsets = [0, 128], sizes = [2, 128], strides = [1, 1]} : vector<2x512xf32> to vector<2x128xf32>
    %428 = arith.negf %427 : vector<2x128xf32>
    %429 = math.exp %428 : vector<2x128xf32>
    %cst_166 = arith.constant 1.000000e+00 : f32
    %430 = vector.broadcast %cst_166 : f32 to vector<2x128xf32>
    %431 = arith.addf %430, %429 : vector<2x128xf32>
    %432 = arith.divf %430, %431 : vector<2x128xf32>
    %433 = vector.extract_strided_slice %420 {offsets = [0, 256], sizes = [2, 128], strides = [1, 1]} : vector<2x512xf32> to vector<2x128xf32>
    %434 = math.tanh %433 : vector<2x128xf32>
    %435 = vector.extract_strided_slice %420 {offsets = [0, 384], sizes = [2, 128], strides = [1, 1]} : vector<2x512xf32> to vector<2x128xf32>
    %436 = arith.negf %435 : vector<2x128xf32>
    %437 = math.exp %436 : vector<2x128xf32>
    %cst_167 = arith.constant 1.000000e+00 : f32
    %438 = vector.broadcast %cst_167 : f32 to vector<2x128xf32>
    %439 = arith.addf %438, %437 : vector<2x128xf32>
    %440 = arith.divf %438, %439 : vector<2x128xf32>
    %441 = vector.extract_strided_slice %388 {offsets = [0, 128], sizes = [2, 128], strides = [1, 1]} : vector<2x256xf32> to vector<2x128xf32>
    %442 = arith.mulf %432, %441 : vector<2x128xf32>
    %443 = arith.mulf %426, %434 : vector<2x128xf32>
    %444 = arith.addf %442, %443 : vector<2x128xf32>
    %445 = math.tanh %444 : vector<2x128xf32>
    %446 = arith.mulf %440, %445 : vector<2x128xf32>
    %c0_168 = arith.constant 0 : index
    %c0_169 = arith.constant 0 : index
    %447 = vector.load %arg8[%c0_168, %c0_169] : memref<2x256xf32, #tpu.memory_space<vmem>>, vector<2x128xf32>
    tpu.vector_store %arg8[%c0_168, %c0_169], %417 {strides = array<i32>} : memref<2x256xf32, #tpu.memory_space<vmem>>, vector<2x128xf32>,
    %c0_170 = arith.constant 0 : index
    %c128_171 = arith.constant 128 : index
    %448 = vector.load %arg8[%c0_170, %c128_171] : memref<2x256xf32, #tpu.memory_space<vmem>>, vector<2x128xf32>
    tpu.vector_store %arg8[%c0_170, %c128_171], %446 {strides = array<i32>} : memref<2x256xf32, #tpu.memory_space<vmem>>, vector<2x128xf32>,
    %c0_172 = arith.constant 0 : index
    %c0_173 = arith.constant 0 : index
    %449 = vector.load %arg9[%c0_172, %c0_173] : memref<2x256xf32, #tpu.memory_space<vmem>>, vector<2x128xf32>
    tpu.vector_store %arg9[%c0_172, %c0_173], %415 {strides = array<i32>} : memref<2x256xf32, #tpu.memory_space<vmem>>, vector<2x128xf32>,
    %c0_174 = arith.constant 0 : index
    %c128_175 = arith.constant 128 : index
    %450 = vector.load %arg9[%c0_174, %c128_175] : memref<2x256xf32, #tpu.memory_space<vmem>>, vector<2x128xf32>
    tpu.vector_store %arg9[%c0_174, %c128_175], %444 {strides = array<i32>} : memref<2x256xf32, #tpu.memory_space<vmem>>, vector<2x128xf32>,
    %451 = vector.extract_strided_slice %417 {offsets = [0, 0], sizes = [2, 50], strides = [1, 1]} : vector<2x128xf32> to vector<2x50xf32>
    %452 = arith.index_cast %c4_i32 : i32 to index
    %c0_176 = arith.constant 0 : index
    %c0_177 = arith.constant 0 : index
    %453 = vector.load %arg5[%452, %c0_176, %c0_177] : memref<8x2x50xf32, #tpu.memory_space<vmem>>, vector<1x2x50xf32>
    %454 = vector.shape_cast %453 : vector<1x2x50xf32> to vector<2x50xf32>
    %455 = vector.shape_cast %451 : vector<2x50xf32> to vector<1x2x50xf32>
    tpu.vector_store %arg5[%452, %c0_176, %c0_177], %455 {strides = array<i32>} : memref<8x2x50xf32, #tpu.memory_space<vmem>>, vector<1x2x50xf32>,
    %456 = vector.extract_strided_slice %446 {offsets = [0, 0], sizes = [2, 50], strides = [1, 1]} : vector<2x128xf32> to vector<2x50xf32>
    %c7_i32_178 = arith.constant 7 : i32
    %457 = arith.subi %c7_i32_178, %c4_i32 : i32
    %458 = arith.index_cast %457 : i32 to index
    %c0_179 = arith.constant 0 : index
    %c0_180 = arith.constant 0 : index
    %459 = vector.load %arg6[%458, %c0_179, %c0_180] : memref<8x2x50xf32, #tpu.memory_space<vmem>>, vector<1x2x50xf32>
    %460 = vector.shape_cast %459 : vector<1x2x50xf32> to vector<2x50xf32>
    %461 = vector.shape_cast %456 : vector<2x50xf32> to vector<1x2x50xf32>
    tpu.vector_store %arg6[%458, %c0_179, %c0_180], %461 {strides = array<i32>} : memref<8x2x50xf32, #tpu.memory_space<vmem>>, vector<1x2x50xf32>,
    %c5_i32 = arith.constant 5 : i32
    %c0_181 = arith.constant 0 : index
    %c0_182 = arith.constant 0 : index
    %462 = vector.load %arg8[%c0_181, %c0_182] : memref<2x256xf32, #tpu.memory_space<vmem>>, vector<2x256xf32>
    %c0_183 = arith.constant 0 : index
    %c0_184 = arith.constant 0 : index
    %463 = vector.load %arg3[%c0_183, %c0_184] : memref<256x1024xf32, #tpu.memory_space<vmem>>, vector<256x1024xf32>
    %cst_185 = arith.constant dense<0.000000e+00> : vector<2x1024xf32>
    %464 = tpu.matmul %462, %463, %cst_185 {dimension_numbers = #tpu.dot_dimension_numbers<[1], [0], [0], [1], [0, 0, 1, 1], [], []>} : vector<2x256xf32>, vector<256x1024xf32>, vector<2x1024xf32> -> vector<2x1024xf32>
    %465 = arith.index_cast %c5_i32 : i32 to index
    %c0_186 = arith.constant 0 : index
    %c0_187 = arith.constant 0 : index
    %466 = vector.load %arg7[%465, %c0_186, %c0_187] : memref<8x2x1024xf32, #tpu.memory_space<vmem>>, vector<1x2x1024xf32>
    %467 = vector.shape_cast %466 : vector<1x2x1024xf32> to vector<2x1024xf32>
    %c7_i32_188 = arith.constant 7 : i32
    %468 = arith.subi %c7_i32_188, %c5_i32 : i32
    %469 = arith.index_cast %468 : i32 to index
    %c0_189 = arith.constant 0 : index
    %c0_190 = arith.constant 0 : index
    %470 = vector.load %arg7[%469, %c0_189, %c0_190] : memref<8x2x1024xf32, #tpu.memory_space<vmem>>, vector<1x2x1024xf32>
    %471 = vector.shape_cast %470 : vector<1x2x1024xf32> to vector<2x1024xf32>
    %c0_191 = arith.constant 0 : index
    %c0_192 = arith.constant 0 : index
    %472 = vector.load %arg9[%c0_191, %c0_192] : memref<2x256xf32, #tpu.memory_space<vmem>>, vector<2x256xf32>
    %473 = vector.extract_strided_slice %464 {offsets = [0, 0], sizes = [2, 512], strides = [1, 1]} : vector<2x1024xf32> to vector<2x512xf32>
    %474 = vector.extract_strided_slice %467 {offsets = [0, 0], sizes = [2, 512], strides = [1, 1]} : vector<2x1024xf32> to vector<2x512xf32>
    %475 = arith.addf %473, %474 : vector<2x512xf32>
    %476 = vector.extract_strided_slice %475 {offsets = [0, 0], sizes = [2, 128], strides = [1, 1]} : vector<2x512xf32> to vector<2x128xf32>
    %477 = arith.negf %476 : vector<2x128xf32>
    %478 = math.exp %477 : vector<2x128xf32>
    %cst_193 = arith.constant 1.000000e+00 : f32
    %479 = vector.broadcast %cst_193 : f32 to vector<2x128xf32>
    %480 = arith.addf %479, %478 : vector<2x128xf32>
    %481 = arith.divf %479, %480 : vector<2x128xf32>
    %482 = vector.extract_strided_slice %475 {offsets = [0, 128], sizes = [2, 128], strides = [1, 1]} : vector<2x512xf32> to vector<2x128xf32>
    %483 = arith.negf %482 : vector<2x128xf32>
    %484 = math.exp %483 : vector<2x128xf32>
    %cst_194 = arith.constant 1.000000e+00 : f32
    %485 = vector.broadcast %cst_194 : f32 to vector<2x128xf32>
    %486 = arith.addf %485, %484 : vector<2x128xf32>
    %487 = arith.divf %485, %486 : vector<2x128xf32>
    %488 = vector.extract_strided_slice %475 {offsets = [0, 256], sizes = [2, 128], strides = [1, 1]} : vector<2x512xf32> to vector<2x128xf32>
    %489 = math.tanh %488 : vector<2x128xf32>
    %490 = vector.extract_strided_slice %475 {offsets = [0, 384], sizes = [2, 128], strides = [1, 1]} : vector<2x512xf32> to vector<2x128xf32>
    %491 = arith.negf %490 : vector<2x128xf32>
    %492 = math.exp %491 : vector<2x128xf32>
    %cst_195 = arith.constant 1.000000e+00 : f32
    %493 = vector.broadcast %cst_195 : f32 to vector<2x128xf32>
    %494 = arith.addf %493, %492 : vector<2x128xf32>
    %495 = arith.divf %493, %494 : vector<2x128xf32>
    %496 = vector.extract_strided_slice %472 {offsets = [0, 0], sizes = [2, 128], strides = [1, 1]} : vector<2x256xf32> to vector<2x128xf32>
    %497 = arith.mulf %487, %496 : vector<2x128xf32>
    %498 = arith.mulf %481, %489 : vector<2x128xf32>
    %499 = arith.addf %497, %498 : vector<2x128xf32>
    %500 = math.tanh %499 : vector<2x128xf32>
    %501 = arith.mulf %495, %500 : vector<2x128xf32>
    %502 = vector.extract_strided_slice %464 {offsets = [0, 512], sizes = [2, 512], strides = [1, 1]} : vector<2x1024xf32> to vector<2x512xf32>
    %503 = vector.extract_strided_slice %471 {offsets = [0, 512], sizes = [2, 512], strides = [1, 1]} : vector<2x1024xf32> to vector<2x512xf32>
    %504 = arith.addf %502, %503 : vector<2x512xf32>
    %505 = vector.extract_strided_slice %504 {offsets = [0, 0], sizes = [2, 128], strides = [1, 1]} : vector<2x512xf32> to vector<2x128xf32>
    %506 = arith.negf %505 : vector<2x128xf32>
    %507 = math.exp %506 : vector<2x128xf32>
    %cst_196 = arith.constant 1.000000e+00 : f32
    %508 = vector.broadcast %cst_196 : f32 to vector<2x128xf32>
    %509 = arith.addf %508, %507 : vector<2x128xf32>
    %510 = arith.divf %508, %509 : vector<2x128xf32>
    %511 = vector.extract_strided_slice %504 {offsets = [0, 128], sizes = [2, 128], strides = [1, 1]} : vector<2x512xf32> to vector<2x128xf32>
    %512 = arith.negf %511 : vector<2x128xf32>
    %513 = math.exp %512 : vector<2x128xf32>
    %cst_197 = arith.constant 1.000000e+00 : f32
    %514 = vector.broadcast %cst_197 : f32 to vector<2x128xf32>
    %515 = arith.addf %514, %513 : vector<2x128xf32>
    %516 = arith.divf %514, %515 : vector<2x128xf32>
    %517 = vector.extract_strided_slice %504 {offsets = [0, 256], sizes = [2, 128], strides = [1, 1]} : vector<2x512xf32> to vector<2x128xf32>
    %518 = math.tanh %517 : vector<2x128xf32>
    %519 = vector.extract_strided_slice %504 {offsets = [0, 384], sizes = [2, 128], strides = [1, 1]} : vector<2x512xf32> to vector<2x128xf32>
    %520 = arith.negf %519 : vector<2x128xf32>
    %521 = math.exp %520 : vector<2x128xf32>
    %cst_198 = arith.constant 1.000000e+00 : f32
    %522 = vector.broadcast %cst_198 : f32 to vector<2x128xf32>
    %523 = arith.addf %522, %521 : vector<2x128xf32>
    %524 = arith.divf %522, %523 : vector<2x128xf32>
    %525 = vector.extract_strided_slice %472 {offsets = [0, 128], sizes = [2, 128], strides = [1, 1]} : vector<2x256xf32> to vector<2x128xf32>
    %526 = arith.mulf %516, %525 : vector<2x128xf32>
    %527 = arith.mulf %510, %518 : vector<2x128xf32>
    %528 = arith.addf %526, %527 : vector<2x128xf32>
    %529 = math.tanh %528 : vector<2x128xf32>
    %530 = arith.mulf %524, %529 : vector<2x128xf32>
    %c0_199 = arith.constant 0 : index
    %c0_200 = arith.constant 0 : index
    %531 = vector.load %arg8[%c0_199, %c0_200] : memref<2x256xf32, #tpu.memory_space<vmem>>, vector<2x128xf32>
    tpu.vector_store %arg8[%c0_199, %c0_200], %501 {strides = array<i32>} : memref<2x256xf32, #tpu.memory_space<vmem>>, vector<2x128xf32>,
    %c0_201 = arith.constant 0 : index
    %c128_202 = arith.constant 128 : index
    %532 = vector.load %arg8[%c0_201, %c128_202] : memref<2x256xf32, #tpu.memory_space<vmem>>, vector<2x128xf32>
    tpu.vector_store %arg8[%c0_201, %c128_202], %530 {strides = array<i32>} : memref<2x256xf32, #tpu.memory_space<vmem>>, vector<2x128xf32>,
    %c0_203 = arith.constant 0 : index
    %c0_204 = arith.constant 0 : index
    %533 = vector.load %arg9[%c0_203, %c0_204] : memref<2x256xf32, #tpu.memory_space<vmem>>, vector<2x128xf32>
    tpu.vector_store %arg9[%c0_203, %c0_204], %499 {strides = array<i32>} : memref<2x256xf32, #tpu.memory_space<vmem>>, vector<2x128xf32>,
    %c0_205 = arith.constant 0 : index
    %c128_206 = arith.constant 128 : index
    %534 = vector.load %arg9[%c0_205, %c128_206] : memref<2x256xf32, #tpu.memory_space<vmem>>, vector<2x128xf32>
    tpu.vector_store %arg9[%c0_205, %c128_206], %528 {strides = array<i32>} : memref<2x256xf32, #tpu.memory_space<vmem>>, vector<2x128xf32>,
    %535 = vector.extract_strided_slice %501 {offsets = [0, 0], sizes = [2, 50], strides = [1, 1]} : vector<2x128xf32> to vector<2x50xf32>
    %536 = arith.index_cast %c5_i32 : i32 to index
    %c0_207 = arith.constant 0 : index
    %c0_208 = arith.constant 0 : index
    %537 = vector.load %arg5[%536, %c0_207, %c0_208] : memref<8x2x50xf32, #tpu.memory_space<vmem>>, vector<1x2x50xf32>
    %538 = vector.shape_cast %537 : vector<1x2x50xf32> to vector<2x50xf32>
    %539 = vector.shape_cast %535 : vector<2x50xf32> to vector<1x2x50xf32>
    tpu.vector_store %arg5[%536, %c0_207, %c0_208], %539 {strides = array<i32>} : memref<8x2x50xf32, #tpu.memory_space<vmem>>, vector<1x2x50xf32>,
    %540 = vector.extract_strided_slice %530 {offsets = [0, 0], sizes = [2, 50], strides = [1, 1]} : vector<2x128xf32> to vector<2x50xf32>
    %c7_i32_209 = arith.constant 7 : i32
    %541 = arith.subi %c7_i32_209, %c5_i32 : i32
    %542 = arith.index_cast %541 : i32 to index
    %c0_210 = arith.constant 0 : index
    %c0_211 = arith.constant 0 : index
    %543 = vector.load %arg6[%542, %c0_210, %c0_211] : memref<8x2x50xf32, #tpu.memory_space<vmem>>, vector<1x2x50xf32>
    %544 = vector.shape_cast %543 : vector<1x2x50xf32> to vector<2x50xf32>
    %545 = vector.shape_cast %540 : vector<2x50xf32> to vector<1x2x50xf32>
    tpu.vector_store %arg6[%542, %c0_210, %c0_211], %545 {strides = array<i32>} : memref<8x2x50xf32, #tpu.memory_space<vmem>>, vector<1x2x50xf32>,
    %c6_i32 = arith.constant 6 : i32
    %c0_212 = arith.constant 0 : index
    %c0_213 = arith.constant 0 : index
    %546 = vector.load %arg8[%c0_212, %c0_213] : memref<2x256xf32, #tpu.memory_space<vmem>>, vector<2x256xf32>
    %c0_214 = arith.constant 0 : index
    %c0_215 = arith.constant 0 : index
    %547 = vector.load %arg3[%c0_214, %c0_215] : memref<256x1024xf32, #tpu.memory_space<vmem>>, vector<256x1024xf32>
    %cst_216 = arith.constant dense<0.000000e+00> : vector<2x1024xf32>
    %548 = tpu.matmul %546, %547, %cst_216 {dimension_numbers = #tpu.dot_dimension_numbers<[1], [0], [0], [1], [0, 0, 1, 1], [], []>} : vector<2x256xf32>, vector<256x1024xf32>, vector<2x1024xf32> -> vector<2x1024xf32>
    %549 = arith.index_cast %c6_i32 : i32 to index
    %c0_217 = arith.constant 0 : index
    %c0_218 = arith.constant 0 : index
    %550 = vector.load %arg7[%549, %c0_217, %c0_218] : memref<8x2x1024xf32, #tpu.memory_space<vmem>>, vector<1x2x1024xf32>
    %551 = vector.shape_cast %550 : vector<1x2x1024xf32> to vector<2x1024xf32>
    %c7_i32_219 = arith.constant 7 : i32
    %552 = arith.subi %c7_i32_219, %c6_i32 : i32
    %553 = arith.index_cast %552 : i32 to index
    %c0_220 = arith.constant 0 : index
    %c0_221 = arith.constant 0 : index
    %554 = vector.load %arg7[%553, %c0_220, %c0_221] : memref<8x2x1024xf32, #tpu.memory_space<vmem>>, vector<1x2x1024xf32>
    %555 = vector.shape_cast %554 : vector<1x2x1024xf32> to vector<2x1024xf32>
    %c0_222 = arith.constant 0 : index
    %c0_223 = arith.constant 0 : index
    %556 = vector.load %arg9[%c0_222, %c0_223] : memref<2x256xf32, #tpu.memory_space<vmem>>, vector<2x256xf32>
    %557 = vector.extract_strided_slice %548 {offsets = [0, 0], sizes = [2, 512], strides = [1, 1]} : vector<2x1024xf32> to vector<2x512xf32>
    %558 = vector.extract_strided_slice %551 {offsets = [0, 0], sizes = [2, 512], strides = [1, 1]} : vector<2x1024xf32> to vector<2x512xf32>
    %559 = arith.addf %557, %558 : vector<2x512xf32>
    %560 = vector.extract_strided_slice %559 {offsets = [0, 0], sizes = [2, 128], strides = [1, 1]} : vector<2x512xf32> to vector<2x128xf32>
    %561 = arith.negf %560 : vector<2x128xf32>
    %562 = math.exp %561 : vector<2x128xf32>
    %cst_224 = arith.constant 1.000000e+00 : f32
    %563 = vector.broadcast %cst_224 : f32 to vector<2x128xf32>
    %564 = arith.addf %563, %562 : vector<2x128xf32>
    %565 = arith.divf %563, %564 : vector<2x128xf32>
    %566 = vector.extract_strided_slice %559 {offsets = [0, 128], sizes = [2, 128], strides = [1, 1]} : vector<2x512xf32> to vector<2x128xf32>
    %567 = arith.negf %566 : vector<2x128xf32>
    %568 = math.exp %567 : vector<2x128xf32>
    %cst_225 = arith.constant 1.000000e+00 : f32
    %569 = vector.broadcast %cst_225 : f32 to vector<2x128xf32>
    %570 = arith.addf %569, %568 : vector<2x128xf32>
    %571 = arith.divf %569, %570 : vector<2x128xf32>
    %572 = vector.extract_strided_slice %559 {offsets = [0, 256], sizes = [2, 128], strides = [1, 1]} : vector<2x512xf32> to vector<2x128xf32>
    %573 = math.tanh %572 : vector<2x128xf32>
    %574 = vector.extract_strided_slice %559 {offsets = [0, 384], sizes = [2, 128], strides = [1, 1]} : vector<2x512xf32> to vector<2x128xf32>
    %575 = arith.negf %574 : vector<2x128xf32>
    %576 = math.exp %575 : vector<2x128xf32>
    %cst_226 = arith.constant 1.000000e+00 : f32
    %577 = vector.broadcast %cst_226 : f32 to vector<2x128xf32>
    %578 = arith.addf %577, %576 : vector<2x128xf32>
    %579 = arith.divf %577, %578 : vector<2x128xf32>
    %580 = vector.extract_strided_slice %556 {offsets = [0, 0], sizes = [2, 128], strides = [1, 1]} : vector<2x256xf32> to vector<2x128xf32>
    %581 = arith.mulf %571, %580 : vector<2x128xf32>
    %582 = arith.mulf %565, %573 : vector<2x128xf32>
    %583 = arith.addf %581, %582 : vector<2x128xf32>
    %584 = math.tanh %583 : vector<2x128xf32>
    %585 = arith.mulf %579, %584 : vector<2x128xf32>
    %586 = vector.extract_strided_slice %548 {offsets = [0, 512], sizes = [2, 512], strides = [1, 1]} : vector<2x1024xf32> to vector<2x512xf32>
    %587 = vector.extract_strided_slice %555 {offsets = [0, 512], sizes = [2, 512], strides = [1, 1]} : vector<2x1024xf32> to vector<2x512xf32>
    %588 = arith.addf %586, %587 : vector<2x512xf32>
    %589 = vector.extract_strided_slice %588 {offsets = [0, 0], sizes = [2, 128], strides = [1, 1]} : vector<2x512xf32> to vector<2x128xf32>
    %590 = arith.negf %589 : vector<2x128xf32>
    %591 = math.exp %590 : vector<2x128xf32>
    %cst_227 = arith.constant 1.000000e+00 : f32
    %592 = vector.broadcast %cst_227 : f32 to vector<2x128xf32>
    %593 = arith.addf %592, %591 : vector<2x128xf32>
    %594 = arith.divf %592, %593 : vector<2x128xf32>
    %595 = vector.extract_strided_slice %588 {offsets = [0, 128], sizes = [2, 128], strides = [1, 1]} : vector<2x512xf32> to vector<2x128xf32>
    %596 = arith.negf %595 : vector<2x128xf32>
    %597 = math.exp %596 : vector<2x128xf32>
    %cst_228 = arith.constant 1.000000e+00 : f32
    %598 = vector.broadcast %cst_228 : f32 to vector<2x128xf32>
    %599 = arith.addf %598, %597 : vector<2x128xf32>
    %600 = arith.divf %598, %599 : vector<2x128xf32>
    %601 = vector.extract_strided_slice %588 {offsets = [0, 256], sizes = [2, 128], strides = [1, 1]} : vector<2x512xf32> to vector<2x128xf32>
    %602 = math.tanh %601 : vector<2x128xf32>
    %603 = vector.extract_strided_slice %588 {offsets = [0, 384], sizes = [2, 128], strides = [1, 1]} : vector<2x512xf32> to vector<2x128xf32>
    %604 = arith.negf %603 : vector<2x128xf32>
    %605 = math.exp %604 : vector<2x128xf32>
    %cst_229 = arith.constant 1.000000e+00 : f32
    %606 = vector.broadcast %cst_229 : f32 to vector<2x128xf32>
    %607 = arith.addf %606, %605 : vector<2x128xf32>
    %608 = arith.divf %606, %607 : vector<2x128xf32>
    %609 = vector.extract_strided_slice %556 {offsets = [0, 128], sizes = [2, 128], strides = [1, 1]} : vector<2x256xf32> to vector<2x128xf32>
    %610 = arith.mulf %600, %609 : vector<2x128xf32>
    %611 = arith.mulf %594, %602 : vector<2x128xf32>
    %612 = arith.addf %610, %611 : vector<2x128xf32>
    %613 = math.tanh %612 : vector<2x128xf32>
    %614 = arith.mulf %608, %613 : vector<2x128xf32>
    %c0_230 = arith.constant 0 : index
    %c0_231 = arith.constant 0 : index
    %615 = vector.load %arg8[%c0_230, %c0_231] : memref<2x256xf32, #tpu.memory_space<vmem>>, vector<2x128xf32>
    tpu.vector_store %arg8[%c0_230, %c0_231], %585 {strides = array<i32>} : memref<2x256xf32, #tpu.memory_space<vmem>>, vector<2x128xf32>,
    %c0_232 = arith.constant 0 : index
    %c128_233 = arith.constant 128 : index
    %616 = vector.load %arg8[%c0_232, %c128_233] : memref<2x256xf32, #tpu.memory_space<vmem>>, vector<2x128xf32>
    tpu.vector_store %arg8[%c0_232, %c128_233], %614 {strides = array<i32>} : memref<2x256xf32, #tpu.memory_space<vmem>>, vector<2x128xf32>,
    %c0_234 = arith.constant 0 : index
    %c0_235 = arith.constant 0 : index
    %617 = vector.load %arg9[%c0_234, %c0_235] : memref<2x256xf32, #tpu.memory_space<vmem>>, vector<2x128xf32>
    tpu.vector_store %arg9[%c0_234, %c0_235], %583 {strides = array<i32>} : memref<2x256xf32, #tpu.memory_space<vmem>>, vector<2x128xf32>,
    %c0_236 = arith.constant 0 : index
    %c128_237 = arith.constant 128 : index
    %618 = vector.load %arg9[%c0_236, %c128_237] : memref<2x256xf32, #tpu.memory_space<vmem>>, vector<2x128xf32>
    tpu.vector_store %arg9[%c0_236, %c128_237], %612 {strides = array<i32>} : memref<2x256xf32, #tpu.memory_space<vmem>>, vector<2x128xf32>,
    %619 = vector.extract_strided_slice %585 {offsets = [0, 0], sizes = [2, 50], strides = [1, 1]} : vector<2x128xf32> to vector<2x50xf32>
    %620 = arith.index_cast %c6_i32 : i32 to index
    %c0_238 = arith.constant 0 : index
    %c0_239 = arith.constant 0 : index
    %621 = vector.load %arg5[%620, %c0_238, %c0_239] : memref<8x2x50xf32, #tpu.memory_space<vmem>>, vector<1x2x50xf32>
    %622 = vector.shape_cast %621 : vector<1x2x50xf32> to vector<2x50xf32>
    %623 = vector.shape_cast %619 : vector<2x50xf32> to vector<1x2x50xf32>
    tpu.vector_store %arg5[%620, %c0_238, %c0_239], %623 {strides = array<i32>} : memref<8x2x50xf32, #tpu.memory_space<vmem>>, vector<1x2x50xf32>,
    %624 = vector.extract_strided_slice %614 {offsets = [0, 0], sizes = [2, 50], strides = [1, 1]} : vector<2x128xf32> to vector<2x50xf32>
    %c7_i32_240 = arith.constant 7 : i32
    %625 = arith.subi %c7_i32_240, %c6_i32 : i32
    %626 = arith.index_cast %625 : i32 to index
    %c0_241 = arith.constant 0 : index
    %c0_242 = arith.constant 0 : index
    %627 = vector.load %arg6[%626, %c0_241, %c0_242] : memref<8x2x50xf32, #tpu.memory_space<vmem>>, vector<1x2x50xf32>
    %628 = vector.shape_cast %627 : vector<1x2x50xf32> to vector<2x50xf32>
    %629 = vector.shape_cast %624 : vector<2x50xf32> to vector<1x2x50xf32>
    tpu.vector_store %arg6[%626, %c0_241, %c0_242], %629 {strides = array<i32>} : memref<8x2x50xf32, #tpu.memory_space<vmem>>, vector<1x2x50xf32>,
    %c7_i32_243 = arith.constant 7 : i32
    %c0_244 = arith.constant 0 : index
    %c0_245 = arith.constant 0 : index
    %630 = vector.load %arg8[%c0_244, %c0_245] : memref<2x256xf32, #tpu.memory_space<vmem>>, vector<2x256xf32>
    %c0_246 = arith.constant 0 : index
    %c0_247 = arith.constant 0 : index
    %631 = vector.load %arg3[%c0_246, %c0_247] : memref<256x1024xf32, #tpu.memory_space<vmem>>, vector<256x1024xf32>
    %cst_248 = arith.constant dense<0.000000e+00> : vector<2x1024xf32>
    %632 = tpu.matmul %630, %631, %cst_248 {dimension_numbers = #tpu.dot_dimension_numbers<[1], [0], [0], [1], [0, 0, 1, 1], [], []>} : vector<2x256xf32>, vector<256x1024xf32>, vector<2x1024xf32> -> vector<2x1024xf32>
    %633 = arith.index_cast %c7_i32_243 : i32 to index
    %c0_249 = arith.constant 0 : index
    %c0_250 = arith.constant 0 : index
    %634 = vector.load %arg7[%633, %c0_249, %c0_250] : memref<8x2x1024xf32, #tpu.memory_space<vmem>>, vector<1x2x1024xf32>
    %635 = vector.shape_cast %634 : vector<1x2x1024xf32> to vector<2x1024xf32>
    %c7_i32_251 = arith.constant 7 : i32
    %636 = arith.subi %c7_i32_251, %c7_i32_243 : i32
    %637 = arith.index_cast %636 : i32 to index
    %c0_252 = arith.constant 0 : index
    %c0_253 = arith.constant 0 : index
    %638 = vector.load %arg7[%637, %c0_252, %c0_253] : memref<8x2x1024xf32, #tpu.memory_space<vmem>>, vector<1x2x1024xf32>
    %639 = vector.shape_cast %638 : vector<1x2x1024xf32> to vector<2x1024xf32>
    %c0_254 = arith.constant 0 : index
    %c0_255 = arith.constant 0 : index
    %640 = vector.load %arg9[%c0_254, %c0_255] : memref<2x256xf32, #tpu.memory_space<vmem>>, vector<2x256xf32>
    %641 = vector.extract_strided_slice %632 {offsets = [0, 0], sizes = [2, 512], strides = [1, 1]} : vector<2x1024xf32> to vector<2x512xf32>
    %642 = vector.extract_strided_slice %635 {offsets = [0, 0], sizes = [2, 512], strides = [1, 1]} : vector<2x1024xf32> to vector<2x512xf32>
    %643 = arith.addf %641, %642 : vector<2x512xf32>
    %644 = vector.extract_strided_slice %643 {offsets = [0, 0], sizes = [2, 128], strides = [1, 1]} : vector<2x512xf32> to vector<2x128xf32>
    %645 = arith.negf %644 : vector<2x128xf32>
    %646 = math.exp %645 : vector<2x128xf32>
    %cst_256 = arith.constant 1.000000e+00 : f32
    %647 = vector.broadcast %cst_256 : f32 to vector<2x128xf32>
    %648 = arith.addf %647, %646 : vector<2x128xf32>
    %649 = arith.divf %647, %648 : vector<2x128xf32>
    %650 = vector.extract_strided_slice %643 {offsets = [0, 128], sizes = [2, 128], strides = [1, 1]} : vector<2x512xf32> to vector<2x128xf32>
    %651 = arith.negf %650 : vector<2x128xf32>
    %652 = math.exp %651 : vector<2x128xf32>
    %cst_257 = arith.constant 1.000000e+00 : f32
    %653 = vector.broadcast %cst_257 : f32 to vector<2x128xf32>
    %654 = arith.addf %653, %652 : vector<2x128xf32>
    %655 = arith.divf %653, %654 : vector<2x128xf32>
    %656 = vector.extract_strided_slice %643 {offsets = [0, 256], sizes = [2, 128], strides = [1, 1]} : vector<2x512xf32> to vector<2x128xf32>
    %657 = math.tanh %656 : vector<2x128xf32>
    %658 = vector.extract_strided_slice %643 {offsets = [0, 384], sizes = [2, 128], strides = [1, 1]} : vector<2x512xf32> to vector<2x128xf32>
    %659 = arith.negf %658 : vector<2x128xf32>
    %660 = math.exp %659 : vector<2x128xf32>
    %cst_258 = arith.constant 1.000000e+00 : f32
    %661 = vector.broadcast %cst_258 : f32 to vector<2x128xf32>
    %662 = arith.addf %661, %660 : vector<2x128xf32>
    %663 = arith.divf %661, %662 : vector<2x128xf32>
    %664 = vector.extract_strided_slice %640 {offsets = [0, 0], sizes = [2, 128], strides = [1, 1]} : vector<2x256xf32> to vector<2x128xf32>
    %665 = arith.mulf %655, %664 : vector<2x128xf32>
    %666 = arith.mulf %649, %657 : vector<2x128xf32>
    %667 = arith.addf %665, %666 : vector<2x128xf32>
    %668 = math.tanh %667 : vector<2x128xf32>
    %669 = arith.mulf %663, %668 : vector<2x128xf32>
    %670 = vector.extract_strided_slice %632 {offsets = [0, 512], sizes = [2, 512], strides = [1, 1]} : vector<2x1024xf32> to vector<2x512xf32>
    %671 = vector.extract_strided_slice %639 {offsets = [0, 512], sizes = [2, 512], strides = [1, 1]} : vector<2x1024xf32> to vector<2x512xf32>
    %672 = arith.addf %670, %671 : vector<2x512xf32>
    %673 = vector.extract_strided_slice %672 {offsets = [0, 0], sizes = [2, 128], strides = [1, 1]} : vector<2x512xf32> to vector<2x128xf32>
    %674 = arith.negf %673 : vector<2x128xf32>
    %675 = math.exp %674 : vector<2x128xf32>
    %cst_259 = arith.constant 1.000000e+00 : f32
    %676 = vector.broadcast %cst_259 : f32 to vector<2x128xf32>
    %677 = arith.addf %676, %675 : vector<2x128xf32>
    %678 = arith.divf %676, %677 : vector<2x128xf32>
    %679 = vector.extract_strided_slice %672 {offsets = [0, 128], sizes = [2, 128], strides = [1, 1]} : vector<2x512xf32> to vector<2x128xf32>
    %680 = arith.negf %679 : vector<2x128xf32>
    %681 = math.exp %680 : vector<2x128xf32>
    %cst_260 = arith.constant 1.000000e+00 : f32
    %682 = vector.broadcast %cst_260 : f32 to vector<2x128xf32>
    %683 = arith.addf %682, %681 : vector<2x128xf32>
    %684 = arith.divf %682, %683 : vector<2x128xf32>
    %685 = vector.extract_strided_slice %672 {offsets = [0, 256], sizes = [2, 128], strides = [1, 1]} : vector<2x512xf32> to vector<2x128xf32>
    %686 = math.tanh %685 : vector<2x128xf32>
    %687 = vector.extract_strided_slice %672 {offsets = [0, 384], sizes = [2, 128], strides = [1, 1]} : vector<2x512xf32> to vector<2x128xf32>
    %688 = arith.negf %687 : vector<2x128xf32>
    %689 = math.exp %688 : vector<2x128xf32>
    %cst_261 = arith.constant 1.000000e+00 : f32
    %690 = vector.broadcast %cst_261 : f32 to vector<2x128xf32>
    %691 = arith.addf %690, %689 : vector<2x128xf32>
    %692 = arith.divf %690, %691 : vector<2x128xf32>
    %693 = vector.extract_strided_slice %640 {offsets = [0, 128], sizes = [2, 128], strides = [1, 1]} : vector<2x256xf32> to vector<2x128xf32>
    %694 = arith.mulf %684, %693 : vector<2x128xf32>
    %695 = arith.mulf %678, %686 : vector<2x128xf32>
    %696 = arith.addf %694, %695 : vector<2x128xf32>
    %697 = math.tanh %696 : vector<2x128xf32>
    %698 = arith.mulf %692, %697 : vector<2x128xf32>
    %c0_262 = arith.constant 0 : index
    %c0_263 = arith.constant 0 : index
    %699 = vector.load %arg8[%c0_262, %c0_263] : memref<2x256xf32, #tpu.memory_space<vmem>>, vector<2x128xf32>
    tpu.vector_store %arg8[%c0_262, %c0_263], %669 {strides = array<i32>} : memref<2x256xf32, #tpu.memory_space<vmem>>, vector<2x128xf32>,
    %c0_264 = arith.constant 0 : index
    %c128_265 = arith.constant 128 : index
    %700 = vector.load %arg8[%c0_264, %c128_265] : memref<2x256xf32, #tpu.memory_space<vmem>>, vector<2x128xf32>
    tpu.vector_store %arg8[%c0_264, %c128_265], %698 {strides = array<i32>} : memref<2x256xf32, #tpu.memory_space<vmem>>, vector<2x128xf32>,
    %c0_266 = arith.constant 0 : index
    %c0_267 = arith.constant 0 : index
    %701 = vector.load %arg9[%c0_266, %c0_267] : memref<2x256xf32, #tpu.memory_space<vmem>>, vector<2x128xf32>
    tpu.vector_store %arg9[%c0_266, %c0_267], %667 {strides = array<i32>} : memref<2x256xf32, #tpu.memory_space<vmem>>, vector<2x128xf32>,
    %c0_268 = arith.constant 0 : index
    %c128_269 = arith.constant 128 : index
    %702 = vector.load %arg9[%c0_268, %c128_269] : memref<2x256xf32, #tpu.memory_space<vmem>>, vector<2x128xf32>
    tpu.vector_store %arg9[%c0_268, %c128_269], %696 {strides = array<i32>} : memref<2x256xf32, #tpu.memory_space<vmem>>, vector<2x128xf32>,
    %703 = vector.extract_strided_slice %669 {offsets = [0, 0], sizes = [2, 50], strides = [1, 1]} : vector<2x128xf32> to vector<2x50xf32>
    %704 = arith.index_cast %c7_i32_243 : i32 to index
    %c0_270 = arith.constant 0 : index
    %c0_271 = arith.constant 0 : index
    %705 = vector.load %arg5[%704, %c0_270, %c0_271] : memref<8x2x50xf32, #tpu.memory_space<vmem>>, vector<1x2x50xf32>
    %706 = vector.shape_cast %705 : vector<1x2x50xf32> to vector<2x50xf32>
    %707 = vector.shape_cast %703 : vector<2x50xf32> to vector<1x2x50xf32>
    tpu.vector_store %arg5[%704, %c0_270, %c0_271], %707 {strides = array<i32>} : memref<8x2x50xf32, #tpu.memory_space<vmem>>, vector<1x2x50xf32>,
    %708 = vector.extract_strided_slice %698 {offsets = [0, 0], sizes = [2, 50], strides = [1, 1]} : vector<2x128xf32> to vector<2x50xf32>
    %c7_i32_272 = arith.constant 7 : i32
    %709 = arith.subi %c7_i32_272, %c7_i32_243 : i32
    %710 = arith.index_cast %709 : i32 to index
    %c0_273 = arith.constant 0 : index
    %c0_274 = arith.constant 0 : index
    %711 = vector.load %arg6[%710, %c0_273, %c0_274] : memref<8x2x50xf32, #tpu.memory_space<vmem>>, vector<1x2x50xf32>
    %712 = vector.shape_cast %711 : vector<1x2x50xf32> to vector<2x50xf32>
    %713 = vector.shape_cast %708 : vector<2x50xf32> to vector<1x2x50xf32>
    tpu.vector_store %arg6[%710, %c0_273, %c0_274], %713 {strides = array<i32>} : memref<8x2x50xf32, #tpu.memory_space<vmem>>, vector<1x2x50xf32>,
    %c8_i32 = arith.constant 8 : i32
    return
  }
  func.func @transform_0(%arg0: i32) -> (i32, i32) {
    %c0_i32 = arith.constant 0 : i32
    %c0_i32_0 = arith.constant 0 : i32
    %c0_i32_1 = arith.constant 0 : i32
    return %c0_i32, %c0_i32_0 : i32, i32
  }
  func.func @transform_1(%arg0: i32) -> (i32, i32) {
    %c0_i32 = arith.constant 0 : i32
    %c0_i32_0 = arith.constant 0 : i32
    %c0_i32_1 = arith.constant 0 : i32
    return %c0_i32, %c0_i32_0 : i32, i32
  }
  func.func @transform_2(%arg0: i32) -> (i32, i32) {
    %c0_i32 = arith.constant 0 : i32
    %c0_i32_0 = arith.constant 0 : i32
    %c0_i32_1 = arith.constant 0 : i32
    return %c0_i32, %c0_i32_0 : i32, i32
  }
  func.func @transform_3(%arg0: i32) -> (i32, i32) {
    %c0_i32 = arith.constant 0 : i32
    %c0_i32_0 = arith.constant 0 : i32
    %c0_i32_1 = arith.constant 0 : i32
    return %c0_i32, %c0_i32_0 : i32, i32
  }
  func.func @transform_4(%arg0: i32) -> (i32, i32, i32) {
    %c0_i32 = arith.constant 0 : i32
    %c0_i32_0 = arith.constant 0 : i32
    %c0_i32_1 = arith.constant 0 : i32
    %c0_i32_2 = arith.constant 0 : i32
    return %c0_i32, %c0_i32_0, %c0_i32_1 : i32, i32, i32
  }
  func.func @transform_5(%arg0: i32) -> (i32, i32, i32) {
    %c0_i32 = arith.constant 0 : i32
    %c0_i32_0 = arith.constant 0 : i32
    %c0_i32_1 = arith.constant 0 : i32
    %c0_i32_2 = arith.constant 0 : i32
    return %c0_i32, %c0_i32_0, %c0_i32_1 : i32, i32, i32
  }
}

</mosaic_0001>

<llo_original>
// kernel: bidirectional_lstm.1
$region0: #{bidirectional_lstm.1}
  #allocation0 [shape = 'u32[]', space=smem, size = 0x4, offset = 0x4, fixed_abs, tag = 'smem constant byte address 0x4 - core index']
  #allocation1 [shape = 'u32[72,128]{1,0:T(1,128)}', space=vmem, size = 0x9000, scoped, tag = 'internal scratch']
  #allocation2 [shape = 'f32[8,2,1024]{2,1,0:T(2,128)}', space=vmem, size = 0x10000, scoped, tag = 'scratch operand']
  #allocation3 [shape = 'f32[2,256]{1,0:T(2,128)}', space=vmem, size = 0x800, scoped, tag = 'scratch operand']
  #allocation4 [shape = 'f32[2,256]{1,0:T(2,128)}', space=vmem, size = 0x800, scoped, tag = 'scratch operand']
  %s0 = inlined_call_operand.hbm [shape: f32[16,50], index: 0, kind: input, shape index: {}]
  %s1 = inlined_call_operand.hbm [shape: f32[50,1024], index: 1, kind: input, shape index: {}]
  %s2 = inlined_call_operand.hbm [shape: f32[256,1024], index: 2, kind: input, shape index: {}]
  %s3 = inlined_call_operand.hbm [shape: f32[1,1024], index: 3, kind: input, shape index: {}]
  %s4 = inlined_call_operand.vmem [shape: f32[8,2,50], index: 4, kind: output, shape index: {0}]
  %s5 = inlined_call_operand.vmem [shape: f32[8,2,50], index: 5, kind: output, shape index: {1}]
  %6 = xla_tuple %s4, %s5
  %s7 = sld [smem:[#allocation0]]
  $region50: #{bidirectional_lstm.1} parent=0
    _
  %s9 = ssub.s32 1, %s7
  %s10 = scalar_select 0, %s9, %s7
  $region1: #{bidirectional_lstm.1} parent=0
    #allocation5 [shape = 'u8[8192]{0}', space=vmem, size = 0x2000, scoped, tag = 'input window, operand 0, single buffered']
    #allocation6 [shape = 's32[1]{0}', space=sflag, size = 0x4, scoped, tag = 'scoped memory for bidirectional_lstm.1']
    #allocation7 [shape = 'u8[229376]{0}', space=vmem, size = 0x38000, scoped, tag = 'input window, operand 1, single buffered']
    #allocation8 [shape = 's32[1]{0}', space=sflag, size = 0x4, scoped, tag = 'scoped memory for bidirectional_lstm.1']
    #allocation9 [shape = 'u8[1048576]{0}', space=vmem, size = 0x100000, scoped, tag = 'input window, operand 2, single buffered']
    #allocation10 [shape = 'u8[4096]{0}', space=vmem, size = 0x1000, scoped, tag = 'input window, operand 3, single buffered']
    #allocation11 [shape = 's32[1]{0}', space=sflag, size = 0x4, scoped, tag = 'scoped memory for bidirectional_lstm.1']
    %11 = vsyncpa [#allocation6], 0
    %12 = vsyncpa [#allocation8], 0
    %13 = vsyncpa [#allocation11], 0
    // Predicated region
    $region2: #{bidirectional_lstm.1} parent=1 // pred_check
      _
    $region3: #{bidirectional_lstm.1} parent=1 // pred_check_branch
      %15 = sbr.rel (0) target = $region5
    $region4: #{bidirectional_lstm.1} parent=1 // pred_region
      %17 = vsyncadd [#allocation6], 0
      %s18 = sshll.u32 %s0, 4
      %s19 = int_to_ptr.hbm [resolvable:$true] %s18
      %s20 = sshll.u32 [#allocation5], 4
      %s21 = int_to_ptr.vmem [resolvable:$true] %s20
      %26 = dma.hbm_to_vmem [thread:$0]  %s19, 256, %s21, [#allocation6], 128, 128, 8
    $region5: #{bidirectional_lstm.1} parent=1 // pred_fallthru
      _
    // Predicated region
    $region6: #{bidirectional_lstm.1} parent=1 // pred_check
      _
    $region7: #{bidirectional_lstm.1} parent=1 // pred_check_branch
      %28 = sbr.rel (0) target = $region9
    $region8: #{bidirectional_lstm.1} parent=1 // pred_region
      %30 = vsyncadd [#allocation8], 0
      %s31 = sshll.u32 %s1, 4
      %s32 = int_to_ptr.hbm [resolvable:$true] %s31
      %s33 = sshll.u32 [#allocation7], 4
      %s34 = int_to_ptr.vmem [resolvable:$true] %s33
      %39 = dma.hbm_to_vmem [thread:$0]  %s32, 7168, %s34, [#allocation8], 1024, 1024, 64
    $region9: #{bidirectional_lstm.1} parent=1 // pred_fallthru
      _
    // Predicated region
    $region10: #{bidirectional_lstm.1} parent=1 // pred_check
      _
    $region11: #{bidirectional_lstm.1} parent=1 // pred_check_branch
      %41 = sbr.rel (0) target = $region13
    $region12: #{bidirectional_lstm.1} parent=1 // pred_region
      %43 = vsyncadd [#allocation8], 0
      %s44 = sshll.u32 %s2, 4
      %s45 = int_to_ptr.hbm [resolvable:$true] %s44
      %s46 = sshll.u32 [#allocation9], 4
      %s47 = int_to_ptr.vmem [resolvable:$true] %s46
      %52 = dma.hbm_to_vmem [thread:$0]  %s45, 32768, %s47, [#allocation8], 1024, 1024, 64
    $region13: #{bidirectional_lstm.1} parent=1 // pred_fallthru
      _
    // Predicated region
    $region14: #{bidirectional_lstm.1} parent=1 // pred_check
      _
    $region15: #{bidirectional_lstm.1} parent=1 // pred_check_branch
      %54 = sbr.rel (0) target = $region17
    $region16: #{bidirectional_lstm.1} parent=1 // pred_region
      %56 = vsyncadd [#allocation11], 0
      %s58 = sshll.u32 %s3, 4
      %s59 = int_to_ptr.hbm [resolvable:$true] %s58
      %s60 = sshll.u32 [#allocation10], 4
      %s61 = int_to_ptr.vmem [resolvable:$true] %s60
      %63 = dma.hbm_to_vmem [thread:$0]  %s59, 128, %s61, [#allocation11]
    $region17: #{bidirectional_lstm.1} parent=1 // pred_fallthru
      _
    // Predicated region
    $region18: #{bidirectional_lstm.1} parent=1 // pred_check
      _
    $region19: #{bidirectional_lstm.1} parent=1 // pred_check_branch
      %65 = sbr.rel (0) target = $region21
    $region20: #{bidirectional_lstm.1} parent=1 // pred_region
      %67 = dma.done [#allocation6], 256
    $region21: #{bidirectional_lstm.1} parent=1 // pred_fallthru
      _
    // Predicated region
    $region22: #{bidirectional_lstm.1} parent=1 // pred_check
      _
    $region23: #{bidirectional_lstm.1} parent=1 // pred_check_branch
      %69 = sbr.rel (0) target = $region25
    $region24: #{bidirectional_lstm.1} parent=1 // pred_region
      %71 = dma.done [#allocation8], 7168
    $region25: #{bidirectional_lstm.1} parent=1 // pred_fallthru
      _
    // Predicated region
    $region26: #{bidirectional_lstm.1} parent=1 // pred_check
      _
    $region27: #{bidirectional_lstm.1} parent=1 // pred_check_branch
      %73 = sbr.rel (0) target = $region29
    $region28: #{bidirectional_lstm.1} parent=1 // pred_region
      %75 = dma.done [#allocation8], 32768
    $region29: #{bidirectional_lstm.1} parent=1 // pred_fallthru
      _
    // Predicated region
    $region30: #{bidirectional_lstm.1} parent=1 // pred_check
      _
    $region31: #{bidirectional_lstm.1} parent=1 // pred_check_branch
      %77 = sbr.rel (0) target = $region33
    $region32: #{bidirectional_lstm.1} parent=1 // pred_region
      %79 = dma.done [#allocation11], 128
    $region33: #{bidirectional_lstm.1} parent=1 // pred_fallthru
      _
    %v80 = vld [vmem:[#allocation5] sm:$0xff]
    %v81 = vld [vmem:[#allocation5 + $0x8] sm:$0xff]
    %v82 = vld [vmem:[#allocation7] sm:$0xff]
    %v83 = vld [vmem:[#allocation7 + $0x8] sm:$0xff]
    %v84 = vld [vmem:[#allocation7 + $0x10] sm:$0xff]
    %v85 = vld [vmem:[#allocation7 + $0x18] sm:$0xff]
    %v86 = vld [vmem:[#allocation7 + $0x20] sm:$0xff]
    %v87 = vld [vmem:[#allocation7 + $0x28] sm:$0xff]
    %v88 = vld [vmem:[#allocation7 + $0x30] sm:$0xff]
    %v89 = vld [vmem:[#allocation7 + $0x38] sm:$0xff]
    %v90 = vld [vmem:[#allocation7 + $0x40] sm:$0xff]
    %v91 = vld [vmem:[#allocation7 + $0x48] sm:$0xff]
    %v92 = vld [vmem:[#allocation7 + $0x50] sm:$0xff]
    %v93 = vld [vmem:[#allocation7 + $0x58] sm:$0xff]
    %v94 = vld [vmem:[#allocation7 + $0x60] sm:$0xff]
    %v95 = vld [vmem:[#allocation7 + $0x68] sm:$0xff]
    %v96 = vld [vmem:[#allocation7 + $0x70] sm:$0xff]
    %v97 = vld [vmem:[#allocation7 + $0x78] sm:$0xff]
    %v98 = vld [vmem:[#allocation7 + $0x80] sm:$0xff]
    %v99 = vld [vmem:[#allocation7 + $0x88] sm:$0xff]
    %v100 = vld [vmem:[#allocation7 + $0x90] sm:$0xff]
    %v101 = vld [vmem:[#allocation7 + $0x98] sm:$0xff]
    %v102 = vld [vmem:[#allocation7 + $0xa0] sm:$0xff]
    %v103 = vld [vmem:[#allocation7 + $0xa8] sm:$0xff]
    %v104 = vld [vmem:[#allocation7 + $0xb0] sm:$0xff]
    %v105 = vld [vmem:[#allocation7 + $0xb8] sm:$0xff]
    %v106 = vld [vmem:[#allocation7 + $0xc0] sm:$0xff]
    %v107 = vld [vmem:[#allocation7 + $0xc8] sm:$0xff]
    %v108 = vld [vmem:[#allocation7 + $0xd0] sm:$0xff]
    %v109 = vld [vmem:[#allocation7 + $0xd8] sm:$0xff]
    %v110 = vld [vmem:[#allocation7 + $0xe0] sm:$0xff]
    %v111 = vld [vmem:[#allocation7 + $0xe8] sm:$0xff]
    %v112 = vld [vmem:[#allocation7 + $0xf0] sm:$0xff]
    %v113 = vld [vmem:[#allocation7 + $0xf8] sm:$0xff]
    %v114 = vld [vmem:[#allocation7 + $0x100] sm:$0xff]
    %v115 = vld [vmem:[#allocation7 + $0x108] sm:$0xff]
    %v116 = vld [vmem:[#allocation7 + $0x110] sm:$0xff]
    %v117 = vld [vmem:[#allocation7 + $0x118] sm:$0xff]
    %v118 = vld [vmem:[#allocation7 + $0x120] sm:$0xff]
    %v119 = vld [vmem:[#allocation7 + $0x128] sm:$0xff]
    %v120 = vld [vmem:[#allocation7 + $0x130] sm:$0xff]
    %v121 = vld [vmem:[#allocation7 + $0x138] sm:$0xff]
    %v122 = vld [vmem:[#allocation7 + $0x140] sm:$0xff]
    %v123 = vld [vmem:[#allocation7 + $0x148] sm:$0xff]
    %v124 = vld [vmem:[#allocation7 + $0x150] sm:$0xff]
    %v125 = vld [vmem:[#allocation7 + $0x158] sm:$0xff]
    %v126 = vld [vmem:[#allocation7 + $0x160] sm:$0xff]
    %v127 = vld [vmem:[#allocation7 + $0x168] sm:$0xff]
    %v128 = vld [vmem:[#allocation7 + $0x170] sm:$0xff]
    %v129 = vld [vmem:[#allocation7 + $0x178] sm:$0xff]
    %v130 = vld [vmem:[#allocation7 + $0x180] sm:$0x3]
    %v131 = vld [vmem:[#allocation7 + $0x188] sm:$0x3]
    %v132 = vld [vmem:[#allocation7 + $0x190] sm:$0x3]
    %v133 = vld [vmem:[#allocation7 + $0x198] sm:$0x3]
    %v134 = vld [vmem:[#allocation7 + $0x1a0] sm:$0x3]
    %v135 = vld [vmem:[#allocation7 + $0x1a8] sm:$0x3]
    %v136 = vld [vmem:[#allocation7 + $0x1b0] sm:$0x3]
    %v137 = vld [vmem:[#allocation7 + $0x1b8] sm:$0x3]
    %v138 = vld [vmem:[#allocation10] sm:$0xff]
    %v140 = vperm.slane %v138, 0
    %v141 = vperm.slane %v138, 1
    %v142 = vperm.slane %v138, 2
    %v143 = vperm.slane %v138, 3
    %v144 = vperm.slane %v138, 4
    %v145 = vperm.slane %v138, 5
    %v146 = vperm.slane %v138, 6
    %v147 = vperm.slane %v138, 7
    %vm156 = vcmask 408576
    %v158 = vsel %vm156, %v80, 0
    %v161 = vsel %vm156, %v81, 0
    %vm163 = vcmask 1041408
    %v165 = vsel %vm163, %v130, 0
    %v168 = vsel %vm163, %v131, 0
    %v171 = vsel %vm163, %v132, 0
    %v174 = vsel %vm163, %v133, 0
    %v177 = vsel %vm163, %v134, 0
    %v180 = vsel %vm163, %v135, 0
    %v183 = vsel %vm163, %v136, 0
    %v186 = vsel %vm163, %v137, 0
    %188 = vmatpush.msra.mxu0 0.0
    %189 = vmatpush.msra.mxu0 0.0
    %190 = vmatpush.msra.mxu0 0.0
    %191 = vmatpush.msra.mxu0 0.0
    %192 = vmatpush.msra.mxu0 0.0
    %193 = vmatpush.msra.mxu0 0.0
    %194 = vmatpush.msra.mxu0 0.0
    %195 = vmatpush.msra.mxu0 0.0
    %196 = vmatpush.msra.mxu0 0.0
    %197 = vmatpush.msra.mxu0 %v165
    %198 = vmatpush.msra.mxu0 %v122
    %199 = vmatpush.msra.mxu0 %v114
    %200 = vmatpush.msra.mxu0 %v106
    %201 = vmatpush.msra.mxu0 %v98
    %202 = vmatpush.msra.mxu0 %v90
    %203 = vmatpush.msra.mxu0 %v82
    %204 = vmatmul.f32.gmra.mxu0 %v158
    %v205 = vpop.f32.mrf.mxu0
    %v206 = vadd.f32 %v140, %v205
    %207 = vmatmul.f32.gmra.mxu0 %v161
    %v208 = vpop.f32.mrf.mxu0
    %v209 = vadd.f32 %v140, %v208
    %210 = vdwg.mxu0
    %211 = vmatpush.msra.mxu0 0.0
    %212 = vmatpush.msra.mxu0 0.0
    %213 = vmatpush.msra.mxu0 0.0
    %214 = vmatpush.msra.mxu0 0.0
    %215 = vmatpush.msra.mxu0 0.0
    %216 = vmatpush.msra.mxu0 0.0
    %217 = vmatpush.msra.mxu0 0.0
    %218 = vmatpush.msra.mxu0 0.0
    %219 = vmatpush.msra.mxu0 0.0
    %220 = vmatpush.msra.mxu0 %v168
    %221 = vmatpush.msra.mxu0 %v123
    %222 = vmatpush.msra.mxu0 %v115
    %223 = vmatpush.msra.mxu0 %v107
    %224 = vmatpush.msra.mxu0 %v99
    %225 = vmatpush.msra.mxu0 %v91
    %226 = vmatpush.msra.mxu0 %v83
    %227 = vmatmul.f32.gmra.mxu0 %v158
    %v228 = vpop.f32.mrf.mxu0
    %v229 = vadd.f32 %v141, %v228
    %230 = vmatmul.f32.gmra.mxu0 %v161
    %v231 = vpop.f32.mrf.mxu0
    %v232 = vadd.f32 %v141, %v231
    %233 = vdwg.mxu0
    %234 = vmatpush.msra.mxu0 0.0
    %235 = vmatpush.msra.mxu0 0.0
    %236 = vmatpush.msra.mxu0 0.0
    %237 = vmatpush.msra.mxu0 0.0
    %238 = vmatpush.msra.mxu0 0.0
    %239 = vmatpush.msra.mxu0 0.0
    %240 = vmatpush.msra.mxu0 0.0
    %241 = vmatpush.msra.mxu0 0.0
    %242 = vmatpush.msra.mxu0 0.0
    %243 = vmatpush.msra.mxu0 %v171
    %244 = vmatpush.msra.mxu0 %v124
    %245 = vmatpush.msra.mxu0 %v116
    %246 = vmatpush.msra.mxu0 %v108
    %247 = vmatpush.msra.mxu0 %v100
    %248 = vmatpush.msra.mxu0 %v92
    %249 = vmatpush.msra.mxu0 %v84
    %250 = vmatmul.f32.gmra.mxu0 %v158
    %v251 = vpop.f32.mrf.mxu0
    %v252 = vadd.f32 %v142, %v251
    %253 = vmatmul.f32.gmra.mxu0 %v161
    %v254 = vpop.f32.mrf.mxu0
    %v255 = vadd.f32 %v142, %v254
    %256 = vdwg.mxu0
    %257 = vmatpush.msra.mxu0 0.0
    %258 = vmatpush.msra.mxu0 0.0
    %259 = vmatpush.msra.mxu0 0.0
    %260 = vmatpush.msra.mxu0 0.0
    %261 = vmatpush.msra.mxu0 0.0
    %262 = vmatpush.msra.mxu0 0.0
    %263 = vmatpush.msra.mxu0 0.0
    %264 = vmatpush.msra.mxu0 0.0
    %265 = vmatpush.msra.mxu0 0.0
    %266 = vmatpush.msra.mxu0 %v174
    %267 = vmatpush.msra.mxu0 %v125
    %268 = vmatpush.msra.mxu0 %v117
    %269 = vmatpush.msra.mxu0 %v109
    %270 = vmatpush.msra.mxu0 %v101
    %271 = vmatpush.msra.mxu0 %v93
    %272 = vmatpush.msra.mxu0 %v85
    %273 = vmatmul.f32.gmra.mxu0 %v158
    %v274 = vpop.f32.mrf.mxu0
    %v275 = vadd.f32 %v143, %v274
    %276 = vmatmul.f32.gmra.mxu0 %v161
    %v277 = vpop.f32.mrf.mxu0
    %v278 = vadd.f32 %v143, %v277
    %279 = vdwg.mxu0
    %280 = vmatpush.msra.mxu0 0.0
    %281 = vmatpush.msra.mxu0 0.0
    %282 = vmatpush.msra.mxu0 0.0
    %283 = vmatpush.msra.mxu0 0.0
    %284 = vmatpush.msra.mxu0 0.0
    %285 = vmatpush.msra.mxu0 0.0
    %286 = vmatpush.msra.mxu0 0.0
    %287 = vmatpush.msra.mxu0 0.0
    %288 = vmatpush.msra.mxu0 0.0
    %289 = vmatpush.msra.mxu0 %v177
    %290 = vmatpush.msra.mxu0 %v126
    %291 = vmatpush.msra.mxu0 %v118
    %292 = vmatpush.msra.mxu0 %v110
    %293 = vmatpush.msra.mxu0 %v102
    %294 = vmatpush.msra.mxu0 %v94
    %295 = vmatpush.msra.mxu0 %v86
    %296 = vmatmul.f32.gmra.mxu0 %v158
    %v297 = vpop.f32.mrf.mxu0
    %v298 = vadd.f32 %v144, %v297
    %299 = vmatmul.f32.gmra.mxu0 %v161
    %v300 = vpop.f32.mrf.mxu0
    %v301 = vadd.f32 %v144, %v300
    %302 = vdwg.mxu0
    %303 = vmatpush.msra.mxu0 0.0
    %304 = vmatpush.msra.mxu0 0.0
    %305 = vmatpush.msra.mxu0 0.0
    %306 = vmatpush.msra.mxu0 0.0
    %307 = vmatpush.msra.mxu0 0.0
    %308 = vmatpush.msra.mxu0 0.0
    %309 = vmatpush.msra.mxu0 0.0
    %310 = vmatpush.msra.mxu0 0.0
    %311 = vmatpush.msra.mxu0 0.0
    %312 = vmatpush.msra.mxu0 %v180
    %313 = vmatpush.msra.mxu0 %v127
    %314 = vmatpush.msra.mxu0 %v119
    %315 = vmatpush.msra.mxu0 %v111
    %316 = vmatpush.msra.mxu0 %v103
    %317 = vmatpush.msra.mxu0 %v95
    %318 = vmatpush.msra.mxu0 %v87
    %319 = vmatmul.f32.gmra.mxu0 %v158
    %v320 = vpop.f32.mrf.mxu0
    %v321 = vadd.f32 %v145, %v320
    %322 = vmatmul.f32.gmra.mxu0 %v161
    %v323 = vpop.f32.mrf.mxu0
    %v324 = vadd.f32 %v145, %v323
    %325 = vdwg.mxu0
    %326 = vmatpush.msra.mxu0 0.0
    %327 = vmatpush.msra.mxu0 0.0
    %328 = vmatpush.msra.mxu0 0.0
    %329 = vmatpush.msra.mxu0 0.0
    %330 = vmatpush.msra.mxu0 0.0
    %331 = vmatpush.msra.mxu0 0.0
    %332 = vmatpush.msra.mxu0 0.0
    %333 = vmatpush.msra.mxu0 0.0
    %334 = vmatpush.msra.mxu0 0.0
    %335 = vmatpush.msra.mxu0 %v183
    %336 = vmatpush.msra.mxu0 %v128
    %337 = vmatpush.msra.mxu0 %v120
    %338 = vmatpush.msra.mxu0 %v112
    %339 = vmatpush.msra.mxu0 %v104
    %340 = vmatpush.msra.mxu0 %v96
    %341 = vmatpush.msra.mxu0 %v88
    %342 = vmatmul.f32.gmra.mxu0 %v158
    %v343 = vpop.f32.mrf.mxu0
    %v344 = vadd.f32 %v146, %v343
    %345 = vmatmul.f32.gmra.mxu0 %v161
    %v346 = vpop.f32.mrf.mxu0
    %v347 = vadd.f32 %v146, %v346
    %348 = vdwg.mxu0
    %349 = vmatpush.msra.mxu0 0.0
    %350 = vmatpush.msra.mxu0 0.0
    %351 = vmatpush.msra.mxu0 0.0
    %352 = vmatpush.msra.mxu0 0.0
    %353 = vmatpush.msra.mxu0 0.0
    %354 = vmatpush.msra.mxu0 0.0
    %355 = vmatpush.msra.mxu0 0.0
    %356 = vmatpush.msra.mxu0 0.0
    %357 = vmatpush.msra.mxu0 0.0
    %358 = vmatpush.msra.mxu0 %v186
    %359 = vmatpush.msra.mxu0 %v129
    %360 = vmatpush.msra.mxu0 %v121
    %361 = vmatpush.msra.mxu0 %v113
    %362 = vmatpush.msra.mxu0 %v105
    %363 = vmatpush.msra.mxu0 %v97
    %364 = vmatpush.msra.mxu0 %v89
    %365 = vmatmul.f32.gmra.mxu0 %v158
    %v366 = vpop.f32.mrf.mxu0
    %v367 = vadd.f32 %v147, %v366
    %368 = vmatmul.f32.gmra.mxu0 %v161
    %v369 = vpop.f32.mrf.mxu0
    %v370 = vadd.f32 %v147, %v369
    %371 = vdwg.mxu0
    %v380 = vrot.slane %v229, 6
    %v381 = vrot.slane %v252, 4
    %v382 = vrot.slane %v275, 2
    %v383 = vrot.slane %v321, 6
    %v384 = vrot.slane %v344, 4
    %v385 = vrot.slane %v367, 2
    %v386 = vsel %vm163, %v206, %v380
    %vm387 = vcmask 1045508
    %v388 = vsel %vm387, %v381, %v382
    %vm389 = vcmask 1043456
    %v390 = vsel %vm389, %v386, %v388
    %v391 = vsel %vm163, %v298, %v383
    %v392 = vsel %vm387, %v384, %v385
    %v393 = vsel %vm389, %v391, %v392
    %396 = vst [vmem:[#allocation2] sm:$0xff] %v390
    %397 = vst [vmem:[#allocation2 + $0x8] sm:$0xff] %v393
    %398 = vst.sshfl [vmem:[#allocation1] sm:$0xff pattern:$0x73625140] %v206
    %399 = vst.sshfl [vmem:[#allocation1 + $0x8] sm:$0xff pattern:$0x73625140] %v229
    %400 = vst.sshfl [vmem:[#allocation1 + $0x10] sm:$0xff pattern:$0x73625140] %v252
    %401 = vst.sshfl [vmem:[#allocation1 + $0x18] sm:$0xff pattern:$0x73625140] %v275
    %402 = vst.sshfl [vmem:[#allocation1 + $0x20] sm:$0xff pattern:$0x73625140] %v298
    %403 = vst.sshfl [vmem:[#allocation1 + $0x28] sm:$0xff pattern:$0x73625140] %v321
    %404 = vst.sshfl [vmem:[#allocation1 + $0x30] sm:$0xff pattern:$0x73625140] %v344
    %405 = vst.sshfl [vmem:[#allocation1 + $0x38] sm:$0xff pattern:$0x73625140] %v367
    %s406 = scalar_lea.vmem [#allocation1], 1
    %v407 = vld [vmem:[%s406] ss:$4 sm:$0xff]
    %s408 = scalar_lea.vmem [#allocation1], 33
    %v409 = vld [vmem:[%s408] ss:$4 sm:$0xff]
    %s412 = scalar_lea.vmem [#allocation2], 16
    %413 = vst [vmem:[%s412] sm:$0xff] %v407
    %414 = vst [vmem:[%s412 + $0x8] sm:$0xff] %v409
    %415 = vst.sshfl [vmem:[#allocation1] sm:$0xff pattern:$0x73625140] %v206
    %416 = vst.sshfl [vmem:[#allocation1 + $0x8] sm:$0xff pattern:$0x73625140] %v229
    %417 = vst.sshfl [vmem:[#allocation1 + $0x10] sm:$0xff pattern:$0x73625140] %v252
    %418 = vst.sshfl [vmem:[#allocation1 + $0x18] sm:$0xff pattern:$0x73625140] %v275
    %419 = vst.sshfl [vmem:[#allocation1 + $0x20] sm:$0xff pattern:$0x73625140] %v298
    %420 = vst.sshfl [vmem:[#allocation1 + $0x28] sm:$0xff pattern:$0x73625140] %v321
    %421 = vst.sshfl [vmem:[#allocation1 + $0x30] sm:$0xff pattern:$0x73625140] %v344
    %422 = vst.sshfl [vmem:[#allocation1 + $0x38] sm:$0xff pattern:$0x73625140] %v367
    %s423 = scalar_lea.vmem [#allocation1], 2
    %v424 = vld [vmem:[%s423] ss:$4 sm:$0xff]
    %s425 = scalar_lea.vmem [#allocation1], 34
    %v426 = vld [vmem:[%s425] ss:$4 sm:$0xff]
    %s429 = scalar_lea.vmem [#allocation2], 32
    %430 = vst [vmem:[%s429] sm:$0xff] %v424
    %431 = vst [vmem:[%s429 + $0x8] sm:$0xff] %v426
    %432 = vst.sshfl [vmem:[#allocation1] sm:$0xff pattern:$0x73625140] %v206
    %433 = vst.sshfl [vmem:[#allocation1 + $0x8] sm:$0xff pattern:$0x73625140] %v229
    %434 = vst.sshfl [vmem:[#allocation1 + $0x10] sm:$0xff pattern:$0x73625140] %v252
    %435 = vst.sshfl [vmem:[#allocation1 + $0x18] sm:$0xff pattern:$0x73625140] %v275
    %436 = vst.sshfl [vmem:[#allocation1 + $0x20] sm:$0xff pattern:$0x73625140] %v298
    %437 = vst.sshfl [vmem:[#allocation1 + $0x28] sm:$0xff pattern:$0x73625140] %v321
    %438 = vst.sshfl [vmem:[#allocation1 + $0x30] sm:$0xff pattern:$0x73625140] %v344
    %439 = vst.sshfl [vmem:[#allocation1 + $0x38] sm:$0xff pattern:$0x73625140] %v367
    %s440 = scalar_lea.vmem [#allocation1], 3
    %v441 = vld [vmem:[%s440] ss:$4 sm:$0xff]
    %s442 = scalar_lea.vmem [#allocation1], 35
    %v443 = vld [vmem:[%s442] ss:$4 sm:$0xff]
    %s446 = scalar_lea.vmem [#allocation2], 48
    %447 = vst [vmem:[%s446] sm:$0xff] %v441
    %448 = vst [vmem:[%s446 + $0x8] sm:$0xff] %v443
    %v457 = vrot.slane %v232, 6
    %v458 = vrot.slane %v255, 4
    %v459 = vrot.slane %v278, 2
    %v460 = vrot.slane %v324, 6
    %v461 = vrot.slane %v347, 4
    %v462 = vrot.slane %v370, 2
    %v463 = vsel %vm163, %v209, %v457
    %v464 = vsel %vm387, %v458, %v459
    %v465 = vsel %vm389, %v463, %v464
    %v466 = vsel %vm163, %v301, %v460
    %v467 = vsel %vm387, %v461, %v462
    %v468 = vsel %vm389, %v466, %v467
    %s471 = scalar_lea.vmem [#allocation2], 64
    %472 = vst [vmem:[%s471] sm:$0xff] %v465
    %473 = vst [vmem:[%s471 + $0x8] sm:$0xff] %v468
    %474 = vst.sshfl [vmem:[#allocation1] sm:$0xff pattern:$0x73625140] %v209
    %475 = vst.sshfl [vmem:[#allocation1 + $0x8] sm:$0xff pattern:$0x73625140] %v232
    %476 = vst.sshfl [vmem:[#allocation1 + $0x10] sm:$0xff pattern:$0x73625140] %v255
    %477 = vst.sshfl [vmem:[#allocation1 + $0x18] sm:$0xff pattern:$0x73625140] %v278
    %478 = vst.sshfl [vmem:[#allocation1 + $0x20] sm:$0xff pattern:$0x73625140] %v301
    %479 = vst.sshfl [vmem:[#allocation1 + $0x28] sm:$0xff pattern:$0x73625140] %v324
    %480 = vst.sshfl [vmem:[#allocation1 + $0x30] sm:$0xff pattern:$0x73625140] %v347
    %481 = vst.sshfl [vmem:[#allocation1 + $0x38] sm:$0xff pattern:$0x73625140] %v370
    %s482 = scalar_lea.vmem [#allocation1], 1
    %v483 = vld [vmem:[%s482] ss:$4 sm:$0xff]
    %s484 = scalar_lea.vmem [#allocation1], 33
    %v485 = vld [vmem:[%s484] ss:$4 sm:$0xff]
    %s488 = scalar_lea.vmem [#allocation2], 80
    %489 = vst [vmem:[%s488] sm:$0xff] %v483
    %490 = vst [vmem:[%s488 + $0x8] sm:$0xff] %v485
    %491 = vst.sshfl [vmem:[#allocation1] sm:$0xff pattern:$0x73625140] %v209
    %492 = vst.sshfl [vmem:[#allocation1 + $0x8] sm:$0xff pattern:$0x73625140] %v232
    %493 = vst.sshfl [vmem:[#allocation1 + $0x10] sm:$0xff pattern:$0x73625140] %v255
    %494 = vst.sshfl [vmem:[#allocation1 + $0x18] sm:$0xff pattern:$0x73625140] %v278
    %495 = vst.sshfl [vmem:[#allocation1 + $0x20] sm:$0xff pattern:$0x73625140] %v301
    %496 = vst.sshfl [vmem:[#allocation1 + $0x28] sm:$0xff pattern:$0x73625140] %v324
    %497 = vst.sshfl [vmem:[#allocation1 + $0x30] sm:$0xff pattern:$0x73625140] %v347
    %498 = vst.sshfl [vmem:[#allocation1 + $0x38] sm:$0xff pattern:$0x73625140] %v370
    %s499 = scalar_lea.vmem [#allocation1], 2
    %v500 = vld [vmem:[%s499] ss:$4 sm:$0xff]
    %s501 = scalar_lea.vmem [#allocation1], 34
    %v502 = vld [vmem:[%s501] ss:$4 sm:$0xff]
    %s505 = scalar_lea.vmem [#allocation2], 96
    %506 = vst [vmem:[%s505] sm:$0xff] %v500
    %507 = vst [vmem:[%s505 + $0x8] sm:$0xff] %v502
    %508 = vst.sshfl [vmem:[#allocation1] sm:$0xff pattern:$0x73625140] %v209
    %509 = vst.sshfl [vmem:[#allocation1 + $0x8] sm:$0xff pattern:$0x73625140] %v232
    %510 = vst.sshfl [vmem:[#allocation1 + $0x10] sm:$0xff pattern:$0x73625140] %v255
    %511 = vst.sshfl [vmem:[#allocation1 + $0x18] sm:$0xff pattern:$0x73625140] %v278
    %512 = vst.sshfl [vmem:[#allocation1 + $0x20] sm:$0xff pattern:$0x73625140] %v301
    %513 = vst.sshfl [vmem:[#allocation1 + $0x28] sm:$0xff pattern:$0x73625140] %v324
    %514 = vst.sshfl [vmem:[#allocation1 + $0x30] sm:$0xff pattern:$0x73625140] %v347
    %515 = vst.sshfl [vmem:[#allocation1 + $0x38] sm:$0xff pattern:$0x73625140] %v370
    %s516 = scalar_lea.vmem [#allocation1], 3
    %v517 = vld [vmem:[%s516] ss:$4 sm:$0xff]
    %s518 = scalar_lea.vmem [#allocation1], 35
    %v519 = vld [vmem:[%s518] ss:$4 sm:$0xff]
    %s522 = scalar_lea.vmem [#allocation2], 112
    %523 = vst [vmem:[%s522] sm:$0xff] %v517
    %524 = vst [vmem:[%s522 + $0x8] sm:$0xff] %v519
    %525 = vst [vmem:[#allocation3] sm:$0xf] 0.0
    %526 = vst [vmem:[#allocation4] sm:$0xf] 0.0
    %v527 = vld [vmem:[#allocation3] sm:$0xf]
    %v528 = vld [vmem:[#allocation9] sm:$0xff]
    %v529 = vld [vmem:[#allocation9 + $0x8] sm:$0xff]
    %v530 = vld [vmem:[#allocation9 + $0x10] sm:$0xff]
    %v531 = vld [vmem:[#allocation9 + $0x18] sm:$0xff]
    %v532 = vld [vmem:[#allocation9 + $0x20] sm:$0xff]
    %v533 = vld [vmem:[#allocation9 + $0x28] sm:$0xff]
    %v534 = vld [vmem:[#allocation9 + $0x30] sm:$0xff]
    %v535 = vld [vmem:[#allocation9 + $0x38] sm:$0xff]
    %v536 = vld [vmem:[#allocation9 + $0x40] sm:$0xff]
    %v537 = vld [vmem:[#allocation9 + $0x48] sm:$0xff]
    %v538 = vld [vmem:[#allocation9 + $0x50] sm:$0xff]
    %v539 = vld [vmem:[#allocation9 + $0x58] sm:$0xff]
    %v540 = vld [vmem:[#allocation9 + $0x60] sm:$0xff]
    %v541 = vld [vmem:[#allocation9 + $0x68] sm:$0xff]
    %v542 = vld [vmem:[#allocation9 + $0x70] sm:$0xff]
    %v543 = vld [vmem:[#allocation9 + $0x78] sm:$0xff]
    %v544 = vld [vmem:[#allocation9 + $0x80] sm:$0xff]
    %v545 = vld [vmem:[#allocation9 + $0x88] sm:$0xff]
    %v546 = vld [vmem:[#allocation9 + $0x90] sm:$0xff]
    %v547 = vld [vmem:[#allocation9 + $0x98] sm:$0xff]
    %v548 = vld [vmem:[#allocation9 + $0xa0] sm:$0xff]
    %v549 = vld [vmem:[#allocation9 + $0xa8] sm:$0xff]
    %v550 = vld [vmem:[#allocation9 + $0xb0] sm:$0xff]
    %v551 = vld [vmem:[#allocation9 + $0xb8] sm:$0xff]
    %v552 = vld [vmem:[#allocation9 + $0xc0] sm:$0xff]
    %v553 = vld [vmem:[#allocation9 + $0xc8] sm:$0xff]
    %v554 = vld [vmem:[#allocation9 + $0xd0] sm:$0xff]
    %v555 = vld [vmem:[#allocation9 + $0xd8] sm:$0xff]
    %v556 = vld [vmem:[#allocation9 + $0xe0] sm:$0xff]
    %v557 = vld [vmem:[#allocation9 + $0xe8] sm:$0xff]
    %v558 = vld [vmem:[#allocation9 + $0xf0] sm:$0xff]
    %v559 = vld [vmem:[#allocation9 + $0xf8] sm:$0xff]
    %v560 = vld [vmem:[#allocation9 + $0x100] sm:$0xff]
    %v561 = vld [vmem:[#allocation9 + $0x108] sm:$0xff]
    %v562 = vld [vmem:[#allocation9 + $0x110] sm:$0xff]
    %v563 = vld [vmem:[#allocation9 + $0x118] sm:$0xff]
    %v564 = vld [vmem:[#allocation9 + $0x120] sm:$0xff]
    %v565 = vld [vmem:[#allocation9 + $0x128] sm:$0xff]
    %v566 = vld [vmem:[#allocation9 + $0x130] sm:$0xff]
    %v567 = vld [vmem:[#allocation9 + $0x138] sm:$0xff]
    %v568 = vld [vmem:[#allocation9 + $0x140] sm:$0xff]
    %v569 = vld [vmem:[#allocation9 + $0x148] sm:$0xff]
    %v570 = vld [vmem:[#allocation9 + $0x150] sm:$0xff]
    %v571 = vld [vmem:[#allocation9 + $0x158] sm:$0xff]
    %v572 = vld [vmem:[#allocation9 + $0x160] sm:$0xff]
    %v573 = vld [vmem:[#allocation9 + $0x168] sm:$0xff]
    %v574 = vld [vmem:[#allocation9 + $0x170] sm:$0xff]
    %v575 = vld [vmem:[#allocation9 + $0x178] sm:$0xff]
    %v576 = vld [vmem:[#allocation9 + $0x180] sm:$0xff]
    %v577 = vld [vmem:[#allocation9 + $0x188] sm:$0xff]
    %v578 = vld [vmem:[#allocation9 + $0x190] sm:$0xff]
    %v579 = vld [vmem:[#allocation9 + $0x198] sm:$0xff]
    %v580 = vld [vmem:[#allocation9 + $0x1a0] sm:$0xff]
    %v581 = vld [vmem:[#allocation9 + $0x1a8] sm:$0xff]
    %v582 = vld [vmem:[#allocation9 + $0x1b0] sm:$0xff]
    %v583 = vld [vmem:[#allocation9 + $0x1b8] sm:$0xff]
    %v584 = vld [vmem:[#allocation9 + $0x1c0] sm:$0xff]
    %v585 = vld [vmem:[#allocation9 + $0x1c8] sm:$0xff]
    %v586 = vld [vmem:[#allocation9 + $0x1d0] sm:$0xff]
    %v587 = vld [vmem:[#allocation9 + $0x1d8] sm:$0xff]
    %v588 = vld [vmem:[#allocation9 + $0x1e0] sm:$0xff]
    %v589 = vld [vmem:[#allocation9 + $0x1e8] sm:$0xff]
    %v590 = vld [vmem:[#allocation9 + $0x1f0] sm:$0xff]
    %v591 = vld [vmem:[#allocation9 + $0x1f8] sm:$0xff]
    %v592 = vld [vmem:[#allocation9 + $0x200] sm:$0xff]
    %v593 = vld [vmem:[#allocation9 + $0x208] sm:$0xff]
    %v594 = vld [vmem:[#allocation9 + $0x210] sm:$0xff]
    %v595 = vld [vmem:[#allocation9 + $0x218] sm:$0xff]
    %v596 = vld [vmem:[#allocation9 + $0x220] sm:$0xff]
    %v597 = vld [vmem:[#allocation9 + $0x228] sm:$0xff]
    %v598 = vld [vmem:[#allocation9 + $0x230] sm:$0xff]
    %v599 = vld [vmem:[#allocation9 + $0x238] sm:$0xff]
    %v600 = vld [vmem:[#allocation9 + $0x240] sm:$0xff]
    %v601 = vld [vmem:[#allocation9 + $0x248] sm:$0xff]
    %v602 = vld [vmem:[#allocation9 + $0x250] sm:$0xff]
    %v603 = vld [vmem:[#allocation9 + $0x258] sm:$0xff]
    %v604 = vld [vmem:[#allocation9 + $0x260] sm:$0xff]
    %v605 = vld [vmem:[#allocation9 + $0x268] sm:$0xff]
    %v606 = vld [vmem:[#allocation9 + $0x270] sm:$0xff]
    %v607 = vld [vmem:[#allocation9 + $0x278] sm:$0xff]
    %v608 = vld [vmem:[#allocation9 + $0x280] sm:$0xff]
    %v609 = vld [vmem:[#allocation9 + $0x288] sm:$0xff]
    %v610 = vld [vmem:[#allocation9 + $0x290] sm:$0xff]
    %v611 = vld [vmem:[#allocation9 + $0x298] sm:$0xff]
    %v612 = vld [vmem:[#allocation9 + $0x2a0] sm:$0xff]
    %v613 = vld [vmem:[#allocation9 + $0x2a8] sm:$0xff]
    %v614 = vld [vmem:[#allocation9 + $0x2b0] sm:$0xff]
    %v615 = vld [vmem:[#allocation9 + $0x2b8] sm:$0xff]
    %v616 = vld [vmem:[#allocation9 + $0x2c0] sm:$0xff]
    %v617 = vld [vmem:[#allocation9 + $0x2c8] sm:$0xff]
    %v618 = vld [vmem:[#allocation9 + $0x2d0] sm:$0xff]
    %v619 = vld [vmem:[#allocation9 + $0x2d8] sm:$0xff]
    %v620 = vld [vmem:[#allocation9 + $0x2e0] sm:$0xff]
    %v621 = vld [vmem:[#allocation9 + $0x2e8] sm:$0xff]
    %v622 = vld [vmem:[#allocation9 + $0x2f0] sm:$0xff]
    %v623 = vld [vmem:[#allocation9 + $0x2f8] sm:$0xff]
    %v624 = vld [vmem:[#allocation9 + $0x300] sm:$0xff]
    %v625 = vld [vmem:[#allocation9 + $0x308] sm:$0xff]
    %v626 = vld [vmem:[#allocation9 + $0x310] sm:$0xff]
    %v627 = vld [vmem:[#allocation9 + $0x318] sm:$0xff]
    %v628 = vld [vmem:[#allocation9 + $0x320] sm:$0xff]
    %v629 = vld [vmem:[#allocation9 + $0x328] sm:$0xff]
    %v630 = vld [vmem:[#allocation9 + $0x330] sm:$0xff]
    %v631 = vld [vmem:[#allocation9 + $0x338] sm:$0xff]
    %v632 = vld [vmem:[#allocation9 + $0x340] sm:$0xff]
    %v633 = vld [vmem:[#allocation9 + $0x348] sm:$0xff]
    %v634 = vld [vmem:[#allocation9 + $0x350] sm:$0xff]
    %v635 = vld [vmem:[#allocation9 + $0x358] sm:$0xff]
    %v636 = vld [vmem:[#allocation9 + $0x360] sm:$0xff]
    %v637 = vld [vmem:[#allocation9 + $0x368] sm:$0xff]
    %v638 = vld [vmem:[#allocation9 + $0x370] sm:$0xff]
    %v639 = vld [vmem:[#allocation9 + $0x378] sm:$0xff]
    %v640 = vld [vmem:[#allocation9 + $0x380] sm:$0xff]
    %v641 = vld [vmem:[#allocation9 + $0x388] sm:$0xff]
    %v642 = vld [vmem:[#allocation9 + $0x390] sm:$0xff]
    %v643 = vld [vmem:[#allocation9 + $0x398] sm:$0xff]
    %v644 = vld [vmem:[#allocation9 + $0x3a0] sm:$0xff]
    %v645 = vld [vmem:[#allocation9 + $0x3a8] sm:$0xff]
    %v646 = vld [vmem:[#allocation9 + $0x3b0] sm:$0xff]
    %v647 = vld [vmem:[#allocation9 + $0x3b8] sm:$0xff]
    %v648 = vld [vmem:[#allocation9 + $0x3c0] sm:$0xff]
    %v649 = vld [vmem:[#allocation9 + $0x3c8] sm:$0xff]
    %v650 = vld [vmem:[#allocation9 + $0x3d0] sm:$0xff]
    %v651 = vld [vmem:[#allocation9 + $0x3d8] sm:$0xff]
    %v652 = vld [vmem:[#allocation9 + $0x3e0] sm:$0xff]
    %v653 = vld [vmem:[#allocation9 + $0x3e8] sm:$0xff]
    %v654 = vld [vmem:[#allocation9 + $0x3f0] sm:$0xff]
    %v655 = vld [vmem:[#allocation9 + $0x3f8] sm:$0xff]
    %v656 = vld [vmem:[#allocation9 + $0x400] sm:$0xff]
    %v657 = vld [vmem:[#allocation9 + $0x408] sm:$0xff]
    %v658 = vld [vmem:[#allocation9 + $0x410] sm:$0xff]
    %v659 = vld [vmem:[#allocation9 + $0x418] sm:$0xff]
    %v660 = vld [vmem:[#allocation9 + $0x420] sm:$0xff]
    %v661 = vld [vmem:[#allocation9 + $0x428] sm:$0xff]
    %v662 = vld [vmem:[#allocation9 + $0x430] sm:$0xff]
    %v663 = vld [vmem:[#allocation9 + $0x438] sm:$0xff]
    %v664 = vld [vmem:[#allocation9 + $0x440] sm:$0xff]
    %v665 = vld [vmem:[#allocation9 + $0x448] sm:$0xff]
    %v666 = vld [vmem:[#allocation9 + $0x450] sm:$0xff]
    %v667 = vld [vmem:[#allocation9 + $0x458] sm:$0xff]
    %v668 = vld [vmem:[#allocation9 + $0x460] sm:$0xff]
    %v669 = vld [vmem:[#allocation9 + $0x468] sm:$0xff]
    %v670 = vld [vmem:[#allocation9 + $0x470] sm:$0xff]
    %v671 = vld [vmem:[#allocation9 + $0x478] sm:$0xff]
    %v672 = vld [vmem:[#allocation9 + $0x480] sm:$0xff]
    %v673 = vld [vmem:[#allocation9 + $0x488] sm:$0xff]
    %v674 = vld [vmem:[#allocation9 + $0x490] sm:$0xff]
    %v675 = vld [vmem:[#allocation9 + $0x498] sm:$0xff]
    %v676 = vld [vmem:[#allocation9 + $0x4a0] sm:$0xff]
    %v677 = vld [vmem:[#allocation9 + $0x4a8] sm:$0xff]
    %v678 = vld [vmem:[#allocation9 + $0x4b0] sm:$0xff]
    %v679 = vld [vmem:[#allocation9 + $0x4b8] sm:$0xff]
    %v680 = vld [vmem:[#allocation9 + $0x4c0] sm:$0xff]
    %v681 = vld [vmem:[#allocation9 + $0x4c8] sm:$0xff]
    %v682 = vld [vmem:[#allocation9 + $0x4d0] sm:$0xff]
    %v683 = vld [vmem:[#allocation9 + $0x4d8] sm:$0xff]
    %v684 = vld [vmem:[#allocation9 + $0x4e0] sm:$0xff]
    %v685 = vld [vmem:[#allocation9 + $0x4e8] sm:$0xff]
    %v686 = vld [vmem:[#allocation9 + $0x4f0] sm:$0xff]
    %v687 = vld [vmem:[#allocation9 + $0x4f8] sm:$0xff]
    %v688 = vld [vmem:[#allocation9 + $0x500] sm:$0xff]
    %v689 = vld [vmem:[#allocation9 + $0x508] sm:$0xff]
    %v690 = vld [vmem:[#allocation9 + $0x510] sm:$0xff]
    %v691 = vld [vmem:[#allocation9 + $0x518] sm:$0xff]
    %v692 = vld [vmem:[#allocation9 + $0x520] sm:$0xff]
    %v693 = vld [vmem:[#allocation9 + $0x528] sm:$0xff]
    %v694 = vld [vmem:[#allocation9 + $0x530] sm:$0xff]
    %v695 = vld [vmem:[#allocation9 + $0x538] sm:$0xff]
    %v696 = vld [vmem:[#allocation9 + $0x540] sm:$0xff]
    %v697 = vld [vmem:[#allocation9 + $0x548] sm:$0xff]
    %v698 = vld [vmem:[#allocation9 + $0x550] sm:$0xff]
    %v699 = vld [vmem:[#allocation9 + $0x558] sm:$0xff]
    %v700 = vld [vmem:[#allocation9 + $0x560] sm:$0xff]
    %v701 = vld [vmem:[#allocation9 + $0x568] sm:$0xff]
    %v702 = vld [vmem:[#allocation9 + $0x570] sm:$0xff]
    %v703 = vld [vmem:[#allocation9 + $0x578] sm:$0xff]
    %v704 = vld [vmem:[#allocation9 + $0x580] sm:$0xff]
    %v705 = vld [vmem:[#allocation9 + $0x588] sm:$0xff]
    %v706 = vld [vmem:[#allocation9 + $0x590] sm:$0xff]
    %v707 = vld [vmem:[#allocation9 + $0x598] sm:$0xff]
    %v708 = vld [vmem:[#allocation9 + $0x5a0] sm:$0xff]
    %v709 = vld [vmem:[#allocation9 + $0x5a8] sm:$0xff]
    %v710 = vld [vmem:[#allocation9 + $0x5b0] sm:$0xff]
    %v711 = vld [vmem:[#allocation9 + $0x5b8] sm:$0xff]
    %v712 = vld [vmem:[#allocation9 + $0x5c0] sm:$0xff]
    %v713 = vld [vmem:[#allocation9 + $0x5c8] sm:$0xff]
    %v714 = vld [vmem:[#allocation9 + $0x5d0] sm:$0xff]
    %v715 = vld [vmem:[#allocation9 + $0x5d8] sm:$0xff]
    %v716 = vld [vmem:[#allocation9 + $0x5e0] sm:$0xff]
    %v717 = vld [vmem:[#allocation9 + $0x5e8] sm:$0xff]
    %v718 = vld [vmem:[#allocation9 + $0x5f0] sm:$0xff]
    %v719 = vld [vmem:[#allocation9 + $0x5f8] sm:$0xff]
    %v720 = vld [vmem:[#allocation9 + $0x600] sm:$0xff]
    %v721 = vld [vmem:[#allocation9 + $0x608] sm:$0xff]
    %v722 = vld [vmem:[#allocation9 + $0x610] sm:$0xff]
    %v723 = vld [vmem:[#allocation9 + $0x618] sm:$0xff]
    %v724 = vld [vmem:[#allocation9 + $0x620] sm:$0xff]
    %v725 = vld [vmem:[#allocation9 + $0x628] sm:$0xff]
    %v726 = vld [vmem:[#allocation9 + $0x630] sm:$0xff]
    %v727 = vld [vmem:[#allocation9 + $0x638] sm:$0xff]
    %v728 = vld [vmem:[#allocation9 + $0x640] sm:$0xff]
    %v729 = vld [vmem:[#allocation9 + $0x648] sm:$0xff]
    %v730 = vld [vmem:[#allocation9 + $0x650] sm:$0xff]
    %v731 = vld [vmem:[#allocation9 + $0x658] sm:$0xff]
    %v732 = vld [vmem:[#allocation9 + $0x660] sm:$0xff]
    %v733 = vld [vmem:[#allocation9 + $0x668] sm:$0xff]
    %v734 = vld [vmem:[#allocation9 + $0x670] sm:$0xff]
    %v735 = vld [vmem:[#allocation9 + $0x678] sm:$0xff]
    %v736 = vld [vmem:[#allocation9 + $0x680] sm:$0xff]
    %v737 = vld [vmem:[#allocation9 + $0x688] sm:$0xff]
    %v738 = vld [vmem:[#allocation9 + $0x690] sm:$0xff]
    %v739 = vld [vmem:[#allocation9 + $0x698] sm:$0xff]
    %v740 = vld [vmem:[#allocation9 + $0x6a0] sm:$0xff]
    %v741 = vld [vmem:[#allocation9 + $0x6a8] sm:$0xff]
    %v742 = vld [vmem:[#allocation9 + $0x6b0] sm:$0xff]
    %v743 = vld [vmem:[#allocation9 + $0x6b8] sm:$0xff]
    %v744 = vld [vmem:[#allocation9 + $0x6c0] sm:$0xff]
    %v745 = vld [vmem:[#allocation9 + $0x6c8] sm:$0xff]
    %v746 = vld [vmem:[#allocation9 + $0x6d0] sm:$0xff]
    %v747 = vld [vmem:[#allocation9 + $0x6d8] sm:$0xff]
    %v748 = vld [vmem:[#allocation9 + $0x6e0] sm:$0xff]
    %v749 = vld [vmem:[#allocation9 + $0x6e8] sm:$0xff]
    %v750 = vld [vmem:[#allocation9 + $0x6f0] sm:$0xff]
    %v751 = vld [vmem:[#allocation9 + $0x6f8] sm:$0xff]
    %v752 = vld [vmem:[#allocation9 + $0x700] sm:$0xff]
    %v753 = vld [vmem:[#allocation9 + $0x708] sm:$0xff]
    %v754 = vld [vmem:[#allocation9 + $0x710] sm:$0xff]
    %v755 = vld [vmem:[#allocation9 + $0x718] sm:$0xff]
    %v756 = vld [vmem:[#allocation9 + $0x720] sm:$0xff]
    %v757 = vld [vmem:[#allocation9 + $0x728] sm:$0xff]
    %v758 = vld [vmem:[#allocation9 + $0x730] sm:$0xff]
    %v759 = vld [vmem:[#allocation9 + $0x738] sm:$0xff]
    %v760 = vld [vmem:[#allocation9 + $0x740] sm:$0xff]
    %v761 = vld [vmem:[#allocation9 + $0x748] sm:$0xff]
    %v762 = vld [vmem:[#allocation9 + $0x750] sm:$0xff]
    %v763 = vld [vmem:[#allocation9 + $0x758] sm:$0xff]
    %v764 = vld [vmem:[#allocation9 + $0x760] sm:$0xff]
    %v765 = vld [vmem:[#allocation9 + $0x768] sm:$0xff]
    %v766 = vld [vmem:[#allocation9 + $0x770] sm:$0xff]
    %v767 = vld [vmem:[#allocation9 + $0x778] sm:$0xff]
    %v768 = vld [vmem:[#allocation9 + $0x780] sm:$0xff]
    %v769 = vld [vmem:[#allocation9 + $0x788] sm:$0xff]
    %v770 = vld [vmem:[#allocation9 + $0x790] sm:$0xff]
    %v771 = vld [vmem:[#allocation9 + $0x798] sm:$0xff]
    %v772 = vld [vmem:[#allocation9 + $0x7a0] sm:$0xff]
    %v773 = vld [vmem:[#allocation9 + $0x7a8] sm:$0xff]
    %v774 = vld [vmem:[#allocation9 + $0x7b0] sm:$0xff]
    %v775 = vld [vmem:[#allocation9 + $0x7b8] sm:$0xff]
    %v776 = vld [vmem:[#allocation9 + $0x7c0] sm:$0xff]
    %v777 = vld [vmem:[#allocation9 + $0x7c8] sm:$0xff]
    %v778 = vld [vmem:[#allocation9 + $0x7d0] sm:$0xff]
    %v779 = vld [vmem:[#allocation9 + $0x7d8] sm:$0xff]
    %v780 = vld [vmem:[#allocation9 + $0x7e0] sm:$0xff]
    %v781 = vld [vmem:[#allocation9 + $0x7e8] sm:$0xff]
    %v782 = vld [vmem:[#allocation9 + $0x7f0] sm:$0xff]
    %v783 = vld [vmem:[#allocation9 + $0x7f8] sm:$0xff]
    %785 = vst [vmem:[#allocation1] ss:$4 sm:$0xff] %v527
    %v786 = vld.sshfl [vmem:[#allocation1] sm:$0xff pattern:$0x73625140]
    %v787 = vld.sshfl [vmem:[#allocation1 + $0x8] sm:$0xff pattern:$0x73625140]
    %790 = vmatpush.msra.mxu0 %v648
    %791 = vmatpush.msra.mxu0 %v640
    %792 = vmatpush.msra.mxu0 %v632
    %793 = vmatpush.msra.mxu0 %v624
    %794 = vmatpush.msra.mxu0 %v616
    %795 = vmatpush.msra.mxu0 %v608
    %796 = vmatpush.msra.mxu0 %v600
    %797 = vmatpush.msra.mxu0 %v592
    %798 = vmatpush.msra.mxu0 %v584
    %799 = vmatpush.msra.mxu0 %v576
    %800 = vmatpush.msra.mxu0 %v568
    %801 = vmatpush.msra.mxu0 %v560
    %802 = vmatpush.msra.mxu0 %v552
    %803 = vmatpush.msra.mxu0 %v544
    %804 = vmatpush.msra.mxu0 %v536
    %805 = vmatpush.msra.mxu0 %v528
    %806 = vmatmul.f32.gmra.mxu0 %v786
    %v807 = vpop.f32.mrf.mxu0
    %v808 = vadd.f32 0.0, %v807
    %809 = vdwg.mxu0
    %810 = vmatpush.msra.mxu0 %v776
    %811 = vmatpush.msra.mxu0 %v768
    %812 = vmatpush.msra.mxu0 %v760
    %813 = vmatpush.msra.mxu0 %v752
    %814 = vmatpush.msra.mxu0 %v744
    %815 = vmatpush.msra.mxu0 %v736
    %816 = vmatpush.msra.mxu0 %v728
    %817 = vmatpush.msra.mxu0 %v720
    %818 = vmatpush.msra.mxu0 %v712
    %819 = vmatpush.msra.mxu0 %v704
    %820 = vmatpush.msra.mxu0 %v696
    %821 = vmatpush.msra.mxu0 %v688
    %822 = vmatpush.msra.mxu0 %v680
    %823 = vmatpush.msra.mxu0 %v672
    %824 = vmatpush.msra.mxu0 %v664
    %825 = vmatpush.msra.mxu0 %v656
    %826 = vmatmul.f32.gmra.mxu0 %v787
    %v827 = vpop.f32.mrf.mxu0
    %v828 = vadd.f32 %v808, %v827
    %829 = vdwg.mxu0
    %830 = vmatpush.msra.mxu0 %v649
    %831 = vmatpush.msra.mxu0 %v641
    %832 = vmatpush.msra.mxu0 %v633
    %833 = vmatpush.msra.mxu0 %v625
    %834 = vmatpush.msra.mxu0 %v617
    %835 = vmatpush.msra.mxu0 %v609
    %836 = vmatpush.msra.mxu0 %v601
    %837 = vmatpush.msra.mxu0 %v593
    %838 = vmatpush.msra.mxu0 %v585
    %839 = vmatpush.msra.mxu0 %v577
    %840 = vmatpush.msra.mxu0 %v569
    %841 = vmatpush.msra.mxu0 %v561
    %842 = vmatpush.msra.mxu0 %v553
    %843 = vmatpush.msra.mxu0 %v545
    %844 = vmatpush.msra.mxu0 %v537
    %845 = vmatpush.msra.mxu0 %v529
    %846 = vmatmul.f32.gmra.mxu0 %v786
    %v847 = vpop.f32.mrf.mxu0
    %v848 = vadd.f32 0.0, %v847
    %849 = vdwg.mxu0
    %850 = vmatpush.msra.mxu0 %v777
    %851 = vmatpush.msra.mxu0 %v769
    %852 = vmatpush.msra.mxu0 %v761
    %853 = vmatpush.msra.mxu0 %v753
    %854 = vmatpush.msra.mxu0 %v745
    %855 = vmatpush.msra.mxu0 %v737
    %856 = vmatpush.msra.mxu0 %v729
    %857 = vmatpush.msra.mxu0 %v721
    %858 = vmatpush.msra.mxu0 %v713
    %859 = vmatpush.msra.mxu0 %v705
    %860 = vmatpush.msra.mxu0 %v697
    %861 = vmatpush.msra.mxu0 %v689
    %862 = vmatpush.msra.mxu0 %v681
    %863 = vmatpush.msra.mxu0 %v673
    %864 = vmatpush.msra.mxu0 %v665
    %865 = vmatpush.msra.mxu0 %v657
    %866 = vmatmul.f32.gmra.mxu0 %v787
    %v867 = vpop.f32.mrf.mxu0
    %v868 = vadd.f32 %v848, %v867
    %869 = vdwg.mxu0
    %870 = vmatpush.msra.mxu0 %v650
    %871 = vmatpush.msra.mxu0 %v642
    %872 = vmatpush.msra.mxu0 %v634
    %873 = vmatpush.msra.mxu0 %v626
    %874 = vmatpush.msra.mxu0 %v618
    %875 = vmatpush.msra.mxu0 %v610
    %876 = vmatpush.msra.mxu0 %v602
    %877 = vmatpush.msra.mxu0 %v594
    %878 = vmatpush.msra.mxu0 %v586
    %879 = vmatpush.msra.mxu0 %v578
    %880 = vmatpush.msra.mxu0 %v570
    %881 = vmatpush.msra.mxu0 %v562
    %882 = vmatpush.msra.mxu0 %v554
    %883 = vmatpush.msra.mxu0 %v546
    %884 = vmatpush.msra.mxu0 %v538
    %885 = vmatpush.msra.mxu0 %v530
    %886 = vmatmul.f32.gmra.mxu0 %v786
    %v887 = vpop.f32.mrf.mxu0
    %v888 = vadd.f32 0.0, %v887
    %889 = vdwg.mxu0
    %890 = vmatpush.msra.mxu0 %v778
    %891 = vmatpush.msra.mxu0 %v770
    %892 = vmatpush.msra.mxu0 %v762
    %893 = vmatpush.msra.mxu0 %v754
    %894 = vmatpush.msra.mxu0 %v746
    %895 = vmatpush.msra.mxu0 %v738
    %896 = vmatpush.msra.mxu0 %v730
    %897 = vmatpush.msra.mxu0 %v722
    %898 = vmatpush.msra.mxu0 %v714
    %899 = vmatpush.msra.mxu0 %v706
    %900 = vmatpush.msra.mxu0 %v698
    %901 = vmatpush.msra.mxu0 %v690
    %902 = vmatpush.msra.mxu0 %v682
    %903 = vmatpush.msra.mxu0 %v674
    %904 = vmatpush.msra.mxu0 %v666
    %905 = vmatpush.msra.mxu0 %v658
    %906 = vmatmul.f32.gmra.mxu0 %v787
    %v907 = vpop.f32.mrf.mxu0
    %v908 = vadd.f32 %v888, %v907
    %909 = vdwg.mxu0
    %910 = vmatpush.msra.mxu0 %v651
    %911 = vmatpush.msra.mxu0 %v643
    %912 = vmatpush.msra.mxu0 %v635
    %913 = vmatpush.msra.mxu0 %v627
    %914 = vmatpush.msra.mxu0 %v619
    %915 = vmatpush.msra.mxu0 %v611
    %916 = vmatpush.msra.mxu0 %v603
    %917 = vmatpush.msra.mxu0 %v595
    %918 = vmatpush.msra.mxu0 %v587
    %919 = vmatpush.msra.mxu0 %v579
    %920 = vmatpush.msra.mxu0 %v571
    %921 = vmatpush.msra.mxu0 %v563
    %922 = vmatpush.msra.mxu0 %v555
    %923 = vmatpush.msra.mxu0 %v547
    %924 = vmatpush.msra.mxu0 %v539
    %925 = vmatpush.msra.mxu0 %v531
    %926 = vmatmul.f32.gmra.mxu0 %v786
    %v927 = vpop.f32.mrf.mxu0
    %v928 = vadd.f32 0.0, %v927
    %929 = vdwg.mxu0
    %930 = vmatpush.msra.mxu0 %v779
    %931 = vmatpush.msra.mxu0 %v771
    %932 = vmatpush.msra.mxu0 %v763
    %933 = vmatpush.msra.mxu0 %v755
    %934 = vmatpush.msra.mxu0 %v747
    %935 = vmatpush.msra.mxu0 %v739
    %936 = vmatpush.msra.mxu0 %v731
    %937 = vmatpush.msra.mxu0 %v723
    %938 = vmatpush.msra.mxu0 %v715
    %939 = vmatpush.msra.mxu0 %v707
    %940 = vmatpush.msra.mxu0 %v699
    %941 = vmatpush.msra.mxu0 %v691
    %942 = vmatpush.msra.mxu0 %v683
    %943 = vmatpush.msra.mxu0 %v675
    %944 = vmatpush.msra.mxu0 %v667
    %945 = vmatpush.msra.mxu0 %v659
    %946 = vmatmul.f32.gmra.mxu0 %v787
    %v947 = vpop.f32.mrf.mxu0
    %v948 = vadd.f32 %v928, %v947
    %949 = vdwg.mxu0
    %950 = vmatpush.msra.mxu0 %v652
    %951 = vmatpush.msra.mxu0 %v644
    %952 = vmatpush.msra.mxu0 %v636
    %953 = vmatpush.msra.mxu0 %v628
    %954 = vmatpush.msra.mxu0 %v620
    %955 = vmatpush.msra.mxu0 %v612
    %956 = vmatpush.msra.mxu0 %v604
    %957 = vmatpush.msra.mxu0 %v596
    %958 = vmatpush.msra.mxu0 %v588
    %959 = vmatpush.msra.mxu0 %v580
    %960 = vmatpush.msra.mxu0 %v572
    %961 = vmatpush.msra.mxu0 %v564
    %962 = vmatpush.msra.mxu0 %v556
    %963 = vmatpush.msra.mxu0 %v548
    %964 = vmatpush.msra.mxu0 %v540
    %965 = vmatpush.msra.mxu0 %v532
    %966 = vmatmul.f32.gmra.mxu0 %v786
    %v967 = vpop.f32.mrf.mxu0
    %v968 = vadd.f32 0.0, %v967
    %969 = vdwg.mxu0
    %970 = vmatpush.msra.mxu0 %v780
    %971 = vmatpush.msra.mxu0 %v772
    %972 = vmatpush.msra.mxu0 %v764
    %973 = vmatpush.msra.mxu0 %v756
    %974 = vmatpush.msra.mxu0 %v748
    %975 = vmatpush.msra.mxu0 %v740
    %976 = vmatpush.msra.mxu0 %v732
    %977 = vmatpush.msra.mxu0 %v724
    %978 = vmatpush.msra.mxu0 %v716
    %979 = vmatpush.msra.mxu0 %v708
    %980 = vmatpush.msra.mxu0 %v700
    %981 = vmatpush.msra.mxu0 %v692
    %982 = vmatpush.msra.mxu0 %v684
    %983 = vmatpush.msra.mxu0 %v676
    %984 = vmatpush.msra.mxu0 %v668
    %985 = vmatpush.msra.mxu0 %v660
    %986 = vmatmul.f32.gmra.mxu0 %v787
    %v987 = vpop.f32.mrf.mxu0
    %v988 = vadd.f32 %v968, %v987
    %989 = vdwg.mxu0
    %990 = vmatpush.msra.mxu0 %v653
    %991 = vmatpush.msra.mxu0 %v645
    %992 = vmatpush.msra.mxu0 %v637
    %993 = vmatpush.msra.mxu0 %v629
    %994 = vmatpush.msra.mxu0 %v621
    %995 = vmatpush.msra.mxu0 %v613
    %996 = vmatpush.msra.mxu0 %v605
    %997 = vmatpush.msra.mxu0 %v597
    %998 = vmatpush.msra.mxu0 %v589
    %999 = vmatpush.msra.mxu0 %v581
    %1000 = vmatpush.msra.mxu0 %v573
    %1001 = vmatpush.msra.mxu0 %v565
    %1002 = vmatpush.msra.mxu0 %v557
    %1003 = vmatpush.msra.mxu0 %v549
    %1004 = vmatpush.msra.mxu0 %v541
    %1005 = vmatpush.msra.mxu0 %v533
    %1006 = vmatmul.f32.gmra.mxu0 %v786
    %v1007 = vpop.f32.mrf.mxu0
    %v1008 = vadd.f32 0.0, %v1007
    %1009 = vdwg.mxu0
    %1010 = vmatpush.msra.mxu0 %v781
    %1011 = vmatpush.msra.mxu0 %v773
    %1012 = vmatpush.msra.mxu0 %v765
    %1013 = vmatpush.msra.mxu0 %v757
    %1014 = vmatpush.msra.mxu0 %v749
    %1015 = vmatpush.msra.mxu0 %v741
    %1016 = vmatpush.msra.mxu0 %v733
    %1017 = vmatpush.msra.mxu0 %v725
    %1018 = vmatpush.msra.mxu0 %v717
    %1019 = vmatpush.msra.mxu0 %v709
    %1020 = vmatpush.msra.mxu0 %v701
    %1021 = vmatpush.msra.mxu0 %v693
    %1022 = vmatpush.msra.mxu0 %v685
    %1023 = vmatpush.msra.mxu0 %v677
    %1024 = vmatpush.msra.mxu0 %v669
    %1025 = vmatpush.msra.mxu0 %v661
    %1026 = vmatmul.f32.gmra.mxu0 %v787
    %v1027 = vpop.f32.mrf.mxu0
    %v1028 = vadd.f32 %v1008, %v1027
    %1029 = vdwg.mxu0
    %1030 = vmatpush.msra.mxu0 %v654
    %1031 = vmatpush.msra.mxu0 %v646
    %1032 = vmatpush.msra.mxu0 %v638
    %1033 = vmatpush.msra.mxu0 %v630
    %1034 = vmatpush.msra.mxu0 %v622
    %1035 = vmatpush.msra.mxu0 %v614
    %1036 = vmatpush.msra.mxu0 %v606
    %1037 = vmatpush.msra.mxu0 %v598
    %1038 = vmatpush.msra.mxu0 %v590
    %1039 = vmatpush.msra.mxu0 %v582
    %1040 = vmatpush.msra.mxu0 %v574
    %1041 = vmatpush.msra.mxu0 %v566
    %1042 = vmatpush.msra.mxu0 %v558
    %1043 = vmatpush.msra.mxu0 %v550
    %1044 = vmatpush.msra.mxu0 %v542
    %1045 = vmatpush.msra.mxu0 %v534
    %1046 = vmatmul.f32.gmra.mxu0 %v786
    %v1047 = vpop.f32.mrf.mxu0
    %v1048 = vadd.f32 0.0, %v1047
    %1049 = vdwg.mxu0
    %1050 = vmatpush.msra.mxu0 %v782
    %1051 = vmatpush.msra.mxu0 %v774
    %1052 = vmatpush.msra.mxu0 %v766
    %1053 = vmatpush.msra.mxu0 %v758
    %1054 = vmatpush.msra.mxu0 %v750
    %1055 = vmatpush.msra.mxu0 %v742
    %1056 = vmatpush.msra.mxu0 %v734
    %1057 = vmatpush.msra.mxu0 %v726
    %1058 = vmatpush.msra.mxu0 %v718
    %1059 = vmatpush.msra.mxu0 %v710
    %1060 = vmatpush.msra.mxu0 %v702
    %1061 = vmatpush.msra.mxu0 %v694
    %1062 = vmatpush.msra.mxu0 %v686
    %1063 = vmatpush.msra.mxu0 %v678
    %1064 = vmatpush.msra.mxu0 %v670
    %1065 = vmatpush.msra.mxu0 %v662
    %1066 = vmatmul.f32.gmra.mxu0 %v787
    %v1067 = vpop.f32.mrf.mxu0
    %v1068 = vadd.f32 %v1048, %v1067
    %1069 = vdwg.mxu0
    %1070 = vmatpush.msra.mxu0 %v655
    %1071 = vmatpush.msra.mxu0 %v647
    %1072 = vmatpush.msra.mxu0 %v639
    %1073 = vmatpush.msra.mxu0 %v631
    %1074 = vmatpush.msra.mxu0 %v623
    %1075 = vmatpush.msra.mxu0 %v615
    %1076 = vmatpush.msra.mxu0 %v607
    %1077 = vmatpush.msra.mxu0 %v599
    %1078 = vmatpush.msra.mxu0 %v591
    %1079 = vmatpush.msra.mxu0 %v583
    %1080 = vmatpush.msra.mxu0 %v575
    %1081 = vmatpush.msra.mxu0 %v567
    %1082 = vmatpush.msra.mxu0 %v559
    %1083 = vmatpush.msra.mxu0 %v551
    %1084 = vmatpush.msra.mxu0 %v543
    %1085 = vmatpush.msra.mxu0 %v535
    %1086 = vmatmul.f32.gmra.mxu0 %v786
    %v1087 = vpop.f32.mrf.mxu0
    %v1088 = vadd.f32 0.0, %v1087
    %1089 = vdwg.mxu0
    %1090 = vmatpush.msra.mxu0 %v783
    %1091 = vmatpush.msra.mxu0 %v775
    %1092 = vmatpush.msra.mxu0 %v767
    %1093 = vmatpush.msra.mxu0 %v759
    %1094 = vmatpush.msra.mxu0 %v751
    %1095 = vmatpush.msra.mxu0 %v743
    %1096 = vmatpush.msra.mxu0 %v735
    %1097 = vmatpush.msra.mxu0 %v727
    %1098 = vmatpush.msra.mxu0 %v719
    %1099 = vmatpush.msra.mxu0 %v711
    %1100 = vmatpush.msra.mxu0 %v703
    %1101 = vmatpush.msra.mxu0 %v695
    %1102 = vmatpush.msra.mxu0 %v687
    %1103 = vmatpush.msra.mxu0 %v679
    %1104 = vmatpush.msra.mxu0 %v671
    %1105 = vmatpush.msra.mxu0 %v663
    %1106 = vmatmul.f32.gmra.mxu0 %v787
    %v1107 = vpop.f32.mrf.mxu0
    %v1108 = vadd.f32 %v1088, %v1107
    %1109 = vdwg.mxu0
    %v1110 = vld [vmem:[#allocation2] sm:$0xff]
    %v1111 = vld [vmem:[%s522 + $0x8] sm:$0xff]
    %v1112 = vld [vmem:[#allocation4] sm:$0xf]
    %1114 = vst [vmem:[#allocation1] ss:$4 sm:$0xff] %v1110
    %v1115 = vld.sshfl [vmem:[#allocation1] sm:$0xff pattern:$0x73625140]
    %v1116 = vld.sshfl [vmem:[#allocation1 + $0x8] sm:$0xff pattern:$0x73625140]
    %v1117 = vld.sshfl [vmem:[#allocation1 + $0x10] sm:$0xff pattern:$0x73625140]
    %v1118 = vld.sshfl [vmem:[#allocation1 + $0x18] sm:$0xff pattern:$0x73625140]
    %v1123 = vadd.f32 %v828, %v1115
    %v1124 = vadd.f32 %v868, %v1116
    %v1125 = vadd.f32 %v908, %v1117
    %v1126 = vadd.f32 %v948, %v1118
    %v1127 = vxor.u32 %v1123, 2147483648
    %v1128 = vmul.f32 %v1127, 1.442695
    %v1129 = vpow.pop %v1128
    %v1130 = vadd.f32 %v1129, 1.0
    %v1131 = vrcp.pop %v1130
    %v1132 = vmul.f32 %v1130, %v1131
    %v1133 = vsub.f32 1.0, %v1132
    %v1134 = vmul.f32 %v1131, %v1133
    %v1135 = vadd.f32 %v1131, %v1134
    %vm1136 = vweird.f32 %v1130
    %vm1137 = vweird.f32 %v1131
    %vm1138 = vmor %vm1136, %vm1137
    %v1139 = vsel %vm1138, %v1131, %v1135
    %v1140 = vand.u32 2147483647, %v1130
    %vm1141 = vcmp.eq.f32.partialorder %v1140, 8.507059e+37
    %v1142 = vand.u32 %v1130, 2147483648
    %v1143 = vor.u32 1.1754944e-38, %v1142
    %v1144 = vsel %vm1141, %v1143, %v1139
    %v1145 = vmul.f32 1.0, %v1144
    %v1146 = vxor.u32 %v1124, 2147483648
    %v1147 = vmul.f32 %v1146, 1.442695
    %v1148 = vpow.pop %v1147
    %v1149 = vadd.f32 %v1148, 1.0
    %v1150 = vrcp.pop %v1149
    %v1151 = vmul.f32 %v1149, %v1150
    %v1152 = vsub.f32 1.0, %v1151
    %v1153 = vmul.f32 %v1150, %v1152
    %v1154 = vadd.f32 %v1150, %v1153
    %vm1155 = vweird.f32 %v1149
    %vm1156 = vweird.f32 %v1150
    %vm1157 = vmor %vm1155, %vm1156
    %v1158 = vsel %vm1157, %v1150, %v1154
    %v1159 = vand.u32 2147483647, %v1149
    %vm1160 = vcmp.eq.f32.partialorder %v1159, 8.507059e+37
    %v1161 = vand.u32 %v1149, 2147483648
    %v1162 = vor.u32 1.1754944e-38, %v1161
    %v1163 = vsel %vm1160, %v1162, %v1158
    %v1164 = vmul.f32 1.0, %v1163
    %v1165 = vtanh.pop %v1125
    %v1166 = vxor.u32 %v1126, 2147483648
    %v1167 = vmul.f32 %v1166, 1.442695
    %v1168 = vpow.pop %v1167
    %v1169 = vadd.f32 %v1168, 1.0
    %v1170 = vrcp.pop %v1169
    %v1171 = vmul.f32 %v1169, %v1170
    %v1172 = vsub.f32 1.0, %v1171
    %v1173 = vmul.f32 %v1170, %v1172
    %v1174 = vadd.f32 %v1170, %v1173
    %vm1175 = vweird.f32 %v1169
    %vm1176 = vweird.f32 %v1170
    %vm1177 = vmor %vm1175, %vm1176
    %v1178 = vsel %vm1177, %v1170, %v1174
    %v1179 = vand.u32 2147483647, %v1169
    %vm1180 = vcmp.eq.f32.partialorder %v1179, 8.507059e+37
    %v1181 = vand.u32 %v1169, 2147483648
    %v1182 = vor.u32 1.1754944e-38, %v1181
    %v1183 = vsel %vm1180, %v1182, %v1178
    %v1184 = vmul.f32 1.0, %v1183
    %v1185 = vmul.f32 %v1164, %v1112
    %v1186 = vmul.f32 %v1145, %v1165
    %v1187 = vadd.f32 %v1185, %v1186
    %v1188 = vtanh.pop %v1187
    %v1189 = vmul.f32 %v1184, %v1188
    %1191 = vst [vmem:[#allocation1] ss:$4 sm:$0xff] %v1111
    %v1192 = vld.sshfl [vmem:[#allocation1] sm:$0xff pattern:$0x73625140]
    %v1193 = vld.sshfl [vmem:[#allocation1 + $0x8] sm:$0xff pattern:$0x73625140]
    %v1194 = vld.sshfl [vmem:[#allocation1 + $0x10] sm:$0xff pattern:$0x73625140]
    %v1195 = vld.sshfl [vmem:[#allocation1 + $0x18] sm:$0xff pattern:$0x73625140]
    %v1200 = vadd.f32 %v988, %v1192
    %v1201 = vadd.f32 %v1028, %v1193
    %v1202 = vadd.f32 %v1068, %v1194
    %v1203 = vadd.f32 %v1108, %v1195
    %v1204 = vxor.u32 %v1200, 2147483648
    %v1205 = vmul.f32 %v1204, 1.442695
    %v1206 = vpow.pop %v1205
    %v1207 = vadd.f32 %v1206, 1.0
    %v1208 = vrcp.pop %v1207
    %v1209 = vmul.f32 %v1207, %v1208
    %v1210 = vsub.f32 1.0, %v1209
    %v1211 = vmul.f32 %v1208, %v1210
    %v1212 = vadd.f32 %v1208, %v1211
    %vm1213 = vweird.f32 %v1207
    %vm1214 = vweird.f32 %v1208
    %vm1215 = vmor %vm1213, %vm1214
    %v1216 = vsel %vm1215, %v1208, %v1212
    %v1217 = vand.u32 2147483647, %v1207
    %vm1218 = vcmp.eq.f32.partialorder %v1217, 8.507059e+37
    %v1219 = vand.u32 %v1207, 2147483648
    %v1220 = vor.u32 1.1754944e-38, %v1219
    %v1221 = vsel %vm1218, %v1220, %v1216
    %v1222 = vmul.f32 1.0, %v1221
    %v1223 = vxor.u32 %v1201, 2147483648
    %v1224 = vmul.f32 %v1223, 1.442695
    %v1225 = vpow.pop %v1224
    %v1226 = vadd.f32 %v1225, 1.0
    %v1227 = vrcp.pop %v1226
    %v1228 = vmul.f32 %v1226, %v1227
    %v1229 = vsub.f32 1.0, %v1228
    %v1230 = vmul.f32 %v1227, %v1229
    %v1231 = vadd.f32 %v1227, %v1230
    %vm1232 = vweird.f32 %v1226
    %vm1233 = vweird.f32 %v1227
    %vm1234 = vmor %vm1232, %vm1233
    %v1235 = vsel %vm1234, %v1227, %v1231
    %v1236 = vand.u32 2147483647, %v1226
    %vm1237 = vcmp.eq.f32.partialorder %v1236, 8.507059e+37
    %v1238 = vand.u32 %v1226, 2147483648
    %v1239 = vor.u32 1.1754944e-38, %v1238
    %v1240 = vsel %vm1237, %v1239, %v1235
    %v1241 = vmul.f32 1.0, %v1240
    %v1242 = vtanh.pop %v1202
    %v1243 = vxor.u32 %v1203, 2147483648
    %v1244 = vmul.f32 %v1243, 1.442695
    %v1245 = vpow.pop %v1244
    %v1246 = vadd.f32 %v1245, 1.0
    %v1247 = vrcp.pop %v1246
    %v1248 = vmul.f32 %v1246, %v1247
    %v1249 = vsub.f32 1.0, %v1248
    %v1250 = vmul.f32 %v1247, %v1249
    %v1251 = vadd.f32 %v1247, %v1250
    %vm1252 = vweird.f32 %v1246
    %vm1253 = vweird.f32 %v1247
    %vm1254 = vmor %vm1252, %vm1253
    %v1255 = vsel %vm1254, %v1247, %v1251
    %v1256 = vand.u32 2147483647, %v1246
    %vm1257 = vcmp.eq.f32.partialorder %v1256, 8.507059e+37
    %v1258 = vand.u32 %v1246, 2147483648
    %v1259 = vor.u32 1.1754944e-38, %v1258
    %v1260 = vsel %vm1257, %v1259, %v1255
    %v1261 = vmul.f32 1.0, %v1260
    %1263 = vst [vmem:[#allocation1] ss:$4 sm:$0xff] %v1112
    %v1264 = vld.sshfl [vmem:[#allocation1 + $0x8] sm:$0xff pattern:$0x73625140]
    %v1266 = vmul.f32 %v1241, %v1264
    %v1267 = vmul.f32 %v1222, %v1242
    %v1268 = vadd.f32 %v1266, %v1267
    %v1269 = vtanh.pop %v1268
    %v1270 = vmul.f32 %v1261, %v1269
    %1271 = vst [vmem:[#allocation3] sm:$0x3] %v1189
    %1272 = vst [vmem:[#allocation3 + $0x2] sm:$0x3] %v1270
    %1273 = vst [vmem:[#allocation4] sm:$0x3] %v1187
    %1274 = vst [vmem:[#allocation4 + $0x2] sm:$0x3] %v1268
    %vm1275 = vcmask 402432
    %1276 = vst.msk [vmem:[%s4] sm:$0x3] %vm1275, %v1189
    %s1277 = scalar_lea.vmem %s5, 14
    %1278 = vst.msk [vmem:[%s1277] sm:$0x3] %vm1275, %v1270
    %v1279 = vld [vmem:[#allocation3] sm:$0xf]
    %v1280 = vld [vmem:[#allocation9] sm:$0xff]
    %v1281 = vld [vmem:[#allocation9 + $0x8] sm:$0xff]
    %v1282 = vld [vmem:[#allocation9 + $0x10] sm:$0xff]
    %v1283 = vld [vmem:[#allocation9 + $0x18] sm:$0xff]
    %v1284 = vld [vmem:[#allocation9 + $0x20] sm:$0xff]
    %v1285 = vld [vmem:[#allocation9 + $0x28] sm:$0xff]
    %v1286 = vld [vmem:[#allocation9 + $0x30] sm:$0xff]
    %v1287 = vld [vmem:[#allocation9 + $0x38] sm:$0xff]
    %v1288 = vld [vmem:[#allocation9 + $0x40] sm:$0xff]
    %v1289 = vld [vmem:[#allocation9 + $0x48] sm:$0xff]
    %v1290 = vld [vmem:[#allocation9 + $0x50] sm:$0xff]
    %v1291 = vld [vmem:[#allocation9 + $0x58] sm:$0xff]
    %v1292 = vld [vmem:[#allocation9 + $0x60] sm:$0xff]
    %v1293 = vld [vmem:[#allocation9 + $0x68] sm:$0xff]
    %v1294 = vld [vmem:[#allocation9 + $0x70] sm:$0xff]
    %v1295 = vld [vmem:[#allocation9 + $0x78] sm:$0xff]
    %v1296 = vld [vmem:[#allocation9 + $0x80] sm:$0xff]
    %v1297 = vld [vmem:[#allocation9 + $0x88] sm:$0xff]
    %v1298 = vld [vmem:[#allocation9 + $0x90] sm:$0xff]
    %v1299 = vld [vmem:[#allocation9 + $0x98] sm:$0xff]
    %v1300 = vld [vmem:[#allocation9 + $0xa0] sm:$0xff]
    %v1301 = vld [vmem:[#allocation9 + $0xa8] sm:$0xff]
    %v1302 = vld [vmem:[#allocation9 + $0xb0] sm:$0xff]
    %v1303 = vld [vmem:[#allocation9 + $0xb8] sm:$0xff]
    %v1304 = vld [vmem:[#allocation9 + $0xc0] sm:$0xff]
    %v1305 = vld [vmem:[#allocation9 + $0xc8] sm:$0xff]
    %v1306 = vld [vmem:[#allocation9 + $0xd0] sm:$0xff]
    %v1307 = vld [vmem:[#allocation9 + $0xd8] sm:$0xff]
    %v1308 = vld [vmem:[#allocation9 + $0xe0] sm:$0xff]
    %v1309 = vld [vmem:[#allocation9 + $0xe8] sm:$0xff]
    %v1310 = vld [vmem:[#allocation9 + $0xf0] sm:$0xff]
    %v1311 = vld [vmem:[#allocation9 + $0xf8] sm:$0xff]
    %v1312 = vld [vmem:[#allocation9 + $0x100] sm:$0xff]
    %v1313 = vld [vmem:[#allocation9 + $0x108] sm:$0xff]
    %v1314 = vld [vmem:[#allocation9 + $0x110] sm:$0xff]
    %v1315 = vld [vmem:[#allocation9 + $0x118] sm:$0xff]
    %v1316 = vld [vmem:[#allocation9 + $0x120] sm:$0xff]
    %v1317 = vld [vmem:[#allocation9 + $0x128] sm:$0xff]
    %v1318 = vld [vmem:[#allocation9 + $0x130] sm:$0xff]
    %v1319 = vld [vmem:[#allocation9 + $0x138] sm:$0xff]
    %v1320 = vld [vmem:[#allocation9 + $0x140] sm:$0xff]
    %v1321 = vld [vmem:[#allocation9 + $0x148] sm:$0xff]
    %v1322 = vld [vmem:[#allocation9 + $0x150] sm:$0xff]
    %v1323 = vld [vmem:[#allocation9 + $0x158] sm:$0xff]
    %v1324 = vld [vmem:[#allocation9 + $0x160] sm:$0xff]
    %v1325 = vld [vmem:[#allocation9 + $0x168] sm:$0xff]
    %v1326 = vld [vmem:[#allocation9 + $0x170] sm:$0xff]
    %v1327 = vld [vmem:[#allocation9 + $0x178] sm:$0xff]
    %v1328 = vld [vmem:[#allocation9 + $0x180] sm:$0xff]
    %v1329 = vld [vmem:[#allocation9 + $0x188] sm:$0xff]
    %v1330 = vld [vmem:[#allocation9 + $0x190] sm:$0xff]
    %v1331 = vld [vmem:[#allocation9 + $0x198] sm:$0xff]
    %v1332 = vld [vmem:[#allocation9 + $0x1a0] sm:$0xff]
    %v1333 = vld [vmem:[#allocation9 + $0x1a8] sm:$0xff]
    %v1334 = vld [vmem:[#allocation9 + $0x1b0] sm:$0xff]
    %v1335 = vld [vmem:[#allocation9 + $0x1b8] sm:$0xff]
    %v1336 = vld [vmem:[#allocation9 + $0x1c0] sm:$0xff]
    %v1337 = vld [vmem:[#allocation9 + $0x1c8] sm:$0xff]
    %v1338 = vld [vmem:[#allocation9 + $0x1d0] sm:$0xff]
    %v1339 = vld [vmem:[#allocation9 + $0x1d8] sm:$0xff]
    %v1340 = vld [vmem:[#allocation9 + $0x1e0] sm:$0xff]
    %v1341 = vld [vmem:[#allocation9 + $0x1e8] sm:$0xff]
    %v1342 = vld [vmem:[#allocation9 + $0x1f0] sm:$0xff]
    %v1343 = vld [vmem:[#allocation9 + $0x1f8] sm:$0xff]
    %v1344 = vld [vmem:[#allocation9 + $0x200] sm:$0xff]
    %v1345 = vld [vmem:[#allocation9 + $0x208] sm:$0xff]
    %v1346 = vld [vmem:[#allocation9 + $0x210] sm:$0xff]
    %v1347 = vld [vmem:[#allocation9 + $0x218] sm:$0xff]
    %v1348 = vld [vmem:[#allocation9 + $0x220] sm:$0xff]
    %v1349 = vld [vmem:[#allocation9 + $0x228] sm:$0xff]
    %v1350 = vld [vmem:[#allocation9 + $0x230] sm:$0xff]
    %v1351 = vld [vmem:[#allocation9 + $0x238] sm:$0xff]
    %v1352 = vld [vmem:[#allocation9 + $0x240] sm:$0xff]
    %v1353 = vld [vmem:[#allocation9 + $0x248] sm:$0xff]
    %v1354 = vld [vmem:[#allocation9 + $0x250] sm:$0xff]
    %v1355 = vld [vmem:[#allocation9 + $0x258] sm:$0xff]
    %v1356 = vld [vmem:[#allocation9 + $0x260] sm:$0xff]
    %v1357 = vld [vmem:[#allocation9 + $0x268] sm:$0xff]
    %v1358 = vld [vmem:[#allocation9 + $0x270] sm:$0xff]
    %v1359 = vld [vmem:[#allocation9 + $0x278] sm:$0xff]
    %v1360 = vld [vmem:[#allocation9 + $0x280] sm:$0xff]
    %v1361 = vld [vmem:[#allocation9 + $0x288] sm:$0xff]
    %v1362 = vld [vmem:[#allocation9 + $0x290] sm:$0xff]
    %v1363 = vld [vmem:[#allocation9 + $0x298] sm:$0xff]
    %v1364 = vld [vmem:[#allocation9 + $0x2a0] sm:$0xff]
    %v1365 = vld [vmem:[#allocation9 + $0x2a8] sm:$0xff]
    %v1366 = vld [vmem:[#allocation9 + $0x2b0] sm:$0xff]
    %v1367 = vld [vmem:[#allocation9 + $0x2b8] sm:$0xff]
    %v1368 = vld [vmem:[#allocation9 + $0x2c0] sm:$0xff]
    %v1369 = vld [vmem:[#allocation9 + $0x2c8] sm:$0xff]
    %v1370 = vld [vmem:[#allocation9 + $0x2d0] sm:$0xff]
    %v1371 = vld [vmem:[#allocation9 + $0x2d8] sm:$0xff]
    %v1372 = vld [vmem:[#allocation9 + $0x2e0] sm:$0xff]
    %v1373 = vld [vmem:[#allocation9 + $0x2e8] sm:$0xff]
    %v1374 = vld [vmem:[#allocation9 + $0x2f0] sm:$0xff]
    %v1375 = vld [vmem:[#allocation9 + $0x2f8] sm:$0xff]
    %v1376 = vld [vmem:[#allocation9 + $0x300] sm:$0xff]
    %v1377 = vld [vmem:[#allocation9 + $0x308] sm:$0xff]
    %v1378 = vld [vmem:[#allocation9 + $0x310] sm:$0xff]
    %v1379 = vld [vmem:[#allocation9 + $0x318] sm:$0xff]
    %v1380 = vld [vmem:[#allocation9 + $0x320] sm:$0xff]
    %v1381 = vld [vmem:[#allocation9 + $0x328] sm:$0xff]
    %v1382 = vld [vmem:[#allocation9 + $0x330] sm:$0xff]
    %v1383 = vld [vmem:[#allocation9 + $0x338] sm:$0xff]
    %v1384 = vld [vmem:[#allocation9 + $0x340] sm:$0xff]
    %v1385 = vld [vmem:[#allocation9 + $0x348] sm:$0xff]
    %v1386 = vld [vmem:[#allocation9 + $0x350] sm:$0xff]
    %v1387 = vld [vmem:[#allocation9 + $0x358] sm:$0xff]
    %v1388 = vld [vmem:[#allocation9 + $0x360] sm:$0xff]
    %v1389 = vld [vmem:[#allocation9 + $0x368] sm:$0xff]
    %v1390 = vld [vmem:[#allocation9 + $0x370] sm:$0xff]
    %v1391 = vld [vmem:[#allocation9 + $0x378] sm:$0xff]
    %v1392 = vld [vmem:[#allocation9 + $0x380] sm:$0xff]
    %v1393 = vld [vmem:[#allocation9 + $0x388] sm:$0xff]
    %v1394 = vld [vmem:[#allocation9 + $0x390] sm:$0xff]
    %v1395 = vld [vmem:[#allocation9 + $0x398] sm:$0xff]
    %v1396 = vld [vmem:[#allocation9 + $0x3a0] sm:$0xff]
    %v1397 = vld [vmem:[#allocation9 + $0x3a8] sm:$0xff]
    %v1398 = vld [vmem:[#allocation9 + $0x3b0] sm:$0xff]
    %v1399 = vld [vmem:[#allocation9 + $0x3b8] sm:$0xff]
    %v1400 = vld [vmem:[#allocation9 + $0x3c0] sm:$0xff]
    %v1401 = vld [vmem:[#allocation9 + $0x3c8] sm:$0xff]
    %v1402 = vld [vmem:[#allocation9 + $0x3d0] sm:$0xff]
    %v1403 = vld [vmem:[#allocation9 + $0x3d8] sm:$0xff]
    %v1404 = vld [vmem:[#allocation9 + $0x3e0] sm:$0xff]
    %v1405 = vld [vmem:[#allocation9 + $0x3e8] sm:$0xff]
    %v1406 = vld [vmem:[#allocation9 + $0x3f0] sm:$0xff]
    %v1407 = vld [vmem:[#allocation9 + $0x3f8] sm:$0xff]
    %v1408 = vld [vmem:[#allocation9 + $0x400] sm:$0xff]
    %v1409 = vld [vmem:[#allocation9 + $0x408] sm:$0xff]
    %v1410 = vld [vmem:[#allocation9 + $0x410] sm:$0xff]
    %v1411 = vld [vmem:[#allocation9 + $0x418] sm:$0xff]
    %v1412 = vld [vmem:[#allocation9 + $0x420] sm:$0xff]
    %v1413 = vld [vmem:[#allocation9 + $0x428] sm:$0xff]
    %v1414 = vld [vmem:[#allocation9 + $0x430] sm:$0xff]
    %v1415 = vld [vmem:[#allocation9 + $0x438] sm:$0xff]
    %v1416 = vld [vmem:[#allocation9 + $0x440] sm:$0xff]
    %v1417 = vld [vmem:[#allocation9 + $0x448] sm:$0xff]
    %v1418 = vld [vmem:[#allocation9 + $0x450] sm:$0xff]
    %v1419 = vld [vmem:[#allocation9 + $0x458] sm:$0xff]
    %v1420 = vld [vmem:[#allocation9 + $0x460] sm:$0xff]
    %v1421 = vld [vmem:[#allocation9 + $0x468] sm:$0xff]
    %v1422 = vld [vmem:[#allocation9 + $0x470] sm:$0xff]
    %v1423 = vld [vmem:[#allocation9 + $0x478] sm:$0xff]
    %v1424 = vld [vmem:[#allocation9 + $0x480] sm:$0xff]
    %v1425 = vld [vmem:[#allocation9 + $0x488] sm:$0xff]
    %v1426 = vld [vmem:[#allocation9 + $0x490] sm:$0xff]
    %v1427 = vld [vmem:[#allocation9 + $0x498] sm:$0xff]
    %v1428 = vld [vmem:[#allocation9 + $0x4a0] sm:$0xff]
    %v1429 = vld [vmem:[#allocation9 + $0x4a8] sm:$0xff]
    %v1430 = vld [vmem:[#allocation9 + $0x4b0] sm:$0xff]
    %v1431 = vld [vmem:[#allocation9 + $0x4b8] sm:$0xff]
    %v1432 = vld [vmem:[#allocation9 + $0x4c0] sm:$0xff]
    %v1433 = vld [vmem:[#allocation9 + $0x4c8] sm:$0xff]
    %v1434 = vld [vmem:[#allocation9 + $0x4d0] sm:$0xff]
    %v1435 = vld [vmem:[#allocation9 + $0x4d8] sm:$0xff]
    %v1436 = vld [vmem:[#allocation9 + $0x4e0] sm:$0xff]
    %v1437 = vld [vmem:[#allocation9 + $0x4e8] sm:$0xff]
    %v1438 = vld [vmem:[#allocation9 + $0x4f0] sm:$0xff]
    %v1439 = vld [vmem:[#allocation9 + $0x4f8] sm:$0xff]
    %v1440 = vld [vmem:[#allocation9 + $0x500] sm:$0xff]
    %v1441 = vld [vmem:[#allocation9 + $0x508] sm:$0xff]
    %v1442 = vld [vmem:[#allocation9 + $0x510] sm:$0xff]
    %v1443 = vld [vmem:[#allocation9 + $0x518] sm:$0xff]
    %v1444 = vld [vmem:[#allocation9 + $0x520] sm:$0xff]
    %v1445 = vld [vmem:[#allocation9 + $0x528] sm:$0xff]
    %v1446 = vld [vmem:[#allocation9 + $0x530] sm:$0xff]
    %v1447 = vld [vmem:[#allocation9 + $0x538] sm:$0xff]
    %v1448 = vld [vmem:[#allocation9 + $0x540] sm:$0xff]
    %v1449 = vld [vmem:[#allocation9 + $0x548] sm:$0xff]
    %v1450 = vld [vmem:[#allocation9 + $0x550] sm:$0xff]
    %v1451 = vld [vmem:[#allocation9 + $0x558] sm:$0xff]
    %v1452 = vld [vmem:[#allocation9 + $0x560] sm:$0xff]
    %v1453 = vld [vmem:[#allocation9 + $0x568] sm:$0xff]
    %v1454 = vld [vmem:[#allocation9 + $0x570] sm:$0xff]
    %v1455 = vld [vmem:[#allocation9 + $0x578] sm:$0xff]
    %v1456 = vld [vmem:[#allocation9 + $0x580] sm:$0xff]
    %v1457 = vld [vmem:[#allocation9 + $0x588] sm:$0xff]
    %v1458 = vld [vmem:[#allocation9 + $0x590] sm:$0xff]
    %v1459 = vld [vmem:[#allocation9 + $0x598] sm:$0xff]
    %v1460 = vld [vmem:[#allocation9 + $0x5a0] sm:$0xff]
    %v1461 = vld [vmem:[#allocation9 + $0x5a8] sm:$0xff]
    %v1462 = vld [vmem:[#allocation9 + $0x5b0] sm:$0xff]
    %v1463 = vld [vmem:[#allocation9 + $0x5b8] sm:$0xff]
    %v1464 = vld [vmem:[#allocation9 + $0x5c0] sm:$0xff]
    %v1465 = vld [vmem:[#allocation9 + $0x5c8] sm:$0xff]
    %v1466 = vld [vmem:[#allocation9 + $0x5d0] sm:$0xff]
    %v1467 = vld [vmem:[#allocation9 + $0x5d8] sm:$0xff]
    %v1468 = vld [vmem:[#allocation9 + $0x5e0] sm:$0xff]
    %v1469 = vld [vmem:[#allocation9 + $0x5e8] sm:$0xff]
    %v1470 = vld [vmem:[#allocation9 + $0x5f0] sm:$0xff]
    %v1471 = vld [vmem:[#allocation9 + $0x5f8] sm:$0xff]
    %v1472 = vld [vmem:[#allocation9 + $0x600] sm:$0xff]
    %v1473 = vld [vmem:[#allocation9 + $0x608] sm:$0xff]
    %v1474 = vld [vmem:[#allocation9 + $0x610] sm:$0xff]
    %v1475 = vld [vmem:[#allocation9 + $0x618] sm:$0xff]
    %v1476 = vld [vmem:[#allocation9 + $0x620] sm:$0xff]
    %v1477 = vld [vmem:[#allocation9 + $0x628] sm:$0xff]
    %v1478 = vld [vmem:[#allocation9 + $0x630] sm:$0xff]
    %v1479 = vld [vmem:[#allocation9 + $0x638] sm:$0xff]
    %v1480 = vld [vmem:[#allocation9 + $0x640] sm:$0xff]
    %v1481 = vld [vmem:[#allocation9 + $0x648] sm:$0xff]
    %v1482 = vld [vmem:[#allocation9 + $0x650] sm:$0xff]
    %v1483 = vld [vmem:[#allocation9 + $0x658] sm:$0xff]
    %v1484 = vld [vmem:[#allocation9 + $0x660] sm:$0xff]
    %v1485 = vld [vmem:[#allocation9 + $0x668] sm:$0xff]
    %v1486 = vld [vmem:[#allocation9 + $0x670] sm:$0xff]
    %v1487 = vld [vmem:[#allocation9 + $0x678] sm:$0xff]
    %v1488 = vld [vmem:[#allocation9 + $0x680] sm:$0xff]
    %v1489 = vld [vmem:[#allocation9 + $0x688] sm:$0xff]
    %v1490 = vld [vmem:[#allocation9 + $0x690] sm:$0xff]
    %v1491 = vld [vmem:[#allocation9 + $0x698] sm:$0xff]
    %v1492 = vld [vmem:[#allocation9 + $0x6a0] sm:$0xff]
    %v1493 = vld [vmem:[#allocation9 + $0x6a8] sm:$0xff]
    %v1494 = vld [vmem:[#allocation9 + $0x6b0] sm:$0xff]
    %v1495 = vld [vmem:[#allocation9 + $0x6b8] sm:$0xff]
    %v1496 = vld [vmem:[#allocation9 + $0x6c0] sm:$0xff]
    %v1497 = vld [vmem:[#allocation9 + $0x6c8] sm:$0xff]
    %v1498 = vld [vmem:[#allocation9 + $0x6d0] sm:$0xff]
    %v1499 = vld [vmem:[#allocation9 + $0x6d8] sm:$0xff]
    %v1500 = vld [vmem:[#allocation9 + $0x6e0] sm:$0xff]
    %v1501 = vld [vmem:[#allocation9 + $0x6e8] sm:$0xff]
    %v1502 = vld [vmem:[#allocation9 + $0x6f0] sm:$0xff]
    %v1503 = vld [vmem:[#allocation9 + $0x6f8] sm:$0xff]
    %v1504 = vld [vmem:[#allocation9 + $0x700] sm:$0xff]
    %v1505 = vld [vmem:[#allocation9 + $0x708] sm:$0xff]
    %v1506 = vld [vmem:[#allocation9 + $0x710] sm:$0xff]
    %v1507 = vld [vmem:[#allocation9 + $0x718] sm:$0xff]
    %v1508 = vld [vmem:[#allocation9 + $0x720] sm:$0xff]
    %v1509 = vld [vmem:[#allocation9 + $0x728] sm:$0xff]
    %v1510 = vld [vmem:[#allocation9 + $0x730] sm:$0xff]
    %v1511 = vld [vmem:[#allocation9 + $0x738] sm:$0xff]
    %v1512 = vld [vmem:[#allocation9 + $0x740] sm:$0xff]
    %v1513 = vld [vmem:[#allocation9 + $0x748] sm:$0xff]
    %v1514 = vld [vmem:[#allocation9 + $0x750] sm:$0xff]
    %v1515 = vld [vmem:[#allocation9 + $0x758] sm:$0xff]
    %v1516 = vld [vmem:[#allocation9 + $0x760] sm:$0xff]
    %v1517 = vld [vmem:[#allocation9 + $0x768] sm:$0xff]
    %v1518 = vld [vmem:[#allocation9 + $0x770] sm:$0xff]
    %v1519 = vld [vmem:[#allocation9 + $0x778] sm:$0xff]
    %v1520 = vld [vmem:[#allocation9 + $0x780] sm:$0xff]
    %v1521 = vld [vmem:[#allocation9 + $0x788] sm:$0xff]
    %v1522 = vld [vmem:[#allocation9 + $0x790] sm:$0xff]
    %v1523 = vld [vmem:[#allocation9 + $0x798] sm:$0xff]
    %v1524 = vld [vmem:[#allocation9 + $0x7a0] sm:$0xff]
    %v1525 = vld [vmem:[#allocation9 + $0x7a8] sm:$0xff]
    %v1526 = vld [vmem:[#allocation9 + $0x7b0] sm:$0xff]
    %v1527 = vld [vmem:[#allocation9 + $0x7b8] sm:$0xff]
    %v1528 = vld [vmem:[#allocation9 + $0x7c0] sm:$0xff]
    %v1529 = vld [vmem:[#allocation9 + $0x7c8] sm:$0xff]
    %v1530 = vld [vmem:[#allocation9 + $0x7d0] sm:$0xff]
    %v1531 = vld [vmem:[#allocation9 + $0x7d8] sm:$0xff]
    %v1532 = vld [vmem:[#allocation9 + $0x7e0] sm:$0xff]
    %v1533 = vld [vmem:[#allocation9 + $0x7e8] sm:$0xff]
    %v1534 = vld [vmem:[#allocation9 + $0x7f0] sm:$0xff]
    %v1535 = vld [vmem:[#allocation9 + $0x7f8] sm:$0xff]
    %1537 = vst [vmem:[#allocation1] ss:$4 sm:$0xff] %v1279
    %v1538 = vld.sshfl [vmem:[#allocation1] sm:$0xff pattern:$0x73625140]
    %v1539 = vld.sshfl [vmem:[#allocation1 + $0x8] sm:$0xff pattern:$0x73625140]
    %1542 = vmatpush.msra.mxu0 %v1400
    %1543 = vmatpush.msra.mxu0 %v1392
    %1544 = vmatpush.msra.mxu0 %v1384
    %1545 = vmatpush.msra.mxu0 %v1376
    %1546 = vmatpush.msra.mxu0 %v1368
    %1547 = vmatpush.msra.mxu0 %v1360
    %1548 = vmatpush.msra.mxu0 %v1352
    %1549 = vmatpush.msra.mxu0 %v1344
    %1550 = vmatpush.msra.mxu0 %v1336
    %1551 = vmatpush.msra.mxu0 %v1328
    %1552 = vmatpush.msra.mxu0 %v1320
    %1553 = vmatpush.msra.mxu0 %v1312
    %1554 = vmatpush.msra.mxu0 %v1304
    %1555 = vmatpush.msra.mxu0 %v1296
    %1556 = vmatpush.msra.mxu0 %v1288
    %1557 = vmatpush.msra.mxu0 %v1280
    %1558 = vmatmul.f32.gmra.mxu0 %v1538
    %v1559 = vpop.f32.mrf.mxu0
    %v1560 = vadd.f32 0.0, %v1559
    %1561 = vdwg.mxu0
    %1562 = vmatpush.msra.mxu0 %v1528
    %1563 = vmatpush.msra.mxu0 %v1520
    %1564 = vmatpush.msra.mxu0 %v1512
    %1565 = vmatpush.msra.mxu0 %v1504
    %1566 = vmatpush.msra.mxu0 %v1496
    %1567 = vmatpush.msra.mxu0 %v1488
    %1568 = vmatpush.msra.mxu0 %v1480
    %1569 = vmatpush.msra.mxu0 %v1472
    %1570 = vmatpush.msra.mxu0 %v1464
    %1571 = vmatpush.msra.mxu0 %v1456
    %1572 = vmatpush.msra.mxu0 %v1448
    %1573 = vmatpush.msra.mxu0 %v1440
    %1574 = vmatpush.msra.mxu0 %v1432
    %1575 = vmatpush.msra.mxu0 %v1424
    %1576 = vmatpush.msra.mxu0 %v1416
    %1577 = vmatpush.msra.mxu0 %v1408
    %1578 = vmatmul.f32.gmra.mxu0 %v1539
    %v1579 = vpop.f32.mrf.mxu0
    %v1580 = vadd.f32 %v1560, %v1579
    %1581 = vdwg.mxu0
    %1582 = vmatpush.msra.mxu0 %v1401
    %1583 = vmatpush.msra.mxu0 %v1393
    %1584 = vmatpush.msra.mxu0 %v1385
    %1585 = vmatpush.msra.mxu0 %v1377
    %1586 = vmatpush.msra.mxu0 %v1369
    %1587 = vmatpush.msra.mxu0 %v1361
    %1588 = vmatpush.msra.mxu0 %v1353
    %1589 = vmatpush.msra.mxu0 %v1345
    %1590 = vmatpush.msra.mxu0 %v1337
    %1591 = vmatpush.msra.mxu0 %v1329
    %1592 = vmatpush.msra.mxu0 %v1321
    %1593 = vmatpush.msra.mxu0 %v1313
    %1594 = vmatpush.msra.mxu0 %v1305
    %1595 = vmatpush.msra.mxu0 %v1297
    %1596 = vmatpush.msra.mxu0 %v1289
    %1597 = vmatpush.msra.mxu0 %v1281
    %1598 = vmatmul.f32.gmra.mxu0 %v1538
    %v1599 = vpop.f32.mrf.mxu0
    %v1600 = vadd.f32 0.0, %v1599
    %1601 = vdwg.mxu0
    %1602 = vmatpush.msra.mxu0 %v1529
    %1603 = vmatpush.msra.mxu0 %v1521
    %1604 = vmatpush.msra.mxu0 %v1513
    %1605 = vmatpush.msra.mxu0 %v1505
    %1606 = vmatpush.msra.mxu0 %v1497
    %1607 = vmatpush.msra.mxu0 %v1489
    %1608 = vmatpush.msra.mxu0 %v1481
    %1609 = vmatpush.msra.mxu0 %v1473
    %1610 = vmatpush.msra.mxu0 %v1465
    %1611 = vmatpush.msra.mxu0 %v1457
    %1612 = vmatpush.msra.mxu0 %v1449
    %1613 = vmatpush.msra.mxu0 %v1441
    %1614 = vmatpush.msra.mxu0 %v1433
    %1615 = vmatpush.msra.mxu0 %v1425
    %1616 = vmatpush.msra.mxu0 %v1417
    %1617 = vmatpush.msra.mxu0 %v1409
    %1618 = vmatmul.f32.gmra.mxu0 %v1539
    %v1619 = vpop.f32.mrf.mxu0
    %v1620 = vadd.f32 %v1600, %v1619
    %1621 = vdwg.mxu0
    %1622 = vmatpush.msra.mxu0 %v1402
    %1623 = vmatpush.msra.mxu0 %v1394
    %1624 = vmatpush.msra.mxu0 %v1386
    %1625 = vmatpush.msra.mxu0 %v1378
    %1626 = vmatpush.msra.mxu0 %v1370
    %1627 = vmatpush.msra.mxu0 %v1362
    %1628 = vmatpush.msra.mxu0 %v1354
    %1629 = vmatpush.msra.mxu0 %v1346
    %1630 = vmatpush.msra.mxu0 %v1338
    %1631 = vmatpush.msra.mxu0 %v1330
    %1632 = vmatpush.msra.mxu0 %v1322
    %1633 = vmatpush.msra.mxu0 %v1314
    %1634 = vmatpush.msra.mxu0 %v1306
    %1635 = vmatpush.msra.mxu0 %v1298
    %1636 = vmatpush.msra.mxu0 %v1290
    %1637 = vmatpush.msra.mxu0 %v1282
    %1638 = vmatmul.f32.gmra.mxu0 %v1538
    %v1639 = vpop.f32.mrf.mxu0
    %v1640 = vadd.f32 0.0, %v1639
    %1641 = vdwg.mxu0
    %1642 = vmatpush.msra.mxu0 %v1530
    %1643 = vmatpush.msra.mxu0 %v1522
    %1644 = vmatpush.msra.mxu0 %v1514
    %1645 = vmatpush.msra.mxu0 %v1506
    %1646 = vmatpush.msra.mxu0 %v1498
    %1647 = vmatpush.msra.mxu0 %v1490
    %1648 = vmatpush.msra.mxu0 %v1482
    %1649 = vmatpush.msra.mxu0 %v1474
    %1650 = vmatpush.msra.mxu0 %v1466
    %1651 = vmatpush.msra.mxu0 %v1458
    %1652 = vmatpush.msra.mxu0 %v1450
    %1653 = vmatpush.msra.mxu0 %v1442
    %1654 = vmatpush.msra.mxu0 %v1434
    %1655 = vmatpush.msra.mxu0 %v1426
    %1656 = vmatpush.msra.mxu0 %v1418
    %1657 = vmatpush.msra.mxu0 %v1410
    %1658 = vmatmul.f32.gmra.mxu0 %v1539
    %v1659 = vpop.f32.mrf.mxu0
    %v1660 = vadd.f32 %v1640, %v1659
    %1661 = vdwg.mxu0
    %1662 = vmatpush.msra.mxu0 %v1403
    %1663 = vmatpush.msra.mxu0 %v1395
    %1664 = vmatpush.msra.mxu0 %v1387
    %1665 = vmatpush.msra.mxu0 %v1379
    %1666 = vmatpush.msra.mxu0 %v1371
    %1667 = vmatpush.msra.mxu0 %v1363
    %1668 = vmatpush.msra.mxu0 %v1355
    %1669 = vmatpush.msra.mxu0 %v1347
    %1670 = vmatpush.msra.mxu0 %v1339
    %1671 = vmatpush.msra.mxu0 %v1331
    %1672 = vmatpush.msra.mxu0 %v1323
    %1673 = vmatpush.msra.mxu0 %v1315
    %1674 = vmatpush.msra.mxu0 %v1307
    %1675 = vmatpush.msra.mxu0 %v1299
    %1676 = vmatpush.msra.mxu0 %v1291
    %1677 = vmatpush.msra.mxu0 %v1283
    %1678 = vmatmul.f32.gmra.mxu0 %v1538
    %v1679 = vpop.f32.mrf.mxu0
    %v1680 = vadd.f32 0.0, %v1679
    %1681 = vdwg.mxu0
    %1682 = vmatpush.msra.mxu0 %v1531
    %1683 = vmatpush.msra.mxu0 %v1523
    %1684 = vmatpush.msra.mxu0 %v1515
    %1685 = vmatpush.msra.mxu0 %v1507
    %1686 = vmatpush.msra.mxu0 %v1499
    %1687 = vmatpush.msra.mxu0 %v1491
    %1688 = vmatpush.msra.mxu0 %v1483
    %1689 = vmatpush.msra.mxu0 %v1475
    %1690 = vmatpush.msra.mxu0 %v1467
    %1691 = vmatpush.msra.mxu0 %v1459
    %1692 = vmatpush.msra.mxu0 %v1451
    %1693 = vmatpush.msra.mxu0 %v1443
    %1694 = vmatpush.msra.mxu0 %v1435
    %1695 = vmatpush.msra.mxu0 %v1427
    %1696 = vmatpush.msra.mxu0 %v1419
    %1697 = vmatpush.msra.mxu0 %v1411
    %1698 = vmatmul.f32.gmra.mxu0 %v1539
    %v1699 = vpop.f32.mrf.mxu0
    %v1700 = vadd.f32 %v1680, %v1699
    %1701 = vdwg.mxu0
    %1702 = vmatpush.msra.mxu0 %v1404
    %1703 = vmatpush.msra.mxu0 %v1396
    %1704 = vmatpush.msra.mxu0 %v1388
    %1705 = vmatpush.msra.mxu0 %v1380
    %1706 = vmatpush.msra.mxu0 %v1372
    %1707 = vmatpush.msra.mxu0 %v1364
    %1708 = vmatpush.msra.mxu0 %v1356
    %1709 = vmatpush.msra.mxu0 %v1348
    %1710 = vmatpush.msra.mxu0 %v1340
    %1711 = vmatpush.msra.mxu0 %v1332
    %1712 = vmatpush.msra.mxu0 %v1324
    %1713 = vmatpush.msra.mxu0 %v1316
    %1714 = vmatpush.msra.mxu0 %v1308
    %1715 = vmatpush.msra.mxu0 %v1300
    %1716 = vmatpush.msra.mxu0 %v1292
    %1717 = vmatpush.msra.mxu0 %v1284
    %1718 = vmatmul.f32.gmra.mxu0 %v1538
    %v1719 = vpop.f32.mrf.mxu0
    %v1720 = vadd.f32 0.0, %v1719
    %1721 = vdwg.mxu0
    %1722 = vmatpush.msra.mxu0 %v1532
    %1723 = vmatpush.msra.mxu0 %v1524
    %1724 = vmatpush.msra.mxu0 %v1516
    %1725 = vmatpush.msra.mxu0 %v1508
    %1726 = vmatpush.msra.mxu0 %v1500
    %1727 = vmatpush.msra.mxu0 %v1492
    %1728 = vmatpush.msra.mxu0 %v1484
    %1729 = vmatpush.msra.mxu0 %v1476
    %1730 = vmatpush.msra.mxu0 %v1468
    %1731 = vmatpush.msra.mxu0 %v1460
    %1732 = vmatpush.msra.mxu0 %v1452
    %1733 = vmatpush.msra.mxu0 %v1444
    %1734 = vmatpush.msra.mxu0 %v1436
    %1735 = vmatpush.msra.mxu0 %v1428
    %1736 = vmatpush.msra.mxu0 %v1420
    %1737 = vmatpush.msra.mxu0 %v1412
    %1738 = vmatmul.f32.gmra.mxu0 %v1539
    %v1739 = vpop.f32.mrf.mxu0
    %v1740 = vadd.f32 %v1720, %v1739
    %1741 = vdwg.mxu0
    %1742 = vmatpush.msra.mxu0 %v1405
    %1743 = vmatpush.msra.mxu0 %v1397
    %1744 = vmatpush.msra.mxu0 %v1389
    %1745 = vmatpush.msra.mxu0 %v1381
    %1746 = vmatpush.msra.mxu0 %v1373
    %1747 = vmatpush.msra.mxu0 %v1365
    %1748 = vmatpush.msra.mxu0 %v1357
    %1749 = vmatpush.msra.mxu0 %v1349
    %1750 = vmatpush.msra.mxu0 %v1341
    %1751 = vmatpush.msra.mxu0 %v1333
    %1752 = vmatpush.msra.mxu0 %v1325
    %1753 = vmatpush.msra.mxu0 %v1317
    %1754 = vmatpush.msra.mxu0 %v1309
    %1755 = vmatpush.msra.mxu0 %v1301
    %1756 = vmatpush.msra.mxu0 %v1293
    %1757 = vmatpush.msra.mxu0 %v1285
    %1758 = vmatmul.f32.gmra.mxu0 %v1538
    %v1759 = vpop.f32.mrf.mxu0
    %v1760 = vadd.f32 0.0, %v1759
    %1761 = vdwg.mxu0
    %1762 = vmatpush.msra.mxu0 %v1533
    %1763 = vmatpush.msra.mxu0 %v1525
    %1764 = vmatpush.msra.mxu0 %v1517
    %1765 = vmatpush.msra.mxu0 %v1509
    %1766 = vmatpush.msra.mxu0 %v1501
    %1767 = vmatpush.msra.mxu0 %v1493
    %1768 = vmatpush.msra.mxu0 %v1485
    %1769 = vmatpush.msra.mxu0 %v1477
    %1770 = vmatpush.msra.mxu0 %v1469
    %1771 = vmatpush.msra.mxu0 %v1461
    %1772 = vmatpush.msra.mxu0 %v1453
    %1773 = vmatpush.msra.mxu0 %v1445
    %1774 = vmatpush.msra.mxu0 %v1437
    %1775 = vmatpush.msra.mxu0 %v1429
    %1776 = vmatpush.msra.mxu0 %v1421
    %1777 = vmatpush.msra.mxu0 %v1413
    %1778 = vmatmul.f32.gmra.mxu0 %v1539
    %v1779 = vpop.f32.mrf.mxu0
    %v1780 = vadd.f32 %v1760, %v1779
    %1781 = vdwg.mxu0
    %1782 = vmatpush.msra.mxu0 %v1406
    %1783 = vmatpush.msra.mxu0 %v1398
    %1784 = vmatpush.msra.mxu0 %v1390
    %1785 = vmatpush.msra.mxu0 %v1382
    %1786 = vmatpush.msra.mxu0 %v1374
    %1787 = vmatpush.msra.mxu0 %v1366
    %1788 = vmatpush.msra.mxu0 %v1358
    %1789 = vmatpush.msra.mxu0 %v1350
    %1790 = vmatpush.msra.mxu0 %v1342
    %1791 = vmatpush.msra.mxu0 %v1334
    %1792 = vmatpush.msra.mxu0 %v1326
    %1793 = vmatpush.msra.mxu0 %v1318
    %1794 = vmatpush.msra.mxu0 %v1310
    %1795 = vmatpush.msra.mxu0 %v1302
    %1796 = vmatpush.msra.mxu0 %v1294
    %1797 = vmatpush.msra.mxu0 %v1286
    %1798 = vmatmul.f32.gmra.mxu0 %v1538
    %v1799 = vpop.f32.mrf.mxu0
    %v1800 = vadd.f32 0.0, %v1799
    %1801 = vdwg.mxu0
    %1802 = vmatpush.msra.mxu0 %v1534
    %1803 = vmatpush.msra.mxu0 %v1526
    %1804 = vmatpush.msra.mxu0 %v1518
    %1805 = vmatpush.msra.mxu0 %v1510
    %1806 = vmatpush.msra.mxu0 %v1502
    %1807 = vmatpush.msra.mxu0 %v1494
    %1808 = vmatpush.msra.mxu0 %v1486
    %1809 = vmatpush.msra.mxu0 %v1478
    %1810 = vmatpush.msra.mxu0 %v1470
    %1811 = vmatpush.msra.mxu0 %v1462
    %1812 = vmatpush.msra.mxu0 %v1454
    %1813 = vmatpush.msra.mxu0 %v1446
    %1814 = vmatpush.msra.mxu0 %v1438
    %1815 = vmatpush.msra.mxu0 %v1430
    %1816 = vmatpush.msra.mxu0 %v1422
    %1817 = vmatpush.msra.mxu0 %v1414
    %1818 = vmatmul.f32.gmra.mxu0 %v1539
    %v1819 = vpop.f32.mrf.mxu0
    %v1820 = vadd.f32 %v1800, %v1819
    %1821 = vdwg.mxu0
    %1822 = vmatpush.msra.mxu0 %v1407
    %1823 = vmatpush.msra.mxu0 %v1399
    %1824 = vmatpush.msra.mxu0 %v1391
    %1825 = vmatpush.msra.mxu0 %v1383
    %1826 = vmatpush.msra.mxu0 %v1375
    %1827 = vmatpush.msra.mxu0 %v1367
    %1828 = vmatpush.msra.mxu0 %v1359
    %1829 = vmatpush.msra.mxu0 %v1351
    %1830 = vmatpush.msra.mxu0 %v1343
    %1831 = vmatpush.msra.mxu0 %v1335
    %1832 = vmatpush.msra.mxu0 %v1327
    %1833 = vmatpush.msra.mxu0 %v1319
    %1834 = vmatpush.msra.mxu0 %v1311
    %1835 = vmatpush.msra.mxu0 %v1303
    %1836 = vmatpush.msra.mxu0 %v1295
    %1837 = vmatpush.msra.mxu0 %v1287
    %1838 = vmatmul.f32.gmra.mxu0 %v1538
    %v1839 = vpop.f32.mrf.mxu0
    %v1840 = vadd.f32 0.0, %v1839
    %1841 = vdwg.mxu0
    %1842 = vmatpush.msra.mxu0 %v1535
    %1843 = vmatpush.msra.mxu0 %v1527
    %1844 = vmatpush.msra.mxu0 %v1519
    %1845 = vmatpush.msra.mxu0 %v1511
    %1846 = vmatpush.msra.mxu0 %v1503
    %1847 = vmatpush.msra.mxu0 %v1495
    %1848 = vmatpush.msra.mxu0 %v1487
    %1849 = vmatpush.msra.mxu0 %v1479
    %1850 = vmatpush.msra.mxu0 %v1471
    %1851 = vmatpush.msra.mxu0 %v1463
    %1852 = vmatpush.msra.mxu0 %v1455
    %1853 = vmatpush.msra.mxu0 %v1447
    %1854 = vmatpush.msra.mxu0 %v1439
    %1855 = vmatpush.msra.mxu0 %v1431
    %1856 = vmatpush.msra.mxu0 %v1423
    %1857 = vmatpush.msra.mxu0 %v1415
    %1858 = vmatmul.f32.gmra.mxu0 %v1539
    %v1859 = vpop.f32.mrf.mxu0
    %v1860 = vadd.f32 %v1840, %v1859
    %1861 = vdwg.mxu0
    %v1862 = vld [vmem:[%s412] sm:$0xff]
    %v1863 = vld [vmem:[%s505 + $0x8] sm:$0xff]
    %v1864 = vld [vmem:[#allocation4] sm:$0xf]
    %1866 = vst [vmem:[#allocation1] ss:$4 sm:$0xff] %v1862
    %v1867 = vld.sshfl [vmem:[#allocation1] sm:$0xff pattern:$0x73625140]
    %v1868 = vld.sshfl [vmem:[#allocation1 + $0x8] sm:$0xff pattern:$0x73625140]
    %v1869 = vld.sshfl [vmem:[#allocation1 + $0x10] sm:$0xff pattern:$0x73625140]
    %v1870 = vld.sshfl [vmem:[#allocation1 + $0x18] sm:$0xff pattern:$0x73625140]
    %v1875 = vadd.f32 %v1580, %v1867
    %v1876 = vadd.f32 %v1620, %v1868
    %v1877 = vadd.f32 %v1660, %v1869
    %v1878 = vadd.f32 %v1700, %v1870
    %v1879 = vxor.u32 %v1875, 2147483648
    %v1880 = vmul.f32 %v1879, 1.442695
    %v1881 = vpow.pop %v1880
    %v1882 = vadd.f32 %v1881, 1.0
    %v1883 = vrcp.pop %v1882
    %v1884 = vmul.f32 %v1882, %v1883
    %v1885 = vsub.f32 1.0, %v1884
    %v1886 = vmul.f32 %v1883, %v1885
    %v1887 = vadd.f32 %v1883, %v1886
    %vm1888 = vweird.f32 %v1882
    %vm1889 = vweird.f32 %v1883
    %vm1890 = vmor %vm1888, %vm1889
    %v1891 = vsel %vm1890, %v1883, %v1887
    %v1892 = vand.u32 2147483647, %v1882
    %vm1893 = vcmp.eq.f32.partialorder %v1892, 8.507059e+37
    %v1894 = vand.u32 %v1882, 2147483648
    %v1895 = vor.u32 1.1754944e-38, %v1894
    %v1896 = vsel %vm1893, %v1895, %v1891
    %v1897 = vmul.f32 1.0, %v1896
    %v1898 = vxor.u32 %v1876, 2147483648
    %v1899 = vmul.f32 %v1898, 1.442695
    %v1900 = vpow.pop %v1899
    %v1901 = vadd.f32 %v1900, 1.0
    %v1902 = vrcp.pop %v1901
    %v1903 = vmul.f32 %v1901, %v1902
    %v1904 = vsub.f32 1.0, %v1903
    %v1905 = vmul.f32 %v1902, %v1904
    %v1906 = vadd.f32 %v1902, %v1905
    %vm1907 = vweird.f32 %v1901
    %vm1908 = vweird.f32 %v1902
    %vm1909 = vmor %vm1907, %vm1908
    %v1910 = vsel %vm1909, %v1902, %v1906
    %v1911 = vand.u32 2147483647, %v1901
    %vm1912 = vcmp.eq.f32.partialorder %v1911, 8.507059e+37
    %v1913 = vand.u32 %v1901, 2147483648
    %v1914 = vor.u32 1.1754944e-38, %v1913
    %v1915 = vsel %vm1912, %v1914, %v1910
    %v1916 = vmul.f32 1.0, %v1915
    %v1917 = vtanh.pop %v1877
    %v1918 = vxor.u32 %v1878, 2147483648
    %v1919 = vmul.f32 %v1918, 1.442695
    %v1920 = vpow.pop %v1919
    %v1921 = vadd.f32 %v1920, 1.0
    %v1922 = vrcp.pop %v1921
    %v1923 = vmul.f32 %v1921, %v1922
    %v1924 = vsub.f32 1.0, %v1923
    %v1925 = vmul.f32 %v1922, %v1924
    %v1926 = vadd.f32 %v1922, %v1925
    %vm1927 = vweird.f32 %v1921
    %vm1928 = vweird.f32 %v1922
    %vm1929 = vmor %vm1927, %vm1928
    %v1930 = vsel %vm1929, %v1922, %v1926
    %v1931 = vand.u32 2147483647, %v1921
    %vm1932 = vcmp.eq.f32.partialorder %v1931, 8.507059e+37
    %v1933 = vand.u32 %v1921, 2147483648
    %v1934 = vor.u32 1.1754944e-38, %v1933
    %v1935 = vsel %vm1932, %v1934, %v1930
    %v1936 = vmul.f32 1.0, %v1935
    %v1937 = vmul.f32 %v1916, %v1864
    %v1938 = vmul.f32 %v1897, %v1917
    %v1939 = vadd.f32 %v1937, %v1938
    %v1940 = vtanh.pop %v1939
    %v1941 = vmul.f32 %v1936, %v1940
    %1943 = vst [vmem:[#allocation1] ss:$4 sm:$0xff] %v1863
    %v1944 = vld.sshfl [vmem:[#allocation1] sm:$0xff pattern:$0x73625140]
    %v1945 = vld.sshfl [vmem:[#allocation1 + $0x8] sm:$0xff pattern:$0x73625140]
    %v1946 = vld.sshfl [vmem:[#allocation1 + $0x10] sm:$0xff pattern:$0x73625140]
    %v1947 = vld.sshfl [vmem:[#allocation1 + $0x18] sm:$0xff pattern:$0x73625140]
    %v1952 = vadd.f32 %v1740, %v1944
    %v1953 = vadd.f32 %v1780, %v1945
    %v1954 = vadd.f32 %v1820, %v1946
    %v1955 = vadd.f32 %v1860, %v1947
    %v1956 = vxor.u32 %v1952, 2147483648
    %v1957 = vmul.f32 %v1956, 1.442695
    %v1958 = vpow.pop %v1957
    %v1959 = vadd.f32 %v1958, 1.0
    %v1960 = vrcp.pop %v1959
    %v1961 = vmul.f32 %v1959, %v1960
    %v1962 = vsub.f32 1.0, %v1961
    %v1963 = vmul.f32 %v1960, %v1962
    %v1964 = vadd.f32 %v1960, %v1963
    %vm1965 = vweird.f32 %v1959
    %vm1966 = vweird.f32 %v1960
    %vm1967 = vmor %vm1965, %vm1966
    %v1968 = vsel %vm1967, %v1960, %v1964
    %v1969 = vand.u32 2147483647, %v1959
    %vm1970 = vcmp.eq.f32.partialorder %v1969, 8.507059e+37
    %v1971 = vand.u32 %v1959, 2147483648
    %v1972 = vor.u32 1.1754944e-38, %v1971
    %v1973 = vsel %vm1970, %v1972, %v1968
    %v1974 = vmul.f32 1.0, %v1973
    %v1975 = vxor.u32 %v1953, 2147483648
    %v1976 = vmul.f32 %v1975, 1.442695
    %v1977 = vpow.pop %v1976
    %v1978 = vadd.f32 %v1977, 1.0
    %v1979 = vrcp.pop %v1978
    %v1980 = vmul.f32 %v1978, %v1979
    %v1981 = vsub.f32 1.0, %v1980
    %v1982 = vmul.f32 %v1979, %v1981
    %v1983 = vadd.f32 %v1979, %v1982
    %vm1984 = vweird.f32 %v1978
    %vm1985 = vweird.f32 %v1979
    %vm1986 = vmor %vm1984, %vm1985
    %v1987 = vsel %vm1986, %v1979, %v1983
    %v1988 = vand.u32 2147483647, %v1978
    %vm1989 = vcmp.eq.f32.partialorder %v1988, 8.507059e+37
    %v1990 = vand.u32 %v1978, 2147483648
    %v1991 = vor.u32 1.1754944e-38, %v1990
    %v1992 = vsel %vm1989, %v1991, %v1987
    %v1993 = vmul.f32 1.0, %v1992
    %v1994 = vtanh.pop %v1954
    %v1995 = vxor.u32 %v1955, 2147483648
    %v1996 = vmul.f32 %v1995, 1.442695
    %v1997 = vpow.pop %v1996
    %v1998 = vadd.f32 %v1997, 1.0
    %v1999 = vrcp.pop %v1998
    %v2000 = vmul.f32 %v1998, %v1999
    %v2001 = vsub.f32 1.0, %v2000
    %v2002 = vmul.f32 %v1999, %v2001
    %v2003 = vadd.f32 %v1999, %v2002
    %vm2004 = vweird.f32 %v1998
    %vm2005 = vweird.f32 %v1999
    %vm2006 = vmor %vm2004, %vm2005
    %v2007 = vsel %vm2006, %v1999, %v2003
    %v2008 = vand.u32 2147483647, %v1998
    %vm2009 = vcmp.eq.f32.partialorder %v2008, 8.507059e+37
    %v2010 = vand.u32 %v1998, 2147483648
    %v2011 = vor.u32 1.1754944e-38, %v2010
    %v2012 = vsel %vm2009, %v2011, %v2007
    %v2013 = vmul.f32 1.0, %v2012
    %2015 = vst [vmem:[#allocation1] ss:$4 sm:$0xff] %v1864
    %v2016 = vld.sshfl [vmem:[#allocation1 + $0x8] sm:$0xff pattern:$0x73625140]
    %v2018 = vmul.f32 %v1993, %v2016
    %v2019 = vmul.f32 %v1974, %v1994
    %v2020 = vadd.f32 %v2018, %v2019
    %v2021 = vtanh.pop %v2020
    %v2022 = vmul.f32 %v2013, %v2021
    %2023 = vst [vmem:[#allocation3] sm:$0x3] %v1941
    %2024 = vst [vmem:[#allocation3 + $0x2] sm:$0x3] %v2022
    %2025 = vst [vmem:[#allocation4] sm:$0x3] %v1939
    %2026 = vst [vmem:[#allocation4 + $0x2] sm:$0x3] %v2020
    %s2027 = scalar_lea.vmem %s4, 2
    %2028 = vst.msk [vmem:[%s2027] sm:$0x3] %vm1275, %v1941
    %s2029 = scalar_lea.vmem %s5, 12
    %2030 = vst.msk [vmem:[%s2029] sm:$0x3] %vm1275, %v2022
    %v2031 = vld [vmem:[#allocation3] sm:$0xf]
    %v2032 = vld [vmem:[#allocation9] sm:$0xff]
    %v2033 = vld [vmem:[#allocation9 + $0x8] sm:$0xff]
    %v2034 = vld [vmem:[#allocation9 + $0x10] sm:$0xff]
    %v2035 = vld [vmem:[#allocation9 + $0x18] sm:$0xff]
    %v2036 = vld [vmem:[#allocation9 + $0x20] sm:$0xff]
    %v2037 = vld [vmem:[#allocation9 + $0x28] sm:$0xff]
    %v2038 = vld [vmem:[#allocation9 + $0x30] sm:$0xff]
    %v2039 = vld [vmem:[#allocation9 + $0x38] sm:$0xff]
    %v2040 = vld [vmem:[#allocation9 + $0x40] sm:$0xff]
    %v2041 = vld [vmem:[#allocation9 + $0x48] sm:$0xff]
    %v2042 = vld [vmem:[#allocation9 + $0x50] sm:$0xff]
    %v2043 = vld [vmem:[#allocation9 + $0x58] sm:$0xff]
    %v2044 = vld [vmem:[#allocation9 + $0x60] sm:$0xff]
    %v2045 = vld [vmem:[#allocation9 + $0x68] sm:$0xff]
    %v2046 = vld [vmem:[#allocation9 + $0x70] sm:$0xff]
    %v2047 = vld [vmem:[#allocation9 + $0x78] sm:$0xff]
    %v2048 = vld [vmem:[#allocation9 + $0x80] sm:$0xff]
    %v2049 = vld [vmem:[#allocation9 + $0x88] sm:$0xff]
    %v2050 = vld [vmem:[#allocation9 + $0x90] sm:$0xff]
    %v2051 = vld [vmem:[#allocation9 + $0x98] sm:$0xff]
    %v2052 = vld [vmem:[#allocation9 + $0xa0] sm:$0xff]
    %v2053 = vld [vmem:[#allocation9 + $0xa8] sm:$0xff]
    %v2054 = vld [vmem:[#allocation9 + $0xb0] sm:$0xff]
    %v2055 = vld [vmem:[#allocation9 + $0xb8] sm:$0xff]
    %v2056 = vld [vmem:[#allocation9 + $0xc0] sm:$0xff]
    %v2057 = vld [vmem:[#allocation9 + $0xc8] sm:$0xff]
    %v2058 = vld [vmem:[#allocation9 + $0xd0] sm:$0xff]
    %v2059 = vld [vmem:[#allocation9 + $0xd8] sm:$0xff]
    %v2060 = vld [vmem:[#allocation9 + $0xe0] sm:$0xff]
    %v2061 = vld [vmem:[#allocation9 + $0xe8] sm:$0xff]
    %v2062 = vld [vmem:[#allocation9 + $0xf0] sm:$0xff]
    %v2063 = vld [vmem:[#allocation9 + $0xf8] sm:$0xff]
    %v2064 = vld [vmem:[#allocation9 + $0x100] sm:$0xff]
    %v2065 = vld [vmem:[#allocation9 + $0x108] sm:$0xff]
    %v2066 = vld [vmem:[#allocation9 + $0x110] sm:$0xff]
    %v2067 = vld [vmem:[#allocation9 + $0x118] sm:$0xff]
    %v2068 = vld [vmem:[#allocation9 + $0x120] sm:$0xff]
    %v2069 = vld [vmem:[#allocation9 + $0x128] sm:$0xff]
    %v2070 = vld [vmem:[#allocation9 + $0x130] sm:$0xff]
    %v2071 = vld [vmem:[#allocation9 + $0x138] sm:$0xff]
    %v2072 = vld [vmem:[#allocation9 + $0x140] sm:$0xff]
    %v2073 = vld [vmem:[#allocation9 + $0x148] sm:$0xff]
    %v2074 = vld [vmem:[#allocation9 + $0x150] sm:$0xff]
    %v2075 = vld [vmem:[#allocation9 + $0x158] sm:$0xff]
    %v2076 = vld [vmem:[#allocation9 + $0x160] sm:$0xff]
    %v2077 = vld [vmem:[#allocation9 + $0x168] sm:$0xff]
    %v2078 = vld [vmem:[#allocation9 + $0x170] sm:$0xff]
    %v2079 = vld [vmem:[#allocation9 + $0x178] sm:$0xff]
    %v2080 = vld [vmem:[#allocation9 + $0x180] sm:$0xff]
    %v2081 = vld [vmem:[#allocation9 + $0x188] sm:$0xff]
    %v2082 = vld [vmem:[#allocation9 + $0x190] sm:$0xff]
    %v2083 = vld [vmem:[#allocation9 + $0x198] sm:$0xff]
    %v2084 = vld [vmem:[#allocation9 + $0x1a0] sm:$0xff]
    %v2085 = vld [vmem:[#allocation9 + $0x1a8] sm:$0xff]
    %v2086 = vld [vmem:[#allocation9 + $0x1b0] sm:$0xff]
    %v2087 = vld [vmem:[#allocation9 + $0x1b8] sm:$0xff]
    %v2088 = vld [vmem:[#allocation9 + $0x1c0] sm:$0xff]
    %v2089 = vld [vmem:[#allocation9 + $0x1c8] sm:$0xff]
    %v2090 = vld [vmem:[#allocation9 + $0x1d0] sm:$0xff]
    %v2091 = vld [vmem:[#allocation9 + $0x1d8] sm:$0xff]
    %v2092 = vld [vmem:[#allocation9 + $0x1e0] sm:$0xff]
    %v2093 = vld [vmem:[#allocation9 + $0x1e8] sm:$0xff]
    %v2094 = vld [vmem:[#allocation9 + $0x1f0] sm:$0xff]
    %v2095 = vld [vmem:[#allocation9 + $0x1f8] sm:$0xff]
    %v2096 = vld [vmem:[#allocation9 + $0x200] sm:$0xff]
    %v2097 = vld [vmem:[#allocation9 + $0x208] sm:$0xff]
    %v2098 = vld [vmem:[#allocation9 + $0x210] sm:$0xff]
    %v2099 = vld [vmem:[#allocation9 + $0x218] sm:$0xff]
    %v2100 = vld [vmem:[#allocation9 + $0x220] sm:$0xff]
    %v2101 = vld [vmem:[#allocation9 + $0x228] sm:$0xff]
    %v2102 = vld [vmem:[#allocation9 + $0x230] sm:$0xff]
    %v2103 = vld [vmem:[#allocation9 + $0x238] sm:$0xff]
    %v2104 = vld [vmem:[#allocation9 + $0x240] sm:$0xff]
    %v2105 = vld [vmem:[#allocation9 + $0x248] sm:$0xff]
    %v2106 = vld [vmem:[#allocation9 + $0x250] sm:$0xff]
    %v2107 = vld [vmem:[#allocation9 + $0x258] sm:$0xff]
    %v2108 = vld [vmem:[#allocation9 + $0x260] sm:$0xff]
    %v2109 = vld [vmem:[#allocation9 + $0x268] sm:$0xff]
    %v2110 = vld [vmem:[#allocation9 + $0x270] sm:$0xff]
    %v2111 = vld [vmem:[#allocation9 + $0x278] sm:$0xff]
    %v2112 = vld [vmem:[#allocation9 + $0x280] sm:$0xff]
    %v2113 = vld [vmem:[#allocation9 + $0x288] sm:$0xff]
    %v2114 = vld [vmem:[#allocation9 + $0x290] sm:$0xff]
    %v2115 = vld [vmem:[#allocation9 + $0x298] sm:$0xff]
    %v2116 = vld [vmem:[#allocation9 + $0x2a0] sm:$0xff]
    %v2117 = vld [vmem:[#allocation9 + $0x2a8] sm:$0xff]
    %v2118 = vld [vmem:[#allocation9 + $0x2b0] sm:$0xff]
    %v2119 = vld [vmem:[#allocation9 + $0x2b8] sm:$0xff]
    %v2120 = vld [vmem:[#allocation9 + $0x2c0] sm:$0xff]
    %v2121 = vld [vmem:[#allocation9 + $0x2c8] sm:$0xff]
    %v2122 = vld [vmem:[#allocation9 + $0x2d0] sm:$0xff]
    %v2123 = vld [vmem:[#allocation9 + $0x2d8] sm:$0xff]
    %v2124 = vld [vmem:[#allocation9 + $0x2e0] sm:$0xff]
    %v2125 = vld [vmem:[#allocation9 + $0x2e8] sm:$0xff]
    %v2126 = vld [vmem:[#allocation9 + $0x2f0] sm:$0xff]
    %v2127 = vld [vmem:[#allocation9 + $0x2f8] sm:$0xff]
    %v2128 = vld [vmem:[#allocation9 + $0x300] sm:$0xff]
    %v2129 = vld [vmem:[#allocation9 + $0x308] sm:$0xff]
    %v2130 = vld [vmem:[#allocation9 + $0x310] sm:$0xff]
    %v2131 = vld [vmem:[#allocation9 + $0x318] sm:$0xff]
    %v2132 = vld [vmem:[#allocation9 + $0x320] sm:$0xff]
    %v2133 = vld [vmem:[#allocation9 + $0x328] sm:$0xff]
    %v2134 = vld [vmem:[#allocation9 + $0x330] sm:$0xff]
    %v2135 = vld [vmem:[#allocation9 + $0x338] sm:$0xff]
    %v2136 = vld [vmem:[#allocation9 + $0x340] sm:$0xff]
    %v2137 = vld [vmem:[#allocation9 + $0x348] sm:$0xff]
    %v2138 = vld [vmem:[#allocation9 + $0x350] sm:$0xff]
    %v2139 = vld [vmem:[#allocation9 + $0x358] sm:$0xff]
    %v2140 = vld [vmem:[#allocation9 + $0x360] sm:$0xff]
    %v2141 = vld [vmem:[#allocation9 + $0x368] sm:$0xff]
    %v2142 = vld [vmem:[#allocation9 + $0x370] sm:$0xff]
    %v2143 = vld [vmem:[#allocation9 + $0x378] sm:$0xff]
    %v2144 = vld [vmem:[#allocation9 + $0x380] sm:$0xff]
    %v2145 = vld [vmem:[#allocation9 + $0x388] sm:$0xff]
    %v2146 = vld [vmem:[#allocation9 + $0x390] sm:$0xff]
    %v2147 = vld [vmem:[#allocation9 + $0x398] sm:$0xff]
    %v2148 = vld [vmem:[#allocation9 + $0x3a0] sm:$0xff]
    %v2149 = vld [vmem:[#allocation9 + $0x3a8] sm:$0xff]
    %v2150 = vld [vmem:[#allocation9 + $0x3b0] sm:$0xff]
    %v2151 = vld [vmem:[#allocation9 + $0x3b8] sm:$0xff]
    %v2152 = vld [vmem:[#allocation9 + $0x3c0] sm:$0xff]
    %v2153 = vld [vmem:[#allocation9 + $0x3c8] sm:$0xff]
    %v2154 = vld [vmem:[#allocation9 + $0x3d0] sm:$0xff]
    %v2155 = vld [vmem:[#allocation9 + $0x3d8] sm:$0xff]
    %v2156 = vld [vmem:[#allocation9 + $0x3e0] sm:$0xff]
    %v2157 = vld [vmem:[#allocation9 + $0x3e8] sm:$0xff]
    %v2158 = vld [vmem:[#allocation9 + $0x3f0] sm:$0xff]
    %v2159 = vld [vmem:[#allocation9 + $0x3f8] sm:$0xff]
    %v2160 = vld [vmem:[#allocation9 + $0x400] sm:$0xff]
    %v2161 = vld [vmem:[#allocation9 + $0x408] sm:$0xff]
    %v2162 = vld [vmem:[#allocation9 + $0x410] sm:$0xff]
    %v2163 = vld [vmem:[#allocation9 + $0x418] sm:$0xff]
    %v2164 = vld [vmem:[#allocation9 + $0x420] sm:$0xff]
    %v2165 = vld [vmem:[#allocation9 + $0x428] sm:$0xff]
    %v2166 = vld [vmem:[#allocation9 + $0x430] sm:$0xff]
    %v2167 = vld [vmem:[#allocation9 + $0x438] sm:$0xff]
    %v2168 = vld [vmem:[#allocation9 + $0x440] sm:$0xff]
    %v2169 = vld [vmem:[#allocation9 + $0x448] sm:$0xff]
    %v2170 = vld [vmem:[#allocation9 + $0x450] sm:$0xff]
    %v2171 = vld [vmem:[#allocation9 + $0x458] sm:$0xff]
    %v2172 = vld [vmem:[#allocation9 + $0x460] sm:$0xff]
    %v2173 = vld [vmem:[#allocation9 + $0x468] sm:$0xff]
    %v2174 = vld [vmem:[#allocation9 + $0x470] sm:$0xff]
    %v2175 = vld [vmem:[#allocation9 + $0x478] sm:$0xff]
    %v2176 = vld [vmem:[#allocation9 + $0x480] sm:$0xff]
    %v2177 = vld [vmem:[#allocation9 + $0x488] sm:$0xff]
    %v2178 = vld [vmem:[#allocation9 + $0x490] sm:$0xff]
    %v2179 = vld [vmem:[#allocation9 + $0x498] sm:$0xff]
    %v2180 = vld [vmem:[#allocation9 + $0x4a0] sm:$0xff]
    %v2181 = vld [vmem:[#allocation9 + $0x4a8] sm:$0xff]
    %v2182 = vld [vmem:[#allocation9 + $0x4b0] sm:$0xff]
    %v2183 = vld [vmem:[#allocation9 + $0x4b8] sm:$0xff]
    %v2184 = vld [vmem:[#allocation9 + $0x4c0] sm:$0xff]
    %v2185 = vld [vmem:[#allocation9 + $0x4c8] sm:$0xff]
    %v2186 = vld [vmem:[#allocation9 + $0x4d0] sm:$0xff]
    %v2187 = vld [vmem:[#allocation9 + $0x4d8] sm:$0xff]
    %v2188 = vld [vmem:[#allocation9 + $0x4e0] sm:$0xff]
    %v2189 = vld [vmem:[#allocation9 + $0x4e8] sm:$0xff]
    %v2190 = vld [vmem:[#allocation9 + $0x4f0] sm:$0xff]
    %v2191 = vld [vmem:[#allocation9 + $0x4f8] sm:$0xff]
    %v2192 = vld [vmem:[#allocation9 + $0x500] sm:$0xff]
    %v2193 = vld [vmem:[#allocation9 + $0x508] sm:$0xff]
    %v2194 = vld [vmem:[#allocation9 + $0x510] sm:$0xff]
    %v2195 = vld [vmem:[#allocation9 + $0x518] sm:$0xff]
    %v2196 = vld [vmem:[#allocation9 + $0x520] sm:$0xff]
    %v2197 = vld [vmem:[#allocation9 + $0x528] sm:$0xff]
    %v2198 = vld [vmem:[#allocation9 + $0x530] sm:$0xff]
    %v2199 = vld [vmem:[#allocation9 + $0x538] sm:$0xff]
    %v2200 = vld [vmem:[#allocation9 + $0x540] sm:$0xff]
    %v2201 = vld [vmem:[#allocation9 + $0x548] sm:$0xff]
    %v2202 = vld [vmem:[#allocation9 + $0x550] sm:$0xff]
    %v2203 = vld [vmem:[#allocation9 + $0x558] sm:$0xff]
    %v2204 = vld [vmem:[#allocation9 + $0x560] sm:$0xff]
    %v2205 = vld [vmem:[#allocation9 + $0x568] sm:$0xff]
    %v2206 = vld [vmem:[#allocation9 + $0x570] sm:$0xff]
    %v2207 = vld [vmem:[#allocation9 + $0x578] sm:$0xff]
    %v2208 = vld [vmem:[#allocation9 + $0x580] sm:$0xff]
    %v2209 = vld [vmem:[#allocation9 + $0x588] sm:$0xff]
    %v2210 = vld [vmem:[#allocation9 + $0x590] sm:$0xff]
    %v2211 = vld [vmem:[#allocation9 + $0x598] sm:$0xff]
    %v2212 = vld [vmem:[#allocation9 + $0x5a0] sm:$0xff]
    %v2213 = vld [vmem:[#allocation9 + $0x5a8] sm:$0xff]
    %v2214 = vld [vmem:[#allocation9 + $0x5b0] sm:$0xff]
    %v2215 = vld [vmem:[#allocation9 + $0x5b8] sm:$0xff]
    %v2216 = vld [vmem:[#allocation9 + $0x5c0] sm:$0xff]
    %v2217 = vld [vmem:[#allocation9 + $0x5c8] sm:$0xff]
    %v2218 = vld [vmem:[#allocation9 + $0x5d0] sm:$0xff]
    %v2219 = vld [vmem:[#allocation9 + $0x5d8] sm:$0xff]
    %v2220 = vld [vmem:[#allocation9 + $0x5e0] sm:$0xff]
    %v2221 = vld [vmem:[#allocation9 + $0x5e8] sm:$0xff]
    %v2222 = vld [vmem:[#allocation9 + $0x5f0] sm:$0xff]
    %v2223 = vld [vmem:[#allocation9 + $0x5f8] sm:$0xff]
    %v2224 = vld [vmem:[#allocation9 + $0x600] sm:$0xff]
    %v2225 = vld [vmem:[#allocation9 + $0x608] sm:$0xff]
    %v2226 = vld [vmem:[#allocation9 + $0x610] sm:$0xff]
    %v2227 = vld [vmem:[#allocation9 + $0x618] sm:$0xff]
    %v2228 = vld [vmem:[#allocation9 + $0x620] sm:$0xff]
    %v2229 = vld [vmem:[#allocation9 + $0x628] sm:$0xff]
    %v2230 = vld [vmem:[#allocation9 + $0x630] sm:$0xff]
    %v2231 = vld [vmem:[#allocation9 + $0x638] sm:$0xff]
    %v2232 = vld [vmem:[#allocation9 + $0x640] sm:$0xff]
    %v2233 = vld [vmem:[#allocation9 + $0x648] sm:$0xff]
    %v2234 = vld [vmem:[#allocation9 + $0x650] sm:$0xff]
    %v2235 = vld [vmem:[#allocation9 + $0x658] sm:$0xff]
    %v2236 = vld [vmem:[#allocation9 + $0x660] sm:$0xff]
    %v2237 = vld [vmem:[#allocation9 + $0x668] sm:$0xff]
    %v2238 = vld [vmem:[#allocation9 + $0x670] sm:$0xff]
    %v2239 = vld [vmem:[#allocation9 + $0x678] sm:$0xff]
    %v2240 = vld [vmem:[#allocation9 + $0x680] sm:$0xff]
    %v2241 = vld [vmem:[#allocation9 + $0x688] sm:$0xff]
    %v2242 = vld [vmem:[#allocation9 + $0x690] sm:$0xff]
    %v2243 = vld [vmem:[#allocation9 + $0x698] sm:$0xff]
    %v2244 = vld [vmem:[#allocation9 + $0x6a0] sm:$0xff]
    %v2245 = vld [vmem:[#allocation9 + $0x6a8] sm:$0xff]
    %v2246 = vld [vmem:[#allocation9 + $0x6b0] sm:$0xff]
    %v2247 = vld [vmem:[#allocation9 + $0x6b8] sm:$0xff]
    %v2248 = vld [vmem:[#allocation9 + $0x6c0] sm:$0xff]
    %v2249 = vld [vmem:[#allocation9 + $0x6c8] sm:$0xff]
    %v2250 = vld [vmem:[#allocation9 + $0x6d0] sm:$0xff]
    %v2251 = vld [vmem:[#allocation9 + $0x6d8] sm:$0xff]
    %v2252 = vld [vmem:[#allocation9 + $0x6e0] sm:$0xff]
    %v2253 = vld [vmem:[#allocation9 + $0x6e8] sm:$0xff]
    %v2254 = vld [vmem:[#allocation9 + $0x6f0] sm:$0xff]
    %v2255 = vld [vmem:[#allocation9 + $0x6f8] sm:$0xff]
    %v2256 = vld [vmem:[#allocation9 + $0x700] sm:$0xff]
    %v2257 = vld [vmem:[#allocation9 + $0x708] sm:$0xff]
    %v2258 = vld [vmem:[#allocation9 + $0x710] sm:$0xff]
    %v2259 = vld [vmem:[#allocation9 + $0x718] sm:$0xff]
    %v2260 = vld [vmem:[#allocation9 + $0x720] sm:$0xff]
    %v2261 = vld [vmem:[#allocation9 + $0x728] sm:$0xff]
    %v2262 = vld [vmem:[#allocation9 + $0x730] sm:$0xff]
    %v2263 = vld [vmem:[#allocation9 + $0x738] sm:$0xff]
    %v2264 = vld [vmem:[#allocation9 + $0x740] sm:$0xff]
    %v2265 = vld [vmem:[#allocation9 + $0x748] sm:$0xff]
    %v2266 = vld [vmem:[#allocation9 + $0x750] sm:$0xff]
    %v2267 = vld [vmem:[#allocation9 + $0x758] sm:$0xff]
    %v2268 = vld [vmem:[#allocation9 + $0x760] sm:$0xff]
    %v2269 = vld [vmem:[#allocation9 + $0x768] sm:$0xff]
    %v2270 = vld [vmem:[#allocation9 + $0x770] sm:$0xff]
    %v2271 = vld [vmem:[#allocation9 + $0x778] sm:$0xff]
    %v2272 = vld [vmem:[#allocation9 + $0x780] sm:$0xff]
    %v2273 = vld [vmem:[#allocation9 + $0x788] sm:$0xff]
    %v2274 = vld [vmem:[#allocation9 + $0x790] sm:$0xff]
    %v2275 = vld [vmem:[#allocation9 + $0x798] sm:$0xff]
    %v2276 = vld [vmem:[#allocation9 + $0x7a0] sm:$0xff]
    %v2277 = vld [vmem:[#allocation9 + $0x7a8] sm:$0xff]
    %v2278 = vld [vmem:[#allocation9 + $0x7b0] sm:$0xff]
    %v2279 = vld [vmem:[#allocation9 + $0x7b8] sm:$0xff]
    %v2280 = vld [vmem:[#allocation9 + $0x7c0] sm:$0xff]
    %v2281 = vld [vmem:[#allocation9 + $0x7c8] sm:$0xff]
    %v2282 = vld [vmem:[#allocation9 + $0x7d0] sm:$0xff]
    %v2283 = vld [vmem:[#allocation9 + $0x7d8] sm:$0xff]
    %v2284 = vld [vmem:[#allocation9 + $0x7e0] sm:$0xff]
    %v2285 = vld [vmem:[#allocation9 + $0x7e8] sm:$0xff]
    %v2286 = vld [vmem:[#allocation9 + $0x7f0] sm:$0xff]
    %v2287 = vld [vmem:[#allocation9 + $0x7f8] sm:$0xff]
    %2289 = vst [vmem:[#allocation1] ss:$4 sm:$0xff] %v2031
    %v2290 = vld.sshfl [vmem:[#allocation1] sm:$0xff pattern:$0x73625140]
    %v2291 = vld.sshfl [vmem:[#allocation1 + $0x8] sm:$0xff pattern:$0x73625140]
    %2294 = vmatpush.msra.mxu0 %v2152
    %2295 = vmatpush.msra.mxu0 %v2144
    %2296 = vmatpush.msra.mxu0 %v2136
    %2297 = vmatpush.msra.mxu0 %v2128
    %2298 = vmatpush.msra.mxu0 %v2120
    %2299 = vmatpush.msra.mxu0 %v2112
    %2300 = vmatpush.msra.mxu0 %v2104
    %2301 = vmatpush.msra.mxu0 %v2096
    %2302 = vmatpush.msra.mxu0 %v2088
    %2303 = vmatpush.msra.mxu0 %v2080
    %2304 = vmatpush.msra.mxu0 %v2072
    %2305 = vmatpush.msra.mxu0 %v2064
    %2306 = vmatpush.msra.mxu0 %v2056
    %2307 = vmatpush.msra.mxu0 %v2048
    %2308 = vmatpush.msra.mxu0 %v2040
    %2309 = vmatpush.msra.mxu0 %v2032
    %2310 = vmatmul.f32.gmra.mxu0 %v2290
    %v2311 = vpop.f32.mrf.mxu0
    %v2312 = vadd.f32 0.0, %v2311
    %2313 = vdwg.mxu0
    %2314 = vmatpush.msra.mxu0 %v2280
    %2315 = vmatpush.msra.mxu0 %v2272
    %2316 = vmatpush.msra.mxu0 %v2264
    %2317 = vmatpush.msra.mxu0 %v2256
    %2318 = vmatpush.msra.mxu0 %v2248
    %2319 = vmatpush.msra.mxu0 %v2240
    %2320 = vmatpush.msra.mxu0 %v2232
    %2321 = vmatpush.msra.mxu0 %v2224
    %2322 = vmatpush.msra.mxu0 %v2216
    %2323 = vmatpush.msra.mxu0 %v2208
    %2324 = vmatpush.msra.mxu0 %v2200
    %2325 = vmatpush.msra.mxu0 %v2192
    %2326 = vmatpush.msra.mxu0 %v2184
    %2327 = vmatpush.msra.mxu0 %v2176
    %2328 = vmatpush.msra.mxu0 %v2168
    %2329 = vmatpush.msra.mxu0 %v2160
    %2330 = vmatmul.f32.gmra.mxu0 %v2291
    %v2331 = vpop.f32.mrf.mxu0
    %v2332 = vadd.f32 %v2312, %v2331
    %2333 = vdwg.mxu0
    %2334 = vmatpush.msra.mxu0 %v2153
    %2335 = vmatpush.msra.mxu0 %v2145
    %2336 = vmatpush.msra.mxu0 %v2137
    %2337 = vmatpush.msra.mxu0 %v2129
    %2338 = vmatpush.msra.mxu0 %v2121
    %2339 = vmatpush.msra.mxu0 %v2113
    %2340 = vmatpush.msra.mxu0 %v2105
    %2341 = vmatpush.msra.mxu0 %v2097
    %2342 = vmatpush.msra.mxu0 %v2089
    %2343 = vmatpush.msra.mxu0 %v2081
    %2344 = vmatpush.msra.mxu0 %v2073
    %2345 = vmatpush.msra.mxu0 %v2065
    %2346 = vmatpush.msra.mxu0 %v2057
    %2347 = vmatpush.msra.mxu0 %v2049
    %2348 = vmatpush.msra.mxu0 %v2041
    %2349 = vmatpush.msra.mxu0 %v2033
    %2350 = vmatmul.f32.gmra.mxu0 %v2290
    %v2351 = vpop.f32.mrf.mxu0
    %v2352 = vadd.f32 0.0, %v2351
    %2353 = vdwg.mxu0
    %2354 = vmatpush.msra.mxu0 %v2281
    %2355 = vmatpush.msra.mxu0 %v2273
    %2356 = vmatpush.msra.mxu0 %v2265
    %2357 = vmatpush.msra.mxu0 %v2257
    %2358 = vmatpush.msra.mxu0 %v2249
    %2359 = vmatpush.msra.mxu0 %v2241
    %2360 = vmatpush.msra.mxu0 %v2233
    %2361 = vmatpush.msra.mxu0 %v2225
    %2362 = vmatpush.msra.mxu0 %v2217
    %2363 = vmatpush.msra.mxu0 %v2209
    %2364 = vmatpush.msra.mxu0 %v2201
    %2365 = vmatpush.msra.mxu0 %v2193
    %2366 = vmatpush.msra.mxu0 %v2185
    %2367 = vmatpush.msra.mxu0 %v2177
    %2368 = vmatpush.msra.mxu0 %v2169
    %2369 = vmatpush.msra.mxu0 %v2161
    %2370 = vmatmul.f32.gmra.mxu0 %v2291
    %v2371 = vpop.f32.mrf.mxu0
    %v2372 = vadd.f32 %v2352, %v2371
    %2373 = vdwg.mxu0
    %2374 = vmatpush.msra.mxu0 %v2154
    %2375 = vmatpush.msra.mxu0 %v2146
    %2376 = vmatpush.msra.mxu0 %v2138
    %2377 = vmatpush.msra.mxu0 %v2130
    %2378 = vmatpush.msra.mxu0 %v2122
    %2379 = vmatpush.msra.mxu0 %v2114
    %2380 = vmatpush.msra.mxu0 %v2106
    %2381 = vmatpush.msra.mxu0 %v2098
    %2382 = vmatpush.msra.mxu0 %v2090
    %2383 = vmatpush.msra.mxu0 %v2082
    %2384 = vmatpush.msra.mxu0 %v2074
    %2385 = vmatpush.msra.mxu0 %v2066
    %2386 = vmatpush.msra.mxu0 %v2058
    %2387 = vmatpush.msra.mxu0 %v2050
    %2388 = vmatpush.msra.mxu0 %v2042
    %2389 = vmatpush.msra.mxu0 %v2034
    %2390 = vmatmul.f32.gmra.mxu0 %v2290
    %v2391 = vpop.f32.mrf.mxu0
    %v2392 = vadd.f32 0.0, %v2391
    %2393 = vdwg.mxu0
    %2394 = vmatpush.msra.mxu0 %v2282
    %2395 = vmatpush.msra.mxu0 %v2274
    %2396 = vmatpush.msra.mxu0 %v2266
    %2397 = vmatpush.msra.mxu0 %v2258
    %2398 = vmatpush.msra.mxu0 %v2250
    %2399 = vmatpush.msra.mxu0 %v2242
    %2400 = vmatpush.msra.mxu0 %v2234
    %2401 = vmatpush.msra.mxu0 %v2226
    %2402 = vmatpush.msra.mxu0 %v2218
    %2403 = vmatpush.msra.mxu0 %v2210
    %2404 = vmatpush.msra.mxu0 %v2202
    %2405 = vmatpush.msra.mxu0 %v2194
    %2406 = vmatpush.msra.mxu0 %v2186
    %2407 = vmatpush.msra.mxu0 %v2178
    %2408 = vmatpush.msra.mxu0 %v2170
    %2409 = vmatpush.msra.mxu0 %v2162
    %2410 = vmatmul.f32.gmra.mxu0 %v2291
    %v2411 = vpop.f32.mrf.mxu0
    %v2412 = vadd.f32 %v2392, %v2411
    %2413 = vdwg.mxu0
    %2414 = vmatpush.msra.mxu0 %v2155
    %2415 = vmatpush.msra.mxu0 %v2147
    %2416 = vmatpush.msra.mxu0 %v2139
    %2417 = vmatpush.msra.mxu0 %v2131
    %2418 = vmatpush.msra.mxu0 %v2123
    %2419 = vmatpush.msra.mxu0 %v2115
    %2420 = vmatpush.msra.mxu0 %v2107
    %2421 = vmatpush.msra.mxu0 %v2099
    %2422 = vmatpush.msra.mxu0 %v2091
    %2423 = vmatpush.msra.mxu0 %v2083
    %2424 = vmatpush.msra.mxu0 %v2075
    %2425 = vmatpush.msra.mxu0 %v2067
    %2426 = vmatpush.msra.mxu0 %v2059
    %2427 = vmatpush.msra.mxu0 %v2051
    %2428 = vmatpush.msra.mxu0 %v2043
    %2429 = vmatpush.msra.mxu0 %v2035
    %2430 = vmatmul.f32.gmra.mxu0 %v2290
    %v2431 = vpop.f32.mrf.mxu0
    %v2432 = vadd.f32 0.0, %v2431
    %2433 = vdwg.mxu0
    %2434 = vmatpush.msra.mxu0 %v2283
    %2435 = vmatpush.msra.mxu0 %v2275
    %2436 = vmatpush.msra.mxu0 %v2267
    %2437 = vmatpush.msra.mxu0 %v2259
    %2438 = vmatpush.msra.mxu0 %v2251
    %2439 = vmatpush.msra.mxu0 %v2243
    %2440 = vmatpush.msra.mxu0 %v2235
    %2441 = vmatpush.msra.mxu0 %v2227
    %2442 = vmatpush.msra.mxu0 %v2219
    %2443 = vmatpush.msra.mxu0 %v2211
    %2444 = vmatpush.msra.mxu0 %v2203
    %2445 = vmatpush.msra.mxu0 %v2195
    %2446 = vmatpush.msra.mxu0 %v2187
    %2447 = vmatpush.msra.mxu0 %v2179
    %2448 = vmatpush.msra.mxu0 %v2171
    %2449 = vmatpush.msra.mxu0 %v2163
    %2450 = vmatmul.f32.gmra.mxu0 %v2291
    %v2451 = vpop.f32.mrf.mxu0
    %v2452 = vadd.f32 %v2432, %v2451
    %2453 = vdwg.mxu0
    %2454 = vmatpush.msra.mxu0 %v2156
    %2455 = vmatpush.msra.mxu0 %v2148
    %2456 = vmatpush.msra.mxu0 %v2140
    %2457 = vmatpush.msra.mxu0 %v2132
    %2458 = vmatpush.msra.mxu0 %v2124
    %2459 = vmatpush.msra.mxu0 %v2116
    %2460 = vmatpush.msra.mxu0 %v2108
    %2461 = vmatpush.msra.mxu0 %v2100
    %2462 = vmatpush.msra.mxu0 %v2092
    %2463 = vmatpush.msra.mxu0 %v2084
    %2464 = vmatpush.msra.mxu0 %v2076
    %2465 = vmatpush.msra.mxu0 %v2068
    %2466 = vmatpush.msra.mxu0 %v2060
    %2467 = vmatpush.msra.mxu0 %v2052
    %2468 = vmatpush.msra.mxu0 %v2044
    %2469 = vmatpush.msra.mxu0 %v2036
    %2470 = vmatmul.f32.gmra.mxu0 %v2290
    %v2471 = vpop.f32.mrf.mxu0
    %v2472 = vadd.f32 0.0, %v2471
    %2473 = vdwg.mxu0
    %2474 = vmatpush.msra.mxu0 %v2284
    %2475 = vmatpush.msra.mxu0 %v2276
    %2476 = vmatpush.msra.mxu0 %v2268
    %2477 = vmatpush.msra.mxu0 %v2260
    %2478 = vmatpush.msra.mxu0 %v2252
    %2479 = vmatpush.msra.mxu0 %v2244
    %2480 = vmatpush.msra.mxu0 %v2236
    %2481 = vmatpush.msra.mxu0 %v2228
    %2482 = vmatpush.msra.mxu0 %v2220
    %2483 = vmatpush.msra.mxu0 %v2212
    %2484 = vmatpush.msra.mxu0 %v2204
    %2485 = vmatpush.msra.mxu0 %v2196
    %2486 = vmatpush.msra.mxu0 %v2188
    %2487 = vmatpush.msra.mxu0 %v2180
    %2488 = vmatpush.msra.mxu0 %v2172
    %2489 = vmatpush.msra.mxu0 %v2164
    %2490 = vmatmul.f32.gmra.mxu0 %v2291
    %v2491 = vpop.f32.mrf.mxu0
    %v2492 = vadd.f32 %v2472, %v2491
    %2493 = vdwg.mxu0
    %2494 = vmatpush.msra.mxu0 %v2157
    %2495 = vmatpush.msra.mxu0 %v2149
    %2496 = vmatpush.msra.mxu0 %v2141
    %2497 = vmatpush.msra.mxu0 %v2133
    %2498 = vmatpush.msra.mxu0 %v2125
    %2499 = vmatpush.msra.mxu0 %v2117
    %2500 = vmatpush.msra.mxu0 %v2109
    %2501 = vmatpush.msra.mxu0 %v2101
    %2502 = vmatpush.msra.mxu0 %v2093
    %2503 = vmatpush.msra.mxu0 %v2085
    %2504 = vmatpush.msra.mxu0 %v2077
    %2505 = vmatpush.msra.mxu0 %v2069
    %2506 = vmatpush.msra.mxu0 %v2061
    %2507 = vmatpush.msra.mxu0 %v2053
    %2508 = vmatpush.msra.mxu0 %v2045
    %2509 = vmatpush.msra.mxu0 %v2037
    %2510 = vmatmul.f32.gmra.mxu0 %v2290
    %v2511 = vpop.f32.mrf.mxu0
    %v2512 = vadd.f32 0.0, %v2511
    %2513 = vdwg.mxu0
    %2514 = vmatpush.msra.mxu0 %v2285
    %2515 = vmatpush.msra.mxu0 %v2277
    %2516 = vmatpush.msra.mxu0 %v2269
    %2517 = vmatpush.msra.mxu0 %v2261
    %2518 = vmatpush.msra.mxu0 %v2253
    %2519 = vmatpush.msra.mxu0 %v2245
    %2520 = vmatpush.msra.mxu0 %v2237
    %2521 = vmatpush.msra.mxu0 %v2229
    %2522 = vmatpush.msra.mxu0 %v2221
    %2523 = vmatpush.msra.mxu0 %v2213
    %2524 = vmatpush.msra.mxu0 %v2205
    %2525 = vmatpush.msra.mxu0 %v2197
    %2526 = vmatpush.msra.mxu0 %v2189
    %2527 = vmatpush.msra.mxu0 %v2181
    %2528 = vmatpush.msra.mxu0 %v2173
    %2529 = vmatpush.msra.mxu0 %v2165
    %2530 = vmatmul.f32.gmra.mxu0 %v2291
    %v2531 = vpop.f32.mrf.mxu0
    %v2532 = vadd.f32 %v2512, %v2531
    %2533 = vdwg.mxu0
    %2534 = vmatpush.msra.mxu0 %v2158
    %2535 = vmatpush.msra.mxu0 %v2150
    %2536 = vmatpush.msra.mxu0 %v2142
    %2537 = vmatpush.msra.mxu0 %v2134
    %2538 = vmatpush.msra.mxu0 %v2126
    %2539 = vmatpush.msra.mxu0 %v2118
    %2540 = vmatpush.msra.mxu0 %v2110
    %2541 = vmatpush.msra.mxu0 %v2102
    %2542 = vmatpush.msra.mxu0 %v2094
    %2543 = vmatpush.msra.mxu0 %v2086
    %2544 = vmatpush.msra.mxu0 %v2078
    %2545 = vmatpush.msra.mxu0 %v2070
    %2546 = vmatpush.msra.mxu0 %v2062
    %2547 = vmatpush.msra.mxu0 %v2054
    %2548 = vmatpush.msra.mxu0 %v2046
    %2549 = vmatpush.msra.mxu0 %v2038
    %2550 = vmatmul.f32.gmra.mxu0 %v2290
    %v2551 = vpop.f32.mrf.mxu0
    %v2552 = vadd.f32 0.0, %v2551
    %2553 = vdwg.mxu0
    %2554 = vmatpush.msra.mxu0 %v2286
    %2555 = vmatpush.msra.mxu0 %v2278
    %2556 = vmatpush.msra.mxu0 %v2270
    %2557 = vmatpush.msra.mxu0 %v2262
    %2558 = vmatpush.msra.mxu0 %v2254
    %2559 = vmatpush.msra.mxu0 %v2246
    %2560 = vmatpush.msra.mxu0 %v2238
    %2561 = vmatpush.msra.mxu0 %v2230
    %2562 = vmatpush.msra.mxu0 %v2222
    %2563 = vmatpush.msra.mxu0 %v2214
    %2564 = vmatpush.msra.mxu0 %v2206
    %2565 = vmatpush.msra.mxu0 %v2198
    %2566 = vmatpush.msra.mxu0 %v2190
    %2567 = vmatpush.msra.mxu0 %v2182
    %2568 = vmatpush.msra.mxu0 %v2174
    %2569 = vmatpush.msra.mxu0 %v2166
    %2570 = vmatmul.f32.gmra.mxu0 %v2291
    %v2571 = vpop.f32.mrf.mxu0
    %v2572 = vadd.f32 %v2552, %v2571
    %2573 = vdwg.mxu0
    %2574 = vmatpush.msra.mxu0 %v2159
    %2575 = vmatpush.msra.mxu0 %v2151
    %2576 = vmatpush.msra.mxu0 %v2143
    %2577 = vmatpush.msra.mxu0 %v2135
    %2578 = vmatpush.msra.mxu0 %v2127
    %2579 = vmatpush.msra.mxu0 %v2119
    %2580 = vmatpush.msra.mxu0 %v2111
    %2581 = vmatpush.msra.mxu0 %v2103
    %2582 = vmatpush.msra.mxu0 %v2095
    %2583 = vmatpush.msra.mxu0 %v2087
    %2584 = vmatpush.msra.mxu0 %v2079
    %2585 = vmatpush.msra.mxu0 %v2071
    %2586 = vmatpush.msra.mxu0 %v2063
    %2587 = vmatpush.msra.mxu0 %v2055
    %2588 = vmatpush.msra.mxu0 %v2047
    %2589 = vmatpush.msra.mxu0 %v2039
    %2590 = vmatmul.f32.gmra.mxu0 %v2290
    %v2591 = vpop.f32.mrf.mxu0
    %v2592 = vadd.f32 0.0, %v2591
    %2593 = vdwg.mxu0
    %2594 = vmatpush.msra.mxu0 %v2287
    %2595 = vmatpush.msra.mxu0 %v2279
    %2596 = vmatpush.msra.mxu0 %v2271
    %2597 = vmatpush.msra.mxu0 %v2263
    %2598 = vmatpush.msra.mxu0 %v2255
    %2599 = vmatpush.msra.mxu0 %v2247
    %2600 = vmatpush.msra.mxu0 %v2239
    %2601 = vmatpush.msra.mxu0 %v2231
    %2602 = vmatpush.msra.mxu0 %v2223
    %2603 = vmatpush.msra.mxu0 %v2215
    %2604 = vmatpush.msra.mxu0 %v2207
    %2605 = vmatpush.msra.mxu0 %v2199
    %2606 = vmatpush.msra.mxu0 %v2191
    %2607 = vmatpush.msra.mxu0 %v2183
    %2608 = vmatpush.msra.mxu0 %v2175
    %2609 = vmatpush.msra.mxu0 %v2167
    %2610 = vmatmul.f32.gmra.mxu0 %v2291
    %v2611 = vpop.f32.mrf.mxu0
    %v2612 = vadd.f32 %v2592, %v2611
    %2613 = vdwg.mxu0
    %v2614 = vld [vmem:[%s429] sm:$0xff]
    %v2615 = vld [vmem:[%s488 + $0x8] sm:$0xff]
    %v2616 = vld [vmem:[#allocation4] sm:$0xf]
    %2618 = vst [vmem:[#allocation1] ss:$4 sm:$0xff] %v2614
    %v2619 = vld.sshfl [vmem:[#allocation1] sm:$0xff pattern:$0x73625140]
    %v2620 = vld.sshfl [vmem:[#allocation1 + $0x8] sm:$0xff pattern:$0x73625140]
    %v2621 = vld.sshfl [vmem:[#allocation1 + $0x10] sm:$0xff pattern:$0x73625140]
    %v2622 = vld.sshfl [vmem:[#allocation1 + $0x18] sm:$0xff pattern:$0x73625140]
    %v2627 = vadd.f32 %v2332, %v2619
    %v2628 = vadd.f32 %v2372, %v2620
    %v2629 = vadd.f32 %v2412, %v2621
    %v2630 = vadd.f32 %v2452, %v2622
    %v2631 = vxor.u32 %v2627, 2147483648
    %v2632 = vmul.f32 %v2631, 1.442695
    %v2633 = vpow.pop %v2632
    %v2634 = vadd.f32 %v2633, 1.0
    %v2635 = vrcp.pop %v2634
    %v2636 = vmul.f32 %v2634, %v2635
    %v2637 = vsub.f32 1.0, %v2636
    %v2638 = vmul.f32 %v2635, %v2637
    %v2639 = vadd.f32 %v2635, %v2638
    %vm2640 = vweird.f32 %v2634
    %vm2641 = vweird.f32 %v2635
    %vm2642 = vmor %vm2640, %vm2641
    %v2643 = vsel %vm2642, %v2635, %v2639
    %v2644 = vand.u32 2147483647, %v2634
    %vm2645 = vcmp.eq.f32.partialorder %v2644, 8.507059e+37
    %v2646 = vand.u32 %v2634, 2147483648
    %v2647 = vor.u32 1.1754944e-38, %v2646
    %v2648 = vsel %vm2645, %v2647, %v2643
    %v2649 = vmul.f32 1.0, %v2648
    %v2650 = vxor.u32 %v2628, 2147483648
    %v2651 = vmul.f32 %v2650, 1.442695
    %v2652 = vpow.pop %v2651
    %v2653 = vadd.f32 %v2652, 1.0
    %v2654 = vrcp.pop %v2653
    %v2655 = vmul.f32 %v2653, %v2654
    %v2656 = vsub.f32 1.0, %v2655
    %v2657 = vmul.f32 %v2654, %v2656
    %v2658 = vadd.f32 %v2654, %v2657
    %vm2659 = vweird.f32 %v2653
    %vm2660 = vweird.f32 %v2654
    %vm2661 = vmor %vm2659, %vm2660
    %v2662 = vsel %vm2661, %v2654, %v2658
    %v2663 = vand.u32 2147483647, %v2653
    %vm2664 = vcmp.eq.f32.partialorder %v2663, 8.507059e+37
    %v2665 = vand.u32 %v2653, 2147483648
    %v2666 = vor.u32 1.1754944e-38, %v2665
    %v2667 = vsel %vm2664, %v2666, %v2662
    %v2668 = vmul.f32 1.0, %v2667
    %v2669 = vtanh.pop %v2629
    %v2670 = vxor.u32 %v2630, 2147483648
    %v2671 = vmul.f32 %v2670, 1.442695
    %v2672 = vpow.pop %v2671
    %v2673 = vadd.f32 %v2672, 1.0
    %v2674 = vrcp.pop %v2673
    %v2675 = vmul.f32 %v2673, %v2674
    %v2676 = vsub.f32 1.0, %v2675
    %v2677 = vmul.f32 %v2674, %v2676
    %v2678 = vadd.f32 %v2674, %v2677
    %vm2679 = vweird.f32 %v2673
    %vm2680 = vweird.f32 %v2674
    %vm2681 = vmor %vm2679, %vm2680
    %v2682 = vsel %vm2681, %v2674, %v2678
    %v2683 = vand.u32 2147483647, %v2673
    %vm2684 = vcmp.eq.f32.partialorder %v2683, 8.507059e+37
    %v2685 = vand.u32 %v2673, 2147483648
    %v2686 = vor.u32 1.1754944e-38, %v2685
    %v2687 = vsel %vm2684, %v2686, %v2682
    %v2688 = vmul.f32 1.0, %v2687
    %v2689 = vmul.f32 %v2668, %v2616
    %v2690 = vmul.f32 %v2649, %v2669
    %v2691 = vadd.f32 %v2689, %v2690
    %v2692 = vtanh.pop %v2691
    %v2693 = vmul.f32 %v2688, %v2692
    %2695 = vst [vmem:[#allocation1] ss:$4 sm:$0xff] %v2615
    %v2696 = vld.sshfl [vmem:[#allocation1] sm:$0xff pattern:$0x73625140]
    %v2697 = vld.sshfl [vmem:[#allocation1 + $0x8] sm:$0xff pattern:$0x73625140]
    %v2698 = vld.sshfl [vmem:[#allocation1 + $0x10] sm:$0xff pattern:$0x73625140]
    %v2699 = vld.sshfl [vmem:[#allocation1 + $0x18] sm:$0xff pattern:$0x73625140]
    %v2704 = vadd.f32 %v2492, %v2696
    %v2705 = vadd.f32 %v2532, %v2697
    %v2706 = vadd.f32 %v2572, %v2698
    %v2707 = vadd.f32 %v2612, %v2699
    %v2708 = vxor.u32 %v2704, 2147483648
    %v2709 = vmul.f32 %v2708, 1.442695
    %v2710 = vpow.pop %v2709
    %v2711 = vadd.f32 %v2710, 1.0
    %v2712 = vrcp.pop %v2711
    %v2713 = vmul.f32 %v2711, %v2712
    %v2714 = vsub.f32 1.0, %v2713
    %v2715 = vmul.f32 %v2712, %v2714
    %v2716 = vadd.f32 %v2712, %v2715
    %vm2717 = vweird.f32 %v2711
    %vm2718 = vweird.f32 %v2712
    %vm2719 = vmor %vm2717, %vm2718
    %v2720 = vsel %vm2719, %v2712, %v2716
    %v2721 = vand.u32 2147483647, %v2711
    %vm2722 = vcmp.eq.f32.partialorder %v2721, 8.507059e+37
    %v2723 = vand.u32 %v2711, 2147483648
    %v2724 = vor.u32 1.1754944e-38, %v2723
    %v2725 = vsel %vm2722, %v2724, %v2720
    %v2726 = vmul.f32 1.0, %v2725
    %v2727 = vxor.u32 %v2705, 2147483648
    %v2728 = vmul.f32 %v2727, 1.442695
    %v2729 = vpow.pop %v2728
    %v2730 = vadd.f32 %v2729, 1.0
    %v2731 = vrcp.pop %v2730
    %v2732 = vmul.f32 %v2730, %v2731
    %v2733 = vsub.f32 1.0, %v2732
    %v2734 = vmul.f32 %v2731, %v2733
    %v2735 = vadd.f32 %v2731, %v2734
    %vm2736 = vweird.f32 %v2730
    %vm2737 = vweird.f32 %v2731
    %vm2738 = vmor %vm2736, %vm2737
    %v2739 = vsel %vm2738, %v2731, %v2735
    %v2740 = vand.u32 2147483647, %v2730
    %vm2741 = vcmp.eq.f32.partialorder %v2740, 8.507059e+37
    %v2742 = vand.u32 %v2730, 2147483648
    %v2743 = vor.u32 1.1754944e-38, %v2742
    %v2744 = vsel %vm2741, %v2743, %v2739
    %v2745 = vmul.f32 1.0, %v2744
    %v2746 = vtanh.pop %v2706
    %v2747 = vxor.u32 %v2707, 2147483648
    %v2748 = vmul.f32 %v2747, 1.442695
    %v2749 = vpow.pop %v2748
    %v2750 = vadd.f32 %v2749, 1.0
    %v2751 = vrcp.pop %v2750
    %v2752 = vmul.f32 %v2750, %v2751
    %v2753 = vsub.f32 1.0, %v2752
    %v2754 = vmul.f32 %v2751, %v2753
    %v2755 = vadd.f32 %v2751, %v2754
    %vm2756 = vweird.f32 %v2750
    %vm2757 = vweird.f32 %v2751
    %vm2758 = vmor %vm2756, %vm2757
    %v2759 = vsel %vm2758, %v2751, %v2755
    %v2760 = vand.u32 2147483647, %v2750
    %vm2761 = vcmp.eq.f32.partialorder %v2760, 8.507059e+37
    %v2762 = vand.u32 %v2750, 2147483648
    %v2763 = vor.u32 1.1754944e-38, %v2762
    %v2764 = vsel %vm2761, %v2763, %v2759
    %v2765 = vmul.f32 1.0, %v2764
    %2767 = vst [vmem:[#allocation1] ss:$4 sm:$0xff] %v2616
    %v2768 = vld.sshfl [vmem:[#allocation1 + $0x8] sm:$0xff pattern:$0x73625140]
    %v2770 = vmul.f32 %v2745, %v2768
    %v2771 = vmul.f32 %v2726, %v2746
    %v2772 = vadd.f32 %v2770, %v2771
    %v2773 = vtanh.pop %v2772
    %v2774 = vmul.f32 %v2765, %v2773
    %2775 = vst [vmem:[#allocation3] sm:$0x3] %v2693
    %2776 = vst [vmem:[#allocation3 + $0x2] sm:$0x3] %v2774
    %2777 = vst [vmem:[#allocation4] sm:$0x3] %v2691
    %2778 = vst [vmem:[#allocation4 + $0x2] sm:$0x3] %v2772
    %s2779 = scalar_lea.vmem %s4, 4
    %2780 = vst.msk [vmem:[%s2779] sm:$0x3] %vm1275, %v2693
    %s2781 = scalar_lea.vmem %s5, 10
    %2782 = vst.msk [vmem:[%s2781] sm:$0x3] %vm1275, %v2774
    %v2783 = vld [vmem:[#allocation3] sm:$0xf]
    %v2784 = vld [vmem:[#allocation9] sm:$0xff]
    %v2785 = vld [vmem:[#allocation9 + $0x8] sm:$0xff]
    %v2786 = vld [vmem:[#allocation9 + $0x10] sm:$0xff]
    %v2787 = vld [vmem:[#allocation9 + $0x18] sm:$0xff]
    %v2788 = vld [vmem:[#allocation9 + $0x20] sm:$0xff]
    %v2789 = vld [vmem:[#allocation9 + $0x28] sm:$0xff]
    %v2790 = vld [vmem:[#allocation9 + $0x30] sm:$0xff]
    %v2791 = vld [vmem:[#allocation9 + $0x38] sm:$0xff]
    %v2792 = vld [vmem:[#allocation9 + $0x40] sm:$0xff]
    %v2793 = vld [vmem:[#allocation9 + $0x48] sm:$0xff]
    %v2794 = vld [vmem:[#allocation9 + $0x50] sm:$0xff]
    %v2795 = vld [vmem:[#allocation9 + $0x58] sm:$0xff]
    %v2796 = vld [vmem:[#allocation9 + $0x60] sm:$0xff]
    %v2797 = vld [vmem:[#allocation9 + $0x68] sm:$0xff]
    %v2798 = vld [vmem:[#allocation9 + $0x70] sm:$0xff]
    %v2799 = vld [vmem:[#allocation9 + $0x78] sm:$0xff]
    %v2800 = vld [vmem:[#allocation9 + $0x80] sm:$0xff]
    %v2801 = vld [vmem:[#allocation9 + $0x88] sm:$0xff]
    %v2802 = vld [vmem:[#allocation9 + $0x90] sm:$0xff]
    %v2803 = vld [vmem:[#allocation9 + $0x98] sm:$0xff]
    %v2804 = vld [vmem:[#allocation9 + $0xa0] sm:$0xff]
    %v2805 = vld [vmem:[#allocation9 + $0xa8] sm:$0xff]
    %v2806 = vld [vmem:[#allocation9 + $0xb0] sm:$0xff]
    %v2807 = vld [vmem:[#allocation9 + $0xb8] sm:$0xff]
    %v2808 = vld [vmem:[#allocation9 + $0xc0] sm:$0xff]
    %v2809 = vld [vmem:[#allocation9 + $0xc8] sm:$0xff]
    %v2810 = vld [vmem:[#allocation9 + $0xd0] sm:$0xff]
    %v2811 = vld [vmem:[#allocation9 + $0xd8] sm:$0xff]
    %v2812 = vld [vmem:[#allocation9 + $0xe0] sm:$0xff]
    %v2813 = vld [vmem:[#allocation9 + $0xe8] sm:$0xff]
    %v2814 = vld [vmem:[#allocation9 + $0xf0] sm:$0xff]
    %v2815 = vld [vmem:[#allocation9 + $0xf8] sm:$0xff]
    %v2816 = vld [vmem:[#allocation9 + $0x100] sm:$0xff]
    %v2817 = vld [vmem:[#allocation9 + $0x108] sm:$0xff]
    %v2818 = vld [vmem:[#allocation9 + $0x110] sm:$0xff]
    %v2819 = vld [vmem:[#allocation9 + $0x118] sm:$0xff]
    %v2820 = vld [vmem:[#allocation9 + $0x120] sm:$0xff]
    %v2821 = vld [vmem:[#allocation9 + $0x128] sm:$0xff]
    %v2822 = vld [vmem:[#allocation9 + $0x130] sm:$0xff]
    %v2823 = vld [vmem:[#allocation9 + $0x138] sm:$0xff]
    %v2824 = vld [vmem:[#allocation9 + $0x140] sm:$0xff]
    %v2825 = vld [vmem:[#allocation9 + $0x148] sm:$0xff]
    %v2826 = vld [vmem:[#allocation9 + $0x150] sm:$0xff]
    %v2827 = vld [vmem:[#allocation9 + $0x158] sm:$0xff]
    %v2828 = vld [vmem:[#allocation9 + $0x160] sm:$0xff]
    %v2829 = vld [vmem:[#allocation9 + $0x168] sm:$0xff]
    %v2830 = vld [vmem:[#allocation9 + $0x170] sm:$0xff]
    %v2831 = vld [vmem:[#allocation9 + $0x178] sm:$0xff]
    %v2832 = vld [vmem:[#allocation9 + $0x180] sm:$0xff]
    %v2833 = vld [vmem:[#allocation9 + $0x188] sm:$0xff]
    %v2834 = vld [vmem:[#allocation9 + $0x190] sm:$0xff]
    %v2835 = vld [vmem:[#allocation9 + $0x198] sm:$0xff]
    %v2836 = vld [vmem:[#allocation9 + $0x1a0] sm:$0xff]
    %v2837 = vld [vmem:[#allocation9 + $0x1a8] sm:$0xff]
    %v2838 = vld [vmem:[#allocation9 + $0x1b0] sm:$0xff]
    %v2839 = vld [vmem:[#allocation9 + $0x1b8] sm:$0xff]
    %v2840 = vld [vmem:[#allocation9 + $0x1c0] sm:$0xff]
    %v2841 = vld [vmem:[#allocation9 + $0x1c8] sm:$0xff]
    %v2842 = vld [vmem:[#allocation9 + $0x1d0] sm:$0xff]
    %v2843 = vld [vmem:[#allocation9 + $0x1d8] sm:$0xff]
    %v2844 = vld [vmem:[#allocation9 + $0x1e0] sm:$0xff]
    %v2845 = vld [vmem:[#allocation9 + $0x1e8] sm:$0xff]
    %v2846 = vld [vmem:[#allocation9 + $0x1f0] sm:$0xff]
    %v2847 = vld [vmem:[#allocation9 + $0x1f8] sm:$0xff]
    %v2848 = vld [vmem:[#allocation9 + $0x200] sm:$0xff]
    %v2849 = vld [vmem:[#allocation9 + $0x208] sm:$0xff]
    %v2850 = vld [vmem:[#allocation9 + $0x210] sm:$0xff]
    %v2851 = vld [vmem:[#allocation9 + $0x218] sm:$0xff]
    %v2852 = vld [vmem:[#allocation9 + $0x220] sm:$0xff]
    %v2853 = vld [vmem:[#allocation9 + $0x228] sm:$0xff]
    %v2854 = vld [vmem:[#allocation9 + $0x230] sm:$0xff]
    %v2855 = vld [vmem:[#allocation9 + $0x238] sm:$0xff]
    %v2856 = vld [vmem:[#allocation9 + $0x240] sm:$0xff]
    %v2857 = vld [vmem:[#allocation9 + $0x248] sm:$0xff]
    %v2858 = vld [vmem:[#allocation9 + $0x250] sm:$0xff]
    %v2859 = vld [vmem:[#allocation9 + $0x258] sm:$0xff]
    %v2860 = vld [vmem:[#allocation9 + $0x260] sm:$0xff]
    %v2861 = vld [vmem:[#allocation9 + $0x268] sm:$0xff]
    %v2862 = vld [vmem:[#allocation9 + $0x270] sm:$0xff]
    %v2863 = vld [vmem:[#allocation9 + $0x278] sm:$0xff]
    %v2864 = vld [vmem:[#allocation9 + $0x280] sm:$0xff]
    %v2865 = vld [vmem:[#allocation9 + $0x288] sm:$0xff]
    %v2866 = vld [vmem:[#allocation9 + $0x290] sm:$0xff]
    %v2867 = vld [vmem:[#allocation9 + $0x298] sm:$0xff]
    %v2868 = vld [vmem:[#allocation9 + $0x2a0] sm:$0xff]
    %v2869 = vld [vmem:[#allocation9 + $0x2a8] sm:$0xff]
    %v2870 = vld [vmem:[#allocation9 + $0x2b0] sm:$0xff]
    %v2871 = vld [vmem:[#allocation9 + $0x2b8] sm:$0xff]
    %v2872 = vld [vmem:[#allocation9 + $0x2c0] sm:$0xff]
    %v2873 = vld [vmem:[#allocation9 + $0x2c8] sm:$0xff]
    %v2874 = vld [vmem:[#allocation9 + $0x2d0] sm:$0xff]
    %v2875 = vld [vmem:[#allocation9 + $0x2d8] sm:$0xff]
    %v2876 = vld [vmem:[#allocation9 + $0x2e0] sm:$0xff]
    %v2877 = vld [vmem:[#allocation9 + $0x2e8] sm:$0xff]
    %v2878 = vld [vmem:[#allocation9 + $0x2f0] sm:$0xff]
    %v2879 = vld [vmem:[#allocation9 + $0x2f8] sm:$0xff]
    %v2880 = vld [vmem:[#allocation9 + $0x300] sm:$0xff]
    %v2881 = vld [vmem:[#allocation9 + $0x308] sm:$0xff]
    %v2882 = vld [vmem:[#allocation9 + $0x310] sm:$0xff]
    %v2883 = vld [vmem:[#allocation9 + $0x318] sm:$0xff]
    %v2884 = vld [vmem:[#allocation9 + $0x320] sm:$0xff]
    %v2885 = vld [vmem:[#allocation9 + $0x328] sm:$0xff]
    %v2886 = vld [vmem:[#allocation9 + $0x330] sm:$0xff]
    %v2887 = vld [vmem:[#allocation9 + $0x338] sm:$0xff]
    %v2888 = vld [vmem:[#allocation9 + $0x340] sm:$0xff]
    %v2889 = vld [vmem:[#allocation9 + $0x348] sm:$0xff]
    %v2890 = vld [vmem:[#allocation9 + $0x350] sm:$0xff]
    %v2891 = vld [vmem:[#allocation9 + $0x358] sm:$0xff]
    %v2892 = vld [vmem:[#allocation9 + $0x360] sm:$0xff]
    %v2893 = vld [vmem:[#allocation9 + $0x368] sm:$0xff]
    %v2894 = vld [vmem:[#allocation9 + $0x370] sm:$0xff]
    %v2895 = vld [vmem:[#allocation9 + $0x378] sm:$0xff]
    %v2896 = vld [vmem:[#allocation9 + $0x380] sm:$0xff]
    %v2897 = vld [vmem:[#allocation9 + $0x388] sm:$0xff]
    %v2898 = vld [vmem:[#allocation9 + $0x390] sm:$0xff]
    %v2899 = vld [vmem:[#allocation9 + $0x398] sm:$0xff]
    %v2900 = vld [vmem:[#allocation9 + $0x3a0] sm:$0xff]
    %v2901 = vld [vmem:[#allocation9 + $0x3a8] sm:$0xff]
    %v2902 = vld [vmem:[#allocation9 + $0x3b0] sm:$0xff]
    %v2903 = vld [vmem:[#allocation9 + $0x3b8] sm:$0xff]
    %v2904 = vld [vmem:[#allocation9 + $0x3c0] sm:$0xff]
    %v2905 = vld [vmem:[#allocation9 + $0x3c8] sm:$0xff]
    %v2906 = vld [vmem:[#allocation9 + $0x3d0] sm:$0xff]
    %v2907 = vld [vmem:[#allocation9 + $0x3d8] sm:$0xff]
    %v2908 = vld [vmem:[#allocation9 + $0x3e0] sm:$0xff]
    %v2909 = vld [vmem:[#allocation9 + $0x3e8] sm:$0xff]
    %v2910 = vld [vmem:[#allocation9 + $0x3f0] sm:$0xff]
    %v2911 = vld [vmem:[#allocation9 + $0x3f8] sm:$0xff]
    %v2912 = vld [vmem:[#allocation9 + $0x400] sm:$0xff]
    %v2913 = vld [vmem:[#allocation9 + $0x408] sm:$0xff]
    %v2914 = vld [vmem:[#allocation9 + $0x410] sm:$0xff]
    %v2915 = vld [vmem:[#allocation9 + $0x418] sm:$0xff]
    %v2916 = vld [vmem:[#allocation9 + $0x420] sm:$0xff]
    %v2917 = vld [vmem:[#allocation9 + $0x428] sm:$0xff]
    %v2918 = vld [vmem:[#allocation9 + $0x430] sm:$0xff]
    %v2919 = vld [vmem:[#allocation9 + $0x438] sm:$0xff]
    %v2920 = vld [vmem:[#allocation9 + $0x440] sm:$0xff]
    %v2921 = vld [vmem:[#allocation9 + $0x448] sm:$0xff]
    %v2922 = vld [vmem:[#allocation9 + $0x450] sm:$0xff]
    %v2923 = vld [vmem:[#allocation9 + $0x458] sm:$0xff]
    %v2924 = vld [vmem:[#allocation9 + $0x460] sm:$0xff]
    %v2925 = vld [vmem:[#allocation9 + $0x468] sm:$0xff]
    %v2926 = vld [vmem:[#allocation9 + $0x470] sm:$0xff]
    %v2927 = vld [vmem:[#allocation9 + $0x478] sm:$0xff]
    %v2928 = vld [vmem:[#allocation9 + $0x480] sm:$0xff]
    %v2929 = vld [vmem:[#allocation9 + $0x488] sm:$0xff]
    %v2930 = vld [vmem:[#allocation9 + $0x490] sm:$0xff]
    %v2931 = vld [vmem:[#allocation9 + $0x498] sm:$0xff]
    %v2932 = vld [vmem:[#allocation9 + $0x4a0] sm:$0xff]
    %v2933 = vld [vmem:[#allocation9 + $0x4a8] sm:$0xff]
    %v2934 = vld [vmem:[#allocation9 + $0x4b0] sm:$0xff]
    %v2935 = vld [vmem:[#allocation9 + $0x4b8] sm:$0xff]
    %v2936 = vld [vmem:[#allocation9 + $0x4c0] sm:$0xff]
    %v2937 = vld [vmem:[#allocation9 + $0x4c8] sm:$0xff]
    %v2938 = vld [vmem:[#allocation9 + $0x4d0] sm:$0xff]
    %v2939 = vld [vmem:[#allocation9 + $0x4d8] sm:$0xff]
    %v2940 = vld [vmem:[#allocation9 + $0x4e0] sm:$0xff]
    %v2941 = vld [vmem:[#allocation9 + $0x4e8] sm:$0xff]
    %v2942 = vld [vmem:[#allocation9 + $0x4f0] sm:$0xff]
    %v2943 = vld [vmem:[#allocation9 + $0x4f8] sm:$0xff]
    %v2944 = vld [vmem:[#allocation9 + $0x500] sm:$0xff]
    %v2945 = vld [vmem:[#allocation9 + $0x508] sm:$0xff]
    %v2946 = vld [vmem:[#allocation9 + $0x510] sm:$0xff]
    %v2947 = vld [vmem:[#allocation9 + $0x518] sm:$0xff]
    %v2948 = vld [vmem:[#allocation9 + $0x520] sm:$0xff]
    %v2949 = vld [vmem:[#allocation9 + $0x528] sm:$0xff]
    %v2950 = vld [vmem:[#allocation9 + $0x530] sm:$0xff]
    %v2951 = vld [vmem:[#allocation9 + $0x538] sm:$0xff]
    %v2952 = vld [vmem:[#allocation9 + $0x540] sm:$0xff]
    %v2953 = vld [vmem:[#allocation9 + $0x548] sm:$0xff]
    %v2954 = vld [vmem:[#allocation9 + $0x550] sm:$0xff]
    %v2955 = vld [vmem:[#allocation9 + $0x558] sm:$0xff]
    %v2956 = vld [vmem:[#allocation9 + $0x560] sm:$0xff]
    %v2957 = vld [vmem:[#allocation9 + $0x568] sm:$0xff]
    %v2958 = vld [vmem:[#allocation9 + $0x570] sm:$0xff]
    %v2959 = vld [vmem:[#allocation9 + $0x578] sm:$0xff]
    %v2960 = vld [vmem:[#allocation9 + $0x580] sm:$0xff]
    %v2961 = vld [vmem:[#allocation9 + $0x588] sm:$0xff]
    %v2962 = vld [vmem:[#allocation9 + $0x590] sm:$0xff]
    %v2963 = vld [vmem:[#allocation9 + $0x598] sm:$0xff]
    %v2964 = vld [vmem:[#allocation9 + $0x5a0] sm:$0xff]
    %v2965 = vld [vmem:[#allocation9 + $0x5a8] sm:$0xff]
    %v2966 = vld [vmem:[#allocation9 + $0x5b0] sm:$0xff]
    %v2967 = vld [vmem:[#allocation9 + $0x5b8] sm:$0xff]
    %v2968 = vld [vmem:[#allocation9 + $0x5c0] sm:$0xff]
    %v2969 = vld [vmem:[#allocation9 + $0x5c8] sm:$0xff]
    %v2970 = vld [vmem:[#allocation9 + $0x5d0] sm:$0xff]
    %v2971 = vld [vmem:[#allocation9 + $0x5d8] sm:$0xff]
    %v2972 = vld [vmem:[#allocation9 + $0x5e0] sm:$0xff]
    %v2973 = vld [vmem:[#allocation9 + $0x5e8] sm:$0xff]
    %v2974 = vld [vmem:[#allocation9 + $0x5f0] sm:$0xff]
    %v2975 = vld [vmem:[#allocation9 + $0x5f8] sm:$0xff]
    %v2976 = vld [vmem:[#allocation9 + $0x600] sm:$0xff]
    %v2977 = vld [vmem:[#allocation9 + $0x608] sm:$0xff]
    %v2978 = vld [vmem:[#allocation9 + $0x610] sm:$0xff]
    %v2979 = vld [vmem:[#allocation9 + $0x618] sm:$0xff]
    %v2980 = vld [vmem:[#allocation9 + $0x620] sm:$0xff]
    %v2981 = vld [vmem:[#allocation9 + $0x628] sm:$0xff]
    %v2982 = vld [vmem:[#allocation9 + $0x630] sm:$0xff]
    %v2983 = vld [vmem:[#allocation9 + $0x638] sm:$0xff]
    %v2984 = vld [vmem:[#allocation9 + $0x640] sm:$0xff]
    %v2985 = vld [vmem:[#allocation9 + $0x648] sm:$0xff]
    %v2986 = vld [vmem:[#allocation9 + $0x650] sm:$0xff]
    %v2987 = vld [vmem:[#allocation9 + $0x658] sm:$0xff]
    %v2988 = vld [vmem:[#allocation9 + $0x660] sm:$0xff]
    %v2989 = vld [vmem:[#allocation9 + $0x668] sm:$0xff]
    %v2990 = vld [vmem:[#allocation9 + $0x670] sm:$0xff]
    %v2991 = vld [vmem:[#allocation9 + $0x678] sm:$0xff]
    %v2992 = vld [vmem:[#allocation9 + $0x680] sm:$0xff]
    %v2993 = vld [vmem:[#allocation9 + $0x688] sm:$0xff]
    %v2994 = vld [vmem:[#allocation9 + $0x690] sm:$0xff]
    %v2995 = vld [vmem:[#allocation9 + $0x698] sm:$0xff]
    %v2996 = vld [vmem:[#allocation9 + $0x6a0] sm:$0xff]
    %v2997 = vld [vmem:[#allocation9 + $0x6a8] sm:$0xff]
    %v2998 = vld [vmem:[#allocation9 + $0x6b0] sm:$0xff]
    %v2999 = vld [vmem:[#allocation9 + $0x6b8] sm:$0xff]
    %v3000 = vld [vmem:[#allocation9 + $0x6c0] sm:$0xff]
    %v3001 = vld [vmem:[#allocation9 + $0x6c8] sm:$0xff]
    %v3002 = vld [vmem:[#allocation9 + $0x6d0] sm:$0xff]
    %v3003 = vld [vmem:[#allocation9 + $0x6d8] sm:$0xff]
    %v3004 = vld [vmem:[#allocation9 + $0x6e0] sm:$0xff]
    %v3005 = vld [vmem:[#allocation9 + $0x6e8] sm:$0xff]
    %v3006 = vld [vmem:[#allocation9 + $0x6f0] sm:$0xff]
    %v3007 = vld [vmem:[#allocation9 + $0x6f8] sm:$0xff]
    %v3008 = vld [vmem:[#allocation9 + $0x700] sm:$0xff]
    %v3009 = vld [vmem:[#allocation9 + $0x708] sm:$0xff]
    %v3010 = vld [vmem:[#allocation9 + $0x710] sm:$0xff]
    %v3011 = vld [vmem:[#allocation9 + $0x718] sm:$0xff]
    %v3012 = vld [vmem:[#allocation9 + $0x720] sm:$0xff]
    %v3013 = vld [vmem:[#allocation9 + $0x728] sm:$0xff]
    %v3014 = vld [vmem:[#allocation9 + $0x730] sm:$0xff]
    %v3015 = vld [vmem:[#allocation9 + $0x738] sm:$0xff]
    %v3016 = vld [vmem:[#allocation9 + $0x740] sm:$0xff]
    %v3017 = vld [vmem:[#allocation9 + $0x748] sm:$0xff]
    %v3018 = vld [vmem:[#allocation9 + $0x750] sm:$0xff]
    %v3019 = vld [vmem:[#allocation9 + $0x758] sm:$0xff]
    %v3020 = vld [vmem:[#allocation9 + $0x760] sm:$0xff]
    %v3021 = vld [vmem:[#allocation9 + $0x768] sm:$0xff]
    %v3022 = vld [vmem:[#allocation9 + $0x770] sm:$0xff]
    %v3023 = vld [vmem:[#allocation9 + $0x778] sm:$0xff]
    %v3024 = vld [vmem:[#allocation9 + $0x780] sm:$0xff]
    %v3025 = vld [vmem:[#allocation9 + $0x788] sm:$0xff]
    %v3026 = vld [vmem:[#allocation9 + $0x790] sm:$0xff]
    %v3027 = vld [vmem:[#allocation9 + $0x798] sm:$0xff]
    %v3028 = vld [vmem:[#allocation9 + $0x7a0] sm:$0xff]
    %v3029 = vld [vmem:[#allocation9 + $0x7a8] sm:$0xff]
    %v3030 = vld [vmem:[#allocation9 + $0x7b0] sm:$0xff]
    %v3031 = vld [vmem:[#allocation9 + $0x7b8] sm:$0xff]
    %v3032 = vld [vmem:[#allocation9 + $0x7c0] sm:$0xff]
    %v3033 = vld [vmem:[#allocation9 + $0x7c8] sm:$0xff]
    %v3034 = vld [vmem:[#allocation9 + $0x7d0] sm:$0xff]
    %v3035 = vld [vmem:[#allocation9 + $0x7d8] sm:$0xff]
    %v3036 = vld [vmem:[#allocation9 + $0x7e0] sm:$0xff]
    %v3037 = vld [vmem:[#allocation9 + $0x7e8] sm:$0xff]
    %v3038 = vld [vmem:[#allocation9 + $0x7f0] sm:$0xff]
    %v3039 = vld [vmem:[#allocation9 + $0x7f8] sm:$0xff]
    %3041 = vst [vmem:[#allocation1] ss:$4 sm:$0xff] %v2783
    %v3042 = vld.sshfl [vmem:[#allocation1] sm:$0xff pattern:$0x73625140]
    %v3043 = vld.sshfl [vmem:[#allocation1 + $0x8] sm:$0xff pattern:$0x73625140]
    %3046 = vmatpush.msra.mxu0 %v2904
    %3047 = vmatpush.msra.mxu0 %v2896
    %3048 = vmatpush.msra.mxu0 %v2888
    %3049 = vmatpush.msra.mxu0 %v2880
    %3050 = vmatpush.msra.mxu0 %v2872
    %3051 = vmatpush.msra.mxu0 %v2864
    %3052 = vmatpush.msra.mxu0 %v2856
    %3053 = vmatpush.msra.mxu0 %v2848
    %3054 = vmatpush.msra.mxu0 %v2840
    %3055 = vmatpush.msra.mxu0 %v2832
    %3056 = vmatpush.msra.mxu0 %v2824
    %3057 = vmatpush.msra.mxu0 %v2816
    %3058 = vmatpush.msra.mxu0 %v2808
    %3059 = vmatpush.msra.mxu0 %v2800
    %3060 = vmatpush.msra.mxu0 %v2792
    %3061 = vmatpush.msra.mxu0 %v2784
    %3062 = vmatmul.f32.gmra.mxu0 %v3042
    %v3063 = vpop.f32.mrf.mxu0
    %v3064 = vadd.f32 0.0, %v3063
    %3065 = vdwg.mxu0
    %3066 = vmatpush.msra.mxu0 %v3032
    %3067 = vmatpush.msra.mxu0 %v3024
    %3068 = vmatpush.msra.mxu0 %v3016
    %3069 = vmatpush.msra.mxu0 %v3008
    %3070 = vmatpush.msra.mxu0 %v3000
    %3071 = vmatpush.msra.mxu0 %v2992
    %3072 = vmatpush.msra.mxu0 %v2984
    %3073 = vmatpush.msra.mxu0 %v2976
    %3074 = vmatpush.msra.mxu0 %v2968
    %3075 = vmatpush.msra.mxu0 %v2960
    %3076 = vmatpush.msra.mxu0 %v2952
    %3077 = vmatpush.msra.mxu0 %v2944
    %3078 = vmatpush.msra.mxu0 %v2936
    %3079 = vmatpush.msra.mxu0 %v2928
    %3080 = vmatpush.msra.mxu0 %v2920
    %3081 = vmatpush.msra.mxu0 %v2912
    %3082 = vmatmul.f32.gmra.mxu0 %v3043
    %v3083 = vpop.f32.mrf.mxu0
    %v3084 = vadd.f32 %v3064, %v3083
    %3085 = vdwg.mxu0
    %3086 = vmatpush.msra.mxu0 %v2905
    %3087 = vmatpush.msra.mxu0 %v2897
    %3088 = vmatpush.msra.mxu0 %v2889
    %3089 = vmatpush.msra.mxu0 %v2881
    %3090 = vmatpush.msra.mxu0 %v2873
    %3091 = vmatpush.msra.mxu0 %v2865
    %3092 = vmatpush.msra.mxu0 %v2857
    %3093 = vmatpush.msra.mxu0 %v2849
    %3094 = vmatpush.msra.mxu0 %v2841
    %3095 = vmatpush.msra.mxu0 %v2833
    %3096 = vmatpush.msra.mxu0 %v2825
    %3097 = vmatpush.msra.mxu0 %v2817
    %3098 = vmatpush.msra.mxu0 %v2809
    %3099 = vmatpush.msra.mxu0 %v2801
    %3100 = vmatpush.msra.mxu0 %v2793
    %3101 = vmatpush.msra.mxu0 %v2785
    %3102 = vmatmul.f32.gmra.mxu0 %v3042
    %v3103 = vpop.f32.mrf.mxu0
    %v3104 = vadd.f32 0.0, %v3103
    %3105 = vdwg.mxu0
    %3106 = vmatpush.msra.mxu0 %v3033
    %3107 = vmatpush.msra.mxu0 %v3025
    %3108 = vmatpush.msra.mxu0 %v3017
    %3109 = vmatpush.msra.mxu0 %v3009
    %3110 = vmatpush.msra.mxu0 %v3001
    %3111 = vmatpush.msra.mxu0 %v2993
    %3112 = vmatpush.msra.mxu0 %v2985
    %3113 = vmatpush.msra.mxu0 %v2977
    %3114 = vmatpush.msra.mxu0 %v2969
    %3115 = vmatpush.msra.mxu0 %v2961
    %3116 = vmatpush.msra.mxu0 %v2953
    %3117 = vmatpush.msra.mxu0 %v2945
    %3118 = vmatpush.msra.mxu0 %v2937
    %3119 = vmatpush.msra.mxu0 %v2929
    %3120 = vmatpush.msra.mxu0 %v2921
    %3121 = vmatpush.msra.mxu0 %v2913
    %3122 = vmatmul.f32.gmra.mxu0 %v3043
    %v3123 = vpop.f32.mrf.mxu0
    %v3124 = vadd.f32 %v3104, %v3123
    %3125 = vdwg.mxu0
    %3126 = vmatpush.msra.mxu0 %v2906
    %3127 = vmatpush.msra.mxu0 %v2898
    %3128 = vmatpush.msra.mxu0 %v2890
    %3129 = vmatpush.msra.mxu0 %v2882
    %3130 = vmatpush.msra.mxu0 %v2874
    %3131 = vmatpush.msra.mxu0 %v2866
    %3132 = vmatpush.msra.mxu0 %v2858
    %3133 = vmatpush.msra.mxu0 %v2850
    %3134 = vmatpush.msra.mxu0 %v2842
    %3135 = vmatpush.msra.mxu0 %v2834
    %3136 = vmatpush.msra.mxu0 %v2826
    %3137 = vmatpush.msra.mxu0 %v2818
    %3138 = vmatpush.msra.mxu0 %v2810
    %3139 = vmatpush.msra.mxu0 %v2802
    %3140 = vmatpush.msra.mxu0 %v2794
    %3141 = vmatpush.msra.mxu0 %v2786
    %3142 = vmatmul.f32.gmra.mxu0 %v3042
    %v3143 = vpop.f32.mrf.mxu0
    %v3144 = vadd.f32 0.0, %v3143
    %3145 = vdwg.mxu0
    %3146 = vmatpush.msra.mxu0 %v3034
    %3147 = vmatpush.msra.mxu0 %v3026
    %3148 = vmatpush.msra.mxu0 %v3018
    %3149 = vmatpush.msra.mxu0 %v3010
    %3150 = vmatpush.msra.mxu0 %v3002
    %3151 = vmatpush.msra.mxu0 %v2994
    %3152 = vmatpush.msra.mxu0 %v2986
    %3153 = vmatpush.msra.mxu0 %v2978
    %3154 = vmatpush.msra.mxu0 %v2970
    %3155 = vmatpush.msra.mxu0 %v2962
    %3156 = vmatpush.msra.mxu0 %v2954
    %3157 = vmatpush.msra.mxu0 %v2946
    %3158 = vmatpush.msra.mxu0 %v2938
    %3159 = vmatpush.msra.mxu0 %v2930
    %3160 = vmatpush.msra.mxu0 %v2922
    %3161 = vmatpush.msra.mxu0 %v2914
    %3162 = vmatmul.f32.gmra.mxu0 %v3043
    %v3163 = vpop.f32.mrf.mxu0
    %v3164 = vadd.f32 %v3144, %v3163
    %3165 = vdwg.mxu0
    %3166 = vmatpush.msra.mxu0 %v2907
    %3167 = vmatpush.msra.mxu0 %v2899
    %3168 = vmatpush.msra.mxu0 %v2891
    %3169 = vmatpush.msra.mxu0 %v2883
    %3170 = vmatpush.msra.mxu0 %v2875
    %3171 = vmatpush.msra.mxu0 %v2867
    %3172 = vmatpush.msra.mxu0 %v2859
    %3173 = vmatpush.msra.mxu0 %v2851
    %3174 = vmatpush.msra.mxu0 %v2843
    %3175 = vmatpush.msra.mxu0 %v2835
    %3176 = vmatpush.msra.mxu0 %v2827
    %3177 = vmatpush.msra.mxu0 %v2819
    %3178 = vmatpush.msra.mxu0 %v2811
    %3179 = vmatpush.msra.mxu0 %v2803
    %3180 = vmatpush.msra.mxu0 %v2795
    %3181 = vmatpush.msra.mxu0 %v2787
    %3182 = vmatmul.f32.gmra.mxu0 %v3042
    %v3183 = vpop.f32.mrf.mxu0
    %v3184 = vadd.f32 0.0, %v3183
    %3185 = vdwg.mxu0
    %3186 = vmatpush.msra.mxu0 %v3035
    %3187 = vmatpush.msra.mxu0 %v3027
    %3188 = vmatpush.msra.mxu0 %v3019
    %3189 = vmatpush.msra.mxu0 %v3011
    %3190 = vmatpush.msra.mxu0 %v3003
    %3191 = vmatpush.msra.mxu0 %v2995
    %3192 = vmatpush.msra.mxu0 %v2987
    %3193 = vmatpush.msra.mxu0 %v2979
    %3194 = vmatpush.msra.mxu0 %v2971
    %3195 = vmatpush.msra.mxu0 %v2963
    %3196 = vmatpush.msra.mxu0 %v2955
    %3197 = vmatpush.msra.mxu0 %v2947
    %3198 = vmatpush.msra.mxu0 %v2939
    %3199 = vmatpush.msra.mxu0 %v2931
    %3200 = vmatpush.msra.mxu0 %v2923
    %3201 = vmatpush.msra.mxu0 %v2915
    %3202 = vmatmul.f32.gmra.mxu0 %v3043
    %v3203 = vpop.f32.mrf.mxu0
    %v3204 = vadd.f32 %v3184, %v3203
    %3205 = vdwg.mxu0
    %3206 = vmatpush.msra.mxu0 %v2908
    %3207 = vmatpush.msra.mxu0 %v2900
    %3208 = vmatpush.msra.mxu0 %v2892
    %3209 = vmatpush.msra.mxu0 %v2884
    %3210 = vmatpush.msra.mxu0 %v2876
    %3211 = vmatpush.msra.mxu0 %v2868
    %3212 = vmatpush.msra.mxu0 %v2860
    %3213 = vmatpush.msra.mxu0 %v2852
    %3214 = vmatpush.msra.mxu0 %v2844
    %3215 = vmatpush.msra.mxu0 %v2836
    %3216 = vmatpush.msra.mxu0 %v2828
    %3217 = vmatpush.msra.mxu0 %v2820
    %3218 = vmatpush.msra.mxu0 %v2812
    %3219 = vmatpush.msra.mxu0 %v2804
    %3220 = vmatpush.msra.mxu0 %v2796
    %3221 = vmatpush.msra.mxu0 %v2788
    %3222 = vmatmul.f32.gmra.mxu0 %v3042
    %v3223 = vpop.f32.mrf.mxu0
    %v3224 = vadd.f32 0.0, %v3223
    %3225 = vdwg.mxu0
    %3226 = vmatpush.msra.mxu0 %v3036
    %3227 = vmatpush.msra.mxu0 %v3028
    %3228 = vmatpush.msra.mxu0 %v3020
    %3229 = vmatpush.msra.mxu0 %v3012
    %3230 = vmatpush.msra.mxu0 %v3004
    %3231 = vmatpush.msra.mxu0 %v2996
    %3232 = vmatpush.msra.mxu0 %v2988
    %3233 = vmatpush.msra.mxu0 %v2980
    %3234 = vmatpush.msra.mxu0 %v2972
    %3235 = vmatpush.msra.mxu0 %v2964
    %3236 = vmatpush.msra.mxu0 %v2956
    %3237 = vmatpush.msra.mxu0 %v2948
    %3238 = vmatpush.msra.mxu0 %v2940
    %3239 = vmatpush.msra.mxu0 %v2932
    %3240 = vmatpush.msra.mxu0 %v2924
    %3241 = vmatpush.msra.mxu0 %v2916
    %3242 = vmatmul.f32.gmra.mxu0 %v3043
    %v3243 = vpop.f32.mrf.mxu0
    %v3244 = vadd.f32 %v3224, %v3243
    %3245 = vdwg.mxu0
    %3246 = vmatpush.msra.mxu0 %v2909
    %3247 = vmatpush.msra.mxu0 %v2901
    %3248 = vmatpush.msra.mxu0 %v2893
    %3249 = vmatpush.msra.mxu0 %v2885
    %3250 = vmatpush.msra.mxu0 %v2877
    %3251 = vmatpush.msra.mxu0 %v2869
    %3252 = vmatpush.msra.mxu0 %v2861
    %3253 = vmatpush.msra.mxu0 %v2853
    %3254 = vmatpush.msra.mxu0 %v2845
    %3255 = vmatpush.msra.mxu0 %v2837
    %3256 = vmatpush.msra.mxu0 %v2829
    %3257 = vmatpush.msra.mxu0 %v2821
    %3258 = vmatpush.msra.mxu0 %v2813
    %3259 = vmatpush.msra.mxu0 %v2805
    %3260 = vmatpush.msra.mxu0 %v2797
    %3261 = vmatpush.msra.mxu0 %v2789
    %3262 = vmatmul.f32.gmra.mxu0 %v3042
    %v3263 = vpop.f32.mrf.mxu0
    %v3264 = vadd.f32 0.0, %v3263
    %3265 = vdwg.mxu0
    %3266 = vmatpush.msra.mxu0 %v3037
    %3267 = vmatpush.msra.mxu0 %v3029
    %3268 = vmatpush.msra.mxu0 %v3021
    %3269 = vmatpush.msra.mxu0 %v3013
    %3270 = vmatpush.msra.mxu0 %v3005
    %3271 = vmatpush.msra.mxu0 %v2997
    %3272 = vmatpush.msra.mxu0 %v2989
    %3273 = vmatpush.msra.mxu0 %v2981
    %3274 = vmatpush.msra.mxu0 %v2973
    %3275 = vmatpush.msra.mxu0 %v2965
    %3276 = vmatpush.msra.mxu0 %v2957
    %3277 = vmatpush.msra.mxu0 %v2949
    %3278 = vmatpush.msra.mxu0 %v2941
    %3279 = vmatpush.msra.mxu0 %v2933
    %3280 = vmatpush.msra.mxu0 %v2925
    %3281 = vmatpush.msra.mxu0 %v2917
    %3282 = vmatmul.f32.gmra.mxu0 %v3043
    %v3283 = vpop.f32.mrf.mxu0
    %v3284 = vadd.f32 %v3264, %v3283
    %3285 = vdwg.mxu0
    %3286 = vmatpush.msra.mxu0 %v2910
    %3287 = vmatpush.msra.mxu0 %v2902
    %3288 = vmatpush.msra.mxu0 %v2894
    %3289 = vmatpush.msra.mxu0 %v2886
    %3290 = vmatpush.msra.mxu0 %v2878
    %3291 = vmatpush.msra.mxu0 %v2870
    %3292 = vmatpush.msra.mxu0 %v2862
    %3293 = vmatpush.msra.mxu0 %v2854
    %3294 = vmatpush.msra.mxu0 %v2846
    %3295 = vmatpush.msra.mxu0 %v2838
    %3296 = vmatpush.msra.mxu0 %v2830
    %3297 = vmatpush.msra.mxu0 %v2822
    %3298 = vmatpush.msra.mxu0 %v2814
    %3299 = vmatpush.msra.mxu0 %v2806
    %3300 = vmatpush.msra.mxu0 %v2798
    %3301 = vmatpush.msra.mxu0 %v2790
    %3302 = vmatmul.f32.gmra.mxu0 %v3042
    %v3303 = vpop.f32.mrf.mxu0
    %v3304 = vadd.f32 0.0, %v3303
    %3305 = vdwg.mxu0
    %3306 = vmatpush.msra.mxu0 %v3038
    %3307 = vmatpush.msra.mxu0 %v3030
    %3308 = vmatpush.msra.mxu0 %v3022
    %3309 = vmatpush.msra.mxu0 %v3014
    %3310 = vmatpush.msra.mxu0 %v3006
    %3311 = vmatpush.msra.mxu0 %v2998
    %3312 = vmatpush.msra.mxu0 %v2990
    %3313 = vmatpush.msra.mxu0 %v2982
    %3314 = vmatpush.msra.mxu0 %v2974
    %3315 = vmatpush.msra.mxu0 %v2966
    %3316 = vmatpush.msra.mxu0 %v2958
    %3317 = vmatpush.msra.mxu0 %v2950
    %3318 = vmatpush.msra.mxu0 %v2942
    %3319 = vmatpush.msra.mxu0 %v2934
    %3320 = vmatpush.msra.mxu0 %v2926
    %3321 = vmatpush.msra.mxu0 %v2918
    %3322 = vmatmul.f32.gmra.mxu0 %v3043
    %v3323 = vpop.f32.mrf.mxu0
    %v3324 = vadd.f32 %v3304, %v3323
    %3325 = vdwg.mxu0
    %3326 = vmatpush.msra.mxu0 %v2911
    %3327 = vmatpush.msra.mxu0 %v2903
    %3328 = vmatpush.msra.mxu0 %v2895
    %3329 = vmatpush.msra.mxu0 %v2887
    %3330 = vmatpush.msra.mxu0 %v2879
    %3331 = vmatpush.msra.mxu0 %v2871
    %3332 = vmatpush.msra.mxu0 %v2863
    %3333 = vmatpush.msra.mxu0 %v2855
    %3334 = vmatpush.msra.mxu0 %v2847
    %3335 = vmatpush.msra.mxu0 %v2839
    %3336 = vmatpush.msra.mxu0 %v2831
    %3337 = vmatpush.msra.mxu0 %v2823
    %3338 = vmatpush.msra.mxu0 %v2815
    %3339 = vmatpush.msra.mxu0 %v2807
    %3340 = vmatpush.msra.mxu0 %v2799
    %3341 = vmatpush.msra.mxu0 %v2791
    %3342 = vmatmul.f32.gmra.mxu0 %v3042
    %v3343 = vpop.f32.mrf.mxu0
    %v3344 = vadd.f32 0.0, %v3343
    %3345 = vdwg.mxu0
    %3346 = vmatpush.msra.mxu0 %v3039
    %3347 = vmatpush.msra.mxu0 %v3031
    %3348 = vmatpush.msra.mxu0 %v3023
    %3349 = vmatpush.msra.mxu0 %v3015
    %3350 = vmatpush.msra.mxu0 %v3007
    %3351 = vmatpush.msra.mxu0 %v2999
    %3352 = vmatpush.msra.mxu0 %v2991
    %3353 = vmatpush.msra.mxu0 %v2983
    %3354 = vmatpush.msra.mxu0 %v2975
    %3355 = vmatpush.msra.mxu0 %v2967
    %3356 = vmatpush.msra.mxu0 %v2959
    %3357 = vmatpush.msra.mxu0 %v2951
    %3358 = vmatpush.msra.mxu0 %v2943
    %3359 = vmatpush.msra.mxu0 %v2935
    %3360 = vmatpush.msra.mxu0 %v2927
    %3361 = vmatpush.msra.mxu0 %v2919
    %3362 = vmatmul.f32.gmra.mxu0 %v3043
    %v3363 = vpop.f32.mrf.mxu0
    %v3364 = vadd.f32 %v3344, %v3363
    %3365 = vdwg.mxu0
    %v3366 = vld [vmem:[%s446] sm:$0xff]
    %v3367 = vld [vmem:[%s471 + $0x8] sm:$0xff]
    %v3368 = vld [vmem:[#allocation4] sm:$0xf]
    %3370 = vst [vmem:[#allocation1] ss:$4 sm:$0xff] %v3366
    %v3371 = vld.sshfl [vmem:[#allocation1] sm:$0xff pattern:$0x73625140]
    %v3372 = vld.sshfl [vmem:[#allocation1 + $0x8] sm:$0xff pattern:$0x73625140]
    %v3373 = vld.sshfl [vmem:[#allocation1 + $0x10] sm:$0xff pattern:$0x73625140]
    %v3374 = vld.sshfl [vmem:[#allocation1 + $0x18] sm:$0xff pattern:$0x73625140]
    %v3379 = vadd.f32 %v3084, %v3371
    %v3380 = vadd.f32 %v3124, %v3372
    %v3381 = vadd.f32 %v3164, %v3373
    %v3382 = vadd.f32 %v3204, %v3374
    %v3383 = vxor.u32 %v3379, 2147483648
    %v3384 = vmul.f32 %v3383, 1.442695
    %v3385 = vpow.pop %v3384
    %v3386 = vadd.f32 %v3385, 1.0
    %v3387 = vrcp.pop %v3386
    %v3388 = vmul.f32 %v3386, %v3387
    %v3389 = vsub.f32 1.0, %v3388
    %v3390 = vmul.f32 %v3387, %v3389
    %v3391 = vadd.f32 %v3387, %v3390
    %vm3392 = vweird.f32 %v3386
    %vm3393 = vweird.f32 %v3387
    %vm3394 = vmor %vm3392, %vm3393
    %v3395 = vsel %vm3394, %v3387, %v3391
    %v3396 = vand.u32 2147483647, %v3386
    %vm3397 = vcmp.eq.f32.partialorder %v3396, 8.507059e+37
    %v3398 = vand.u32 %v3386, 2147483648
    %v3399 = vor.u32 1.1754944e-38, %v3398
    %v3400 = vsel %vm3397, %v3399, %v3395
    %v3401 = vmul.f32 1.0, %v3400
    %v3402 = vxor.u32 %v3380, 2147483648
    %v3403 = vmul.f32 %v3402, 1.442695
    %v3404 = vpow.pop %v3403
    %v3405 = vadd.f32 %v3404, 1.0
    %v3406 = vrcp.pop %v3405
    %v3407 = vmul.f32 %v3405, %v3406
    %v3408 = vsub.f32 1.0, %v3407
    %v3409 = vmul.f32 %v3406, %v3408
    %v3410 = vadd.f32 %v3406, %v3409
    %vm3411 = vweird.f32 %v3405
    %vm3412 = vweird.f32 %v3406
    %vm3413 = vmor %vm3411, %vm3412
    %v3414 = vsel %vm3413, %v3406, %v3410
    %v3415 = vand.u32 2147483647, %v3405
    %vm3416 = vcmp.eq.f32.partialorder %v3415, 8.507059e+37
    %v3417 = vand.u32 %v3405, 2147483648
    %v3418 = vor.u32 1.1754944e-38, %v3417
    %v3419 = vsel %vm3416, %v3418, %v3414
    %v3420 = vmul.f32 1.0, %v3419
    %v3421 = vtanh.pop %v3381
    %v3422 = vxor.u32 %v3382, 2147483648
    %v3423 = vmul.f32 %v3422, 1.442695
    %v3424 = vpow.pop %v3423
    %v3425 = vadd.f32 %v3424, 1.0
    %v3426 = vrcp.pop %v3425
    %v3427 = vmul.f32 %v3425, %v3426
    %v3428 = vsub.f32 1.0, %v3427
    %v3429 = vmul.f32 %v3426, %v3428
    %v3430 = vadd.f32 %v3426, %v3429
    %vm3431 = vweird.f32 %v3425
    %vm3432 = vweird.f32 %v3426
    %vm3433 = vmor %vm3431, %vm3432
    %v3434 = vsel %vm3433, %v3426, %v3430
    %v3435 = vand.u32 2147483647, %v3425
    %vm3436 = vcmp.eq.f32.partialorder %v3435, 8.507059e+37
    %v3437 = vand.u32 %v3425, 2147483648
    %v3438 = vor.u32 1.1754944e-38, %v3437
    %v3439 = vsel %vm3436, %v3438, %v3434
    %v3440 = vmul.f32 1.0, %v3439
    %v3441 = vmul.f32 %v3420, %v3368
    %v3442 = vmul.f32 %v3401, %v3421
    %v3443 = vadd.f32 %v3441, %v3442
    %v3444 = vtanh.pop %v3443
    %v3445 = vmul.f32 %v3440, %v3444
    %3447 = vst [vmem:[#allocation1] ss:$4 sm:$0xff] %v3367
    %v3448 = vld.sshfl [vmem:[#allocation1] sm:$0xff pattern:$0x73625140]
    %v3449 = vld.sshfl [vmem:[#allocation1 + $0x8] sm:$0xff pattern:$0x73625140]
    %v3450 = vld.sshfl [vmem:[#allocation1 + $0x10] sm:$0xff pattern:$0x73625140]
    %v3451 = vld.sshfl [vmem:[#allocation1 + $0x18] sm:$0xff pattern:$0x73625140]
    %v3456 = vadd.f32 %v3244, %v3448
    %v3457 = vadd.f32 %v3284, %v3449
    %v3458 = vadd.f32 %v3324, %v3450
    %v3459 = vadd.f32 %v3364, %v3451
    %v3460 = vxor.u32 %v3456, 2147483648
    %v3461 = vmul.f32 %v3460, 1.442695
    %v3462 = vpow.pop %v3461
    %v3463 = vadd.f32 %v3462, 1.0
    %v3464 = vrcp.pop %v3463
    %v3465 = vmul.f32 %v3463, %v3464
    %v3466 = vsub.f32 1.0, %v3465
    %v3467 = vmul.f32 %v3464, %v3466
    %v3468 = vadd.f32 %v3464, %v3467
    %vm3469 = vweird.f32 %v3463
    %vm3470 = vweird.f32 %v3464
    %vm3471 = vmor %vm3469, %vm3470
    %v3472 = vsel %vm3471, %v3464, %v3468
    %v3473 = vand.u32 2147483647, %v3463
    %vm3474 = vcmp.eq.f32.partialorder %v3473, 8.507059e+37
    %v3475 = vand.u32 %v3463, 2147483648
    %v3476 = vor.u32 1.1754944e-38, %v3475
    %v3477 = vsel %vm3474, %v3476, %v3472
    %v3478 = vmul.f32 1.0, %v3477
    %v3479 = vxor.u32 %v3457, 2147483648
    %v3480 = vmul.f32 %v3479, 1.442695
    %v3481 = vpow.pop %v3480
    %v3482 = vadd.f32 %v3481, 1.0
    %v3483 = vrcp.pop %v3482
    %v3484 = vmul.f32 %v3482, %v3483
    %v3485 = vsub.f32 1.0, %v3484
    %v3486 = vmul.f32 %v3483, %v3485
    %v3487 = vadd.f32 %v3483, %v3486
    %vm3488 = vweird.f32 %v3482
    %vm3489 = vweird.f32 %v3483
    %vm3490 = vmor %vm3488, %vm3489
    %v3491 = vsel %vm3490, %v3483, %v3487
    %v3492 = vand.u32 2147483647, %v3482
    %vm3493 = vcmp.eq.f32.partialorder %v3492, 8.507059e+37
    %v3494 = vand.u32 %v3482, 2147483648
    %v3495 = vor.u32 1.1754944e-38, %v3494
    %v3496 = vsel %vm3493, %v3495, %v3491
    %v3497 = vmul.f32 1.0, %v3496
    %v3498 = vtanh.pop %v3458
    %v3499 = vxor.u32 %v3459, 2147483648
    %v3500 = vmul.f32 %v3499, 1.442695
    %v3501 = vpow.pop %v3500
    %v3502 = vadd.f32 %v3501, 1.0
    %v3503 = vrcp.pop %v3502
    %v3504 = vmul.f32 %v3502, %v3503
    %v3505 = vsub.f32 1.0, %v3504
    %v3506 = vmul.f32 %v3503, %v3505
    %v3507 = vadd.f32 %v3503, %v3506
    %vm3508 = vweird.f32 %v3502
    %vm3509 = vweird.f32 %v3503
    %vm3510 = vmor %vm3508, %vm3509
    %v3511 = vsel %vm3510, %v3503, %v3507
    %v3512 = vand.u32 2147483647, %v3502
    %vm3513 = vcmp.eq.f32.partialorder %v3512, 8.507059e+37
    %v3514 = vand.u32 %v3502, 2147483648
    %v3515 = vor.u32 1.1754944e-38, %v3514
    %v3516 = vsel %vm3513, %v3515, %v3511
    %v3517 = vmul.f32 1.0, %v3516
    %3519 = vst [vmem:[#allocation1] ss:$4 sm:$0xff] %v3368
    %v3520 = vld.sshfl [vmem:[#allocation1 + $0x8] sm:$0xff pattern:$0x73625140]
    %v3522 = vmul.f32 %v3497, %v3520
    %v3523 = vmul.f32 %v3478, %v3498
    %v3524 = vadd.f32 %v3522, %v3523
    %v3525 = vtanh.pop %v3524
    %v3526 = vmul.f32 %v3517, %v3525
    %3527 = vst [vmem:[#allocation3] sm:$0x3] %v3445
    %3528 = vst [vmem:[#allocation3 + $0x2] sm:$0x3] %v3526
    %3529 = vst [vmem:[#allocation4] sm:$0x3] %v3443
    %3530 = vst [vmem:[#allocation4 + $0x2] sm:$0x3] %v3524
    %s3531 = scalar_lea.vmem %s4, 6
    %3532 = vst.msk [vmem:[%s3531] sm:$0x3] %vm1275, %v3445
    %s3533 = scalar_lea.vmem %s5, 8
    %3534 = vst.msk [vmem:[%s3533] sm:$0x3] %vm1275, %v3526
    %v3535 = vld [vmem:[#allocation3] sm:$0xf]
    %v3536 = vld [vmem:[#allocation9] sm:$0xff]
    %v3537 = vld [vmem:[#allocation9 + $0x8] sm:$0xff]
    %v3538 = vld [vmem:[#allocation9 + $0x10] sm:$0xff]
    %v3539 = vld [vmem:[#allocation9 + $0x18] sm:$0xff]
    %v3540 = vld [vmem:[#allocation9 + $0x20] sm:$0xff]
    %v3541 = vld [vmem:[#allocation9 + $0x28] sm:$0xff]
    %v3542 = vld [vmem:[#allocation9 + $0x30] sm:$0xff]
    %v3543 = vld [vmem:[#allocation9 + $0x38] sm:$0xff]
    %v3544 = vld [vmem:[#allocation9 + $0x40] sm:$0xff]
    %v3545 = vld [vmem:[#allocation9 + $0x48] sm:$0xff]
    %v3546 = vld [vmem:[#allocation9 + $0x50] sm:$0xff]
    %v3547 = vld [vmem:[#allocation9 + $0x58] sm:$0xff]
    %v3548 = vld [vmem:[#allocation9 + $0x60] sm:$0xff]
    %v3549 = vld [vmem:[#allocation9 + $0x68] sm:$0xff]
    %v3550 = vld [vmem:[#allocation9 + $0x70] sm:$0xff]
    %v3551 = vld [vmem:[#allocation9 + $0x78] sm:$0xff]
    %v3552 = vld [vmem:[#allocation9 + $0x80] sm:$0xff]
    %v3553 = vld [vmem:[#allocation9 + $0x88] sm:$0xff]
    %v3554 = vld [vmem:[#allocation9 + $0x90] sm:$0xff]
    %v3555 = vld [vmem:[#allocation9 + $0x98] sm:$0xff]
    %v3556 = vld [vmem:[#allocation9 + $0xa0] sm:$0xff]
    %v3557 = vld [vmem:[#allocation9 + $0xa8] sm:$0xff]
    %v3558 = vld [vmem:[#allocation9 + $0xb0] sm:$0xff]
    %v3559 = vld [vmem:[#allocation9 + $0xb8] sm:$0xff]
    %v3560 = vld [vmem:[#allocation9 + $0xc0] sm:$0xff]
    %v3561 = vld [vmem:[#allocation9 + $0xc8] sm:$0xff]
    %v3562 = vld [vmem:[#allocation9 + $0xd0] sm:$0xff]
    %v3563 = vld [vmem:[#allocation9 + $0xd8] sm:$0xff]
    %v3564 = vld [vmem:[#allocation9 + $0xe0] sm:$0xff]
    %v3565 = vld [vmem:[#allocation9 + $0xe8] sm:$0xff]
    %v3566 = vld [vmem:[#allocation9 + $0xf0] sm:$0xff]
    %v3567 = vld [vmem:[#allocation9 + $0xf8] sm:$0xff]
    %v3568 = vld [vmem:[#allocation9 + $0x100] sm:$0xff]
    %v3569 = vld [vmem:[#allocation9 + $0x108] sm:$0xff]
    %v3570 = vld [vmem:[#allocation9 + $0x110] sm:$0xff]
    %v3571 = vld [vmem:[#allocation9 + $0x118] sm:$0xff]
    %v3572 = vld [vmem:[#allocation9 + $0x120] sm:$0xff]
    %v3573 = vld [vmem:[#allocation9 + $0x128] sm:$0xff]
    %v3574 = vld [vmem:[#allocation9 + $0x130] sm:$0xff]
    %v3575 = vld [vmem:[#allocation9 + $0x138] sm:$0xff]
    %v3576 = vld [vmem:[#allocation9 + $0x140] sm:$0xff]
    %v3577 = vld [vmem:[#allocation9 + $0x148] sm:$0xff]
    %v3578 = vld [vmem:[#allocation9 + $0x150] sm:$0xff]
    %v3579 = vld [vmem:[#allocation9 + $0x158] sm:$0xff]
    %v3580 = vld [vmem:[#allocation9 + $0x160] sm:$0xff]
    %v3581 = vld [vmem:[#allocation9 + $0x168] sm:$0xff]
    %v3582 = vld [vmem:[#allocation9 + $0x170] sm:$0xff]
    %v3583 = vld [vmem:[#allocation9 + $0x178] sm:$0xff]
    %v3584 = vld [vmem:[#allocation9 + $0x180] sm:$0xff]
    %v3585 = vld [vmem:[#allocation9 + $0x188] sm:$0xff]
    %v3586 = vld [vmem:[#allocation9 + $0x190] sm:$0xff]
    %v3587 = vld [vmem:[#allocation9 + $0x198] sm:$0xff]
    %v3588 = vld [vmem:[#allocation9 + $0x1a0] sm:$0xff]
    %v3589 = vld [vmem:[#allocation9 + $0x1a8] sm:$0xff]
    %v3590 = vld [vmem:[#allocation9 + $0x1b0] sm:$0xff]
    %v3591 = vld [vmem:[#allocation9 + $0x1b8] sm:$0xff]
    %v3592 = vld [vmem:[#allocation9 + $0x1c0] sm:$0xff]
    %v3593 = vld [vmem:[#allocation9 + $0x1c8] sm:$0xff]
    %v3594 = vld [vmem:[#allocation9 + $0x1d0] sm:$0xff]
    %v3595 = vld [vmem:[#allocation9 + $0x1d8] sm:$0xff]
    %v3596 = vld [vmem:[#allocation9 + $0x1e0] sm:$0xff]
    %v3597 = vld [vmem:[#allocation9 + $0x1e8] sm:$0xff]
    %v3598 = vld [vmem:[#allocation9 + $0x1f0] sm:$0xff]
    %v3599 = vld [vmem:[#allocation9 + $0x1f8] sm:$0xff]
    %v3600 = vld [vmem:[#allocation9 + $0x200] sm:$0xff]
    %v3601 = vld [vmem:[#allocation9 + $0x208] sm:$0xff]
    %v3602 = vld [vmem:[#allocation9 + $0x210] sm:$0xff]
    %v3603 = vld [vmem:[#allocation9 + $0x218] sm:$0xff]
    %v3604 = vld [vmem:[#allocation9 + $0x220] sm:$0xff]
    %v3605 = vld [vmem:[#allocation9 + $0x228] sm:$0xff]
    %v3606 = vld [vmem:[#allocation9 + $0x230] sm:$0xff]
    %v3607 = vld [vmem:[#allocation9 + $0x238] sm:$0xff]
    %v3608 = vld [vmem:[#allocation9 + $0x240] sm:$0xff]
    %v3609 = vld [vmem:[#allocation9 + $0x248] sm:$0xff]
    %v3610 = vld [vmem:[#allocation9 + $0x250] sm:$0xff]
    %v3611 = vld [vmem:[#allocation9 + $0x258] sm:$0xff]
    %v3612 = vld [vmem:[#allocation9 + $0x260] sm:$0xff]
    %v3613 = vld [vmem:[#allocation9 + $0x268] sm:$0xff]
    %v3614 = vld [vmem:[#allocation9 + $0x270] sm:$0xff]
    %v3615 = vld [vmem:[#allocation9 + $0x278] sm:$0xff]
    %v3616 = vld [vmem:[#allocation9 + $0x280] sm:$0xff]
    %v3617 = vld [vmem:[#allocation9 + $0x288] sm:$0xff]
    %v3618 = vld [vmem:[#allocation9 + $0x290] sm:$0xff]
    %v3619 = vld [vmem:[#allocation9 + $0x298] sm:$0xff]
    %v3620 = vld [vmem:[#allocation9 + $0x2a0] sm:$0xff]
    %v3621 = vld [vmem:[#allocation9 + $0x2a8] sm:$0xff]
    %v3622 = vld [vmem:[#allocation9 + $0x2b0] sm:$0xff]
    %v3623 = vld [vmem:[#allocation9 + $0x2b8] sm:$0xff]
    %v3624 = vld [vmem:[#allocation9 + $0x2c0] sm:$0xff]
    %v3625 = vld [vmem:[#allocation9 + $0x2c8] sm:$0xff]
    %v3626 = vld [vmem:[#allocation9 + $0x2d0] sm:$0xff]
    %v3627 = vld [vmem:[#allocation9 + $0x2d8] sm:$0xff]
    %v3628 = vld [vmem:[#allocation9 + $0x2e0] sm:$0xff]
    %v3629 = vld [vmem:[#allocation9 + $0x2e8] sm:$0xff]
    %v3630 = vld [vmem:[#allocation9 + $0x2f0] sm:$0xff]
    %v3631 = vld [vmem:[#allocation9 + $0x2f8] sm:$0xff]
    %v3632 = vld [vmem:[#allocation9 + $0x300] sm:$0xff]
    %v3633 = vld [vmem:[#allocation9 + $0x308] sm:$0xff]
    %v3634 = vld [vmem:[#allocation9 + $0x310] sm:$0xff]
    %v3635 = vld [vmem:[#allocation9 + $0x318] sm:$0xff]
    %v3636 = vld [vmem:[#allocation9 + $0x320] sm:$0xff]
    %v3637 = vld [vmem:[#allocation9 + $0x328] sm:$0xff]
    %v3638 = vld [vmem:[#allocation9 + $0x330] sm:$0xff]
    %v3639 = vld [vmem:[#allocation9 + $0x338] sm:$0xff]
    %v3640 = vld [vmem:[#allocation9 + $0x340] sm:$0xff]
    %v3641 = vld [vmem:[#allocation9 + $0x348] sm:$0xff]
    %v3642 = vld [vmem:[#allocation9 + $0x350] sm:$0xff]
    %v3643 = vld [vmem:[#allocation9 + $0x358] sm:$0xff]
    %v3644 = vld [vmem:[#allocation9 + $0x360] sm:$0xff]
    %v3645 = vld [vmem:[#allocation9 + $0x368] sm:$0xff]
    %v3646 = vld [vmem:[#allocation9 + $0x370] sm:$0xff]
    %v3647 = vld [vmem:[#allocation9 + $0x378] sm:$0xff]
    %v3648 = vld [vmem:[#allocation9 + $0x380] sm:$0xff]
    %v3649 = vld [vmem:[#allocation9 + $0x388] sm:$0xff]
    %v3650 = vld [vmem:[#allocation9 + $0x390] sm:$0xff]
    %v3651 = vld [vmem:[#allocation9 + $0x398] sm:$0xff]
    %v3652 = vld [vmem:[#allocation9 + $0x3a0] sm:$0xff]
    %v3653 = vld [vmem:[#allocation9 + $0x3a8] sm:$0xff]
    %v3654 = vld [vmem:[#allocation9 + $0x3b0] sm:$0xff]
    %v3655 = vld [vmem:[#allocation9 + $0x3b8] sm:$0xff]
    %v3656 = vld [vmem:[#allocation9 + $0x3c0] sm:$0xff]
    %v3657 = vld [vmem:[#allocation9 + $0x3c8] sm:$0xff]
    %v3658 = vld [vmem:[#allocation9 + $0x3d0] sm:$0xff]
    %v3659 = vld [vmem:[#allocation9 + $0x3d8] sm:$0xff]
    %v3660 = vld [vmem:[#allocation9 + $0x3e0] sm:$0xff]
    %v3661 = vld [vmem:[#allocation9 + $0x3e8] sm:$0xff]
    %v3662 = vld [vmem:[#allocation9 + $0x3f0] sm:$0xff]
    %v3663 = vld [vmem:[#allocation9 + $0x3f8] sm:$0xff]
    %v3664 = vld [vmem:[#allocation9 + $0x400] sm:$0xff]
    %v3665 = vld [vmem:[#allocation9 + $0x408] sm:$0xff]
    %v3666 = vld [vmem:[#allocation9 + $0x410] sm:$0xff]
    %v3667 = vld [vmem:[#allocation9 + $0x418] sm:$0xff]
    %v3668 = vld [vmem:[#allocation9 + $0x420] sm:$0xff]
    %v3669 = vld [vmem:[#allocation9 + $0x428] sm:$0xff]
    %v3670 = vld [vmem:[#allocation9 + $0x430] sm:$0xff]
    %v3671 = vld [vmem:[#allocation9 + $0x438] sm:$0xff]
    %v3672 = vld [vmem:[#allocation9 + $0x440] sm:$0xff]
    %v3673 = vld [vmem:[#allocation9 + $0x448] sm:$0xff]
    %v3674 = vld [vmem:[#allocation9 + $0x450] sm:$0xff]
    %v3675 = vld [vmem:[#allocation9 + $0x458] sm:$0xff]
    %v3676 = vld [vmem:[#allocation9 + $0x460] sm:$0xff]
    %v3677 = vld [vmem:[#allocation9 + $0x468] sm:$0xff]
    %v3678 = vld [vmem:[#allocation9 + $0x470] sm:$0xff]
    %v3679 = vld [vmem:[#allocation9 + $0x478] sm:$0xff]
    %v3680 = vld [vmem:[#allocation9 + $0x480] sm:$0xff]
    %v3681 = vld [vmem:[#allocation9 + $0x488] sm:$0xff]
    %v3682 = vld [vmem:[#allocation9 + $0x490] sm:$0xff]
    %v3683 = vld [vmem:[#allocation9 + $0x498] sm:$0xff]
    %v3684 = vld [vmem:[#allocation9 + $0x4a0] sm:$0xff]
    %v3685 = vld [vmem:[#allocation9 + $0x4a8] sm:$0xff]
    %v3686 = vld [vmem:[#allocation9 + $0x4b0] sm:$0xff]
    %v3687 = vld [vmem:[#allocation9 + $0x4b8] sm:$0xff]
    %v3688 = vld [vmem:[#allocation9 + $0x4c0] sm:$0xff]
    %v3689 = vld [vmem:[#allocation9 + $0x4c8] sm:$0xff]
    %v3690 = vld [vmem:[#allocation9 + $0x4d0] sm:$0xff]
    %v3691 = vld [vmem:[#allocation9 + $0x4d8] sm:$0xff]
    %v3692 = vld [vmem:[#allocation9 + $0x4e0] sm:$0xff]
    %v3693 = vld [vmem:[#allocation9 + $0x4e8] sm:$0xff]
    %v3694 = vld [vmem:[#allocation9 + $0x4f0] sm:$0xff]
    %v3695 = vld [vmem:[#allocation9 + $0x4f8] sm:$0xff]
    %v3696 = vld [vmem:[#allocation9 + $0x500] sm:$0xff]
    %v3697 = vld [vmem:[#allocation9 + $0x508] sm:$0xff]
    %v3698 = vld [vmem:[#allocation9 + $0x510] sm:$0xff]
    %v3699 = vld [vmem:[#allocation9 + $0x518] sm:$0xff]
    %v3700 = vld [vmem:[#allocation9 + $0x520] sm:$0xff]
    %v3701 = vld [vmem:[#allocation9 + $0x528] sm:$0xff]
    %v3702 = vld [vmem:[#allocation9 + $0x530] sm:$0xff]
    %v3703 = vld [vmem:[#allocation9 + $0x538] sm:$0xff]
    %v3704 = vld [vmem:[#allocation9 + $0x540] sm:$0xff]
    %v3705 = vld [vmem:[#allocation9 + $0x548] sm:$0xff]
    %v3706 = vld [vmem:[#allocation9 + $0x550] sm:$0xff]
    %v3707 = vld [vmem:[#allocation9 + $0x558] sm:$0xff]
    %v3708 = vld [vmem:[#allocation9 + $0x560] sm:$0xff]
    %v3709 = vld [vmem:[#allocation9 + $0x568] sm:$0xff]
    %v3710 = vld [vmem:[#allocation9 + $0x570] sm:$0xff]
    %v3711 = vld [vmem:[#allocation9 + $0x578] sm:$0xff]
    %v3712 = vld [vmem:[#allocation9 + $0x580] sm:$0xff]
    %v3713 = vld [vmem:[#allocation9 + $0x588] sm:$0xff]
    %v3714 = vld [vmem:[#allocation9 + $0x590] sm:$0xff]
    %v3715 = vld [vmem:[#allocation9 + $0x598] sm:$0xff]
    %v3716 = vld [vmem:[#allocation9 + $0x5a0] sm:$0xff]
    %v3717 = vld [vmem:[#allocation9 + $0x5a8] sm:$0xff]
    %v3718 = vld [vmem:[#allocation9 + $0x5b0] sm:$0xff]
    %v3719 = vld [vmem:[#allocation9 + $0x5b8] sm:$0xff]
    %v3720 = vld [vmem:[#allocation9 + $0x5c0] sm:$0xff]
    %v3721 = vld [vmem:[#allocation9 + $0x5c8] sm:$0xff]
    %v3722 = vld [vmem:[#allocation9 + $0x5d0] sm:$0xff]
    %v3723 = vld [vmem:[#allocation9 + $0x5d8] sm:$0xff]
    %v3724 = vld [vmem:[#allocation9 + $0x5e0] sm:$0xff]
    %v3725 = vld [vmem:[#allocation9 + $0x5e8] sm:$0xff]
    %v3726 = vld [vmem:[#allocation9 + $0x5f0] sm:$0xff]
    %v3727 = vld [vmem:[#allocation9 + $0x5f8] sm:$0xff]
    %v3728 = vld [vmem:[#allocation9 + $0x600] sm:$0xff]
    %v3729 = vld [vmem:[#allocation9 + $0x608] sm:$0xff]
    %v3730 = vld [vmem:[#allocation9 + $0x610] sm:$0xff]
    %v3731 = vld [vmem:[#allocation9 + $0x618] sm:$0xff]
    %v3732 = vld [vmem:[#allocation9 + $0x620] sm:$0xff]
    %v3733 = vld [vmem:[#allocation9 + $0x628] sm:$0xff]
    %v3734 = vld [vmem:[#allocation9 + $0x630] sm:$0xff]
    %v3735 = vld [vmem:[#allocation9 + $0x638] sm:$0xff]
    %v3736 = vld [vmem:[#allocation9 + $0x640] sm:$0xff]
    %v3737 = vld [vmem:[#allocation9 + $0x648] sm:$0xff]
    %v3738 = vld [vmem:[#allocation9 + $0x650] sm:$0xff]
    %v3739 = vld [vmem:[#allocation9 + $0x658] sm:$0xff]
    %v3740 = vld [vmem:[#allocation9 + $0x660] sm:$0xff]
    %v3741 = vld [vmem:[#allocation9 + $0x668] sm:$0xff]
    %v3742 = vld [vmem:[#allocation9 + $0x670] sm:$0xff]
    %v3743 = vld [vmem:[#allocation9 + $0x678] sm:$0xff]
    %v3744 = vld [vmem:[#allocation9 + $0x680] sm:$0xff]
    %v3745 = vld [vmem:[#allocation9 + $0x688] sm:$0xff]
    %v3746 = vld [vmem:[#allocation9 + $0x690] sm:$0xff]
    %v3747 = vld [vmem:[#allocation9 + $0x698] sm:$0xff]
    %v3748 = vld [vmem:[#allocation9 + $0x6a0] sm:$0xff]
    %v3749 = vld [vmem:[#allocation9 + $0x6a8] sm:$0xff]
    %v3750 = vld [vmem:[#allocation9 + $0x6b0] sm:$0xff]
    %v3751 = vld [vmem:[#allocation9 + $0x6b8] sm:$0xff]
    %v3752 = vld [vmem:[#allocation9 + $0x6c0] sm:$0xff]
    %v3753 = vld [vmem:[#allocation9 + $0x6c8] sm:$0xff]
    %v3754 = vld [vmem:[#allocation9 + $0x6d0] sm:$0xff]
    %v3755 = vld [vmem:[#allocation9 + $0x6d8] sm:$0xff]
    %v3756 = vld [vmem:[#allocation9 + $0x6e0] sm:$0xff]
    %v3757 = vld [vmem:[#allocation9 + $0x6e8] sm:$0xff]
    %v3758 = vld [vmem:[#allocation9 + $0x6f0] sm:$0xff]
    %v3759 = vld [vmem:[#allocation9 + $0x6f8] sm:$0xff]
    %v3760 = vld [vmem:[#allocation9 + $0x700] sm:$0xff]
    %v3761 = vld [vmem:[#allocation9 + $0x708] sm:$0xff]
    %v3762 = vld [vmem:[#allocation9 + $0x710] sm:$0xff]
    %v3763 = vld [vmem:[#allocation9 + $0x718] sm:$0xff]
    %v3764 = vld [vmem:[#allocation9 + $0x720] sm:$0xff]
    %v3765 = vld [vmem:[#allocation9 + $0x728] sm:$0xff]
    %v3766 = vld [vmem:[#allocation9 + $0x730] sm:$0xff]
    %v3767 = vld [vmem:[#allocation9 + $0x738] sm:$0xff]
    %v3768 = vld [vmem:[#allocation9 + $0x740] sm:$0xff]
    %v3769 = vld [vmem:[#allocation9 + $0x748] sm:$0xff]
    %v3770 = vld [vmem:[#allocation9 + $0x750] sm:$0xff]
    %v3771 = vld [vmem:[#allocation9 + $0x758] sm:$0xff]
    %v3772 = vld [vmem:[#allocation9 + $0x760] sm:$0xff]
    %v3773 = vld [vmem:[#allocation9 + $0x768] sm:$0xff]
    %v3774 = vld [vmem:[#allocation9 + $0x770] sm:$0xff]
    %v3775 = vld [vmem:[#allocation9 + $0x778] sm:$0xff]
    %v3776 = vld [vmem:[#allocation9 + $0x780] sm:$0xff]
    %v3777 = vld [vmem:[#allocation9 + $0x788] sm:$0xff]
    %v3778 = vld [vmem:[#allocation9 + $0x790] sm:$0xff]
    %v3779 = vld [vmem:[#allocation9 + $0x798] sm:$0xff]
    %v3780 = vld [vmem:[#allocation9 + $0x7a0] sm:$0xff]
    %v3781 = vld [vmem:[#allocation9 + $0x7a8] sm:$0xff]
    %v3782 = vld [vmem:[#allocation9 + $0x7b0] sm:$0xff]
    %v3783 = vld [vmem:[#allocation9 + $0x7b8] sm:$0xff]
    %v3784 = vld [vmem:[#allocation9 + $0x7c0] sm:$0xff]
    %v3785 = vld [vmem:[#allocation9 + $0x7c8] sm:$0xff]
    %v3786 = vld [vmem:[#allocation9 + $0x7d0] sm:$0xff]
    %v3787 = vld [vmem:[#allocation9 + $0x7d8] sm:$0xff]
    %v3788 = vld [vmem:[#allocation9 + $0x7e0] sm:$0xff]
    %v3789 = vld [vmem:[#allocation9 + $0x7e8] sm:$0xff]
    %v3790 = vld [vmem:[#allocation9 + $0x7f0] sm:$0xff]
    %v3791 = vld [vmem:[#allocation9 + $0x7f8] sm:$0xff]
    %3793 = vst [vmem:[#allocation1] ss:$4 sm:$0xff] %v3535
    %v3794 = vld.sshfl [vmem:[#allocation1] sm:$0xff pattern:$0x73625140]
    %v3795 = vld.sshfl [vmem:[#allocation1 + $0x8] sm:$0xff pattern:$0x73625140]
    %3798 = vmatpush.msra.mxu0 %v3656
    %3799 = vmatpush.msra.mxu0 %v3648
    %3800 = vmatpush.msra.mxu0 %v3640
    %3801 = vmatpush.msra.mxu0 %v3632
    %3802 = vmatpush.msra.mxu0 %v3624
    %3803 = vmatpush.msra.mxu0 %v3616
    %3804 = vmatpush.msra.mxu0 %v3608
    %3805 = vmatpush.msra.mxu0 %v3600
    %3806 = vmatpush.msra.mxu0 %v3592
    %3807 = vmatpush.msra.mxu0 %v3584
    %3808 = vmatpush.msra.mxu0 %v3576
    %3809 = vmatpush.msra.mxu0 %v3568
    %3810 = vmatpush.msra.mxu0 %v3560
    %3811 = vmatpush.msra.mxu0 %v3552
    %3812 = vmatpush.msra.mxu0 %v3544
    %3813 = vmatpush.msra.mxu0 %v3536
    %3814 = vmatmul.f32.gmra.mxu0 %v3794
    %v3815 = vpop.f32.mrf.mxu0
    %v3816 = vadd.f32 0.0, %v3815
    %3817 = vdwg.mxu0
    %3818 = vmatpush.msra.mxu0 %v3784
    %3819 = vmatpush.msra.mxu0 %v3776
    %3820 = vmatpush.msra.mxu0 %v3768
    %3821 = vmatpush.msra.mxu0 %v3760
    %3822 = vmatpush.msra.mxu0 %v3752
    %3823 = vmatpush.msra.mxu0 %v3744
    %3824 = vmatpush.msra.mxu0 %v3736
    %3825 = vmatpush.msra.mxu0 %v3728
    %3826 = vmatpush.msra.mxu0 %v3720
    %3827 = vmatpush.msra.mxu0 %v3712
    %3828 = vmatpush.msra.mxu0 %v3704
    %3829 = vmatpush.msra.mxu0 %v3696
    %3830 = vmatpush.msra.mxu0 %v3688
    %3831 = vmatpush.msra.mxu0 %v3680
    %3832 = vmatpush.msra.mxu0 %v3672
    %3833 = vmatpush.msra.mxu0 %v3664
    %3834 = vmatmul.f32.gmra.mxu0 %v3795
    %v3835 = vpop.f32.mrf.mxu0
    %v3836 = vadd.f32 %v3816, %v3835
    %3837 = vdwg.mxu0
    %3838 = vmatpush.msra.mxu0 %v3657
    %3839 = vmatpush.msra.mxu0 %v3649
    %3840 = vmatpush.msra.mxu0 %v3641
    %3841 = vmatpush.msra.mxu0 %v3633
    %3842 = vmatpush.msra.mxu0 %v3625
    %3843 = vmatpush.msra.mxu0 %v3617
    %3844 = vmatpush.msra.mxu0 %v3609
    %3845 = vmatpush.msra.mxu0 %v3601
    %3846 = vmatpush.msra.mxu0 %v3593
    %3847 = vmatpush.msra.mxu0 %v3585
    %3848 = vmatpush.msra.mxu0 %v3577
    %3849 = vmatpush.msra.mxu0 %v3569
    %3850 = vmatpush.msra.mxu0 %v3561
    %3851 = vmatpush.msra.mxu0 %v3553
    %3852 = vmatpush.msra.mxu0 %v3545
    %3853 = vmatpush.msra.mxu0 %v3537
    %3854 = vmatmul.f32.gmra.mxu0 %v3794
    %v3855 = vpop.f32.mrf.mxu0
    %v3856 = vadd.f32 0.0, %v3855
    %3857 = vdwg.mxu0
    %3858 = vmatpush.msra.mxu0 %v3785
    %3859 = vmatpush.msra.mxu0 %v3777
    %3860 = vmatpush.msra.mxu0 %v3769
    %3861 = vmatpush.msra.mxu0 %v3761
    %3862 = vmatpush.msra.mxu0 %v3753
    %3863 = vmatpush.msra.mxu0 %v3745
    %3864 = vmatpush.msra.mxu0 %v3737
    %3865 = vmatpush.msra.mxu0 %v3729
    %3866 = vmatpush.msra.mxu0 %v3721
    %3867 = vmatpush.msra.mxu0 %v3713
    %3868 = vmatpush.msra.mxu0 %v3705
    %3869 = vmatpush.msra.mxu0 %v3697
    %3870 = vmatpush.msra.mxu0 %v3689
    %3871 = vmatpush.msra.mxu0 %v3681
    %3872 = vmatpush.msra.mxu0 %v3673
    %3873 = vmatpush.msra.mxu0 %v3665
    %3874 = vmatmul.f32.gmra.mxu0 %v3795
    %v3875 = vpop.f32.mrf.mxu0
    %v3876 = vadd.f32 %v3856, %v3875
    %3877 = vdwg.mxu0
    %3878 = vmatpush.msra.mxu0 %v3658
    %3879 = vmatpush.msra.mxu0 %v3650
    %3880 = vmatpush.msra.mxu0 %v3642
    %3881 = vmatpush.msra.mxu0 %v3634
    %3882 = vmatpush.msra.mxu0 %v3626
    %3883 = vmatpush.msra.mxu0 %v3618
    %3884 = vmatpush.msra.mxu0 %v3610
    %3885 = vmatpush.msra.mxu0 %v3602
    %3886 = vmatpush.msra.mxu0 %v3594
    %3887 = vmatpush.msra.mxu0 %v3586
    %3888 = vmatpush.msra.mxu0 %v3578
    %3889 = vmatpush.msra.mxu0 %v3570
    %3890 = vmatpush.msra.mxu0 %v3562
    %3891 = vmatpush.msra.mxu0 %v3554
    %3892 = vmatpush.msra.mxu0 %v3546
    %3893 = vmatpush.msra.mxu0 %v3538
    %3894 = vmatmul.f32.gmra.mxu0 %v3794
    %v3895 = vpop.f32.mrf.mxu0
    %v3896 = vadd.f32 0.0, %v3895
    %3897 = vdwg.mxu0
    %3898 = vmatpush.msra.mxu0 %v3786
    %3899 = vmatpush.msra.mxu0 %v3778
    %3900 = vmatpush.msra.mxu0 %v3770
    %3901 = vmatpush.msra.mxu0 %v3762
    %3902 = vmatpush.msra.mxu0 %v3754
    %3903 = vmatpush.msra.mxu0 %v3746
    %3904 = vmatpush.msra.mxu0 %v3738
    %3905 = vmatpush.msra.mxu0 %v3730
    %3906 = vmatpush.msra.mxu0 %v3722
    %3907 = vmatpush.msra.mxu0 %v3714
    %3908 = vmatpush.msra.mxu0 %v3706
    %3909 = vmatpush.msra.mxu0 %v3698
    %3910 = vmatpush.msra.mxu0 %v3690
    %3911 = vmatpush.msra.mxu0 %v3682
    %3912 = vmatpush.msra.mxu0 %v3674
    %3913 = vmatpush.msra.mxu0 %v3666
    %3914 = vmatmul.f32.gmra.mxu0 %v3795
    %v3915 = vpop.f32.mrf.mxu0
    %v3916 = vadd.f32 %v3896, %v3915
    %3917 = vdwg.mxu0
    %3918 = vmatpush.msra.mxu0 %v3659
    %3919 = vmatpush.msra.mxu0 %v3651
    %3920 = vmatpush.msra.mxu0 %v3643
    %3921 = vmatpush.msra.mxu0 %v3635
    %3922 = vmatpush.msra.mxu0 %v3627
    %3923 = vmatpush.msra.mxu0 %v3619
    %3924 = vmatpush.msra.mxu0 %v3611
    %3925 = vmatpush.msra.mxu0 %v3603
    %3926 = vmatpush.msra.mxu0 %v3595
    %3927 = vmatpush.msra.mxu0 %v3587
    %3928 = vmatpush.msra.mxu0 %v3579
    %3929 = vmatpush.msra.mxu0 %v3571
    %3930 = vmatpush.msra.mxu0 %v3563
    %3931 = vmatpush.msra.mxu0 %v3555
    %3932 = vmatpush.msra.mxu0 %v3547
    %3933 = vmatpush.msra.mxu0 %v3539
    %3934 = vmatmul.f32.gmra.mxu0 %v3794
    %v3935 = vpop.f32.mrf.mxu0
    %v3936 = vadd.f32 0.0, %v3935
    %3937 = vdwg.mxu0
    %3938 = vmatpush.msra.mxu0 %v3787
    %3939 = vmatpush.msra.mxu0 %v3779
    %3940 = vmatpush.msra.mxu0 %v3771
    %3941 = vmatpush.msra.mxu0 %v3763
    %3942 = vmatpush.msra.mxu0 %v3755
    %3943 = vmatpush.msra.mxu0 %v3747
    %3944 = vmatpush.msra.mxu0 %v3739
    %3945 = vmatpush.msra.mxu0 %v3731
    %3946 = vmatpush.msra.mxu0 %v3723
    %3947 = vmatpush.msra.mxu0 %v3715
    %3948 = vmatpush.msra.mxu0 %v3707
    %3949 = vmatpush.msra.mxu0 %v3699
    %3950 = vmatpush.msra.mxu0 %v3691
    %3951 = vmatpush.msra.mxu0 %v3683
    %3952 = vmatpush.msra.mxu0 %v3675
    %3953 = vmatpush.msra.mxu0 %v3667
    %3954 = vmatmul.f32.gmra.mxu0 %v3795
    %v3955 = vpop.f32.mrf.mxu0
    %v3956 = vadd.f32 %v3936, %v3955
    %3957 = vdwg.mxu0
    %3958 = vmatpush.msra.mxu0 %v3660
    %3959 = vmatpush.msra.mxu0 %v3652
    %3960 = vmatpush.msra.mxu0 %v3644
    %3961 = vmatpush.msra.mxu0 %v3636
    %3962 = vmatpush.msra.mxu0 %v3628
    %3963 = vmatpush.msra.mxu0 %v3620
    %3964 = vmatpush.msra.mxu0 %v3612
    %3965 = vmatpush.msra.mxu0 %v3604
    %3966 = vmatpush.msra.mxu0 %v3596
    %3967 = vmatpush.msra.mxu0 %v3588
    %3968 = vmatpush.msra.mxu0 %v3580
    %3969 = vmatpush.msra.mxu0 %v3572
    %3970 = vmatpush.msra.mxu0 %v3564
    %3971 = vmatpush.msra.mxu0 %v3556
    %3972 = vmatpush.msra.mxu0 %v3548
    %3973 = vmatpush.msra.mxu0 %v3540
    %3974 = vmatmul.f32.gmra.mxu0 %v3794
    %v3975 = vpop.f32.mrf.mxu0
    %v3976 = vadd.f32 0.0, %v3975
    %3977 = vdwg.mxu0
    %3978 = vmatpush.msra.mxu0 %v3788
    %3979 = vmatpush.msra.mxu0 %v3780
    %3980 = vmatpush.msra.mxu0 %v3772
    %3981 = vmatpush.msra.mxu0 %v3764
    %3982 = vmatpush.msra.mxu0 %v3756
    %3983 = vmatpush.msra.mxu0 %v3748
    %3984 = vmatpush.msra.mxu0 %v3740
    %3985 = vmatpush.msra.mxu0 %v3732
    %3986 = vmatpush.msra.mxu0 %v3724
    %3987 = vmatpush.msra.mxu0 %v3716
    %3988 = vmatpush.msra.mxu0 %v3708
    %3989 = vmatpush.msra.mxu0 %v3700
    %3990 = vmatpush.msra.mxu0 %v3692
    %3991 = vmatpush.msra.mxu0 %v3684
    %3992 = vmatpush.msra.mxu0 %v3676
    %3993 = vmatpush.msra.mxu0 %v3668
    %3994 = vmatmul.f32.gmra.mxu0 %v3795
    %v3995 = vpop.f32.mrf.mxu0
    %v3996 = vadd.f32 %v3976, %v3995
    %3997 = vdwg.mxu0
    %3998 = vmatpush.msra.mxu0 %v3661
    %3999 = vmatpush.msra.mxu0 %v3653
    %4000 = vmatpush.msra.mxu0 %v3645
    %4001 = vmatpush.msra.mxu0 %v3637
    %4002 = vmatpush.msra.mxu0 %v3629
    %4003 = vmatpush.msra.mxu0 %v3621
    %4004 = vmatpush.msra.mxu0 %v3613
    %4005 = vmatpush.msra.mxu0 %v3605
    %4006 = vmatpush.msra.mxu0 %v3597
    %4007 = vmatpush.msra.mxu0 %v3589
    %4008 = vmatpush.msra.mxu0 %v3581
    %4009 = vmatpush.msra.mxu0 %v3573
    %4010 = vmatpush.msra.mxu0 %v3565
    %4011 = vmatpush.msra.mxu0 %v3557
    %4012 = vmatpush.msra.mxu0 %v3549
    %4013 = vmatpush.msra.mxu0 %v3541
    %4014 = vmatmul.f32.gmra.mxu0 %v3794
    %v4015 = vpop.f32.mrf.mxu0
    %v4016 = vadd.f32 0.0, %v4015
    %4017 = vdwg.mxu0
    %4018 = vmatpush.msra.mxu0 %v3789
    %4019 = vmatpush.msra.mxu0 %v3781
    %4020 = vmatpush.msra.mxu0 %v3773
    %4021 = vmatpush.msra.mxu0 %v3765
    %4022 = vmatpush.msra.mxu0 %v3757
    %4023 = vmatpush.msra.mxu0 %v3749
    %4024 = vmatpush.msra.mxu0 %v3741
    %4025 = vmatpush.msra.mxu0 %v3733
    %4026 = vmatpush.msra.mxu0 %v3725
    %4027 = vmatpush.msra.mxu0 %v3717
    %4028 = vmatpush.msra.mxu0 %v3709
    %4029 = vmatpush.msra.mxu0 %v3701
    %4030 = vmatpush.msra.mxu0 %v3693
    %4031 = vmatpush.msra.mxu0 %v3685
    %4032 = vmatpush.msra.mxu0 %v3677
    %4033 = vmatpush.msra.mxu0 %v3669
    %4034 = vmatmul.f32.gmra.mxu0 %v3795
    %v4035 = vpop.f32.mrf.mxu0
    %v4036 = vadd.f32 %v4016, %v4035
    %4037 = vdwg.mxu0
    %4038 = vmatpush.msra.mxu0 %v3662
    %4039 = vmatpush.msra.mxu0 %v3654
    %4040 = vmatpush.msra.mxu0 %v3646
    %4041 = vmatpush.msra.mxu0 %v3638
    %4042 = vmatpush.msra.mxu0 %v3630
    %4043 = vmatpush.msra.mxu0 %v3622
    %4044 = vmatpush.msra.mxu0 %v3614
    %4045 = vmatpush.msra.mxu0 %v3606
    %4046 = vmatpush.msra.mxu0 %v3598
    %4047 = vmatpush.msra.mxu0 %v3590
    %4048 = vmatpush.msra.mxu0 %v3582
    %4049 = vmatpush.msra.mxu0 %v3574
    %4050 = vmatpush.msra.mxu0 %v3566
    %4051 = vmatpush.msra.mxu0 %v3558
    %4052 = vmatpush.msra.mxu0 %v3550
    %4053 = vmatpush.msra.mxu0 %v3542
    %4054 = vmatmul.f32.gmra.mxu0 %v3794
    %v4055 = vpop.f32.mrf.mxu0
    %v4056 = vadd.f32 0.0, %v4055
    %4057 = vdwg.mxu0
    %4058 = vmatpush.msra.mxu0 %v3790
    %4059 = vmatpush.msra.mxu0 %v3782
    %4060 = vmatpush.msra.mxu0 %v3774
    %4061 = vmatpush.msra.mxu0 %v3766
    %4062 = vmatpush.msra.mxu0 %v3758
    %4063 = vmatpush.msra.mxu0 %v3750
    %4064 = vmatpush.msra.mxu0 %v3742
    %4065 = vmatpush.msra.mxu0 %v3734
    %4066 = vmatpush.msra.mxu0 %v3726
    %4067 = vmatpush.msra.mxu0 %v3718
    %4068 = vmatpush.msra.mxu0 %v3710
    %4069 = vmatpush.msra.mxu0 %v3702
    %4070 = vmatpush.msra.mxu0 %v3694
    %4071 = vmatpush.msra.mxu0 %v3686
    %4072 = vmatpush.msra.mxu0 %v3678
    %4073 = vmatpush.msra.mxu0 %v3670
    %4074 = vmatmul.f32.gmra.mxu0 %v3795
    %v4075 = vpop.f32.mrf.mxu0
    %v4076 = vadd.f32 %v4056, %v4075
    %4077 = vdwg.mxu0
    %4078 = vmatpush.msra.mxu0 %v3663
    %4079 = vmatpush.msra.mxu0 %v3655
    %4080 = vmatpush.msra.mxu0 %v3647
    %4081 = vmatpush.msra.mxu0 %v3639
    %4082 = vmatpush.msra.mxu0 %v3631
    %4083 = vmatpush.msra.mxu0 %v3623
    %4084 = vmatpush.msra.mxu0 %v3615
    %4085 = vmatpush.msra.mxu0 %v3607
    %4086 = vmatpush.msra.mxu0 %v3599
    %4087 = vmatpush.msra.mxu0 %v3591
    %4088 = vmatpush.msra.mxu0 %v3583
    %4089 = vmatpush.msra.mxu0 %v3575
    %4090 = vmatpush.msra.mxu0 %v3567
    %4091 = vmatpush.msra.mxu0 %v3559
    %4092 = vmatpush.msra.mxu0 %v3551
    %4093 = vmatpush.msra.mxu0 %v3543
    %4094 = vmatmul.f32.gmra.mxu0 %v3794
    %v4095 = vpop.f32.mrf.mxu0
    %v4096 = vadd.f32 0.0, %v4095
    %4097 = vdwg.mxu0
    %4098 = vmatpush.msra.mxu0 %v3791
    %4099 = vmatpush.msra.mxu0 %v3783
    %4100 = vmatpush.msra.mxu0 %v3775
    %4101 = vmatpush.msra.mxu0 %v3767
    %4102 = vmatpush.msra.mxu0 %v3759
    %4103 = vmatpush.msra.mxu0 %v3751
    %4104 = vmatpush.msra.mxu0 %v3743
    %4105 = vmatpush.msra.mxu0 %v3735
    %4106 = vmatpush.msra.mxu0 %v3727
    %4107 = vmatpush.msra.mxu0 %v3719
    %4108 = vmatpush.msra.mxu0 %v3711
    %4109 = vmatpush.msra.mxu0 %v3703
    %4110 = vmatpush.msra.mxu0 %v3695
    %4111 = vmatpush.msra.mxu0 %v3687
    %4112 = vmatpush.msra.mxu0 %v3679
    %4113 = vmatpush.msra.mxu0 %v3671
    %4114 = vmatmul.f32.gmra.mxu0 %v3795
    %v4115 = vpop.f32.mrf.mxu0
    %v4116 = vadd.f32 %v4096, %v4115
    %4117 = vdwg.mxu0
    %v4118 = vld [vmem:[%s471] sm:$0xff]
    %v4119 = vld [vmem:[%s446 + $0x8] sm:$0xff]
    %v4120 = vld [vmem:[#allocation4] sm:$0xf]
    %4122 = vst [vmem:[#allocation1] ss:$4 sm:$0xff] %v4118
    %v4123 = vld.sshfl [vmem:[#allocation1] sm:$0xff pattern:$0x73625140]
    %v4124 = vld.sshfl [vmem:[#allocation1 + $0x8] sm:$0xff pattern:$0x73625140]
    %v4125 = vld.sshfl [vmem:[#allocation1 + $0x10] sm:$0xff pattern:$0x73625140]
    %v4126 = vld.sshfl [vmem:[#allocation1 + $0x18] sm:$0xff pattern:$0x73625140]
    %v4131 = vadd.f32 %v3836, %v4123
    %v4132 = vadd.f32 %v3876, %v4124
    %v4133 = vadd.f32 %v3916, %v4125
    %v4134 = vadd.f32 %v3956, %v4126
    %v4135 = vxor.u32 %v4131, 2147483648
    %v4136 = vmul.f32 %v4135, 1.442695
    %v4137 = vpow.pop %v4136
    %v4138 = vadd.f32 %v4137, 1.0
    %v4139 = vrcp.pop %v4138
    %v4140 = vmul.f32 %v4138, %v4139
    %v4141 = vsub.f32 1.0, %v4140
    %v4142 = vmul.f32 %v4139, %v4141
    %v4143 = vadd.f32 %v4139, %v4142
    %vm4144 = vweird.f32 %v4138
    %vm4145 = vweird.f32 %v4139
    %vm4146 = vmor %vm4144, %vm4145
    %v4147 = vsel %vm4146, %v4139, %v4143
    %v4148 = vand.u32 2147483647, %v4138
    %vm4149 = vcmp.eq.f32.partialorder %v4148, 8.507059e+37
    %v4150 = vand.u32 %v4138, 2147483648
    %v4151 = vor.u32 1.1754944e-38, %v4150
    %v4152 = vsel %vm4149, %v4151, %v4147
    %v4153 = vmul.f32 1.0, %v4152
    %v4154 = vxor.u32 %v4132, 2147483648
    %v4155 = vmul.f32 %v4154, 1.442695
    %v4156 = vpow.pop %v4155
    %v4157 = vadd.f32 %v4156, 1.0
    %v4158 = vrcp.pop %v4157
    %v4159 = vmul.f32 %v4157, %v4158
    %v4160 = vsub.f32 1.0, %v4159
    %v4161 = vmul.f32 %v4158, %v4160
    %v4162 = vadd.f32 %v4158, %v4161
    %vm4163 = vweird.f32 %v4157
    %vm4164 = vweird.f32 %v4158
    %vm4165 = vmor %vm4163, %vm4164
    %v4166 = vsel %vm4165, %v4158, %v4162
    %v4167 = vand.u32 2147483647, %v4157
    %vm4168 = vcmp.eq.f32.partialorder %v4167, 8.507059e+37
    %v4169 = vand.u32 %v4157, 2147483648
    %v4170 = vor.u32 1.1754944e-38, %v4169
    %v4171 = vsel %vm4168, %v4170, %v4166
    %v4172 = vmul.f32 1.0, %v4171
    %v4173 = vtanh.pop %v4133
    %v4174 = vxor.u32 %v4134, 2147483648
    %v4175 = vmul.f32 %v4174, 1.442695
    %v4176 = vpow.pop %v4175
    %v4177 = vadd.f32 %v4176, 1.0
    %v4178 = vrcp.pop %v4177
    %v4179 = vmul.f32 %v4177, %v4178
    %v4180 = vsub.f32 1.0, %v4179
    %v4181 = vmul.f32 %v4178, %v4180
    %v4182 = vadd.f32 %v4178, %v4181
    %vm4183 = vweird.f32 %v4177
    %vm4184 = vweird.f32 %v4178
    %vm4185 = vmor %vm4183, %vm4184
    %v4186 = vsel %vm4185, %v4178, %v4182
    %v4187 = vand.u32 2147483647, %v4177
    %vm4188 = vcmp.eq.f32.partialorder %v4187, 8.507059e+37
    %v4189 = vand.u32 %v4177, 2147483648
    %v4190 = vor.u32 1.1754944e-38, %v4189
    %v4191 = vsel %vm4188, %v4190, %v4186
    %v4192 = vmul.f32 1.0, %v4191
    %v4193 = vmul.f32 %v4172, %v4120
    %v4194 = vmul.f32 %v4153, %v4173
    %v4195 = vadd.f32 %v4193, %v4194
    %v4196 = vtanh.pop %v4195
    %v4197 = vmul.f32 %v4192, %v4196
    %4199 = vst [vmem:[#allocation1] ss:$4 sm:$0xff] %v4119
    %v4200 = vld.sshfl [vmem:[#allocation1] sm:$0xff pattern:$0x73625140]
    %v4201 = vld.sshfl [vmem:[#allocation1 + $0x8] sm:$0xff pattern:$0x73625140]
    %v4202 = vld.sshfl [vmem:[#allocation1 + $0x10] sm:$0xff pattern:$0x73625140]
    %v4203 = vld.sshfl [vmem:[#allocation1 + $0x18] sm:$0xff pattern:$0x73625140]
    %v4208 = vadd.f32 %v3996, %v4200
    %v4209 = vadd.f32 %v4036, %v4201
    %v4210 = vadd.f32 %v4076, %v4202
    %v4211 = vadd.f32 %v4116, %v4203
    %v4212 = vxor.u32 %v4208, 2147483648
    %v4213 = vmul.f32 %v4212, 1.442695
    %v4214 = vpow.pop %v4213
    %v4215 = vadd.f32 %v4214, 1.0
    %v4216 = vrcp.pop %v4215
    %v4217 = vmul.f32 %v4215, %v4216
    %v4218 = vsub.f32 1.0, %v4217
    %v4219 = vmul.f32 %v4216, %v4218
    %v4220 = vadd.f32 %v4216, %v4219
    %vm4221 = vweird.f32 %v4215
    %vm4222 = vweird.f32 %v4216
    %vm4223 = vmor %vm4221, %vm4222
    %v4224 = vsel %vm4223, %v4216, %v4220
    %v4225 = vand.u32 2147483647, %v4215
    %vm4226 = vcmp.eq.f32.partialorder %v4225, 8.507059e+37
    %v4227 = vand.u32 %v4215, 2147483648
    %v4228 = vor.u32 1.1754944e-38, %v4227
    %v4229 = vsel %vm4226, %v4228, %v4224
    %v4230 = vmul.f32 1.0, %v4229
    %v4231 = vxor.u32 %v4209, 2147483648
    %v4232 = vmul.f32 %v4231, 1.442695
    %v4233 = vpow.pop %v4232
    %v4234 = vadd.f32 %v4233, 1.0
    %v4235 = vrcp.pop %v4234
    %v4236 = vmul.f32 %v4234, %v4235
    %v4237 = vsub.f32 1.0, %v4236
    %v4238 = vmul.f32 %v4235, %v4237
    %v4239 = vadd.f32 %v4235, %v4238
    %vm4240 = vweird.f32 %v4234
    %vm4241 = vweird.f32 %v4235
    %vm4242 = vmor %vm4240, %vm4241
    %v4243 = vsel %vm4242, %v4235, %v4239
    %v4244 = vand.u32 2147483647, %v4234
    %vm4245 = vcmp.eq.f32.partialorder %v4244, 8.507059e+37
    %v4246 = vand.u32 %v4234, 2147483648
    %v4247 = vor.u32 1.1754944e-38, %v4246
    %v4248 = vsel %vm4245, %v4247, %v4243
    %v4249 = vmul.f32 1.0, %v4248
    %v4250 = vtanh.pop %v4210
    %v4251 = vxor.u32 %v4211, 2147483648
    %v4252 = vmul.f32 %v4251, 1.442695
    %v4253 = vpow.pop %v4252
    %v4254 = vadd.f32 %v4253, 1.0
    %v4255 = vrcp.pop %v4254
    %v4256 = vmul.f32 %v4254, %v4255
    %v4257 = vsub.f32 1.0, %v4256
    %v4258 = vmul.f32 %v4255, %v4257
    %v4259 = vadd.f32 %v4255, %v4258
    %vm4260 = vweird.f32 %v4254
    %vm4261 = vweird.f32 %v4255
    %vm4262 = vmor %vm4260, %vm4261
    %v4263 = vsel %vm4262, %v4255, %v4259
    %v4264 = vand.u32 2147483647, %v4254
    %vm4265 = vcmp.eq.f32.partialorder %v4264, 8.507059e+37
    %v4266 = vand.u32 %v4254, 2147483648
    %v4267 = vor.u32 1.1754944e-38, %v4266
    %v4268 = vsel %vm4265, %v4267, %v4263
    %v4269 = vmul.f32 1.0, %v4268
    %4271 = vst [vmem:[#allocation1] ss:$4 sm:$0xff] %v4120
    %v4272 = vld.sshfl [vmem:[#allocation1 + $0x8] sm:$0xff pattern:$0x73625140]
    %v4274 = vmul.f32 %v4249, %v4272
    %v4275 = vmul.f32 %v4230, %v4250
    %v4276 = vadd.f32 %v4274, %v4275
    %v4277 = vtanh.pop %v4276
    %v4278 = vmul.f32 %v4269, %v4277
    %4279 = vst [vmem:[#allocation3] sm:$0x3] %v4197
    %4280 = vst [vmem:[#allocation3 + $0x2] sm:$0x3] %v4278
    %4281 = vst [vmem:[#allocation4] sm:$0x3] %v4195
    %4282 = vst [vmem:[#allocation4 + $0x2] sm:$0x3] %v4276
    %s4283 = scalar_lea.vmem %s4, 8
    %4284 = vst.msk [vmem:[%s4283] sm:$0x3] %vm1275, %v4197
    %s4285 = scalar_lea.vmem %s5, 6
    %4286 = vst.msk [vmem:[%s4285] sm:$0x3] %vm1275, %v4278
    %v4287 = vld [vmem:[#allocation3] sm:$0xf]
    %v4288 = vld [vmem:[#allocation9] sm:$0xff]
    %v4289 = vld [vmem:[#allocation9 + $0x8] sm:$0xff]
    %v4290 = vld [vmem:[#allocation9 + $0x10] sm:$0xff]
    %v4291 = vld [vmem:[#allocation9 + $0x18] sm:$0xff]
    %v4292 = vld [vmem:[#allocation9 + $0x20] sm:$0xff]
    %v4293 = vld [vmem:[#allocation9 + $0x28] sm:$0xff]
    %v4294 = vld [vmem:[#allocation9 + $0x30] sm:$0xff]
    %v4295 = vld [vmem:[#allocation9 + $0x38] sm:$0xff]
    %v4296 = vld [vmem:[#allocation9 + $0x40] sm:$0xff]
    %v4297 = vld [vmem:[#allocation9 + $0x48] sm:$0xff]
    %v4298 = vld [vmem:[#allocation9 + $0x50] sm:$0xff]
    %v4299 = vld [vmem:[#allocation9 + $0x58] sm:$0xff]
    %v4300 = vld [vmem:[#allocation9 + $0x60] sm:$0xff]
    %v4301 = vld [vmem:[#allocation9 + $0x68] sm:$0xff]
    %v4302 = vld [vmem:[#allocation9 + $0x70] sm:$0xff]
    %v4303 = vld [vmem:[#allocation9 + $0x78] sm:$0xff]
    %v4304 = vld [vmem:[#allocation9 + $0x80] sm:$0xff]
    %v4305 = vld [vmem:[#allocation9 + $0x88] sm:$0xff]
    %v4306 = vld [vmem:[#allocation9 + $0x90] sm:$0xff]
    %v4307 = vld [vmem:[#allocation9 + $0x98] sm:$0xff]
    %v4308 = vld [vmem:[#allocation9 + $0xa0] sm:$0xff]
    %v4309 = vld [vmem:[#allocation9 + $0xa8] sm:$0xff]
    %v4310 = vld [vmem:[#allocation9 + $0xb0] sm:$0xff]
    %v4311 = vld [vmem:[#allocation9 + $0xb8] sm:$0xff]
    %v4312 = vld [vmem:[#allocation9 + $0xc0] sm:$0xff]
    %v4313 = vld [vmem:[#allocation9 + $0xc8] sm:$0xff]
    %v4314 = vld [vmem:[#allocation9 + $0xd0] sm:$0xff]
    %v4315 = vld [vmem:[#allocation9 + $0xd8] sm:$0xff]
    %v4316 = vld [vmem:[#allocation9 + $0xe0] sm:$0xff]
    %v4317 = vld [vmem:[#allocation9 + $0xe8] sm:$0xff]
    %v4318 = vld [vmem:[#allocation9 + $0xf0] sm:$0xff]
    %v4319 = vld [vmem:[#allocation9 + $0xf8] sm:$0xff]
    %v4320 = vld [vmem:[#allocation9 + $0x100] sm:$0xff]
    %v4321 = vld [vmem:[#allocation9 + $0x108] sm:$0xff]
    %v4322 = vld [vmem:[#allocation9 + $0x110] sm:$0xff]
    %v4323 = vld [vmem:[#allocation9 + $0x118] sm:$0xff]
    %v4324 = vld [vmem:[#allocation9 + $0x120] sm:$0xff]
    %v4325 = vld [vmem:[#allocation9 + $0x128] sm:$0xff]
    %v4326 = vld [vmem:[#allocation9 + $0x130] sm:$0xff]
    %v4327 = vld [vmem:[#allocation9 + $0x138] sm:$0xff]
    %v4328 = vld [vmem:[#allocation9 + $0x140] sm:$0xff]
    %v4329 = vld [vmem:[#allocation9 + $0x148] sm:$0xff]
    %v4330 = vld [vmem:[#allocation9 + $0x150] sm:$0xff]
    %v4331 = vld [vmem:[#allocation9 + $0x158] sm:$0xff]
    %v4332 = vld [vmem:[#allocation9 + $0x160] sm:$0xff]
    %v4333 = vld [vmem:[#allocation9 + $0x168] sm:$0xff]
    %v4334 = vld [vmem:[#allocation9 + $0x170] sm:$0xff]
    %v4335 = vld [vmem:[#allocation9 + $0x178] sm:$0xff]
    %v4336 = vld [vmem:[#allocation9 + $0x180] sm:$0xff]
    %v4337 = vld [vmem:[#allocation9 + $0x188] sm:$0xff]
    %v4338 = vld [vmem:[#allocation9 + $0x190] sm:$0xff]
    %v4339 = vld [vmem:[#allocation9 + $0x198] sm:$0xff]
    %v4340 = vld [vmem:[#allocation9 + $0x1a0] sm:$0xff]
    %v4341 = vld [vmem:[#allocation9 + $0x1a8] sm:$0xff]
    %v4342 = vld [vmem:[#allocation9 + $0x1b0] sm:$0xff]
    %v4343 = vld [vmem:[#allocation9 + $0x1b8] sm:$0xff]
    %v4344 = vld [vmem:[#allocation9 + $0x1c0] sm:$0xff]
    %v4345 = vld [vmem:[#allocation9 + $0x1c8] sm:$0xff]
    %v4346 = vld [vmem:[#allocation9 + $0x1d0] sm:$0xff]
    %v4347 = vld [vmem:[#allocation9 + $0x1d8] sm:$0xff]
    %v4348 = vld [vmem:[#allocation9 + $0x1e0] sm:$0xff]
    %v4349 = vld [vmem:[#allocation9 + $0x1e8] sm:$0xff]
    %v4350 = vld [vmem:[#allocation9 + $0x1f0] sm:$0xff]
    %v4351 = vld [vmem:[#allocation9 + $0x1f8] sm:$0xff]
    %v4352 = vld [vmem:[#allocation9 + $0x200] sm:$0xff]
    %v4353 = vld [vmem:[#allocation9 + $0x208] sm:$0xff]
    %v4354 = vld [vmem:[#allocation9 + $0x210] sm:$0xff]
    %v4355 = vld [vmem:[#allocation9 + $0x218] sm:$0xff]
    %v4356 = vld [vmem:[#allocation9 + $0x220] sm:$0xff]
    %v4357 = vld [vmem:[#allocation9 + $0x228] sm:$0xff]
    %v4358 = vld [vmem:[#allocation9 + $0x230] sm:$0xff]
    %v4359 = vld [vmem:[#allocation9 + $0x238] sm:$0xff]
    %v4360 = vld [vmem:[#allocation9 + $0x240] sm:$0xff]
    %v4361 = vld [vmem:[#allocation9 + $0x248] sm:$0xff]
    %v4362 = vld [vmem:[#allocation9 + $0x250] sm:$0xff]
    %v4363 = vld [vmem:[#allocation9 + $0x258] sm:$0xff]
    %v4364 = vld [vmem:[#allocation9 + $0x260] sm:$0xff]
    %v4365 = vld [vmem:[#allocation9 + $0x268] sm:$0xff]
    %v4366 = vld [vmem:[#allocation9 + $0x270] sm:$0xff]
    %v4367 = vld [vmem:[#allocation9 + $0x278] sm:$0xff]
    %v4368 = vld [vmem:[#allocation9 + $0x280] sm:$0xff]
    %v4369 = vld [vmem:[#allocation9 + $0x288] sm:$0xff]
    %v4370 = vld [vmem:[#allocation9 + $0x290] sm:$0xff]
    %v4371 = vld [vmem:[#allocation9 + $0x298] sm:$0xff]
    %v4372 = vld [vmem:[#allocation9 + $0x2a0] sm:$0xff]
    %v4373 = vld [vmem:[#allocation9 + $0x2a8] sm:$0xff]
    %v4374 = vld [vmem:[#allocation9 + $0x2b0] sm:$0xff]
    %v4375 = vld [vmem:[#allocation9 + $0x2b8] sm:$0xff]
    %v4376 = vld [vmem:[#allocation9 + $0x2c0] sm:$0xff]
    %v4377 = vld [vmem:[#allocation9 + $0x2c8] sm:$0xff]
    %v4378 = vld [vmem:[#allocation9 + $0x2d0] sm:$0xff]
    %v4379 = vld [vmem:[#allocation9 + $0x2d8] sm:$0xff]
    %v4380 = vld [vmem:[#allocation9 + $0x2e0] sm:$0xff]
    %v4381 = vld [vmem:[#allocation9 + $0x2e8] sm:$0xff]
    %v4382 = vld [vmem:[#allocation9 + $0x2f0] sm:$0xff]
    %v4383 = vld [vmem:[#allocation9 + $0x2f8] sm:$0xff]
    %v4384 = vld [vmem:[#allocation9 + $0x300] sm:$0xff]
    %v4385 = vld [vmem:[#allocation9 + $0x308] sm:$0xff]
    %v4386 = vld [vmem:[#allocation9 + $0x310] sm:$0xff]
    %v4387 = vld [vmem:[#allocation9 + $0x318] sm:$0xff]
    %v4388 = vld [vmem:[#allocation9 + $0x320] sm:$0xff]
    %v4389 = vld [vmem:[#allocation9 + $0x328] sm:$0xff]
    %v4390 = vld [vmem:[#allocation9 + $0x330] sm:$0xff]
    %v4391 = vld [vmem:[#allocation9 + $0x338] sm:$0xff]
    %v4392 = vld [vmem:[#allocation9 + $0x340] sm:$0xff]
    %v4393 = vld [vmem:[#allocation9 + $0x348] sm:$0xff]
    %v4394 = vld [vmem:[#allocation9 + $0x350] sm:$0xff]
    %v4395 = vld [vmem:[#allocation9 + $0x358] sm:$0xff]
    %v4396 = vld [vmem:[#allocation9 + $0x360] sm:$0xff]
    %v4397 = vld [vmem:[#allocation9 + $0x368] sm:$0xff]
    %v4398 = vld [vmem:[#allocation9 + $0x370] sm:$0xff]
    %v4399 = vld [vmem:[#allocation9 + $0x378] sm:$0xff]
    %v4400 = vld [vmem:[#allocation9 + $0x380] sm:$0xff]
    %v4401 = vld [vmem:[#allocation9 + $0x388] sm:$0xff]
    %v4402 = vld [vmem:[#allocation9 + $0x390] sm:$0xff]
    %v4403 = vld [vmem:[#allocation9 + $0x398] sm:$0xff]
    %v4404 = vld [vmem:[#allocation9 + $0x3a0] sm:$0xff]
    %v4405 = vld [vmem:[#allocation9 + $0x3a8] sm:$0xff]
    %v4406 = vld [vmem:[#allocation9 + $0x3b0] sm:$0xff]
    %v4407 = vld [vmem:[#allocation9 + $0x3b8] sm:$0xff]
    %v4408 = vld [vmem:[#allocation9 + $0x3c0] sm:$0xff]
    %v4409 = vld [vmem:[#allocation9 + $0x3c8] sm:$0xff]
    %v4410 = vld [vmem:[#allocation9 + $0x3d0] sm:$0xff]
    %v4411 = vld [vmem:[#allocation9 + $0x3d8] sm:$0xff]
    %v4412 = vld [vmem:[#allocation9 + $0x3e0] sm:$0xff]
    %v4413 = vld [vmem:[#allocation9 + $0x3e8] sm:$0xff]
    %v4414 = vld [vmem:[#allocation9 + $0x3f0] sm:$0xff]
    %v4415 = vld [vmem:[#allocation9 + $0x3f8] sm:$0xff]
    %v4416 = vld [vmem:[#allocation9 + $0x400] sm:$0xff]
    %v4417 = vld [vmem:[#allocation9 + $0x408] sm:$0xff]
    %v4418 = vld [vmem:[#allocation9 + $0x410] sm:$0xff]
    %v4419 = vld [vmem:[#allocation9 + $0x418] sm:$0xff]
    %v4420 = vld [vmem:[#allocation9 + $0x420] sm:$0xff]
    %v4421 = vld [vmem:[#allocation9 + $0x428] sm:$0xff]
    %v4422 = vld [vmem:[#allocation9 + $0x430] sm:$0xff]
    %v4423 = vld [vmem:[#allocation9 + $0x438] sm:$0xff]
    %v4424 = vld [vmem:[#allocation9 + $0x440] sm:$0xff]
    %v4425 = vld [vmem:[#allocation9 + $0x448] sm:$0xff]
    %v4426 = vld [vmem:[#allocation9 + $0x450] sm:$0xff]
    %v4427 = vld [vmem:[#allocation9 + $0x458] sm:$0xff]
    %v4428 = vld [vmem:[#allocation9 + $0x460] sm:$0xff]
    %v4429 = vld [vmem:[#allocation9 + $0x468] sm:$0xff]
    %v4430 = vld [vmem:[#allocation9 + $0x470] sm:$0xff]
    %v4431 = vld [vmem:[#allocation9 + $0x478] sm:$0xff]
    %v4432 = vld [vmem:[#allocation9 + $0x480] sm:$0xff]
    %v4433 = vld [vmem:[#allocation9 + $0x488] sm:$0xff]
    %v4434 = vld [vmem:[#allocation9 + $0x490] sm:$0xff]
    %v4435 = vld [vmem:[#allocation9 + $0x498] sm:$0xff]
    %v4436 = vld [vmem:[#allocation9 + $0x4a0] sm:$0xff]
    %v4437 = vld [vmem:[#allocation9 + $0x4a8] sm:$0xff]
    %v4438 = vld [vmem:[#allocation9 + $0x4b0] sm:$0xff]
    %v4439 = vld [vmem:[#allocation9 + $0x4b8] sm:$0xff]
    %v4440 = vld [vmem:[#allocation9 + $0x4c0] sm:$0xff]
    %v4441 = vld [vmem:[#allocation9 + $0x4c8] sm:$0xff]
    %v4442 = vld [vmem:[#allocation9 + $0x4d0] sm:$0xff]
    %v4443 = vld [vmem:[#allocation9 + $0x4d8] sm:$0xff]
    %v4444 = vld [vmem:[#allocation9 + $0x4e0] sm:$0xff]
    %v4445 = vld [vmem:[#allocation9 + $0x4e8] sm:$0xff]
    %v4446 = vld [vmem:[#allocation9 + $0x4f0] sm:$0xff]
    %v4447 = vld [vmem:[#allocation9 + $0x4f8] sm:$0xff]
    %v4448 = vld [vmem:[#allocation9 + $0x500] sm:$0xff]
    %v4449 = vld [vmem:[#allocation9 + $0x508] sm:$0xff]
    %v4450 = vld [vmem:[#allocation9 + $0x510] sm:$0xff]
    %v4451 = vld [vmem:[#allocation9 + $0x518] sm:$0xff]
    %v4452 = vld [vmem:[#allocation9 + $0x520] sm:$0xff]
    %v4453 = vld [vmem:[#allocation9 + $0x528] sm:$0xff]
    %v4454 = vld [vmem:[#allocation9 + $0x530] sm:$0xff]
    %v4455 = vld [vmem:[#allocation9 + $0x538] sm:$0xff]
    %v4456 = vld [vmem:[#allocation9 + $0x540] sm:$0xff]
    %v4457 = vld [vmem:[#allocation9 + $0x548] sm:$0xff]
    %v4458 = vld [vmem:[#allocation9 + $0x550] sm:$0xff]
    %v4459 = vld [vmem:[#allocation9 + $0x558] sm:$0xff]
    %v4460 = vld [vmem:[#allocation9 + $0x560] sm:$0xff]
    %v4461 = vld [vmem:[#allocation9 + $0x568] sm:$0xff]
    %v4462 = vld [vmem:[#allocation9 + $0x570] sm:$0xff]
    %v4463 = vld [vmem:[#allocation9 + $0x578] sm:$0xff]
    %v4464 = vld [vmem:[#allocation9 + $0x580] sm:$0xff]
    %v4465 = vld [vmem:[#allocation9 + $0x588] sm:$0xff]
    %v4466 = vld [vmem:[#allocation9 + $0x590] sm:$0xff]
    %v4467 = vld [vmem:[#allocation9 + $0x598] sm:$0xff]
    %v4468 = vld [vmem:[#allocation9 + $0x5a0] sm:$0xff]
    %v4469 = vld [vmem:[#allocation9 + $0x5a8] sm:$0xff]
    %v4470 = vld [vmem:[#allocation9 + $0x5b0] sm:$0xff]
    %v4471 = vld [vmem:[#allocation9 + $0x5b8] sm:$0xff]
    %v4472 = vld [vmem:[#allocation9 + $0x5c0] sm:$0xff]
    %v4473 = vld [vmem:[#allocation9 + $0x5c8] sm:$0xff]
    %v4474 = vld [vmem:[#allocation9 + $0x5d0] sm:$0xff]
    %v4475 = vld [vmem:[#allocation9 + $0x5d8] sm:$0xff]
    %v4476 = vld [vmem:[#allocation9 + $0x5e0] sm:$0xff]
    %v4477 = vld [vmem:[#allocation9 + $0x5e8] sm:$0xff]
    %v4478 = vld [vmem:[#allocation9 + $0x5f0] sm:$0xff]
    %v4479 = vld [vmem:[#allocation9 + $0x5f8] sm:$0xff]
    %v4480 = vld [vmem:[#allocation9 + $0x600] sm:$0xff]
    %v4481 = vld [vmem:[#allocation9 + $0x608] sm:$0xff]
    %v4482 = vld [vmem:[#allocation9 + $0x610] sm:$0xff]
    %v4483 = vld [vmem:[#allocation9 + $0x618] sm:$0xff]
    %v4484 = vld [vmem:[#allocation9 + $0x620] sm:$0xff]
    %v4485 = vld [vmem:[#allocation9 + $0x628] sm:$0xff]
    %v4486 = vld [vmem:[#allocation9 + $0x630] sm:$0xff]
    %v4487 = vld [vmem:[#allocation9 + $0x638] sm:$0xff]
    %v4488 = vld [vmem:[#allocation9 + $0x640] sm:$0xff]
    %v4489 = vld [vmem:[#allocation9 + $0x648] sm:$0xff]
    %v4490 = vld [vmem:[#allocation9 + $0x650] sm:$0xff]
    %v4491 = vld [vmem:[#allocation9 + $0x658] sm:$0xff]
    %v4492 = vld [vmem:[#allocation9 + $0x660] sm:$0xff]
    %v4493 = vld [vmem:[#allocation9 + $0x668] sm:$0xff]
    %v4494 = vld [vmem:[#allocation9 + $0x670] sm:$0xff]
    %v4495 = vld [vmem:[#allocation9 + $0x678] sm:$0xff]
    %v4496 = vld [vmem:[#allocation9 + $0x680] sm:$0xff]
    %v4497 = vld [vmem:[#allocation9 + $0x688] sm:$0xff]
    %v4498 = vld [vmem:[#allocation9 + $0x690] sm:$0xff]
    %v4499 = vld [vmem:[#allocation9 + $0x698] sm:$0xff]
    %v4500 = vld [vmem:[#allocation9 + $0x6a0] sm:$0xff]
    %v4501 = vld [vmem:[#allocation9 + $0x6a8] sm:$0xff]
    %v4502 = vld [vmem:[#allocation9 + $0x6b0] sm:$0xff]
    %v4503 = vld [vmem:[#allocation9 + $0x6b8] sm:$0xff]
    %v4504 = vld [vmem:[#allocation9 + $0x6c0] sm:$0xff]
    %v4505 = vld [vmem:[#allocation9 + $0x6c8] sm:$0xff]
    %v4506 = vld [vmem:[#allocation9 + $0x6d0] sm:$0xff]
    %v4507 = vld [vmem:[#allocation9 + $0x6d8] sm:$0xff]
    %v4508 = vld [vmem:[#allocation9 + $0x6e0] sm:$0xff]
    %v4509 = vld [vmem:[#allocation9 + $0x6e8] sm:$0xff]
    %v4510 = vld [vmem:[#allocation9 + $0x6f0] sm:$0xff]
    %v4511 = vld [vmem:[#allocation9 + $0x6f8] sm:$0xff]
    %v4512 = vld [vmem:[#allocation9 + $0x700] sm:$0xff]
    %v4513 = vld [vmem:[#allocation9 + $0x708] sm:$0xff]
    %v4514 = vld [vmem:[#allocation9 + $0x710] sm:$0xff]
    %v4515 = vld [vmem:[#allocation9 + $0x718] sm:$0xff]
    %v4516 = vld [vmem:[#allocation9 + $0x720] sm:$0xff]
    %v4517 = vld [vmem:[#allocation9 + $0x728] sm:$0xff]
    %v4518 = vld [vmem:[#allocation9 + $0x730] sm:$0xff]
    %v4519 = vld [vmem:[#allocation9 + $0x738] sm:$0xff]
    %v4520 = vld [vmem:[#allocation9 + $0x740] sm:$0xff]
    %v4521 = vld [vmem:[#allocation9 + $0x748] sm:$0xff]
    %v4522 = vld [vmem:[#allocation9 + $0x750] sm:$0xff]
    %v4523 = vld [vmem:[#allocation9 + $0x758] sm:$0xff]
    %v4524 = vld [vmem:[#allocation9 + $0x760] sm:$0xff]
    %v4525 = vld [vmem:[#allocation9 + $0x768] sm:$0xff]
    %v4526 = vld [vmem:[#allocation9 + $0x770] sm:$0xff]
    %v4527 = vld [vmem:[#allocation9 + $0x778] sm:$0xff]
    %v4528 = vld [vmem:[#allocation9 + $0x780] sm:$0xff]
    %v4529 = vld [vmem:[#allocation9 + $0x788] sm:$0xff]
    %v4530 = vld [vmem:[#allocation9 + $0x790] sm:$0xff]
    %v4531 = vld [vmem:[#allocation9 + $0x798] sm:$0xff]
    %v4532 = vld [vmem:[#allocation9 + $0x7a0] sm:$0xff]
    %v4533 = vld [vmem:[#allocation9 + $0x7a8] sm:$0xff]
    %v4534 = vld [vmem:[#allocation9 + $0x7b0] sm:$0xff]
    %v4535 = vld [vmem:[#allocation9 + $0x7b8] sm:$0xff]
    %v4536 = vld [vmem:[#allocation9 + $0x7c0] sm:$0xff]
    %v4537 = vld [vmem:[#allocation9 + $0x7c8] sm:$0xff]
    %v4538 = vld [vmem:[#allocation9 + $0x7d0] sm:$0xff]
    %v4539 = vld [vmem:[#allocation9 + $0x7d8] sm:$0xff]
    %v4540 = vld [vmem:[#allocation9 + $0x7e0] sm:$0xff]
    %v4541 = vld [vmem:[#allocation9 + $0x7e8] sm:$0xff]
    %v4542 = vld [vmem:[#allocation9 + $0x7f0] sm:$0xff]
    %v4543 = vld [vmem:[#allocation9 + $0x7f8] sm:$0xff]
    %4545 = vst [vmem:[#allocation1] ss:$4 sm:$0xff] %v4287
    %v4546 = vld.sshfl [vmem:[#allocation1] sm:$0xff pattern:$0x73625140]
    %v4547 = vld.sshfl [vmem:[#allocation1 + $0x8] sm:$0xff pattern:$0x73625140]
    %4550 = vmatpush.msra.mxu0 %v4408
    %4551 = vmatpush.msra.mxu0 %v4400
    %4552 = vmatpush.msra.mxu0 %v4392
    %4553 = vmatpush.msra.mxu0 %v4384
    %4554 = vmatpush.msra.mxu0 %v4376
    %4555 = vmatpush.msra.mxu0 %v4368
    %4556 = vmatpush.msra.mxu0 %v4360
    %4557 = vmatpush.msra.mxu0 %v4352
    %4558 = vmatpush.msra.mxu0 %v4344
    %4559 = vmatpush.msra.mxu0 %v4336
    %4560 = vmatpush.msra.mxu0 %v4328
    %4561 = vmatpush.msra.mxu0 %v4320
    %4562 = vmatpush.msra.mxu0 %v4312
    %4563 = vmatpush.msra.mxu0 %v4304
    %4564 = vmatpush.msra.mxu0 %v4296
    %4565 = vmatpush.msra.mxu0 %v4288
    %4566 = vmatmul.f32.gmra.mxu0 %v4546
    %v4567 = vpop.f32.mrf.mxu0
    %v4568 = vadd.f32 0.0, %v4567
    %4569 = vdwg.mxu0
    %4570 = vmatpush.msra.mxu0 %v4536
    %4571 = vmatpush.msra.mxu0 %v4528
    %4572 = vmatpush.msra.mxu0 %v4520
    %4573 = vmatpush.msra.mxu0 %v4512
    %4574 = vmatpush.msra.mxu0 %v4504
    %4575 = vmatpush.msra.mxu0 %v4496
    %4576 = vmatpush.msra.mxu0 %v4488
    %4577 = vmatpush.msra.mxu0 %v4480
    %4578 = vmatpush.msra.mxu0 %v4472
    %4579 = vmatpush.msra.mxu0 %v4464
    %4580 = vmatpush.msra.mxu0 %v4456
    %4581 = vmatpush.msra.mxu0 %v4448
    %4582 = vmatpush.msra.mxu0 %v4440
    %4583 = vmatpush.msra.mxu0 %v4432
    %4584 = vmatpush.msra.mxu0 %v4424
    %4585 = vmatpush.msra.mxu0 %v4416
    %4586 = vmatmul.f32.gmra.mxu0 %v4547
    %v4587 = vpop.f32.mrf.mxu0
    %v4588 = vadd.f32 %v4568, %v4587
    %4589 = vdwg.mxu0
    %4590 = vmatpush.msra.mxu0 %v4409
    %4591 = vmatpush.msra.mxu0 %v4401
    %4592 = vmatpush.msra.mxu0 %v4393
    %4593 = vmatpush.msra.mxu0 %v4385
    %4594 = vmatpush.msra.mxu0 %v4377
    %4595 = vmatpush.msra.mxu0 %v4369
    %4596 = vmatpush.msra.mxu0 %v4361
    %4597 = vmatpush.msra.mxu0 %v4353
    %4598 = vmatpush.msra.mxu0 %v4345
    %4599 = vmatpush.msra.mxu0 %v4337
    %4600 = vmatpush.msra.mxu0 %v4329
    %4601 = vmatpush.msra.mxu0 %v4321
    %4602 = vmatpush.msra.mxu0 %v4313
    %4603 = vmatpush.msra.mxu0 %v4305
    %4604 = vmatpush.msra.mxu0 %v4297
    %4605 = vmatpush.msra.mxu0 %v4289
    %4606 = vmatmul.f32.gmra.mxu0 %v4546
    %v4607 = vpop.f32.mrf.mxu0
    %v4608 = vadd.f32 0.0, %v4607
    %4609 = vdwg.mxu0
    %4610 = vmatpush.msra.mxu0 %v4537
    %4611 = vmatpush.msra.mxu0 %v4529
    %4612 = vmatpush.msra.mxu0 %v4521
    %4613 = vmatpush.msra.mxu0 %v4513
    %4614 = vmatpush.msra.mxu0 %v4505
    %4615 = vmatpush.msra.mxu0 %v4497
    %4616 = vmatpush.msra.mxu0 %v4489
    %4617 = vmatpush.msra.mxu0 %v4481
    %4618 = vmatpush.msra.mxu0 %v4473
    %4619 = vmatpush.msra.mxu0 %v4465
    %4620 = vmatpush.msra.mxu0 %v4457
    %4621 = vmatpush.msra.mxu0 %v4449
    %4622 = vmatpush.msra.mxu0 %v4441
    %4623 = vmatpush.msra.mxu0 %v4433
    %4624 = vmatpush.msra.mxu0 %v4425
    %4625 = vmatpush.msra.mxu0 %v4417
    %4626 = vmatmul.f32.gmra.mxu0 %v4547
    %v4627 = vpop.f32.mrf.mxu0
    %v4628 = vadd.f32 %v4608, %v4627
    %4629 = vdwg.mxu0
    %4630 = vmatpush.msra.mxu0 %v4410
    %4631 = vmatpush.msra.mxu0 %v4402
    %4632 = vmatpush.msra.mxu0 %v4394
    %4633 = vmatpush.msra.mxu0 %v4386
    %4634 = vmatpush.msra.mxu0 %v4378
    %4635 = vmatpush.msra.mxu0 %v4370
    %4636 = vmatpush.msra.mxu0 %v4362
    %4637 = vmatpush.msra.mxu0 %v4354
    %4638 = vmatpush.msra.mxu0 %v4346
    %4639 = vmatpush.msra.mxu0 %v4338
    %4640 = vmatpush.msra.mxu0 %v4330
    %4641 = vmatpush.msra.mxu0 %v4322
    %4642 = vmatpush.msra.mxu0 %v4314
    %4643 = vmatpush.msra.mxu0 %v4306
    %4644 = vmatpush.msra.mxu0 %v4298
    %4645 = vmatpush.msra.mxu0 %v4290
    %4646 = vmatmul.f32.gmra.mxu0 %v4546
    %v4647 = vpop.f32.mrf.mxu0
    %v4648 = vadd.f32 0.0, %v4647
    %4649 = vdwg.mxu0
    %4650 = vmatpush.msra.mxu0 %v4538
    %4651 = vmatpush.msra.mxu0 %v4530
    %4652 = vmatpush.msra.mxu0 %v4522
    %4653 = vmatpush.msra.mxu0 %v4514
    %4654 = vmatpush.msra.mxu0 %v4506
    %4655 = vmatpush.msra.mxu0 %v4498
    %4656 = vmatpush.msra.mxu0 %v4490
    %4657 = vmatpush.msra.mxu0 %v4482
    %4658 = vmatpush.msra.mxu0 %v4474
    %4659 = vmatpush.msra.mxu0 %v4466
    %4660 = vmatpush.msra.mxu0 %v4458
    %4661 = vmatpush.msra.mxu0 %v4450
    %4662 = vmatpush.msra.mxu0 %v4442
    %4663 = vmatpush.msra.mxu0 %v4434
    %4664 = vmatpush.msra.mxu0 %v4426
    %4665 = vmatpush.msra.mxu0 %v4418
    %4666 = vmatmul.f32.gmra.mxu0 %v4547
    %v4667 = vpop.f32.mrf.mxu0
    %v4668 = vadd.f32 %v4648, %v4667
    %4669 = vdwg.mxu0
    %4670 = vmatpush.msra.mxu0 %v4411
    %4671 = vmatpush.msra.mxu0 %v4403
    %4672 = vmatpush.msra.mxu0 %v4395
    %4673 = vmatpush.msra.mxu0 %v4387
    %4674 = vmatpush.msra.mxu0 %v4379
    %4675 = vmatpush.msra.mxu0 %v4371
    %4676 = vmatpush.msra.mxu0 %v4363
    %4677 = vmatpush.msra.mxu0 %v4355
    %4678 = vmatpush.msra.mxu0 %v4347
    %4679 = vmatpush.msra.mxu0 %v4339
    %4680 = vmatpush.msra.mxu0 %v4331
    %4681 = vmatpush.msra.mxu0 %v4323
    %4682 = vmatpush.msra.mxu0 %v4315
    %4683 = vmatpush.msra.mxu0 %v4307
    %4684 = vmatpush.msra.mxu0 %v4299
    %4685 = vmatpush.msra.mxu0 %v4291
    %4686 = vmatmul.f32.gmra.mxu0 %v4546
    %v4687 = vpop.f32.mrf.mxu0
    %v4688 = vadd.f32 0.0, %v4687
    %4689 = vdwg.mxu0
    %4690 = vmatpush.msra.mxu0 %v4539
    %4691 = vmatpush.msra.mxu0 %v4531
    %4692 = vmatpush.msra.mxu0 %v4523
    %4693 = vmatpush.msra.mxu0 %v4515
    %4694 = vmatpush.msra.mxu0 %v4507
    %4695 = vmatpush.msra.mxu0 %v4499
    %4696 = vmatpush.msra.mxu0 %v4491
    %4697 = vmatpush.msra.mxu0 %v4483
    %4698 = vmatpush.msra.mxu0 %v4475
    %4699 = vmatpush.msra.mxu0 %v4467
    %4700 = vmatpush.msra.mxu0 %v4459
    %4701 = vmatpush.msra.mxu0 %v4451
    %4702 = vmatpush.msra.mxu0 %v4443
    %4703 = vmatpush.msra.mxu0 %v4435
    %4704 = vmatpush.msra.mxu0 %v4427
    %4705 = vmatpush.msra.mxu0 %v4419
    %4706 = vmatmul.f32.gmra.mxu0 %v4547
    %v4707 = vpop.f32.mrf.mxu0
    %v4708 = vadd.f32 %v4688, %v4707
    %4709 = vdwg.mxu0
    %4710 = vmatpush.msra.mxu0 %v4412
    %4711 = vmatpush.msra.mxu0 %v4404
    %4712 = vmatpush.msra.mxu0 %v4396
    %4713 = vmatpush.msra.mxu0 %v4388
    %4714 = vmatpush.msra.mxu0 %v4380
    %4715 = vmatpush.msra.mxu0 %v4372
    %4716 = vmatpush.msra.mxu0 %v4364
    %4717 = vmatpush.msra.mxu0 %v4356
    %4718 = vmatpush.msra.mxu0 %v4348
    %4719 = vmatpush.msra.mxu0 %v4340
    %4720 = vmatpush.msra.mxu0 %v4332
    %4721 = vmatpush.msra.mxu0 %v4324
    %4722 = vmatpush.msra.mxu0 %v4316
    %4723 = vmatpush.msra.mxu0 %v4308
    %4724 = vmatpush.msra.mxu0 %v4300
    %4725 = vmatpush.msra.mxu0 %v4292
    %4726 = vmatmul.f32.gmra.mxu0 %v4546
    %v4727 = vpop.f32.mrf.mxu0
    %v4728 = vadd.f32 0.0, %v4727
    %4729 = vdwg.mxu0
    %4730 = vmatpush.msra.mxu0 %v4540
    %4731 = vmatpush.msra.mxu0 %v4532
    %4732 = vmatpush.msra.mxu0 %v4524
    %4733 = vmatpush.msra.mxu0 %v4516
    %4734 = vmatpush.msra.mxu0 %v4508
    %4735 = vmatpush.msra.mxu0 %v4500
    %4736 = vmatpush.msra.mxu0 %v4492
    %4737 = vmatpush.msra.mxu0 %v4484
    %4738 = vmatpush.msra.mxu0 %v4476
    %4739 = vmatpush.msra.mxu0 %v4468
    %4740 = vmatpush.msra.mxu0 %v4460
    %4741 = vmatpush.msra.mxu0 %v4452
    %4742 = vmatpush.msra.mxu0 %v4444
    %4743 = vmatpush.msra.mxu0 %v4436
    %4744 = vmatpush.msra.mxu0 %v4428
    %4745 = vmatpush.msra.mxu0 %v4420
    %4746 = vmatmul.f32.gmra.mxu0 %v4547
    %v4747 = vpop.f32.mrf.mxu0
    %v4748 = vadd.f32 %v4728, %v4747
    %4749 = vdwg.mxu0
    %4750 = vmatpush.msra.mxu0 %v4413
    %4751 = vmatpush.msra.mxu0 %v4405
    %4752 = vmatpush.msra.mxu0 %v4397
    %4753 = vmatpush.msra.mxu0 %v4389
    %4754 = vmatpush.msra.mxu0 %v4381
    %4755 = vmatpush.msra.mxu0 %v4373
    %4756 = vmatpush.msra.mxu0 %v4365
    %4757 = vmatpush.msra.mxu0 %v4357
    %4758 = vmatpush.msra.mxu0 %v4349
    %4759 = vmatpush.msra.mxu0 %v4341
    %4760 = vmatpush.msra.mxu0 %v4333
    %4761 = vmatpush.msra.mxu0 %v4325
    %4762 = vmatpush.msra.mxu0 %v4317
    %4763 = vmatpush.msra.mxu0 %v4309
    %4764 = vmatpush.msra.mxu0 %v4301
    %4765 = vmatpush.msra.mxu0 %v4293
    %4766 = vmatmul.f32.gmra.mxu0 %v4546
    %v4767 = vpop.f32.mrf.mxu0
    %v4768 = vadd.f32 0.0, %v4767
    %4769 = vdwg.mxu0
    %4770 = vmatpush.msra.mxu0 %v4541
    %4771 = vmatpush.msra.mxu0 %v4533
    %4772 = vmatpush.msra.mxu0 %v4525
    %4773 = vmatpush.msra.mxu0 %v4517
    %4774 = vmatpush.msra.mxu0 %v4509
    %4775 = vmatpush.msra.mxu0 %v4501
    %4776 = vmatpush.msra.mxu0 %v4493
    %4777 = vmatpush.msra.mxu0 %v4485
    %4778 = vmatpush.msra.mxu0 %v4477
    %4779 = vmatpush.msra.mxu0 %v4469
    %4780 = vmatpush.msra.mxu0 %v4461
    %4781 = vmatpush.msra.mxu0 %v4453
    %4782 = vmatpush.msra.mxu0 %v4445
    %4783 = vmatpush.msra.mxu0 %v4437
    %4784 = vmatpush.msra.mxu0 %v4429
    %4785 = vmatpush.msra.mxu0 %v4421
    %4786 = vmatmul.f32.gmra.mxu0 %v4547
    %v4787 = vpop.f32.mrf.mxu0
    %v4788 = vadd.f32 %v4768, %v4787
    %4789 = vdwg.mxu0
    %4790 = vmatpush.msra.mxu0 %v4414
    %4791 = vmatpush.msra.mxu0 %v4406
    %4792 = vmatpush.msra.mxu0 %v4398
    %4793 = vmatpush.msra.mxu0 %v4390
    %4794 = vmatpush.msra.mxu0 %v4382
    %4795 = vmatpush.msra.mxu0 %v4374
    %4796 = vmatpush.msra.mxu0 %v4366
    %4797 = vmatpush.msra.mxu0 %v4358
    %4798 = vmatpush.msra.mxu0 %v4350
    %4799 = vmatpush.msra.mxu0 %v4342
    %4800 = vmatpush.msra.mxu0 %v4334
    %4801 = vmatpush.msra.mxu0 %v4326
    %4802 = vmatpush.msra.mxu0 %v4318
    %4803 = vmatpush.msra.mxu0 %v4310
    %4804 = vmatpush.msra.mxu0 %v4302
    %4805 = vmatpush.msra.mxu0 %v4294
    %4806 = vmatmul.f32.gmra.mxu0 %v4546
    %v4807 = vpop.f32.mrf.mxu0
    %v4808 = vadd.f32 0.0, %v4807
    %4809 = vdwg.mxu0
    %4810 = vmatpush.msra.mxu0 %v4542
    %4811 = vmatpush.msra.mxu0 %v4534
    %4812 = vmatpush.msra.mxu0 %v4526
    %4813 = vmatpush.msra.mxu0 %v4518
    %4814 = vmatpush.msra.mxu0 %v4510
    %4815 = vmatpush.msra.mxu0 %v4502
    %4816 = vmatpush.msra.mxu0 %v4494
    %4817 = vmatpush.msra.mxu0 %v4486
    %4818 = vmatpush.msra.mxu0 %v4478
    %4819 = vmatpush.msra.mxu0 %v4470
    %4820 = vmatpush.msra.mxu0 %v4462
    %4821 = vmatpush.msra.mxu0 %v4454
    %4822 = vmatpush.msra.mxu0 %v4446
    %4823 = vmatpush.msra.mxu0 %v4438
    %4824 = vmatpush.msra.mxu0 %v4430
    %4825 = vmatpush.msra.mxu0 %v4422
    %4826 = vmatmul.f32.gmra.mxu0 %v4547
    %v4827 = vpop.f32.mrf.mxu0
    %v4828 = vadd.f32 %v4808, %v4827
    %4829 = vdwg.mxu0
    %4830 = vmatpush.msra.mxu0 %v4415
    %4831 = vmatpush.msra.mxu0 %v4407
    %4832 = vmatpush.msra.mxu0 %v4399
    %4833 = vmatpush.msra.mxu0 %v4391
    %4834 = vmatpush.msra.mxu0 %v4383
    %4835 = vmatpush.msra.mxu0 %v4375
    %4836 = vmatpush.msra.mxu0 %v4367
    %4837 = vmatpush.msra.mxu0 %v4359
    %4838 = vmatpush.msra.mxu0 %v4351
    %4839 = vmatpush.msra.mxu0 %v4343
    %4840 = vmatpush.msra.mxu0 %v4335
    %4841 = vmatpush.msra.mxu0 %v4327
    %4842 = vmatpush.msra.mxu0 %v4319
    %4843 = vmatpush.msra.mxu0 %v4311
    %4844 = vmatpush.msra.mxu0 %v4303
    %4845 = vmatpush.msra.mxu0 %v4295
    %4846 = vmatmul.f32.gmra.mxu0 %v4546
    %v4847 = vpop.f32.mrf.mxu0
    %v4848 = vadd.f32 0.0, %v4847
    %4849 = vdwg.mxu0
    %4850 = vmatpush.msra.mxu0 %v4543
    %4851 = vmatpush.msra.mxu0 %v4535
    %4852 = vmatpush.msra.mxu0 %v4527
    %4853 = vmatpush.msra.mxu0 %v4519
    %4854 = vmatpush.msra.mxu0 %v4511
    %4855 = vmatpush.msra.mxu0 %v4503
    %4856 = vmatpush.msra.mxu0 %v4495
    %4857 = vmatpush.msra.mxu0 %v4487
    %4858 = vmatpush.msra.mxu0 %v4479
    %4859 = vmatpush.msra.mxu0 %v4471
    %4860 = vmatpush.msra.mxu0 %v4463
    %4861 = vmatpush.msra.mxu0 %v4455
    %4862 = vmatpush.msra.mxu0 %v4447
    %4863 = vmatpush.msra.mxu0 %v4439
    %4864 = vmatpush.msra.mxu0 %v4431
    %4865 = vmatpush.msra.mxu0 %v4423
    %4866 = vmatmul.f32.gmra.mxu0 %v4547
    %v4867 = vpop.f32.mrf.mxu0
    %v4868 = vadd.f32 %v4848, %v4867
    %4869 = vdwg.mxu0
    %v4870 = vld [vmem:[%s488] sm:$0xff]
    %v4871 = vld [vmem:[%s429 + $0x8] sm:$0xff]
    %v4872 = vld [vmem:[#allocation4] sm:$0xf]
    %4874 = vst [vmem:[#allocation1] ss:$4 sm:$0xff] %v4870
    %v4875 = vld.sshfl [vmem:[#allocation1] sm:$0xff pattern:$0x73625140]
    %v4876 = vld.sshfl [vmem:[#allocation1 + $0x8] sm:$0xff pattern:$0x73625140]
    %v4877 = vld.sshfl [vmem:[#allocation1 + $0x10] sm:$0xff pattern:$0x73625140]
    %v4878 = vld.sshfl [vmem:[#allocation1 + $0x18] sm:$0xff pattern:$0x73625140]
    %v4883 = vadd.f32 %v4588, %v4875
    %v4884 = vadd.f32 %v4628, %v4876
    %v4885 = vadd.f32 %v4668, %v4877
    %v4886 = vadd.f32 %v4708, %v4878
    %v4887 = vxor.u32 %v4883, 2147483648
    %v4888 = vmul.f32 %v4887, 1.442695
    %v4889 = vpow.pop %v4888
    %v4890 = vadd.f32 %v4889, 1.0
    %v4891 = vrcp.pop %v4890
    %v4892 = vmul.f32 %v4890, %v4891
    %v4893 = vsub.f32 1.0, %v4892
    %v4894 = vmul.f32 %v4891, %v4893
    %v4895 = vadd.f32 %v4891, %v4894
    %vm4896 = vweird.f32 %v4890
    %vm4897 = vweird.f32 %v4891
    %vm4898 = vmor %vm4896, %vm4897
    %v4899 = vsel %vm4898, %v4891, %v4895
    %v4900 = vand.u32 2147483647, %v4890
    %vm4901 = vcmp.eq.f32.partialorder %v4900, 8.507059e+37
    %v4902 = vand.u32 %v4890, 2147483648
    %v4903 = vor.u32 1.1754944e-38, %v4902
    %v4904 = vsel %vm4901, %v4903, %v4899
    %v4905 = vmul.f32 1.0, %v4904
    %v4906 = vxor.u32 %v4884, 2147483648
    %v4907 = vmul.f32 %v4906, 1.442695
    %v4908 = vpow.pop %v4907
    %v4909 = vadd.f32 %v4908, 1.0
    %v4910 = vrcp.pop %v4909
    %v4911 = vmul.f32 %v4909, %v4910
    %v4912 = vsub.f32 1.0, %v4911
    %v4913 = vmul.f32 %v4910, %v4912
    %v4914 = vadd.f32 %v4910, %v4913
    %vm4915 = vweird.f32 %v4909
    %vm4916 = vweird.f32 %v4910
    %vm4917 = vmor %vm4915, %vm4916
    %v4918 = vsel %vm4917, %v4910, %v4914
    %v4919 = vand.u32 2147483647, %v4909
    %vm4920 = vcmp.eq.f32.partialorder %v4919, 8.507059e+37
    %v4921 = vand.u32 %v4909, 2147483648
    %v4922 = vor.u32 1.1754944e-38, %v4921
    %v4923 = vsel %vm4920, %v4922, %v4918
    %v4924 = vmul.f32 1.0, %v4923
    %v4925 = vtanh.pop %v4885
    %v4926 = vxor.u32 %v4886, 2147483648
    %v4927 = vmul.f32 %v4926, 1.442695
    %v4928 = vpow.pop %v4927
    %v4929 = vadd.f32 %v4928, 1.0
    %v4930 = vrcp.pop %v4929
    %v4931 = vmul.f32 %v4929, %v4930
    %v4932 = vsub.f32 1.0, %v4931
    %v4933 = vmul.f32 %v4930, %v4932
    %v4934 = vadd.f32 %v4930, %v4933
    %vm4935 = vweird.f32 %v4929
    %vm4936 = vweird.f32 %v4930
    %vm4937 = vmor %vm4935, %vm4936
    %v4938 = vsel %vm4937, %v4930, %v4934
    %v4939 = vand.u32 2147483647, %v4929
    %vm4940 = vcmp.eq.f32.partialorder %v4939, 8.507059e+37
    %v4941 = vand.u32 %v4929, 2147483648
    %v4942 = vor.u32 1.1754944e-38, %v4941
    %v4943 = vsel %vm4940, %v4942, %v4938
    %v4944 = vmul.f32 1.0, %v4943
    %v4945 = vmul.f32 %v4924, %v4872
    %v4946 = vmul.f32 %v4905, %v4925
    %v4947 = vadd.f32 %v4945, %v4946
    %v4948 = vtanh.pop %v4947
    %v4949 = vmul.f32 %v4944, %v4948
    %4951 = vst [vmem:[#allocation1] ss:$4 sm:$0xff] %v4871
    %v4952 = vld.sshfl [vmem:[#allocation1] sm:$0xff pattern:$0x73625140]
    %v4953 = vld.sshfl [vmem:[#allocation1 + $0x8] sm:$0xff pattern:$0x73625140]
    %v4954 = vld.sshfl [vmem:[#allocation1 + $0x10] sm:$0xff pattern:$0x73625140]
    %v4955 = vld.sshfl [vmem:[#allocation1 + $0x18] sm:$0xff pattern:$0x73625140]
    %v4960 = vadd.f32 %v4748, %v4952
    %v4961 = vadd.f32 %v4788, %v4953
    %v4962 = vadd.f32 %v4828, %v4954
    %v4963 = vadd.f32 %v4868, %v4955
    %v4964 = vxor.u32 %v4960, 2147483648
    %v4965 = vmul.f32 %v4964, 1.442695
    %v4966 = vpow.pop %v4965
    %v4967 = vadd.f32 %v4966, 1.0
    %v4968 = vrcp.pop %v4967
    %v4969 = vmul.f32 %v4967, %v4968
    %v4970 = vsub.f32 1.0, %v4969
    %v4971 = vmul.f32 %v4968, %v4970
    %v4972 = vadd.f32 %v4968, %v4971
    %vm4973 = vweird.f32 %v4967
    %vm4974 = vweird.f32 %v4968
    %vm4975 = vmor %vm4973, %vm4974
    %v4976 = vsel %vm4975, %v4968, %v4972
    %v4977 = vand.u32 2147483647, %v4967
    %vm4978 = vcmp.eq.f32.partialorder %v4977, 8.507059e+37
    %v4979 = vand.u32 %v4967, 2147483648
    %v4980 = vor.u32 1.1754944e-38, %v4979
    %v4981 = vsel %vm4978, %v4980, %v4976
    %v4982 = vmul.f32 1.0, %v4981
    %v4983 = vxor.u32 %v4961, 2147483648
    %v4984 = vmul.f32 %v4983, 1.442695
    %v4985 = vpow.pop %v4984
    %v4986 = vadd.f32 %v4985, 1.0
    %v4987 = vrcp.pop %v4986
    %v4988 = vmul.f32 %v4986, %v4987
    %v4989 = vsub.f32 1.0, %v4988
    %v4990 = vmul.f32 %v4987, %v4989
    %v4991 = vadd.f32 %v4987, %v4990
    %vm4992 = vweird.f32 %v4986
    %vm4993 = vweird.f32 %v4987
    %vm4994 = vmor %vm4992, %vm4993
    %v4995 = vsel %vm4994, %v4987, %v4991
    %v4996 = vand.u32 2147483647, %v4986
    %vm4997 = vcmp.eq.f32.partialorder %v4996, 8.507059e+37
    %v4998 = vand.u32 %v4986, 2147483648
    %v4999 = vor.u32 1.1754944e-38, %v4998
    %v5000 = vsel %vm4997, %v4999, %v4995
    %v5001 = vmul.f32 1.0, %v5000
    %v5002 = vtanh.pop %v4962
    %v5003 = vxor.u32 %v4963, 2147483648
    %v5004 = vmul.f32 %v5003, 1.442695
    %v5005 = vpow.pop %v5004
    %v5006 = vadd.f32 %v5005, 1.0
    %v5007 = vrcp.pop %v5006
    %v5008 = vmul.f32 %v5006, %v5007
    %v5009 = vsub.f32 1.0, %v5008
    %v5010 = vmul.f32 %v5007, %v5009
    %v5011 = vadd.f32 %v5007, %v5010
    %vm5012 = vweird.f32 %v5006
    %vm5013 = vweird.f32 %v5007
    %vm5014 = vmor %vm5012, %vm5013
    %v5015 = vsel %vm5014, %v5007, %v5011
    %v5016 = vand.u32 2147483647, %v5006
    %vm5017 = vcmp.eq.f32.partialorder %v5016, 8.507059e+37
    %v5018 = vand.u32 %v5006, 2147483648
    %v5019 = vor.u32 1.1754944e-38, %v5018
    %v5020 = vsel %vm5017, %v5019, %v5015
    %v5021 = vmul.f32 1.0, %v5020
    %5023 = vst [vmem:[#allocation1] ss:$4 sm:$0xff] %v4872
    %v5024 = vld.sshfl [vmem:[#allocation1 + $0x8] sm:$0xff pattern:$0x73625140]
    %v5026 = vmul.f32 %v5001, %v5024
    %v5027 = vmul.f32 %v4982, %v5002
    %v5028 = vadd.f32 %v5026, %v5027
    %v5029 = vtanh.pop %v5028
    %v5030 = vmul.f32 %v5021, %v5029
    %5031 = vst [vmem:[#allocation3] sm:$0x3] %v4949
    %5032 = vst [vmem:[#allocation3 + $0x2] sm:$0x3] %v5030
    %5033 = vst [vmem:[#allocation4] sm:$0x3] %v4947
    %5034 = vst [vmem:[#allocation4 + $0x2] sm:$0x3] %v5028
    %s5035 = scalar_lea.vmem %s4, 10
    %5036 = vst.msk [vmem:[%s5035] sm:$0x3] %vm1275, %v4949
    %s5037 = scalar_lea.vmem %s5, 4
    %5038 = vst.msk [vmem:[%s5037] sm:$0x3] %vm1275, %v5030
    %v5039 = vld [vmem:[#allocation3] sm:$0xf]
    %v5040 = vld [vmem:[#allocation9] sm:$0xff]
    %v5041 = vld [vmem:[#allocation9 + $0x8] sm:$0xff]
    %v5042 = vld [vmem:[#allocation9 + $0x10] sm:$0xff]
    %v5043 = vld [vmem:[#allocation9 + $0x18] sm:$0xff]
    %v5044 = vld [vmem:[#allocation9 + $0x20] sm:$0xff]
    %v5045 = vld [vmem:[#allocation9 + $0x28] sm:$0xff]
    %v5046 = vld [vmem:[#allocation9 + $0x30] sm:$0xff]
    %v5047 = vld [vmem:[#allocation9 + $0x38] sm:$0xff]
    %v5048 = vld [vmem:[#allocation9 + $0x40] sm:$0xff]
    %v5049 = vld [vmem:[#allocation9 + $0x48] sm:$0xff]
    %v5050 = vld [vmem:[#allocation9 + $0x50] sm:$0xff]
    %v5051 = vld [vmem:[#allocation9 + $0x58] sm:$0xff]
    %v5052 = vld [vmem:[#allocation9 + $0x60] sm:$0xff]
    %v5053 = vld [vmem:[#allocation9 + $0x68] sm:$0xff]
    %v5054 = vld [vmem:[#allocation9 + $0x70] sm:$0xff]
    %v5055 = vld [vmem:[#allocation9 + $0x78] sm:$0xff]
    %v5056 = vld [vmem:[#allocation9 + $0x80] sm:$0xff]
    %v5057 = vld [vmem:[#allocation9 + $0x88] sm:$0xff]
    %v5058 = vld [vmem:[#allocation9 + $0x90] sm:$0xff]
    %v5059 = vld [vmem:[#allocation9 + $0x98] sm:$0xff]
    %v5060 = vld [vmem:[#allocation9 + $0xa0] sm:$0xff]
    %v5061 = vld [vmem:[#allocation9 + $0xa8] sm:$0xff]
    %v5062 = vld [vmem:[#allocation9 + $0xb0] sm:$0xff]
    %v5063 = vld [vmem:[#allocation9 + $0xb8] sm:$0xff]
    %v5064 = vld [vmem:[#allocation9 + $0xc0] sm:$0xff]
    %v5065 = vld [vmem:[#allocation9 + $0xc8] sm:$0xff]
    %v5066 = vld [vmem:[#allocation9 + $0xd0] sm:$0xff]
    %v5067 = vld [vmem:[#allocation9 + $0xd8] sm:$0xff]
    %v5068 = vld [vmem:[#allocation9 + $0xe0] sm:$0xff]
    %v5069 = vld [vmem:[#allocation9 + $0xe8] sm:$0xff]
    %v5070 = vld [vmem:[#allocation9 + $0xf0] sm:$0xff]
    %v5071 = vld [vmem:[#allocation9 + $0xf8] sm:$0xff]
    %v5072 = vld [vmem:[#allocation9 + $0x100] sm:$0xff]
    %v5073 = vld [vmem:[#allocation9 + $0x108] sm:$0xff]
    %v5074 = vld [vmem:[#allocation9 + $0x110] sm:$0xff]
    %v5075 = vld [vmem:[#allocation9 + $0x118] sm:$0xff]
    %v5076 = vld [vmem:[#allocation9 + $0x120] sm:$0xff]
    %v5077 = vld [vmem:[#allocation9 + $0x128] sm:$0xff]
    %v5078 = vld [vmem:[#allocation9 + $0x130] sm:$0xff]
    %v5079 = vld [vmem:[#allocation9 + $0x138] sm:$0xff]
    %v5080 = vld [vmem:[#allocation9 + $0x140] sm:$0xff]
    %v5081 = vld [vmem:[#allocation9 + $0x148] sm:$0xff]
    %v5082 = vld [vmem:[#allocation9 + $0x150] sm:$0xff]
    %v5083 = vld [vmem:[#allocation9 + $0x158] sm:$0xff]
    %v5084 = vld [vmem:[#allocation9 + $0x160] sm:$0xff]
    %v5085 = vld [vmem:[#allocation9 + $0x168] sm:$0xff]
    %v5086 = vld [vmem:[#allocation9 + $0x170] sm:$0xff]
    %v5087 = vld [vmem:[#allocation9 + $0x178] sm:$0xff]
    %v5088 = vld [vmem:[#allocation9 + $0x180] sm:$0xff]
    %v5089 = vld [vmem:[#allocation9 + $0x188] sm:$0xff]
    %v5090 = vld [vmem:[#allocation9 + $0x190] sm:$0xff]
    %v5091 = vld [vmem:[#allocation9 + $0x198] sm:$0xff]
    %v5092 = vld [vmem:[#allocation9 + $0x1a0] sm:$0xff]
    %v5093 = vld [vmem:[#allocation9 + $0x1a8] sm:$0xff]
    %v5094 = vld [vmem:[#allocation9 + $0x1b0] sm:$0xff]
    %v5095 = vld [vmem:[#allocation9 + $0x1b8] sm:$0xff]
    %v5096 = vld [vmem:[#allocation9 + $0x1c0] sm:$0xff]
    %v5097 = vld [vmem:[#allocation9 + $0x1c8] sm:$0xff]
    %v5098 = vld [vmem:[#allocation9 + $0x1d0] sm:$0xff]
    %v5099 = vld [vmem:[#allocation9 + $0x1d8] sm:$0xff]
    %v5100 = vld [vmem:[#allocation9 + $0x1e0] sm:$0xff]
    %v5101 = vld [vmem:[#allocation9 + $0x1e8] sm:$0xff]
    %v5102 = vld [vmem:[#allocation9 + $0x1f0] sm:$0xff]
    %v5103 = vld [vmem:[#allocation9 + $0x1f8] sm:$0xff]
    %v5104 = vld [vmem:[#allocation9 + $0x200] sm:$0xff]
    %v5105 = vld [vmem:[#allocation9 + $0x208] sm:$0xff]
    %v5106 = vld [vmem:[#allocation9 + $0x210] sm:$0xff]
    %v5107 = vld [vmem:[#allocation9 + $0x218] sm:$0xff]
    %v5108 = vld [vmem:[#allocation9 + $0x220] sm:$0xff]
    %v5109 = vld [vmem:[#allocation9 + $0x228] sm:$0xff]
    %v5110 = vld [vmem:[#allocation9 + $0x230] sm:$0xff]
    %v5111 = vld [vmem:[#allocation9 + $0x238] sm:$0xff]
    %v5112 = vld [vmem:[#allocation9 + $0x240] sm:$0xff]
    %v5113 = vld [vmem:[#allocation9 + $0x248] sm:$0xff]
    %v5114 = vld [vmem:[#allocation9 + $0x250] sm:$0xff]
    %v5115 = vld [vmem:[#allocation9 + $0x258] sm:$0xff]
    %v5116 = vld [vmem:[#allocation9 + $0x260] sm:$0xff]
    %v5117 = vld [vmem:[#allocation9 + $0x268] sm:$0xff]
    %v5118 = vld [vmem:[#allocation9 + $0x270] sm:$0xff]
    %v5119 = vld [vmem:[#allocation9 + $0x278] sm:$0xff]
    %v5120 = vld [vmem:[#allocation9 + $0x280] sm:$0xff]
    %v5121 = vld [vmem:[#allocation9 + $0x288] sm:$0xff]
    %v5122 = vld [vmem:[#allocation9 + $0x290] sm:$0xff]
    %v5123 = vld [vmem:[#allocation9 + $0x298] sm:$0xff]
    %v5124 = vld [vmem:[#allocation9 + $0x2a0] sm:$0xff]
    %v5125 = vld [vmem:[#allocation9 + $0x2a8] sm:$0xff]
    %v5126 = vld [vmem:[#allocation9 + $0x2b0] sm:$0xff]
    %v5127 = vld [vmem:[#allocation9 + $0x2b8] sm:$0xff]
    %v5128 = vld [vmem:[#allocation9 + $0x2c0] sm:$0xff]
    %v5129 = vld [vmem:[#allocation9 + $0x2c8] sm:$0xff]
    %v5130 = vld [vmem:[#allocation9 + $0x2d0] sm:$0xff]
    %v5131 = vld [vmem:[#allocation9 + $0x2d8] sm:$0xff]
    %v5132 = vld [vmem:[#allocation9 + $0x2e0] sm:$0xff]
    %v5133 = vld [vmem:[#allocation9 + $0x2e8] sm:$0xff]
    %v5134 = vld [vmem:[#allocation9 + $0x2f0] sm:$0xff]
    %v5135 = vld [vmem:[#allocation9 + $0x2f8] sm:$0xff]
    %v5136 = vld [vmem:[#allocation9 + $0x300] sm:$0xff]
    %v5137 = vld [vmem:[#allocation9 + $0x308] sm:$0xff]
    %v5138 = vld [vmem:[#allocation9 + $0x310] sm:$0xff]
    %v5139 = vld [vmem:[#allocation9 + $0x318] sm:$0xff]
    %v5140 = vld [vmem:[#allocation9 + $0x320] sm:$0xff]
    %v5141 = vld [vmem:[#allocation9 + $0x328] sm:$0xff]
    %v5142 = vld [vmem:[#allocation9 + $0x330] sm:$0xff]
    %v5143 = vld [vmem:[#allocation9 + $0x338] sm:$0xff]
    %v5144 = vld [vmem:[#allocation9 + $0x340] sm:$0xff]
    %v5145 = vld [vmem:[#allocation9 + $0x348] sm:$0xff]
    %v5146 = vld [vmem:[#allocation9 + $0x350] sm:$0xff]
    %v5147 = vld [vmem:[#allocation9 + $0x358] sm:$0xff]
    %v5148 = vld [vmem:[#allocation9 + $0x360] sm:$0xff]
    %v5149 = vld [vmem:[#allocation9 + $0x368] sm:$0xff]
    %v5150 = vld [vmem:[#allocation9 + $0x370] sm:$0xff]
    %v5151 = vld [vmem:[#allocation9 + $0x378] sm:$0xff]
    %v5152 = vld [vmem:[#allocation9 + $0x380] sm:$0xff]
    %v5153 = vld [vmem:[#allocation9 + $0x388] sm:$0xff]
    %v5154 = vld [vmem:[#allocation9 + $0x390] sm:$0xff]
    %v5155 = vld [vmem:[#allocation9 + $0x398] sm:$0xff]
    %v5156 = vld [vmem:[#allocation9 + $0x3a0] sm:$0xff]
    %v5157 = vld [vmem:[#allocation9 + $0x3a8] sm:$0xff]
    %v5158 = vld [vmem:[#allocation9 + $0x3b0] sm:$0xff]
    %v5159 = vld [vmem:[#allocation9 + $0x3b8] sm:$0xff]
    %v5160 = vld [vmem:[#allocation9 + $0x3c0] sm:$0xff]
    %v5161 = vld [vmem:[#allocation9 + $0x3c8] sm:$0xff]
    %v5162 = vld [vmem:[#allocation9 + $0x3d0] sm:$0xff]
    %v5163 = vld [vmem:[#allocation9 + $0x3d8] sm:$0xff]
    %v5164 = vld [vmem:[#allocation9 + $0x3e0] sm:$0xff]
    %v5165 = vld [vmem:[#allocation9 + $0x3e8] sm:$0xff]
    %v5166 = vld [vmem:[#allocation9 + $0x3f0] sm:$0xff]
    %v5167 = vld [vmem:[#allocation9 + $0x3f8] sm:$0xff]
    %v5168 = vld [vmem:[#allocation9 + $0x400] sm:$0xff]
    %v5169 = vld [vmem:[#allocation9 + $0x408] sm:$0xff]
    %v5170 = vld [vmem:[#allocation9 + $0x410] sm:$0xff]
    %v5171 = vld [vmem:[#allocation9 + $0x418] sm:$0xff]
    %v5172 = vld [vmem:[#allocation9 + $0x420] sm:$0xff]
    %v5173 = vld [vmem:[#allocation9 + $0x428] sm:$0xff]
    %v5174 = vld [vmem:[#allocation9 + $0x430] sm:$0xff]
    %v5175 = vld [vmem:[#allocation9 + $0x438] sm:$0xff]
    %v5176 = vld [vmem:[#allocation9 + $0x440] sm:$0xff]
    %v5177 = vld [vmem:[#allocation9 + $0x448] sm:$0xff]
    %v5178 = vld [vmem:[#allocation9 + $0x450] sm:$0xff]
    %v5179 = vld [vmem:[#allocation9 + $0x458] sm:$0xff]
    %v5180 = vld [vmem:[#allocation9 + $0x460] sm:$0xff]
    %v5181 = vld [vmem:[#allocation9 + $0x468] sm:$0xff]
    %v5182 = vld [vmem:[#allocation9 + $0x470] sm:$0xff]
    %v5183 = vld [vmem:[#allocation9 + $0x478] sm:$0xff]
    %v5184 = vld [vmem:[#allocation9 + $0x480] sm:$0xff]
    %v5185 = vld [vmem:[#allocation9 + $0x488] sm:$0xff]
    %v5186 = vld [vmem:[#allocation9 + $0x490] sm:$0xff]
    %v5187 = vld [vmem:[#allocation9 + $0x498] sm:$0xff]
    %v5188 = vld [vmem:[#allocation9 + $0x4a0] sm:$0xff]
    %v5189 = vld [vmem:[#allocation9 + $0x4a8] sm:$0xff]
    %v5190 = vld [vmem:[#allocation9 + $0x4b0] sm:$0xff]
    %v5191 = vld [vmem:[#allocation9 + $0x4b8] sm:$0xff]
    %v5192 = vld [vmem:[#allocation9 + $0x4c0] sm:$0xff]
    %v5193 = vld [vmem:[#allocation9 + $0x4c8] sm:$0xff]
    %v5194 = vld [vmem:[#allocation9 + $0x4d0] sm:$0xff]
    %v5195 = vld [vmem:[#allocation9 + $0x4d8] sm:$0xff]
    %v5196 = vld [vmem:[#allocation9 + $0x4e0] sm:$0xff]
    %v5197 = vld [vmem:[#allocation9 + $0x4e8] sm:$0xff]
    %v5198 = vld [vmem:[#allocation9 + $0x4f0] sm:$0xff]
    %v5199 = vld [vmem:[#allocation9 + $0x4f8] sm:$0xff]
    %v5200 = vld [vmem:[#allocation9 + $0x500] sm:$0xff]
    %v5201 = vld [vmem:[#allocation9 + $0x508] sm:$0xff]
    %v5202 = vld [vmem:[#allocation9 + $0x510] sm:$0xff]
    %v5203 = vld [vmem:[#allocation9 + $0x518] sm:$0xff]
    %v5204 = vld [vmem:[#allocation9 + $0x520] sm:$0xff]
    %v5205 = vld [vmem:[#allocation9 + $0x528] sm:$0xff]
    %v5206 = vld [vmem:[#allocation9 + $0x530] sm:$0xff]
    %v5207 = vld [vmem:[#allocation9 + $0x538] sm:$0xff]
    %v5208 = vld [vmem:[#allocation9 + $0x540] sm:$0xff]
    %v5209 = vld [vmem:[#allocation9 + $0x548] sm:$0xff]
    %v5210 = vld [vmem:[#allocation9 + $0x550] sm:$0xff]
    %v5211 = vld [vmem:[#allocation9 + $0x558] sm:$0xff]
    %v5212 = vld [vmem:[#allocation9 + $0x560] sm:$0xff]
    %v5213 = vld [vmem:[#allocation9 + $0x568] sm:$0xff]
    %v5214 = vld [vmem:[#allocation9 + $0x570] sm:$0xff]
    %v5215 = vld [vmem:[#allocation9 + $0x578] sm:$0xff]
    %v5216 = vld [vmem:[#allocation9 + $0x580] sm:$0xff]
    %v5217 = vld [vmem:[#allocation9 + $0x588] sm:$0xff]
    %v5218 = vld [vmem:[#allocation9 + $0x590] sm:$0xff]
    %v5219 = vld [vmem:[#allocation9 + $0x598] sm:$0xff]
    %v5220 = vld [vmem:[#allocation9 + $0x5a0] sm:$0xff]
    %v5221 = vld [vmem:[#allocation9 + $0x5a8] sm:$0xff]
    %v5222 = vld [vmem:[#allocation9 + $0x5b0] sm:$0xff]
    %v5223 = vld [vmem:[#allocation9 + $0x5b8] sm:$0xff]
    %v5224 = vld [vmem:[#allocation9 + $0x5c0] sm:$0xff]
    %v5225 = vld [vmem:[#allocation9 + $0x5c8] sm:$0xff]
    %v5226 = vld [vmem:[#allocation9 + $0x5d0] sm:$0xff]
    %v5227 = vld [vmem:[#allocation9 + $0x5d8] sm:$0xff]
    %v5228 = vld [vmem:[#allocation9 + $0x5e0] sm:$0xff]
    %v5229 = vld [vmem:[#allocation9 + $0x5e8] sm:$0xff]
    %v5230 = vld [vmem:[#allocation9 + $0x5f0] sm:$0xff]
    %v5231 = vld [vmem:[#allocation9 + $0x5f8] sm:$0xff]
    %v5232 = vld [vmem:[#allocation9 + $0x600] sm:$0xff]
    %v5233 = vld [vmem:[#allocation9 + $0x608] sm:$0xff]
    %v5234 = vld [vmem:[#allocation9 + $0x610] sm:$0xff]
    %v5235 = vld [vmem:[#allocation9 + $0x618] sm:$0xff]
    %v5236 = vld [vmem:[#allocation9 + $0x620] sm:$0xff]
    %v5237 = vld [vmem:[#allocation9 + $0x628] sm:$0xff]
    %v5238 = vld [vmem:[#allocation9 + $0x630] sm:$0xff]
    %v5239 = vld [vmem:[#allocation9 + $0x638] sm:$0xff]
    %v5240 = vld [vmem:[#allocation9 + $0x640] sm:$0xff]
    %v5241 = vld [vmem:[#allocation9 + $0x648] sm:$0xff]
    %v5242 = vld [vmem:[#allocation9 + $0x650] sm:$0xff]
    %v5243 = vld [vmem:[#allocation9 + $0x658] sm:$0xff]
    %v5244 = vld [vmem:[#allocation9 + $0x660] sm:$0xff]
    %v5245 = vld [vmem:[#allocation9 + $0x668] sm:$0xff]
    %v5246 = vld [vmem:[#allocation9 + $0x670] sm:$0xff]
    %v5247 = vld [vmem:[#allocation9 + $0x678] sm:$0xff]
    %v5248 = vld [vmem:[#allocation9 + $0x680] sm:$0xff]
    %v5249 = vld [vmem:[#allocation9 + $0x688] sm:$0xff]
    %v5250 = vld [vmem:[#allocation9 + $0x690] sm:$0xff]
    %v5251 = vld [vmem:[#allocation9 + $0x698] sm:$0xff]
    %v5252 = vld [vmem:[#allocation9 + $0x6a0] sm:$0xff]
    %v5253 = vld [vmem:[#allocation9 + $0x6a8] sm:$0xff]
    %v5254 = vld [vmem:[#allocation9 + $0x6b0] sm:$0xff]
    %v5255 = vld [vmem:[#allocation9 + $0x6b8] sm:$0xff]
    %v5256 = vld [vmem:[#allocation9 + $0x6c0] sm:$0xff]
    %v5257 = vld [vmem:[#allocation9 + $0x6c8] sm:$0xff]
    %v5258 = vld [vmem:[#allocation9 + $0x6d0] sm:$0xff]
    %v5259 = vld [vmem:[#allocation9 + $0x6d8] sm:$0xff]
    %v5260 = vld [vmem:[#allocation9 + $0x6e0] sm:$0xff]
    %v5261 = vld [vmem:[#allocation9 + $0x6e8] sm:$0xff]
    %v5262 = vld [vmem:[#allocation9 + $0x6f0] sm:$0xff]
    %v5263 = vld [vmem:[#allocation9 + $0x6f8] sm:$0xff]
    %v5264 = vld [vmem:[#allocation9 + $0x700] sm:$0xff]
    %v5265 = vld [vmem:[#allocation9 + $0x708] sm:$0xff]
    %v5266 = vld [vmem:[#allocation9 + $0x710] sm:$0xff]
    %v5267 = vld [vmem:[#allocation9 + $0x718] sm:$0xff]
    %v5268 = vld [vmem:[#allocation9 + $0x720] sm:$0xff]
    %v5269 = vld [vmem:[#allocation9 + $0x728] sm:$0xff]
    %v5270 = vld [vmem:[#allocation9 + $0x730] sm:$0xff]
    %v5271 = vld [vmem:[#allocation9 + $0x738] sm:$0xff]
    %v5272 = vld [vmem:[#allocation9 + $0x740] sm:$0xff]
    %v5273 = vld [vmem:[#allocation9 + $0x748] sm:$0xff]
    %v5274 = vld [vmem:[#allocation9 + $0x750] sm:$0xff]
    %v5275 = vld [vmem:[#allocation9 + $0x758] sm:$0xff]
    %v5276 = vld [vmem:[#allocation9 + $0x760] sm:$0xff]
    %v5277 = vld [vmem:[#allocation9 + $0x768] sm:$0xff]
    %v5278 = vld [vmem:[#allocation9 + $0x770] sm:$0xff]
    %v5279 = vld [vmem:[#allocation9 + $0x778] sm:$0xff]
    %v5280 = vld [vmem:[#allocation9 + $0x780] sm:$0xff]
    %v5281 = vld [vmem:[#allocation9 + $0x788] sm:$0xff]
    %v5282 = vld [vmem:[#allocation9 + $0x790] sm:$0xff]
    %v5283 = vld [vmem:[#allocation9 + $0x798] sm:$0xff]
    %v5284 = vld [vmem:[#allocation9 + $0x7a0] sm:$0xff]
    %v5285 = vld [vmem:[#allocation9 + $0x7a8] sm:$0xff]
    %v5286 = vld [vmem:[#allocation9 + $0x7b0] sm:$0xff]
    %v5287 = vld [vmem:[#allocation9 + $0x7b8] sm:$0xff]
    %v5288 = vld [vmem:[#allocation9 + $0x7c0] sm:$0xff]
    %v5289 = vld [vmem:[#allocation9 + $0x7c8] sm:$0xff]
    %v5290 = vld [vmem:[#allocation9 + $0x7d0] sm:$0xff]
    %v5291 = vld [vmem:[#allocation9 + $0x7d8] sm:$0xff]
    %v5292 = vld [vmem:[#allocation9 + $0x7e0] sm:$0xff]
    %v5293 = vld [vmem:[#allocation9 + $0x7e8] sm:$0xff]
    %v5294 = vld [vmem:[#allocation9 + $0x7f0] sm:$0xff]
    %v5295 = vld [vmem:[#allocation9 + $0x7f8] sm:$0xff]
    %5297 = vst [vmem:[#allocation1] ss:$4 sm:$0xff] %v5039
    %v5298 = vld.sshfl [vmem:[#allocation1] sm:$0xff pattern:$0x73625140]
    %v5299 = vld.sshfl [vmem:[#allocation1 + $0x8] sm:$0xff pattern:$0x73625140]
    %5302 = vmatpush.msra.mxu0 %v5160
    %5303 = vmatpush.msra.mxu0 %v5152
    %5304 = vmatpush.msra.mxu0 %v5144
    %5305 = vmatpush.msra.mxu0 %v5136
    %5306 = vmatpush.msra.mxu0 %v5128
    %5307 = vmatpush.msra.mxu0 %v5120
    %5308 = vmatpush.msra.mxu0 %v5112
    %5309 = vmatpush.msra.mxu0 %v5104
    %5310 = vmatpush.msra.mxu0 %v5096
    %5311 = vmatpush.msra.mxu0 %v5088
    %5312 = vmatpush.msra.mxu0 %v5080
    %5313 = vmatpush.msra.mxu0 %v5072
    %5314 = vmatpush.msra.mxu0 %v5064
    %5315 = vmatpush.msra.mxu0 %v5056
    %5316 = vmatpush.msra.mxu0 %v5048
    %5317 = vmatpush.msra.mxu0 %v5040
    %5318 = vmatmul.f32.gmra.mxu0 %v5298
    %v5319 = vpop.f32.mrf.mxu0
    %v5320 = vadd.f32 0.0, %v5319
    %5321 = vdwg.mxu0
    %5322 = vmatpush.msra.mxu0 %v5288
    %5323 = vmatpush.msra.mxu0 %v5280
    %5324 = vmatpush.msra.mxu0 %v5272
    %5325 = vmatpush.msra.mxu0 %v5264
    %5326 = vmatpush.msra.mxu0 %v5256
    %5327 = vmatpush.msra.mxu0 %v5248
    %5328 = vmatpush.msra.mxu0 %v5240
    %5329 = vmatpush.msra.mxu0 %v5232
    %5330 = vmatpush.msra.mxu0 %v5224
    %5331 = vmatpush.msra.mxu0 %v5216
    %5332 = vmatpush.msra.mxu0 %v5208
    %5333 = vmatpush.msra.mxu0 %v5200
    %5334 = vmatpush.msra.mxu0 %v5192
    %5335 = vmatpush.msra.mxu0 %v5184
    %5336 = vmatpush.msra.mxu0 %v5176
    %5337 = vmatpush.msra.mxu0 %v5168
    %5338 = vmatmul.f32.gmra.mxu0 %v5299
    %v5339 = vpop.f32.mrf.mxu0
    %v5340 = vadd.f32 %v5320, %v5339
    %5341 = vdwg.mxu0
    %5342 = vmatpush.msra.mxu0 %v5161
    %5343 = vmatpush.msra.mxu0 %v5153
    %5344 = vmatpush.msra.mxu0 %v5145
    %5345 = vmatpush.msra.mxu0 %v5137
    %5346 = vmatpush.msra.mxu0 %v5129
    %5347 = vmatpush.msra.mxu0 %v5121
    %5348 = vmatpush.msra.mxu0 %v5113
    %5349 = vmatpush.msra.mxu0 %v5105
    %5350 = vmatpush.msra.mxu0 %v5097
    %5351 = vmatpush.msra.mxu0 %v5089
    %5352 = vmatpush.msra.mxu0 %v5081
    %5353 = vmatpush.msra.mxu0 %v5073
    %5354 = vmatpush.msra.mxu0 %v5065
    %5355 = vmatpush.msra.mxu0 %v5057
    %5356 = vmatpush.msra.mxu0 %v5049
    %5357 = vmatpush.msra.mxu0 %v5041
    %5358 = vmatmul.f32.gmra.mxu0 %v5298
    %v5359 = vpop.f32.mrf.mxu0
    %v5360 = vadd.f32 0.0, %v5359
    %5361 = vdwg.mxu0
    %5362 = vmatpush.msra.mxu0 %v5289
    %5363 = vmatpush.msra.mxu0 %v5281
    %5364 = vmatpush.msra.mxu0 %v5273
    %5365 = vmatpush.msra.mxu0 %v5265
    %5366 = vmatpush.msra.mxu0 %v5257
    %5367 = vmatpush.msra.mxu0 %v5249
    %5368 = vmatpush.msra.mxu0 %v5241
    %5369 = vmatpush.msra.mxu0 %v5233
    %5370 = vmatpush.msra.mxu0 %v5225
    %5371 = vmatpush.msra.mxu0 %v5217
    %5372 = vmatpush.msra.mxu0 %v5209
    %5373 = vmatpush.msra.mxu0 %v5201
    %5374 = vmatpush.msra.mxu0 %v5193
    %5375 = vmatpush.msra.mxu0 %v5185
    %5376 = vmatpush.msra.mxu0 %v5177
    %5377 = vmatpush.msra.mxu0 %v5169
    %5378 = vmatmul.f32.gmra.mxu0 %v5299
    %v5379 = vpop.f32.mrf.mxu0
    %v5380 = vadd.f32 %v5360, %v5379
    %5381 = vdwg.mxu0
    %5382 = vmatpush.msra.mxu0 %v5162
    %5383 = vmatpush.msra.mxu0 %v5154
    %5384 = vmatpush.msra.mxu0 %v5146
    %5385 = vmatpush.msra.mxu0 %v5138
    %5386 = vmatpush.msra.mxu0 %v5130
    %5387 = vmatpush.msra.mxu0 %v5122
    %5388 = vmatpush.msra.mxu0 %v5114
    %5389 = vmatpush.msra.mxu0 %v5106
    %5390 = vmatpush.msra.mxu0 %v5098
    %5391 = vmatpush.msra.mxu0 %v5090
    %5392 = vmatpush.msra.mxu0 %v5082
    %5393 = vmatpush.msra.mxu0 %v5074
    %5394 = vmatpush.msra.mxu0 %v5066
    %5395 = vmatpush.msra.mxu0 %v5058
    %5396 = vmatpush.msra.mxu0 %v5050
    %5397 = vmatpush.msra.mxu0 %v5042
    %5398 = vmatmul.f32.gmra.mxu0 %v5298
    %v5399 = vpop.f32.mrf.mxu0
    %v5400 = vadd.f32 0.0, %v5399
    %5401 = vdwg.mxu0
    %5402 = vmatpush.msra.mxu0 %v5290
    %5403 = vmatpush.msra.mxu0 %v5282
    %5404 = vmatpush.msra.mxu0 %v5274
    %5405 = vmatpush.msra.mxu0 %v5266
    %5406 = vmatpush.msra.mxu0 %v5258
    %5407 = vmatpush.msra.mxu0 %v5250
    %5408 = vmatpush.msra.mxu0 %v5242
    %5409 = vmatpush.msra.mxu0 %v5234
    %5410 = vmatpush.msra.mxu0 %v5226
    %5411 = vmatpush.msra.mxu0 %v5218
    %5412 = vmatpush.msra.mxu0 %v5210
    %5413 = vmatpush.msra.mxu0 %v5202
    %5414 = vmatpush.msra.mxu0 %v5194
    %5415 = vmatpush.msra.mxu0 %v5186
    %5416 = vmatpush.msra.mxu0 %v5178
    %5417 = vmatpush.msra.mxu0 %v5170
    %5418 = vmatmul.f32.gmra.mxu0 %v5299
    %v5419 = vpop.f32.mrf.mxu0
    %v5420 = vadd.f32 %v5400, %v5419
    %5421 = vdwg.mxu0
    %5422 = vmatpush.msra.mxu0 %v5163
    %5423 = vmatpush.msra.mxu0 %v5155
    %5424 = vmatpush.msra.mxu0 %v5147
    %5425 = vmatpush.msra.mxu0 %v5139
    %5426 = vmatpush.msra.mxu0 %v5131
    %5427 = vmatpush.msra.mxu0 %v5123
    %5428 = vmatpush.msra.mxu0 %v5115
    %5429 = vmatpush.msra.mxu0 %v5107
    %5430 = vmatpush.msra.mxu0 %v5099
    %5431 = vmatpush.msra.mxu0 %v5091
    %5432 = vmatpush.msra.mxu0 %v5083
    %5433 = vmatpush.msra.mxu0 %v5075
    %5434 = vmatpush.msra.mxu0 %v5067
    %5435 = vmatpush.msra.mxu0 %v5059
    %5436 = vmatpush.msra.mxu0 %v5051
    %5437 = vmatpush.msra.mxu0 %v5043
    %5438 = vmatmul.f32.gmra.mxu0 %v5298
    %v5439 = vpop.f32.mrf.mxu0
    %v5440 = vadd.f32 0.0, %v5439
    %5441 = vdwg.mxu0
    %5442 = vmatpush.msra.mxu0 %v5291
    %5443 = vmatpush.msra.mxu0 %v5283
    %5444 = vmatpush.msra.mxu0 %v5275
    %5445 = vmatpush.msra.mxu0 %v5267
    %5446 = vmatpush.msra.mxu0 %v5259
    %5447 = vmatpush.msra.mxu0 %v5251
    %5448 = vmatpush.msra.mxu0 %v5243
    %5449 = vmatpush.msra.mxu0 %v5235
    %5450 = vmatpush.msra.mxu0 %v5227
    %5451 = vmatpush.msra.mxu0 %v5219
    %5452 = vmatpush.msra.mxu0 %v5211
    %5453 = vmatpush.msra.mxu0 %v5203
    %5454 = vmatpush.msra.mxu0 %v5195
    %5455 = vmatpush.msra.mxu0 %v5187
    %5456 = vmatpush.msra.mxu0 %v5179
    %5457 = vmatpush.msra.mxu0 %v5171
    %5458 = vmatmul.f32.gmra.mxu0 %v5299
    %v5459 = vpop.f32.mrf.mxu0
    %v5460 = vadd.f32 %v5440, %v5459
    %5461 = vdwg.mxu0
    %5462 = vmatpush.msra.mxu0 %v5164
    %5463 = vmatpush.msra.mxu0 %v5156
    %5464 = vmatpush.msra.mxu0 %v5148
    %5465 = vmatpush.msra.mxu0 %v5140
    %5466 = vmatpush.msra.mxu0 %v5132
    %5467 = vmatpush.msra.mxu0 %v5124
    %5468 = vmatpush.msra.mxu0 %v5116
    %5469 = vmatpush.msra.mxu0 %v5108
    %5470 = vmatpush.msra.mxu0 %v5100
    %5471 = vmatpush.msra.mxu0 %v5092
    %5472 = vmatpush.msra.mxu0 %v5084
    %5473 = vmatpush.msra.mxu0 %v5076
    %5474 = vmatpush.msra.mxu0 %v5068
    %5475 = vmatpush.msra.mxu0 %v5060
    %5476 = vmatpush.msra.mxu0 %v5052
    %5477 = vmatpush.msra.mxu0 %v5044
    %5478 = vmatmul.f32.gmra.mxu0 %v5298
    %v5479 = vpop.f32.mrf.mxu0
    %v5480 = vadd.f32 0.0, %v5479
    %5481 = vdwg.mxu0
    %5482 = vmatpush.msra.mxu0 %v5292
    %5483 = vmatpush.msra.mxu0 %v5284
    %5484 = vmatpush.msra.mxu0 %v5276
    %5485 = vmatpush.msra.mxu0 %v5268
    %5486 = vmatpush.msra.mxu0 %v5260
    %5487 = vmatpush.msra.mxu0 %v5252
    %5488 = vmatpush.msra.mxu0 %v5244
    %5489 = vmatpush.msra.mxu0 %v5236
    %5490 = vmatpush.msra.mxu0 %v5228
    %5491 = vmatpush.msra.mxu0 %v5220
    %5492 = vmatpush.msra.mxu0 %v5212
    %5493 = vmatpush.msra.mxu0 %v5204
    %5494 = vmatpush.msra.mxu0 %v5196
    %5495 = vmatpush.msra.mxu0 %v5188
    %5496 = vmatpush.msra.mxu0 %v5180
    %5497 = vmatpush.msra.mxu0 %v5172
    %5498 = vmatmul.f32.gmra.mxu0 %v5299
    %v5499 = vpop.f32.mrf.mxu0
    %v5500 = vadd.f32 %v5480, %v5499
    %5501 = vdwg.mxu0
    %5502 = vmatpush.msra.mxu0 %v5165
    %5503 = vmatpush.msra.mxu0 %v5157
    %5504 = vmatpush.msra.mxu0 %v5149
    %5505 = vmatpush.msra.mxu0 %v5141
    %5506 = vmatpush.msra.mxu0 %v5133
    %5507 = vmatpush.msra.mxu0 %v5125
    %5508 = vmatpush.msra.mxu0 %v5117
    %5509 = vmatpush.msra.mxu0 %v5109
    %5510 = vmatpush.msra.mxu0 %v5101
    %5511 = vmatpush.msra.mxu0 %v5093
    %5512 = vmatpush.msra.mxu0 %v5085
    %5513 = vmatpush.msra.mxu0 %v5077
    %5514 = vmatpush.msra.mxu0 %v5069
    %5515 = vmatpush.msra.mxu0 %v5061
    %5516 = vmatpush.msra.mxu0 %v5053
    %5517 = vmatpush.msra.mxu0 %v5045
    %5518 = vmatmul.f32.gmra.mxu0 %v5298
    %v5519 = vpop.f32.mrf.mxu0
    %v5520 = vadd.f32 0.0, %v5519
    %5521 = vdwg.mxu0
    %5522 = vmatpush.msra.mxu0 %v5293
    %5523 = vmatpush.msra.mxu0 %v5285
    %5524 = vmatpush.msra.mxu0 %v5277
    %5525 = vmatpush.msra.mxu0 %v5269
    %5526 = vmatpush.msra.mxu0 %v5261
    %5527 = vmatpush.msra.mxu0 %v5253
    %5528 = vmatpush.msra.mxu0 %v5245
    %5529 = vmatpush.msra.mxu0 %v5237
    %5530 = vmatpush.msra.mxu0 %v5229
    %5531 = vmatpush.msra.mxu0 %v5221
    %5532 = vmatpush.msra.mxu0 %v5213
    %5533 = vmatpush.msra.mxu0 %v5205
    %5534 = vmatpush.msra.mxu0 %v5197
    %5535 = vmatpush.msra.mxu0 %v5189
    %5536 = vmatpush.msra.mxu0 %v5181
    %5537 = vmatpush.msra.mxu0 %v5173
    %5538 = vmatmul.f32.gmra.mxu0 %v5299
    %v5539 = vpop.f32.mrf.mxu0
    %v5540 = vadd.f32 %v5520, %v5539
    %5541 = vdwg.mxu0
    %5542 = vmatpush.msra.mxu0 %v5166
    %5543 = vmatpush.msra.mxu0 %v5158
    %5544 = vmatpush.msra.mxu0 %v5150
    %5545 = vmatpush.msra.mxu0 %v5142
    %5546 = vmatpush.msra.mxu0 %v5134
    %5547 = vmatpush.msra.mxu0 %v5126
    %5548 = vmatpush.msra.mxu0 %v5118
    %5549 = vmatpush.msra.mxu0 %v5110
    %5550 = vmatpush.msra.mxu0 %v5102
    %5551 = vmatpush.msra.mxu0 %v5094
    %5552 = vmatpush.msra.mxu0 %v5086
    %5553 = vmatpush.msra.mxu0 %v5078
    %5554 = vmatpush.msra.mxu0 %v5070
    %5555 = vmatpush.msra.mxu0 %v5062
    %5556 = vmatpush.msra.mxu0 %v5054
    %5557 = vmatpush.msra.mxu0 %v5046
    %5558 = vmatmul.f32.gmra.mxu0 %v5298
    %v5559 = vpop.f32.mrf.mxu0
    %v5560 = vadd.f32 0.0, %v5559
    %5561 = vdwg.mxu0
    %5562 = vmatpush.msra.mxu0 %v5294
    %5563 = vmatpush.msra.mxu0 %v5286
    %5564 = vmatpush.msra.mxu0 %v5278
    %5565 = vmatpush.msra.mxu0 %v5270
    %5566 = vmatpush.msra.mxu0 %v5262
    %5567 = vmatpush.msra.mxu0 %v5254
    %5568 = vmatpush.msra.mxu0 %v5246
    %5569 = vmatpush.msra.mxu0 %v5238
    %5570 = vmatpush.msra.mxu0 %v5230
    %5571 = vmatpush.msra.mxu0 %v5222
    %5572 = vmatpush.msra.mxu0 %v5214
    %5573 = vmatpush.msra.mxu0 %v5206
    %5574 = vmatpush.msra.mxu0 %v5198
    %5575 = vmatpush.msra.mxu0 %v5190
    %5576 = vmatpush.msra.mxu0 %v5182
    %5577 = vmatpush.msra.mxu0 %v5174
    %5578 = vmatmul.f32.gmra.mxu0 %v5299
    %v5579 = vpop.f32.mrf.mxu0
    %v5580 = vadd.f32 %v5560, %v5579
    %5581 = vdwg.mxu0
    %5582 = vmatpush.msra.mxu0 %v5167
    %5583 = vmatpush.msra.mxu0 %v5159
    %5584 = vmatpush.msra.mxu0 %v5151
    %5585 = vmatpush.msra.mxu0 %v5143
    %5586 = vmatpush.msra.mxu0 %v5135
    %5587 = vmatpush.msra.mxu0 %v5127
    %5588 = vmatpush.msra.mxu0 %v5119
    %5589 = vmatpush.msra.mxu0 %v5111
    %5590 = vmatpush.msra.mxu0 %v5103
    %5591 = vmatpush.msra.mxu0 %v5095
    %5592 = vmatpush.msra.mxu0 %v5087
    %5593 = vmatpush.msra.mxu0 %v5079
    %5594 = vmatpush.msra.mxu0 %v5071
    %5595 = vmatpush.msra.mxu0 %v5063
    %5596 = vmatpush.msra.mxu0 %v5055
    %5597 = vmatpush.msra.mxu0 %v5047
    %5598 = vmatmul.f32.gmra.mxu0 %v5298
    %v5599 = vpop.f32.mrf.mxu0
    %v5600 = vadd.f32 0.0, %v5599
    %5601 = vdwg.mxu0
    %5602 = vmatpush.msra.mxu0 %v5295
    %5603 = vmatpush.msra.mxu0 %v5287
    %5604 = vmatpush.msra.mxu0 %v5279
    %5605 = vmatpush.msra.mxu0 %v5271
    %5606 = vmatpush.msra.mxu0 %v5263
    %5607 = vmatpush.msra.mxu0 %v5255
    %5608 = vmatpush.msra.mxu0 %v5247
    %5609 = vmatpush.msra.mxu0 %v5239
    %5610 = vmatpush.msra.mxu0 %v5231
    %5611 = vmatpush.msra.mxu0 %v5223
    %5612 = vmatpush.msra.mxu0 %v5215
    %5613 = vmatpush.msra.mxu0 %v5207
    %5614 = vmatpush.msra.mxu0 %v5199
    %5615 = vmatpush.msra.mxu0 %v5191
    %5616 = vmatpush.msra.mxu0 %v5183
    %5617 = vmatpush.msra.mxu0 %v5175
    %5618 = vmatmul.f32.gmra.mxu0 %v5299
    %v5619 = vpop.f32.mrf.mxu0
    %v5620 = vadd.f32 %v5600, %v5619
    %5621 = vdwg.mxu0
    %v5622 = vld [vmem:[%s505] sm:$0xff]
    %v5623 = vld [vmem:[%s412 + $0x8] sm:$0xff]
    %v5624 = vld [vmem:[#allocation4] sm:$0xf]
    %5626 = vst [vmem:[#allocation1] ss:$4 sm:$0xff] %v5622
    %v5627 = vld.sshfl [vmem:[#allocation1] sm:$0xff pattern:$0x73625140]
    %v5628 = vld.sshfl [vmem:[#allocation1 + $0x8] sm:$0xff pattern:$0x73625140]
    %v5629 = vld.sshfl [vmem:[#allocation1 + $0x10] sm:$0xff pattern:$0x73625140]
    %v5630 = vld.sshfl [vmem:[#allocation1 + $0x18] sm:$0xff pattern:$0x73625140]
    %v5635 = vadd.f32 %v5340, %v5627
    %v5636 = vadd.f32 %v5380, %v5628
    %v5637 = vadd.f32 %v5420, %v5629
    %v5638 = vadd.f32 %v5460, %v5630
    %v5639 = vxor.u32 %v5635, 2147483648
    %v5640 = vmul.f32 %v5639, 1.442695
    %v5641 = vpow.pop %v5640
    %v5642 = vadd.f32 %v5641, 1.0
    %v5643 = vrcp.pop %v5642
    %v5644 = vmul.f32 %v5642, %v5643
    %v5645 = vsub.f32 1.0, %v5644
    %v5646 = vmul.f32 %v5643, %v5645
    %v5647 = vadd.f32 %v5643, %v5646
    %vm5648 = vweird.f32 %v5642
    %vm5649 = vweird.f32 %v5643
    %vm5650 = vmor %vm5648, %vm5649
    %v5651 = vsel %vm5650, %v5643, %v5647
    %v5652 = vand.u32 2147483647, %v5642
    %vm5653 = vcmp.eq.f32.partialorder %v5652, 8.507059e+37
    %v5654 = vand.u32 %v5642, 2147483648
    %v5655 = vor.u32 1.1754944e-38, %v5654
    %v5656 = vsel %vm5653, %v5655, %v5651
    %v5657 = vmul.f32 1.0, %v5656
    %v5658 = vxor.u32 %v5636, 2147483648
    %v5659 = vmul.f32 %v5658, 1.442695
    %v5660 = vpow.pop %v5659
    %v5661 = vadd.f32 %v5660, 1.0
    %v5662 = vrcp.pop %v5661
    %v5663 = vmul.f32 %v5661, %v5662
    %v5664 = vsub.f32 1.0, %v5663
    %v5665 = vmul.f32 %v5662, %v5664
    %v5666 = vadd.f32 %v5662, %v5665
    %vm5667 = vweird.f32 %v5661
    %vm5668 = vweird.f32 %v5662
    %vm5669 = vmor %vm5667, %vm5668
    %v5670 = vsel %vm5669, %v5662, %v5666
    %v5671 = vand.u32 2147483647, %v5661
    %vm5672 = vcmp.eq.f32.partialorder %v5671, 8.507059e+37
    %v5673 = vand.u32 %v5661, 2147483648
    %v5674 = vor.u32 1.1754944e-38, %v5673
    %v5675 = vsel %vm5672, %v5674, %v5670
    %v5676 = vmul.f32 1.0, %v5675
    %v5677 = vtanh.pop %v5637
    %v5678 = vxor.u32 %v5638, 2147483648
    %v5679 = vmul.f32 %v5678, 1.442695
    %v5680 = vpow.pop %v5679
    %v5681 = vadd.f32 %v5680, 1.0
    %v5682 = vrcp.pop %v5681
    %v5683 = vmul.f32 %v5681, %v5682
    %v5684 = vsub.f32 1.0, %v5683
    %v5685 = vmul.f32 %v5682, %v5684
    %v5686 = vadd.f32 %v5682, %v5685
    %vm5687 = vweird.f32 %v5681
    %vm5688 = vweird.f32 %v5682
    %vm5689 = vmor %vm5687, %vm5688
    %v5690 = vsel %vm5689, %v5682, %v5686
    %v5691 = vand.u32 2147483647, %v5681
    %vm5692 = vcmp.eq.f32.partialorder %v5691, 8.507059e+37
    %v5693 = vand.u32 %v5681, 2147483648
    %v5694 = vor.u32 1.1754944e-38, %v5693
    %v5695 = vsel %vm5692, %v5694, %v5690
    %v5696 = vmul.f32 1.0, %v5695
    %v5697 = vmul.f32 %v5676, %v5624
    %v5698 = vmul.f32 %v5657, %v5677
    %v5699 = vadd.f32 %v5697, %v5698
    %v5700 = vtanh.pop %v5699
    %v5701 = vmul.f32 %v5696, %v5700
    %5703 = vst [vmem:[#allocation1] ss:$4 sm:$0xff] %v5623
    %v5704 = vld.sshfl [vmem:[#allocation1] sm:$0xff pattern:$0x73625140]
    %v5705 = vld.sshfl [vmem:[#allocation1 + $0x8] sm:$0xff pattern:$0x73625140]
    %v5706 = vld.sshfl [vmem:[#allocation1 + $0x10] sm:$0xff pattern:$0x73625140]
    %v5707 = vld.sshfl [vmem:[#allocation1 + $0x18] sm:$0xff pattern:$0x73625140]
    %v5712 = vadd.f32 %v5500, %v5704
    %v5713 = vadd.f32 %v5540, %v5705
    %v5714 = vadd.f32 %v5580, %v5706
    %v5715 = vadd.f32 %v5620, %v5707
    %v5716 = vxor.u32 %v5712, 2147483648
    %v5717 = vmul.f32 %v5716, 1.442695
    %v5718 = vpow.pop %v5717
    %v5719 = vadd.f32 %v5718, 1.0
    %v5720 = vrcp.pop %v5719
    %v5721 = vmul.f32 %v5719, %v5720
    %v5722 = vsub.f32 1.0, %v5721
    %v5723 = vmul.f32 %v5720, %v5722
    %v5724 = vadd.f32 %v5720, %v5723
    %vm5725 = vweird.f32 %v5719
    %vm5726 = vweird.f32 %v5720
    %vm5727 = vmor %vm5725, %vm5726
    %v5728 = vsel %vm5727, %v5720, %v5724
    %v5729 = vand.u32 2147483647, %v5719
    %vm5730 = vcmp.eq.f32.partialorder %v5729, 8.507059e+37
    %v5731 = vand.u32 %v5719, 2147483648
    %v5732 = vor.u32 1.1754944e-38, %v5731
    %v5733 = vsel %vm5730, %v5732, %v5728
    %v5734 = vmul.f32 1.0, %v5733
    %v5735 = vxor.u32 %v5713, 2147483648
    %v5736 = vmul.f32 %v5735, 1.442695
    %v5737 = vpow.pop %v5736
    %v5738 = vadd.f32 %v5737, 1.0
    %v5739 = vrcp.pop %v5738
    %v5740 = vmul.f32 %v5738, %v5739
    %v5741 = vsub.f32 1.0, %v5740
    %v5742 = vmul.f32 %v5739, %v5741
    %v5743 = vadd.f32 %v5739, %v5742
    %vm5744 = vweird.f32 %v5738
    %vm5745 = vweird.f32 %v5739
    %vm5746 = vmor %vm5744, %vm5745
    %v5747 = vsel %vm5746, %v5739, %v5743
    %v5748 = vand.u32 2147483647, %v5738
    %vm5749 = vcmp.eq.f32.partialorder %v5748, 8.507059e+37
    %v5750 = vand.u32 %v5738, 2147483648
    %v5751 = vor.u32 1.1754944e-38, %v5750
    %v5752 = vsel %vm5749, %v5751, %v5747
    %v5753 = vmul.f32 1.0, %v5752
    %v5754 = vtanh.pop %v5714
    %v5755 = vxor.u32 %v5715, 2147483648
    %v5756 = vmul.f32 %v5755, 1.442695
    %v5757 = vpow.pop %v5756
    %v5758 = vadd.f32 %v5757, 1.0
    %v5759 = vrcp.pop %v5758
    %v5760 = vmul.f32 %v5758, %v5759
    %v5761 = vsub.f32 1.0, %v5760
    %v5762 = vmul.f32 %v5759, %v5761
    %v5763 = vadd.f32 %v5759, %v5762
    %vm5764 = vweird.f32 %v5758
    %vm5765 = vweird.f32 %v5759
    %vm5766 = vmor %vm5764, %vm5765
    %v5767 = vsel %vm5766, %v5759, %v5763
    %v5768 = vand.u32 2147483647, %v5758
    %vm5769 = vcmp.eq.f32.partialorder %v5768, 8.507059e+37
    %v5770 = vand.u32 %v5758, 2147483648
    %v5771 = vor.u32 1.1754944e-38, %v5770
    %v5772 = vsel %vm5769, %v5771, %v5767
    %v5773 = vmul.f32 1.0, %v5772
    %5775 = vst [vmem:[#allocation1] ss:$4 sm:$0xff] %v5624
    %v5776 = vld.sshfl [vmem:[#allocation1 + $0x8] sm:$0xff pattern:$0x73625140]
    %v5778 = vmul.f32 %v5753, %v5776
    %v5779 = vmul.f32 %v5734, %v5754
    %v5780 = vadd.f32 %v5778, %v5779
    %v5781 = vtanh.pop %v5780
    %v5782 = vmul.f32 %v5773, %v5781
    %5783 = vst [vmem:[#allocation3] sm:$0x3] %v5701
    %5784 = vst [vmem:[#allocation3 + $0x2] sm:$0x3] %v5782
    %5785 = vst [vmem:[#allocation4] sm:$0x3] %v5699
    %5786 = vst [vmem:[#allocation4 + $0x2] sm:$0x3] %v5780
    %s5787 = scalar_lea.vmem %s4, 12
    %5788 = vst.msk [vmem:[%s5787] sm:$0x3] %vm1275, %v5701
    %s5789 = scalar_lea.vmem %s5, 2
    %5790 = vst.msk [vmem:[%s5789] sm:$0x3] %vm1275, %v5782
    %v5791 = vld [vmem:[#allocation3] sm:$0xf]
    %v5792 = vld [vmem:[#allocation9] sm:$0xff]
    %v5793 = vld [vmem:[#allocation9 + $0x8] sm:$0xff]
    %v5794 = vld [vmem:[#allocation9 + $0x10] sm:$0xff]
    %v5795 = vld [vmem:[#allocation9 + $0x18] sm:$0xff]
    %v5796 = vld [vmem:[#allocation9 + $0x20] sm:$0xff]
    %v5797 = vld [vmem:[#allocation9 + $0x28] sm:$0xff]
    %v5798 = vld [vmem:[#allocation9 + $0x30] sm:$0xff]
    %v5799 = vld [vmem:[#allocation9 + $0x38] sm:$0xff]
    %v5800 = vld [vmem:[#allocation9 + $0x40] sm:$0xff]
    %v5801 = vld [vmem:[#allocation9 + $0x48] sm:$0xff]
    %v5802 = vld [vmem:[#allocation9 + $0x50] sm:$0xff]
    %v5803 = vld [vmem:[#allocation9 + $0x58] sm:$0xff]
    %v5804 = vld [vmem:[#allocation9 + $0x60] sm:$0xff]
    %v5805 = vld [vmem:[#allocation9 + $0x68] sm:$0xff]
    %v5806 = vld [vmem:[#allocation9 + $0x70] sm:$0xff]
    %v5807 = vld [vmem:[#allocation9 + $0x78] sm:$0xff]
    %v5808 = vld [vmem:[#allocation9 + $0x80] sm:$0xff]
    %v5809 = vld [vmem:[#allocation9 + $0x88] sm:$0xff]
    %v5810 = vld [vmem:[#allocation9 + $0x90] sm:$0xff]
    %v5811 = vld [vmem:[#allocation9 + $0x98] sm:$0xff]
    %v5812 = vld [vmem:[#allocation9 + $0xa0] sm:$0xff]
    %v5813 = vld [vmem:[#allocation9 + $0xa8] sm:$0xff]
    %v5814 = vld [vmem:[#allocation9 + $0xb0] sm:$0xff]
    %v5815 = vld [vmem:[#allocation9 + $0xb8] sm:$0xff]
    %v5816 = vld [vmem:[#allocation9 + $0xc0] sm:$0xff]
    %v5817 = vld [vmem:[#allocation9 + $0xc8] sm:$0xff]
    %v5818 = vld [vmem:[#allocation9 + $0xd0] sm:$0xff]
    %v5819 = vld [vmem:[#allocation9 + $0xd8] sm:$0xff]
    %v5820 = vld [vmem:[#allocation9 + $0xe0] sm:$0xff]
    %v5821 = vld [vmem:[#allocation9 + $0xe8] sm:$0xff]
    %v5822 = vld [vmem:[#allocation9 + $0xf0] sm:$0xff]
    %v5823 = vld [vmem:[#allocation9 + $0xf8] sm:$0xff]
    %v5824 = vld [vmem:[#allocation9 + $0x100] sm:$0xff]
    %v5825 = vld [vmem:[#allocation9 + $0x108] sm:$0xff]
    %v5826 = vld [vmem:[#allocation9 + $0x110] sm:$0xff]
    %v5827 = vld [vmem:[#allocation9 + $0x118] sm:$0xff]
    %v5828 = vld [vmem:[#allocation9 + $0x120] sm:$0xff]
    %v5829 = vld [vmem:[#allocation9 + $0x128] sm:$0xff]
    %v5830 = vld [vmem:[#allocation9 + $0x130] sm:$0xff]
    %v5831 = vld [vmem:[#allocation9 + $0x138] sm:$0xff]
    %v5832 = vld [vmem:[#allocation9 + $0x140] sm:$0xff]
    %v5833 = vld [vmem:[#allocation9 + $0x148] sm:$0xff]
    %v5834 = vld [vmem:[#allocation9 + $0x150] sm:$0xff]
    %v5835 = vld [vmem:[#allocation9 + $0x158] sm:$0xff]
    %v5836 = vld [vmem:[#allocation9 + $0x160] sm:$0xff]
    %v5837 = vld [vmem:[#allocation9 + $0x168] sm:$0xff]
    %v5838 = vld [vmem:[#allocation9 + $0x170] sm:$0xff]
    %v5839 = vld [vmem:[#allocation9 + $0x178] sm:$0xff]
    %v5840 = vld [vmem:[#allocation9 + $0x180] sm:$0xff]
    %v5841 = vld [vmem:[#allocation9 + $0x188] sm:$0xff]
    %v5842 = vld [vmem:[#allocation9 + $0x190] sm:$0xff]
    %v5843 = vld [vmem:[#allocation9 + $0x198] sm:$0xff]
    %v5844 = vld [vmem:[#allocation9 + $0x1a0] sm:$0xff]
    %v5845 = vld [vmem:[#allocation9 + $0x1a8] sm:$0xff]
    %v5846 = vld [vmem:[#allocation9 + $0x1b0] sm:$0xff]
    %v5847 = vld [vmem:[#allocation9 + $0x1b8] sm:$0xff]
    %v5848 = vld [vmem:[#allocation9 + $0x1c0] sm:$0xff]
    %v5849 = vld [vmem:[#allocation9 + $0x1c8] sm:$0xff]
    %v5850 = vld [vmem:[#allocation9 + $0x1d0] sm:$0xff]
    %v5851 = vld [vmem:[#allocation9 + $0x1d8] sm:$0xff]
    %v5852 = vld [vmem:[#allocation9 + $0x1e0] sm:$0xff]
    %v5853 = vld [vmem:[#allocation9 + $0x1e8] sm:$0xff]
    %v5854 = vld [vmem:[#allocation9 + $0x1f0] sm:$0xff]
    %v5855 = vld [vmem:[#allocation9 + $0x1f8] sm:$0xff]
    %v5856 = vld [vmem:[#allocation9 + $0x200] sm:$0xff]
    %v5857 = vld [vmem:[#allocation9 + $0x208] sm:$0xff]
    %v5858 = vld [vmem:[#allocation9 + $0x210] sm:$0xff]
    %v5859 = vld [vmem:[#allocation9 + $0x218] sm:$0xff]
    %v5860 = vld [vmem:[#allocation9 + $0x220] sm:$0xff]
    %v5861 = vld [vmem:[#allocation9 + $0x228] sm:$0xff]
    %v5862 = vld [vmem:[#allocation9 + $0x230] sm:$0xff]
    %v5863 = vld [vmem:[#allocation9 + $0x238] sm:$0xff]
    %v5864 = vld [vmem:[#allocation9 + $0x240] sm:$0xff]
    %v5865 = vld [vmem:[#allocation9 + $0x248] sm:$0xff]
    %v5866 = vld [vmem:[#allocation9 + $0x250] sm:$0xff]
    %v5867 = vld [vmem:[#allocation9 + $0x258] sm:$0xff]
    %v5868 = vld [vmem:[#allocation9 + $0x260] sm:$0xff]
    %v5869 = vld [vmem:[#allocation9 + $0x268] sm:$0xff]
    %v5870 = vld [vmem:[#allocation9 + $0x270] sm:$0xff]
    %v5871 = vld [vmem:[#allocation9 + $0x278] sm:$0xff]
    %v5872 = vld [vmem:[#allocation9 + $0x280] sm:$0xff]
    %v5873 = vld [vmem:[#allocation9 + $0x288] sm:$0xff]
    %v5874 = vld [vmem:[#allocation9 + $0x290] sm:$0xff]
    %v5875 = vld [vmem:[#allocation9 + $0x298] sm:$0xff]
    %v5876 = vld [vmem:[#allocation9 + $0x2a0] sm:$0xff]
    %v5877 = vld [vmem:[#allocation9 + $0x2a8] sm:$0xff]
    %v5878 = vld [vmem:[#allocation9 + $0x2b0] sm:$0xff]
    %v5879 = vld [vmem:[#allocation9 + $0x2b8] sm:$0xff]
    %v5880 = vld [vmem:[#allocation9 + $0x2c0] sm:$0xff]
    %v5881 = vld [vmem:[#allocation9 + $0x2c8] sm:$0xff]
    %v5882 = vld [vmem:[#allocation9 + $0x2d0] sm:$0xff]
    %v5883 = vld [vmem:[#allocation9 + $0x2d8] sm:$0xff]
    %v5884 = vld [vmem:[#allocation9 + $0x2e0] sm:$0xff]
    %v5885 = vld [vmem:[#allocation9 + $0x2e8] sm:$0xff]
    %v5886 = vld [vmem:[#allocation9 + $0x2f0] sm:$0xff]
    %v5887 = vld [vmem:[#allocation9 + $0x2f8] sm:$0xff]
    %v5888 = vld [vmem:[#allocation9 + $0x300] sm:$0xff]
    %v5889 = vld [vmem:[#allocation9 + $0x308] sm:$0xff]
    %v5890 = vld [vmem:[#allocation9 + $0x310] sm:$0xff]
    %v5891 = vld [vmem:[#allocation9 + $0x318] sm:$0xff]
    %v5892 = vld [vmem:[#allocation9 + $0x320] sm:$0xff]
    %v5893 = vld [vmem:[#allocation9 + $0x328] sm:$0xff]
    %v5894 = vld [vmem:[#allocation9 + $0x330] sm:$0xff]
    %v5895 = vld [vmem:[#allocation9 + $0x338] sm:$0xff]
    %v5896 = vld [vmem:[#allocation9 + $0x340] sm:$0xff]
    %v5897 = vld [vmem:[#allocation9 + $0x348] sm:$0xff]
    %v5898 = vld [vmem:[#allocation9 + $0x350] sm:$0xff]
    %v5899 = vld [vmem:[#allocation9 + $0x358] sm:$0xff]
    %v5900 = vld [vmem:[#allocation9 + $0x360] sm:$0xff]
    %v5901 = vld [vmem:[#allocation9 + $0x368] sm:$0xff]
    %v5902 = vld [vmem:[#allocation9 + $0x370] sm:$0xff]
    %v5903 = vld [vmem:[#allocation9 + $0x378] sm:$0xff]
    %v5904 = vld [vmem:[#allocation9 + $0x380] sm:$0xff]
    %v5905 = vld [vmem:[#allocation9 + $0x388] sm:$0xff]
    %v5906 = vld [vmem:[#allocation9 + $0x390] sm:$0xff]
    %v5907 = vld [vmem:[#allocation9 + $0x398] sm:$0xff]
    %v5908 = vld [vmem:[#allocation9 + $0x3a0] sm:$0xff]
    %v5909 = vld [vmem:[#allocation9 + $0x3a8] sm:$0xff]
    %v5910 = vld [vmem:[#allocation9 + $0x3b0] sm:$0xff]
    %v5911 = vld [vmem:[#allocation9 + $0x3b8] sm:$0xff]
    %v5912 = vld [vmem:[#allocation9 + $0x3c0] sm:$0xff]
    %v5913 = vld [vmem:[#allocation9 + $0x3c8] sm:$0xff]
    %v5914 = vld [vmem:[#allocation9 + $0x3d0] sm:$0xff]
    %v5915 = vld [vmem:[#allocation9 + $0x3d8] sm:$0xff]
    %v5916 = vld [vmem:[#allocation9 + $0x3e0] sm:$0xff]
    %v5917 = vld [vmem:[#allocation9 + $0x3e8] sm:$0xff]
    %v5918 = vld [vmem:[#allocation9 + $0x3f0] sm:$0xff]
    %v5919 = vld [vmem:[#allocation9 + $0x3f8] sm:$0xff]
    %v5920 = vld [vmem:[#allocation9 + $0x400] sm:$0xff]
    %v5921 = vld [vmem:[#allocation9 + $0x408] sm:$0xff]
    %v5922 = vld [vmem:[#allocation9 + $0x410] sm:$0xff]
    %v5923 = vld [vmem:[#allocation9 + $0x418] sm:$0xff]
    %v5924 = vld [vmem:[#allocation9 + $0x420] sm:$0xff]
    %v5925 = vld [vmem:[#allocation9 + $0x428] sm:$0xff]
    %v5926 = vld [vmem:[#allocation9 + $0x430] sm:$0xff]
    %v5927 = vld [vmem:[#allocation9 + $0x438] sm:$0xff]
    %v5928 = vld [vmem:[#allocation9 + $0x440] sm:$0xff]
    %v5929 = vld [vmem:[#allocation9 + $0x448] sm:$0xff]
    %v5930 = vld [vmem:[#allocation9 + $0x450] sm:$0xff]
    %v5931 = vld [vmem:[#allocation9 + $0x458] sm:$0xff]
    %v5932 = vld [vmem:[#allocation9 + $0x460] sm:$0xff]
    %v5933 = vld [vmem:[#allocation9 + $0x468] sm:$0xff]
    %v5934 = vld [vmem:[#allocation9 + $0x470] sm:$0xff]
    %v5935 = vld [vmem:[#allocation9 + $0x478] sm:$0xff]
    %v5936 = vld [vmem:[#allocation9 + $0x480] sm:$0xff]
    %v5937 = vld [vmem:[#allocation9 + $0x488] sm:$0xff]
    %v5938 = vld [vmem:[#allocation9 + $0x490] sm:$0xff]
    %v5939 = vld [vmem:[#allocation9 + $0x498] sm:$0xff]
    %v5940 = vld [vmem:[#allocation9 + $0x4a0] sm:$0xff]
    %v5941 = vld [vmem:[#allocation9 + $0x4a8] sm:$0xff]
    %v5942 = vld [vmem:[#allocation9 + $0x4b0] sm:$0xff]
    %v5943 = vld [vmem:[#allocation9 + $0x4b8] sm:$0xff]
    %v5944 = vld [vmem:[#allocation9 + $0x4c0] sm:$0xff]
    %v5945 = vld [vmem:[#allocation9 + $0x4c8] sm:$0xff]
    %v5946 = vld [vmem:[#allocation9 + $0x4d0] sm:$0xff]
    %v5947 = vld [vmem:[#allocation9 + $0x4d8] sm:$0xff]
    %v5948 = vld [vmem:[#allocation9 + $0x4e0] sm:$0xff]
    %v5949 = vld [vmem:[#allocation9 + $0x4e8] sm:$0xff]
    %v5950 = vld [vmem:[#allocation9 + $0x4f0] sm:$0xff]
    %v5951 = vld [vmem:[#allocation9 + $0x4f8] sm:$0xff]
    %v5952 = vld [vmem:[#allocation9 + $0x500] sm:$0xff]
    %v5953 = vld [vmem:[#allocation9 + $0x508] sm:$0xff]
    %v5954 = vld [vmem:[#allocation9 + $0x510] sm:$0xff]
    %v5955 = vld [vmem:[#allocation9 + $0x518] sm:$0xff]
    %v5956 = vld [vmem:[#allocation9 + $0x520] sm:$0xff]
    %v5957 = vld [vmem:[#allocation9 + $0x528] sm:$0xff]
    %v5958 = vld [vmem:[#allocation9 + $0x530] sm:$0xff]
    %v5959 = vld [vmem:[#allocation9 + $0x538] sm:$0xff]
    %v5960 = vld [vmem:[#allocation9 + $0x540] sm:$0xff]
    %v5961 = vld [vmem:[#allocation9 + $0x548] sm:$0xff]
    %v5962 = vld [vmem:[#allocation9 + $0x550] sm:$0xff]
    %v5963 = vld [vmem:[#allocation9 + $0x558] sm:$0xff]
    %v5964 = vld [vmem:[#allocation9 + $0x560] sm:$0xff]
    %v5965 = vld [vmem:[#allocation9 + $0x568] sm:$0xff]
    %v5966 = vld [vmem:[#allocation9 + $0x570] sm:$0xff]
    %v5967 = vld [vmem:[#allocation9 + $0x578] sm:$0xff]
    %v5968 = vld [vmem:[#allocation9 + $0x580] sm:$0xff]
    %v5969 = vld [vmem:[#allocation9 + $0x588] sm:$0xff]
    %v5970 = vld [vmem:[#allocation9 + $0x590] sm:$0xff]
    %v5971 = vld [vmem:[#allocation9 + $0x598] sm:$0xff]
    %v5972 = vld [vmem:[#allocation9 + $0x5a0] sm:$0xff]
    %v5973 = vld [vmem:[#allocation9 + $0x5a8] sm:$0xff]
    %v5974 = vld [vmem:[#allocation9 + $0x5b0] sm:$0xff]
    %v5975 = vld [vmem:[#allocation9 + $0x5b8] sm:$0xff]
    %v5976 = vld [vmem:[#allocation9 + $0x5c0] sm:$0xff]
    %v5977 = vld [vmem:[#allocation9 + $0x5c8] sm:$0xff]
    %v5978 = vld [vmem:[#allocation9 + $0x5d0] sm:$0xff]
    %v5979 = vld [vmem:[#allocation9 + $0x5d8] sm:$0xff]
    %v5980 = vld [vmem:[#allocation9 + $0x5e0] sm:$0xff]
    %v5981 = vld [vmem:[#allocation9 + $0x5e8] sm:$0xff]
    %v5982 = vld [vmem:[#allocation9 + $0x5f0] sm:$0xff]
    %v5983 = vld [vmem:[#allocation9 + $0x5f8] sm:$0xff]
    %v5984 = vld [vmem:[#allocation9 + $0x600] sm:$0xff]
    %v5985 = vld [vmem:[#allocation9 + $0x608] sm:$0xff]
    %v5986 = vld [vmem:[#allocation9 + $0x610] sm:$0xff]
    %v5987 = vld [vmem:[#allocation9 + $0x618] sm:$0xff]
    %v5988 = vld [vmem:[#allocation9 + $0x620] sm:$0xff]
    %v5989 = vld [vmem:[#allocation9 + $0x628] sm:$0xff]
    %v5990 = vld [vmem:[#allocation9 + $0x630] sm:$0xff]
    %v5991 = vld [vmem:[#allocation9 + $0x638] sm:$0xff]
    %v5992 = vld [vmem:[#allocation9 + $0x640] sm:$0xff]
    %v5993 = vld [vmem:[#allocation9 + $0x648] sm:$0xff]
    %v5994 = vld [vmem:[#allocation9 + $0x650] sm:$0xff]
    %v5995 = vld [vmem:[#allocation9 + $0x658] sm:$0xff]
    %v5996 = vld [vmem:[#allocation9 + $0x660] sm:$0xff]
    %v5997 = vld [vmem:[#allocation9 + $0x668] sm:$0xff]
    %v5998 = vld [vmem:[#allocation9 + $0x670] sm:$0xff]
    %v5999 = vld [vmem:[#allocation9 + $0x678] sm:$0xff]
    %v6000 = vld [vmem:[#allocation9 + $0x680] sm:$0xff]
    %v6001 = vld [vmem:[#allocation9 + $0x688] sm:$0xff]
    %v6002 = vld [vmem:[#allocation9 + $0x690] sm:$0xff]
    %v6003 = vld [vmem:[#allocation9 + $0x698] sm:$0xff]
    %v6004 = vld [vmem:[#allocation9 + $0x6a0] sm:$0xff]
    %v6005 = vld [vmem:[#allocation9 + $0x6a8] sm:$0xff]
    %v6006 = vld [vmem:[#allocation9 + $0x6b0] sm:$0xff]
    %v6007 = vld [vmem:[#allocation9 + $0x6b8] sm:$0xff]
    %v6008 = vld [vmem:[#allocation9 + $0x6c0] sm:$0xff]
    %v6009 = vld [vmem:[#allocation9 + $0x6c8] sm:$0xff]
    %v6010 = vld [vmem:[#allocation9 + $0x6d0] sm:$0xff]
    %v6011 = vld [vmem:[#allocation9 + $0x6d8] sm:$0xff]
    %v6012 = vld [vmem:[#allocation9 + $0x6e0] sm:$0xff]
    %v6013 = vld [vmem:[#allocation9 + $0x6e8] sm:$0xff]
    %v6014 = vld [vmem:[#allocation9 + $0x6f0] sm:$0xff]
    %v6015 = vld [vmem:[#allocation9 + $0x6f8] sm:$0xff]
    %v6016 = vld [vmem:[#allocation9 + $0x700] sm:$0xff]
    %v6017 = vld [vmem:[#allocation9 + $0x708] sm:$0xff]
    %v6018 = vld [vmem:[#allocation9 + $0x710] sm:$0xff]
    %v6019 = vld [vmem:[#allocation9 + $0x718] sm:$0xff]
    %v6020 = vld [vmem:[#allocation9 + $0x720] sm:$0xff]
    %v6021 = vld [vmem:[#allocation9 + $0x728] sm:$0xff]
    %v6022 = vld [vmem:[#allocation9 + $0x730] sm:$0xff]
    %v6023 = vld [vmem:[#allocation9 + $0x738] sm:$0xff]
    %v6024 = vld [vmem:[#allocation9 + $0x740] sm:$0xff]
    %v6025 = vld [vmem:[#allocation9 + $0x748] sm:$0xff]
    %v6026 = vld [vmem:[#allocation9 + $0x750] sm:$0xff]
    %v6027 = vld [vmem:[#allocation9 + $0x758] sm:$0xff]
    %v6028 = vld [vmem:[#allocation9 + $0x760] sm:$0xff]
    %v6029 = vld [vmem:[#allocation9 + $0x768] sm:$0xff]
    %v6030 = vld [vmem:[#allocation9 + $0x770] sm:$0xff]
    %v6031 = vld [vmem:[#allocation9 + $0x778] sm:$0xff]
    %v6032 = vld [vmem:[#allocation9 + $0x780] sm:$0xff]
    %v6033 = vld [vmem:[#allocation9 + $0x788] sm:$0xff]
    %v6034 = vld [vmem:[#allocation9 + $0x790] sm:$0xff]
    %v6035 = vld [vmem:[#allocation9 + $0x798] sm:$0xff]
    %v6036 = vld [vmem:[#allocation9 + $0x7a0] sm:$0xff]
    %v6037 = vld [vmem:[#allocation9 + $0x7a8] sm:$0xff]
    %v6038 = vld [vmem:[#allocation9 + $0x7b0] sm:$0xff]
    %v6039 = vld [vmem:[#allocation9 + $0x7b8] sm:$0xff]
    %v6040 = vld [vmem:[#allocation9 + $0x7c0] sm:$0xff]
    %v6041 = vld [vmem:[#allocation9 + $0x7c8] sm:$0xff]
    %v6042 = vld [vmem:[#allocation9 + $0x7d0] sm:$0xff]
    %v6043 = vld [vmem:[#allocation9 + $0x7d8] sm:$0xff]
    %v6044 = vld [vmem:[#allocation9 + $0x7e0] sm:$0xff]
    %v6045 = vld [vmem:[#allocation9 + $0x7e8] sm:$0xff]
    %v6046 = vld [vmem:[#allocation9 + $0x7f0] sm:$0xff]
    %v6047 = vld [vmem:[#allocation9 + $0x7f8] sm:$0xff]
    %6049 = vst [vmem:[#allocation1] ss:$4 sm:$0xff] %v5791
    %v6050 = vld.sshfl [vmem:[#allocation1] sm:$0xff pattern:$0x73625140]
    %v6051 = vld.sshfl [vmem:[#allocation1 + $0x8] sm:$0xff pattern:$0x73625140]
    %6054 = vmatpush.msra.mxu0 %v5912
    %6055 = vmatpush.msra.mxu0 %v5904
    %6056 = vmatpush.msra.mxu0 %v5896
    %6057 = vmatpush.msra.mxu0 %v5888
    %6058 = vmatpush.msra.mxu0 %v5880
    %6059 = vmatpush.msra.mxu0 %v5872
    %6060 = vmatpush.msra.mxu0 %v5864
    %6061 = vmatpush.msra.mxu0 %v5856
    %6062 = vmatpush.msra.mxu0 %v5848
    %6063 = vmatpush.msra.mxu0 %v5840
    %6064 = vmatpush.msra.mxu0 %v5832
    %6065 = vmatpush.msra.mxu0 %v5824
    %6066 = vmatpush.msra.mxu0 %v5816
    %6067 = vmatpush.msra.mxu0 %v5808
    %6068 = vmatpush.msra.mxu0 %v5800
    %6069 = vmatpush.msra.mxu0 %v5792
    %6070 = vmatmul.f32.gmra.mxu0 %v6050
    %v6071 = vpop.f32.mrf.mxu0
    %v6072 = vadd.f32 0.0, %v6071
    %6073 = vdwg.mxu0
    %6074 = vmatpush.msra.mxu0 %v6040
    %6075 = vmatpush.msra.mxu0 %v6032
    %6076 = vmatpush.msra.mxu0 %v6024
    %6077 = vmatpush.msra.mxu0 %v6016
    %6078 = vmatpush.msra.mxu0 %v6008
    %6079 = vmatpush.msra.mxu0 %v6000
    %6080 = vmatpush.msra.mxu0 %v5992
    %6081 = vmatpush.msra.mxu0 %v5984
    %6082 = vmatpush.msra.mxu0 %v5976
    %6083 = vmatpush.msra.mxu0 %v5968
    %6084 = vmatpush.msra.mxu0 %v5960
    %6085 = vmatpush.msra.mxu0 %v5952
    %6086 = vmatpush.msra.mxu0 %v5944
    %6087 = vmatpush.msra.mxu0 %v5936
    %6088 = vmatpush.msra.mxu0 %v5928
    %6089 = vmatpush.msra.mxu0 %v5920
    %6090 = vmatmul.f32.gmra.mxu0 %v6051
    %v6091 = vpop.f32.mrf.mxu0
    %v6092 = vadd.f32 %v6072, %v6091
    %6093 = vdwg.mxu0
    %6094 = vmatpush.msra.mxu0 %v5913
    %6095 = vmatpush.msra.mxu0 %v5905
    %6096 = vmatpush.msra.mxu0 %v5897
    %6097 = vmatpush.msra.mxu0 %v5889
    %6098 = vmatpush.msra.mxu0 %v5881
    %6099 = vmatpush.msra.mxu0 %v5873
    %6100 = vmatpush.msra.mxu0 %v5865
    %6101 = vmatpush.msra.mxu0 %v5857
    %6102 = vmatpush.msra.mxu0 %v5849
    %6103 = vmatpush.msra.mxu0 %v5841
    %6104 = vmatpush.msra.mxu0 %v5833
    %6105 = vmatpush.msra.mxu0 %v5825
    %6106 = vmatpush.msra.mxu0 %v5817
    %6107 = vmatpush.msra.mxu0 %v5809
    %6108 = vmatpush.msra.mxu0 %v5801
    %6109 = vmatpush.msra.mxu0 %v5793
    %6110 = vmatmul.f32.gmra.mxu0 %v6050
    %v6111 = vpop.f32.mrf.mxu0
    %v6112 = vadd.f32 0.0, %v6111
    %6113 = vdwg.mxu0
    %6114 = vmatpush.msra.mxu0 %v6041
    %6115 = vmatpush.msra.mxu0 %v6033
    %6116 = vmatpush.msra.mxu0 %v6025
    %6117 = vmatpush.msra.mxu0 %v6017
    %6118 = vmatpush.msra.mxu0 %v6009
    %6119 = vmatpush.msra.mxu0 %v6001
    %6120 = vmatpush.msra.mxu0 %v5993
    %6121 = vmatpush.msra.mxu0 %v5985
    %6122 = vmatpush.msra.mxu0 %v5977
    %6123 = vmatpush.msra.mxu0 %v5969
    %6124 = vmatpush.msra.mxu0 %v5961
    %6125 = vmatpush.msra.mxu0 %v5953
    %6126 = vmatpush.msra.mxu0 %v5945
    %6127 = vmatpush.msra.mxu0 %v5937
    %6128 = vmatpush.msra.mxu0 %v5929
    %6129 = vmatpush.msra.mxu0 %v5921
    %6130 = vmatmul.f32.gmra.mxu0 %v6051
    %v6131 = vpop.f32.mrf.mxu0
    %v6132 = vadd.f32 %v6112, %v6131
    %6133 = vdwg.mxu0
    %6134 = vmatpush.msra.mxu0 %v5914
    %6135 = vmatpush.msra.mxu0 %v5906
    %6136 = vmatpush.msra.mxu0 %v5898
    %6137 = vmatpush.msra.mxu0 %v5890
    %6138 = vmatpush.msra.mxu0 %v5882
    %6139 = vmatpush.msra.mxu0 %v5874
    %6140 = vmatpush.msra.mxu0 %v5866
    %6141 = vmatpush.msra.mxu0 %v5858
    %6142 = vmatpush.msra.mxu0 %v5850
    %6143 = vmatpush.msra.mxu0 %v5842
    %6144 = vmatpush.msra.mxu0 %v5834
    %6145 = vmatpush.msra.mxu0 %v5826
    %6146 = vmatpush.msra.mxu0 %v5818
    %6147 = vmatpush.msra.mxu0 %v5810
    %6148 = vmatpush.msra.mxu0 %v5802
    %6149 = vmatpush.msra.mxu0 %v5794
    %6150 = vmatmul.f32.gmra.mxu0 %v6050
    %v6151 = vpop.f32.mrf.mxu0
    %v6152 = vadd.f32 0.0, %v6151
    %6153 = vdwg.mxu0
    %6154 = vmatpush.msra.mxu0 %v6042
    %6155 = vmatpush.msra.mxu0 %v6034
    %6156 = vmatpush.msra.mxu0 %v6026
    %6157 = vmatpush.msra.mxu0 %v6018
    %6158 = vmatpush.msra.mxu0 %v6010
    %6159 = vmatpush.msra.mxu0 %v6002
    %6160 = vmatpush.msra.mxu0 %v5994
    %6161 = vmatpush.msra.mxu0 %v5986
    %6162 = vmatpush.msra.mxu0 %v5978
    %6163 = vmatpush.msra.mxu0 %v5970
    %6164 = vmatpush.msra.mxu0 %v5962
    %6165 = vmatpush.msra.mxu0 %v5954
    %6166 = vmatpush.msra.mxu0 %v5946
    %6167 = vmatpush.msra.mxu0 %v5938
    %6168 = vmatpush.msra.mxu0 %v5930
    %6169 = vmatpush.msra.mxu0 %v5922
    %6170 = vmatmul.f32.gmra.mxu0 %v6051
    %v6171 = vpop.f32.mrf.mxu0
    %v6172 = vadd.f32 %v6152, %v6171
    %6173 = vdwg.mxu0
    %6174 = vmatpush.msra.mxu0 %v5915
    %6175 = vmatpush.msra.mxu0 %v5907
    %6176 = vmatpush.msra.mxu0 %v5899
    %6177 = vmatpush.msra.mxu0 %v5891
    %6178 = vmatpush.msra.mxu0 %v5883
    %6179 = vmatpush.msra.mxu0 %v5875
    %6180 = vmatpush.msra.mxu0 %v5867
    %6181 = vmatpush.msra.mxu0 %v5859
    %6182 = vmatpush.msra.mxu0 %v5851
    %6183 = vmatpush.msra.mxu0 %v5843
    %6184 = vmatpush.msra.mxu0 %v5835
    %6185 = vmatpush.msra.mxu0 %v5827
    %6186 = vmatpush.msra.mxu0 %v5819
    %6187 = vmatpush.msra.mxu0 %v5811
    %6188 = vmatpush.msra.mxu0 %v5803
    %6189 = vmatpush.msra.mxu0 %v5795
    %6190 = vmatmul.f32.gmra.mxu0 %v6050
    %v6191 = vpop.f32.mrf.mxu0
    %v6192 = vadd.f32 0.0, %v6191
    %6193 = vdwg.mxu0
    %6194 = vmatpush.msra.mxu0 %v6043
    %6195 = vmatpush.msra.mxu0 %v6035
    %6196 = vmatpush.msra.mxu0 %v6027
    %6197 = vmatpush.msra.mxu0 %v6019
    %6198 = vmatpush.msra.mxu0 %v6011
    %6199 = vmatpush.msra.mxu0 %v6003
    %6200 = vmatpush.msra.mxu0 %v5995
    %6201 = vmatpush.msra.mxu0 %v5987
    %6202 = vmatpush.msra.mxu0 %v5979
    %6203 = vmatpush.msra.mxu0 %v5971
    %6204 = vmatpush.msra.mxu0 %v5963
    %6205 = vmatpush.msra.mxu0 %v5955
    %6206 = vmatpush.msra.mxu0 %v5947
    %6207 = vmatpush.msra.mxu0 %v5939
    %6208 = vmatpush.msra.mxu0 %v5931
    %6209 = vmatpush.msra.mxu0 %v5923
    %6210 = vmatmul.f32.gmra.mxu0 %v6051
    %v6211 = vpop.f32.mrf.mxu0
    %v6212 = vadd.f32 %v6192, %v6211
    %6213 = vdwg.mxu0
    %6214 = vmatpush.msra.mxu0 %v5916
    %6215 = vmatpush.msra.mxu0 %v5908
    %6216 = vmatpush.msra.mxu0 %v5900
    %6217 = vmatpush.msra.mxu0 %v5892
    %6218 = vmatpush.msra.mxu0 %v5884
    %6219 = vmatpush.msra.mxu0 %v5876
    %6220 = vmatpush.msra.mxu0 %v5868
    %6221 = vmatpush.msra.mxu0 %v5860
    %6222 = vmatpush.msra.mxu0 %v5852
    %6223 = vmatpush.msra.mxu0 %v5844
    %6224 = vmatpush.msra.mxu0 %v5836
    %6225 = vmatpush.msra.mxu0 %v5828
    %6226 = vmatpush.msra.mxu0 %v5820
    %6227 = vmatpush.msra.mxu0 %v5812
    %6228 = vmatpush.msra.mxu0 %v5804
    %6229 = vmatpush.msra.mxu0 %v5796
    %6230 = vmatmul.f32.gmra.mxu0 %v6050
    %v6231 = vpop.f32.mrf.mxu0
    %v6232 = vadd.f32 0.0, %v6231
    %6233 = vdwg.mxu0
    %6234 = vmatpush.msra.mxu0 %v6044
    %6235 = vmatpush.msra.mxu0 %v6036
    %6236 = vmatpush.msra.mxu0 %v6028
    %6237 = vmatpush.msra.mxu0 %v6020
    %6238 = vmatpush.msra.mxu0 %v6012
    %6239 = vmatpush.msra.mxu0 %v6004
    %6240 = vmatpush.msra.mxu0 %v5996
    %6241 = vmatpush.msra.mxu0 %v5988
    %6242 = vmatpush.msra.mxu0 %v5980
    %6243 = vmatpush.msra.mxu0 %v5972
    %6244 = vmatpush.msra.mxu0 %v5964
    %6245 = vmatpush.msra.mxu0 %v5956
    %6246 = vmatpush.msra.mxu0 %v5948
    %6247 = vmatpush.msra.mxu0 %v5940
    %6248 = vmatpush.msra.mxu0 %v5932
    %6249 = vmatpush.msra.mxu0 %v5924
    %6250 = vmatmul.f32.gmra.mxu0 %v6051
    %v6251 = vpop.f32.mrf.mxu0
    %v6252 = vadd.f32 %v6232, %v6251
    %6253 = vdwg.mxu0
    %6254 = vmatpush.msra.mxu0 %v5917
    %6255 = vmatpush.msra.mxu0 %v5909
    %6256 = vmatpush.msra.mxu0 %v5901
    %6257 = vmatpush.msra.mxu0 %v5893
    %6258 = vmatpush.msra.mxu0 %v5885
    %6259 = vmatpush.msra.mxu0 %v5877
    %6260 = vmatpush.msra.mxu0 %v5869
    %6261 = vmatpush.msra.mxu0 %v5861
    %6262 = vmatpush.msra.mxu0 %v5853
    %6263 = vmatpush.msra.mxu0 %v5845
    %6264 = vmatpush.msra.mxu0 %v5837
    %6265 = vmatpush.msra.mxu0 %v5829
    %6266 = vmatpush.msra.mxu0 %v5821
    %6267 = vmatpush.msra.mxu0 %v5813
    %6268 = vmatpush.msra.mxu0 %v5805
    %6269 = vmatpush.msra.mxu0 %v5797
    %6270 = vmatmul.f32.gmra.mxu0 %v6050
    %v6271 = vpop.f32.mrf.mxu0
    %v6272 = vadd.f32 0.0, %v6271
    %6273 = vdwg.mxu0
    %6274 = vmatpush.msra.mxu0 %v6045
    %6275 = vmatpush.msra.mxu0 %v6037
    %6276 = vmatpush.msra.mxu0 %v6029
    %6277 = vmatpush.msra.mxu0 %v6021
    %6278 = vmatpush.msra.mxu0 %v6013
    %6279 = vmatpush.msra.mxu0 %v6005
    %6280 = vmatpush.msra.mxu0 %v5997
    %6281 = vmatpush.msra.mxu0 %v5989
    %6282 = vmatpush.msra.mxu0 %v5981
    %6283 = vmatpush.msra.mxu0 %v5973
    %6284 = vmatpush.msra.mxu0 %v5965
    %6285 = vmatpush.msra.mxu0 %v5957
    %6286 = vmatpush.msra.mxu0 %v5949
    %6287 = vmatpush.msra.mxu0 %v5941
    %6288 = vmatpush.msra.mxu0 %v5933
    %6289 = vmatpush.msra.mxu0 %v5925
    %6290 = vmatmul.f32.gmra.mxu0 %v6051
    %v6291 = vpop.f32.mrf.mxu0
    %v6292 = vadd.f32 %v6272, %v6291
    %6293 = vdwg.mxu0
    %6294 = vmatpush.msra.mxu0 %v5918
    %6295 = vmatpush.msra.mxu0 %v5910
    %6296 = vmatpush.msra.mxu0 %v5902
    %6297 = vmatpush.msra.mxu0 %v5894
    %6298 = vmatpush.msra.mxu0 %v5886
    %6299 = vmatpush.msra.mxu0 %v5878
    %6300 = vmatpush.msra.mxu0 %v5870
    %6301 = vmatpush.msra.mxu0 %v5862
    %6302 = vmatpush.msra.mxu0 %v5854
    %6303 = vmatpush.msra.mxu0 %v5846
    %6304 = vmatpush.msra.mxu0 %v5838
    %6305 = vmatpush.msra.mxu0 %v5830
    %6306 = vmatpush.msra.mxu0 %v5822
    %6307 = vmatpush.msra.mxu0 %v5814
    %6308 = vmatpush.msra.mxu0 %v5806
    %6309 = vmatpush.msra.mxu0 %v5798
    %6310 = vmatmul.f32.gmra.mxu0 %v6050
    %v6311 = vpop.f32.mrf.mxu0
    %v6312 = vadd.f32 0.0, %v6311
    %6313 = vdwg.mxu0
    %6314 = vmatpush.msra.mxu0 %v6046
    %6315 = vmatpush.msra.mxu0 %v6038
    %6316 = vmatpush.msra.mxu0 %v6030
    %6317 = vmatpush.msra.mxu0 %v6022
    %6318 = vmatpush.msra.mxu0 %v6014
    %6319 = vmatpush.msra.mxu0 %v6006
    %6320 = vmatpush.msra.mxu0 %v5998
    %6321 = vmatpush.msra.mxu0 %v5990
    %6322 = vmatpush.msra.mxu0 %v5982
    %6323 = vmatpush.msra.mxu0 %v5974
    %6324 = vmatpush.msra.mxu0 %v5966
    %6325 = vmatpush.msra.mxu0 %v5958
    %6326 = vmatpush.msra.mxu0 %v5950
    %6327 = vmatpush.msra.mxu0 %v5942
    %6328 = vmatpush.msra.mxu0 %v5934
    %6329 = vmatpush.msra.mxu0 %v5926
    %6330 = vmatmul.f32.gmra.mxu0 %v6051
    %v6331 = vpop.f32.mrf.mxu0
    %v6332 = vadd.f32 %v6312, %v6331
    %6333 = vdwg.mxu0
    %6334 = vmatpush.msra.mxu0 %v5919
    %6335 = vmatpush.msra.mxu0 %v5911
    %6336 = vmatpush.msra.mxu0 %v5903
    %6337 = vmatpush.msra.mxu0 %v5895
    %6338 = vmatpush.msra.mxu0 %v5887
    %6339 = vmatpush.msra.mxu0 %v5879
    %6340 = vmatpush.msra.mxu0 %v5871
    %6341 = vmatpush.msra.mxu0 %v5863
    %6342 = vmatpush.msra.mxu0 %v5855
    %6343 = vmatpush.msra.mxu0 %v5847
    %6344 = vmatpush.msra.mxu0 %v5839
    %6345 = vmatpush.msra.mxu0 %v5831
    %6346 = vmatpush.msra.mxu0 %v5823
    %6347 = vmatpush.msra.mxu0 %v5815
    %6348 = vmatpush.msra.mxu0 %v5807
    %6349 = vmatpush.msra.mxu0 %v5799
    %6350 = vmatmul.f32.gmra.mxu0 %v6050
    %v6351 = vpop.f32.mrf.mxu0
    %v6352 = vadd.f32 0.0, %v6351
    %6353 = vdwg.mxu0
    %6354 = vmatpush.msra.mxu0 %v6047
    %6355 = vmatpush.msra.mxu0 %v6039
    %6356 = vmatpush.msra.mxu0 %v6031
    %6357 = vmatpush.msra.mxu0 %v6023
    %6358 = vmatpush.msra.mxu0 %v6015
    %6359 = vmatpush.msra.mxu0 %v6007
    %6360 = vmatpush.msra.mxu0 %v5999
    %6361 = vmatpush.msra.mxu0 %v5991
    %6362 = vmatpush.msra.mxu0 %v5983
    %6363 = vmatpush.msra.mxu0 %v5975
    %6364 = vmatpush.msra.mxu0 %v5967
    %6365 = vmatpush.msra.mxu0 %v5959
    %6366 = vmatpush.msra.mxu0 %v5951
    %6367 = vmatpush.msra.mxu0 %v5943
    %6368 = vmatpush.msra.mxu0 %v5935
    %6369 = vmatpush.msra.mxu0 %v5927
    %6370 = vmatmul.f32.gmra.mxu0 %v6051
    %v6371 = vpop.f32.mrf.mxu0
    %v6372 = vadd.f32 %v6352, %v6371
    %6373 = vdwg.mxu0
    %v6374 = vld [vmem:[%s522] sm:$0xff]
    %v6375 = vld [vmem:[#allocation2 + $0x8] sm:$0xff]
    %v6376 = vld [vmem:[#allocation4] sm:$0xf]
    %6378 = vst [vmem:[#allocation1] ss:$4 sm:$0xff] %v6374
    %v6379 = vld.sshfl [vmem:[#allocation1] sm:$0xff pattern:$0x73625140]
    %v6380 = vld.sshfl [vmem:[#allocation1 + $0x8] sm:$0xff pattern:$0x73625140]
    %v6381 = vld.sshfl [vmem:[#allocation1 + $0x10] sm:$0xff pattern:$0x73625140]
    %v6382 = vld.sshfl [vmem:[#allocation1 + $0x18] sm:$0xff pattern:$0x73625140]
    %v6387 = vadd.f32 %v6092, %v6379
    %v6388 = vadd.f32 %v6132, %v6380
    %v6389 = vadd.f32 %v6172, %v6381
    %v6390 = vadd.f32 %v6212, %v6382
    %v6391 = vxor.u32 %v6387, 2147483648
    %v6392 = vmul.f32 %v6391, 1.442695
    %v6393 = vpow.pop %v6392
    %v6394 = vadd.f32 %v6393, 1.0
    %v6395 = vrcp.pop %v6394
    %v6396 = vmul.f32 %v6394, %v6395
    %v6397 = vsub.f32 1.0, %v6396
    %v6398 = vmul.f32 %v6395, %v6397
    %v6399 = vadd.f32 %v6395, %v6398
    %vm6400 = vweird.f32 %v6394
    %vm6401 = vweird.f32 %v6395
    %vm6402 = vmor %vm6400, %vm6401
    %v6403 = vsel %vm6402, %v6395, %v6399
    %v6404 = vand.u32 2147483647, %v6394
    %vm6405 = vcmp.eq.f32.partialorder %v6404, 8.507059e+37
    %v6406 = vand.u32 %v6394, 2147483648
    %v6407 = vor.u32 1.1754944e-38, %v6406
    %v6408 = vsel %vm6405, %v6407, %v6403
    %v6409 = vmul.f32 1.0, %v6408
    %v6410 = vxor.u32 %v6388, 2147483648
    %v6411 = vmul.f32 %v6410, 1.442695
    %v6412 = vpow.pop %v6411
    %v6413 = vadd.f32 %v6412, 1.0
    %v6414 = vrcp.pop %v6413
    %v6415 = vmul.f32 %v6413, %v6414
    %v6416 = vsub.f32 1.0, %v6415
    %v6417 = vmul.f32 %v6414, %v6416
    %v6418 = vadd.f32 %v6414, %v6417
    %vm6419 = vweird.f32 %v6413
    %vm6420 = vweird.f32 %v6414
    %vm6421 = vmor %vm6419, %vm6420
    %v6422 = vsel %vm6421, %v6414, %v6418
    %v6423 = vand.u32 2147483647, %v6413
    %vm6424 = vcmp.eq.f32.partialorder %v6423, 8.507059e+37
    %v6425 = vand.u32 %v6413, 2147483648
    %v6426 = vor.u32 1.1754944e-38, %v6425
    %v6427 = vsel %vm6424, %v6426, %v6422
    %v6428 = vmul.f32 1.0, %v6427
    %v6429 = vtanh.pop %v6389
    %v6430 = vxor.u32 %v6390, 2147483648
    %v6431 = vmul.f32 %v6430, 1.442695
    %v6432 = vpow.pop %v6431
    %v6433 = vadd.f32 %v6432, 1.0
    %v6434 = vrcp.pop %v6433
    %v6435 = vmul.f32 %v6433, %v6434
    %v6436 = vsub.f32 1.0, %v6435
    %v6437 = vmul.f32 %v6434, %v6436
    %v6438 = vadd.f32 %v6434, %v6437
    %vm6439 = vweird.f32 %v6433
    %vm6440 = vweird.f32 %v6434
    %vm6441 = vmor %vm6439, %vm6440
    %v6442 = vsel %vm6441, %v6434, %v6438
    %v6443 = vand.u32 2147483647, %v6433
    %vm6444 = vcmp.eq.f32.partialorder %v6443, 8.507059e+37
    %v6445 = vand.u32 %v6433, 2147483648
    %v6446 = vor.u32 1.1754944e-38, %v6445
    %v6447 = vsel %vm6444, %v6446, %v6442
    %v6448 = vmul.f32 1.0, %v6447
    %v6449 = vmul.f32 %v6428, %v6376
    %v6450 = vmul.f32 %v6409, %v6429
    %v6451 = vadd.f32 %v6449, %v6450
    %v6452 = vtanh.pop %v6451
    %v6453 = vmul.f32 %v6448, %v6452
    %6455 = vst [vmem:[#allocation1] ss:$4 sm:$0xff] %v6375
    %v6456 = vld.sshfl [vmem:[#allocation1] sm:$0xff pattern:$0x73625140]
    %v6457 = vld.sshfl [vmem:[#allocation1 + $0x8] sm:$0xff pattern:$0x73625140]
    %v6458 = vld.sshfl [vmem:[#allocation1 + $0x10] sm:$0xff pattern:$0x73625140]
    %v6459 = vld.sshfl [vmem:[#allocation1 + $0x18] sm:$0xff pattern:$0x73625140]
    %v6464 = vadd.f32 %v6252, %v6456
    %v6465 = vadd.f32 %v6292, %v6457
    %v6466 = vadd.f32 %v6332, %v6458
    %v6467 = vadd.f32 %v6372, %v6459
    %v6468 = vxor.u32 %v6464, 2147483648
    %v6469 = vmul.f32 %v6468, 1.442695
    %v6470 = vpow.pop %v6469
    %v6471 = vadd.f32 %v6470, 1.0
    %v6472 = vrcp.pop %v6471
    %v6473 = vmul.f32 %v6471, %v6472
    %v6474 = vsub.f32 1.0, %v6473
    %v6475 = vmul.f32 %v6472, %v6474
    %v6476 = vadd.f32 %v6472, %v6475
    %vm6477 = vweird.f32 %v6471
    %vm6478 = vweird.f32 %v6472
    %vm6479 = vmor %vm6477, %vm6478
    %v6480 = vsel %vm6479, %v6472, %v6476
    %v6481 = vand.u32 2147483647, %v6471
    %vm6482 = vcmp.eq.f32.partialorder %v6481, 8.507059e+37
    %v6483 = vand.u32 %v6471, 2147483648
    %v6484 = vor.u32 1.1754944e-38, %v6483
    %v6485 = vsel %vm6482, %v6484, %v6480
    %v6486 = vmul.f32 1.0, %v6485
    %v6487 = vxor.u32 %v6465, 2147483648
    %v6488 = vmul.f32 %v6487, 1.442695
    %v6489 = vpow.pop %v6488
    %v6490 = vadd.f32 %v6489, 1.0
    %v6491 = vrcp.pop %v6490
    %v6492 = vmul.f32 %v6490, %v6491
    %v6493 = vsub.f32 1.0, %v6492
    %v6494 = vmul.f32 %v6491, %v6493
    %v6495 = vadd.f32 %v6491, %v6494
    %vm6496 = vweird.f32 %v6490
    %vm6497 = vweird.f32 %v6491
    %vm6498 = vmor %vm6496, %vm6497
    %v6499 = vsel %vm6498, %v6491, %v6495
    %v6500 = vand.u32 2147483647, %v6490
    %vm6501 = vcmp.eq.f32.partialorder %v6500, 8.507059e+37
    %v6502 = vand.u32 %v6490, 2147483648
    %v6503 = vor.u32 1.1754944e-38, %v6502
    %v6504 = vsel %vm6501, %v6503, %v6499
    %v6505 = vmul.f32 1.0, %v6504
    %v6506 = vtanh.pop %v6466
    %v6507 = vxor.u32 %v6467, 2147483648
    %v6508 = vmul.f32 %v6507, 1.442695
    %v6509 = vpow.pop %v6508
    %v6510 = vadd.f32 %v6509, 1.0
    %v6511 = vrcp.pop %v6510
    %v6512 = vmul.f32 %v6510, %v6511
    %v6513 = vsub.f32 1.0, %v6512
    %v6514 = vmul.f32 %v6511, %v6513
    %v6515 = vadd.f32 %v6511, %v6514
    %vm6516 = vweird.f32 %v6510
    %vm6517 = vweird.f32 %v6511
    %vm6518 = vmor %vm6516, %vm6517
    %v6519 = vsel %vm6518, %v6511, %v6515
    %v6520 = vand.u32 2147483647, %v6510
    %vm6521 = vcmp.eq.f32.partialorder %v6520, 8.507059e+37
    %v6522 = vand.u32 %v6510, 2147483648
    %v6523 = vor.u32 1.1754944e-38, %v6522
    %v6524 = vsel %vm6521, %v6523, %v6519
    %v6525 = vmul.f32 1.0, %v6524
    %6527 = vst [vmem:[#allocation1] ss:$4 sm:$0xff] %v6376
    %v6528 = vld.sshfl [vmem:[#allocation1 + $0x8] sm:$0xff pattern:$0x73625140]
    %v6530 = vmul.f32 %v6505, %v6528
    %v6531 = vmul.f32 %v6486, %v6506
    %v6532 = vadd.f32 %v6530, %v6531
    %v6533 = vtanh.pop %v6532
    %v6534 = vmul.f32 %v6525, %v6533
    %6535 = vst [vmem:[#allocation3] sm:$0x3] %v6453
    %6536 = vst [vmem:[#allocation3 + $0x2] sm:$0x3] %v6534
    %6537 = vst [vmem:[#allocation4] sm:$0x3] %v6451
    %6538 = vst [vmem:[#allocation4 + $0x2] sm:$0x3] %v6532
    %s6539 = scalar_lea.vmem %s4, 14
    %6540 = vst.msk [vmem:[%s6539] sm:$0x3] %vm1275, %v6453
    %6541 = vst.msk [vmem:[%s5] sm:$0x3] %vm1275, %v6534
    // Predicated region
    $region34: #{bidirectional_lstm.1} parent=1 // pred_check
      _
    $region35: #{bidirectional_lstm.1} parent=1 // pred_check_branch
      %6543 = sbr.rel (0) target = $region37
    $region36: #{bidirectional_lstm.1} parent=1 // pred_region
      _
    $region37: #{bidirectional_lstm.1} parent=1 // pred_fallthru
      _
    // Predicated region
    $region38: #{bidirectional_lstm.1} parent=1 // pred_check
      _
    $region39: #{bidirectional_lstm.1} parent=1 // pred_check_branch
      %6545 = sbr.rel (0) target = $region41
    $region40: #{bidirectional_lstm.1} parent=1 // pred_region
      _
    $region41: #{bidirectional_lstm.1} parent=1 // pred_fallthru
      _
    // Predicated region
    $region42: #{bidirectional_lstm.1} parent=1 // pred_check
      _
    $region43: #{bidirectional_lstm.1} parent=1 // pred_check_branch
      %6547 = sbr.rel (0) target = $region45
    $region44: #{bidirectional_lstm.1} parent=1 // pred_region
      _
    $region45: #{bidirectional_lstm.1} parent=1 // pred_fallthru
      _
    // Predicated region
    $region46: #{bidirectional_lstm.1} parent=1 // pred_check
      _
    $region47: #{bidirectional_lstm.1} parent=1 // pred_check_branch
      %6549 = sbr.rel (0) target = $region49
    $region48: #{bidirectional_lstm.1} parent=1 // pred_region
      _
    $region49: #{bidirectional_lstm.1} parent=1 // pred_fallthru
      _
    %6550 = vsyncpa [#allocation6], 1
    %6551 = vsyncpa [#allocation8], 1
    %6552 = vsyncpa [#allocation11], 1

</llo_original>
